<compile_context>
chip_gen: v7x
topology: tpu7x:2x2x1
jax: 0.10.0
libtpu: 0.0.40
codegen_flags: <defaults>
</compile_context>

<pallas_src>
import functools

import jax
import jax.numpy as jnp
from jax.experimental import pallas as pl
from jax.experimental.pallas import tpu as pltpu


# ---------------------------------------------------------------------------
# In-kernel helpers (operate on (H, W, C) VMEM values)
# ---------------------------------------------------------------------------
def _nxt_row(a):  # a[m+1, n, :], zeros past the last row
    return jnp.concatenate([a[1:], jnp.zeros_like(a[:1])], axis=0)


def _prv_row(a):  # a[m-1, n, :], zeros before the first row
    return jnp.concatenate([jnp.zeros_like(a[:1]), a[:-1]], axis=0)


def _nxt_col(a):  # a[m, n+1, :], zeros past the last column
    return jnp.concatenate([a[:, 1:], jnp.zeros_like(a[:, :1])], axis=1)


def _prv_col(a):  # a[m, n-1, :], zeros before the first column
    return jnp.concatenate([jnp.zeros_like(a[:, :1]), a[:, :-1]], axis=1)


def _nxt_row_clamp(a):  # a[min(m+1, H-1), n, :]
    return jnp.concatenate([a[1:], a[-1:]], axis=0)


def _prv_row_clamp(a):  # a[max(m-1, 0), n, :]
    return jnp.concatenate([a[:1], a[:-1]], axis=0)


def _nxt_col_clamp(a):
    return jnp.concatenate([a[:, 1:], a[:, -1:]], axis=1)


def _prv_col_clamp(a):
    return jnp.concatenate([a[:, :1], a[:, :-1]], axis=1)


def _matmul_affine(a3d, w, shift, relu=True):
    """relu((a3d.reshape(HW, K*C) @ w) + shift) as (H, W, Cout)."""
    h, ww, kc = a3d.shape
    acc = jnp.dot(a3d.reshape(h * ww, kc), w,
                  preferred_element_type=jnp.float32)
    acc = (acc + shift).reshape(h, ww, -1)
    if relu:
        acc = jnp.maximum(acc, 0.0)
    return acc


_PARITIES = ((0, 0), (0, 1), (1, 0), (1, 1))


def _conv4_affine(ins, w, shift, residuals=None, relu=True):
    """One fused MXU matmul for all 4 parity planes of a non_bottleneck conv.

    ins: dict {(py, px): (H, W, K*C)} sharing the same weight w (K*C, C).
    Returns [[p00, p01], [p10, p11]] of (H, W, C).
    """
    h, ww, kc = ins[_PARITIES[0]].shape
    hw = h * ww
    a = jnp.concatenate([ins[q].reshape(hw, kc) for q in _PARITIES], axis=0)
    acc = jnp.dot(a, w, preferred_element_type=jnp.float32) + shift
    out = [[None, None], [None, None]]
    for i, (py, px) in enumerate(_PARITIES):
        o = acc[i * hw:(i + 1) * hw].reshape(h, ww, -1)
        if residuals is not None:
            o = o + residuals[py][px]
        if relu:
            o = jnp.maximum(o, 0.0)
        out[py][px] = o
    return out


def _shift_inputs_31(p):
    """(3,1)-conv tap gather: rows r-1, r, r+1 of the interleaved 2H map."""
    ins = {}
    for px in (0, 1):
        a, b = p[0][px], p[1][px]
        ins[(0, px)] = jnp.concatenate([_prv_row(b), a, b], axis=-1)
        ins[(1, px)] = jnp.concatenate([a, b, _nxt_row(a)], axis=-1)
    return ins


def _shift_inputs_13(p):
    """(1,3)-conv tap gather: cols c-1, c, c+1 of the interleaved 2W map."""
    ins = {}
    for py in (0, 1):
        a, b = p[py][0], p[py][1]
        ins[(py, 0)] = jnp.concatenate([_prv_col(b), a, b], axis=-1)
        ins[(py, 1)] = jnp.concatenate([a, b, _nxt_col(a)], axis=-1)
    return ins


# ---------------------------------------------------------------------------
# The fused Pallas kernel (one batch element per grid step)
# ---------------------------------------------------------------------------
def _upsampler_kernel(x_ref, dwee_ref, dweo_ref, dwoe_ref, dwoo_ref, dsh_ref,
                      iw_ref, ish_ref, fw_ref, fsh_ref, o_ref):
    x = x_ref[0]                       # (H, W, Cin), f32
    dsh = dsh_ref[...]                 # (1, Cout)

    # --- ConvTranspose2d(3, stride=2, pad=1, out_pad=1) + BN + ReLU --------
    # Sub-pixel decomposition: output pixel (2m+py, 2n+px) only touches taps
    # with matching parity, so each parity plane is a tiny regular conv.
    x_r = _nxt_row(x)                  # x[m+1, n]
    x_c = _nxt_col(x)                  # x[m, n+1]
    x_rc = _nxt_col(x_r)               # x[m+1, n+1]
    p = [[None, None], [None, None]]   # p[py][px] -> (H, W, Cout) plane
    p[0][0] = _matmul_affine(x, dwee_ref[...], dsh)
    p[0][1] = _matmul_affine(jnp.concatenate([x_c, x], axis=-1),
                             dweo_ref[...], dsh)
    p[1][0] = _matmul_affine(jnp.concatenate([x_r, x], axis=-1),
                             dwoe_ref[...], dsh)
    p[1][1] = _matmul_affine(jnp.concatenate([x_rc, x_r, x_c, x], axis=-1),
                             dwoo_ref[...], dsh)

    # --- two non_bottleneck_1d blocks, entirely in VMEM (parity space) -----
    for f in range(2):
        res = [[p[0][0], p[0][1]], [p[1][0], p[1][1]]]   # residual = block in
        for s in range(4):
            w = fw_ref[f, s]           # (3*C, C), BN scale pre-folded
            sh = fsh_ref[f, s]         # (1, C)
            last = s == 3
            ins = _shift_inputs_31(p) if s % 2 == 0 else _shift_inputs_13(p)
            p = _conv4_affine(ins, w, sh,
                              residuals=res if last else None, relu=True)

    # --- interpolate branch: 1x1 conv + BN + ReLU, bilinear x2 (fixed taps,
    #     align_corners=False, edge clamp), fused with the final add ---------
    y = _matmul_affine(x, iw_ref[...], ish_ref[...])      # (H, W, Cout)
    ry = (0.25 * _prv_row_clamp(y) + 0.75 * y,            # output rows 2m
          0.75 * y + 0.25 * _nxt_row_clamp(y))            # output rows 2m+1
    for py in (0, 1):
        i_even = 0.25 * _prv_col_clamp(ry[py]) + 0.75 * ry[py]   # cols 2n
        i_odd = 0.75 * ry[py] + 0.25 * _nxt_col_clamp(ry[py])    # cols 2n+1
        # (W, 2*Cout) is linearly identical to (2W, Cout): concat along lanes
        # interleaves the column parities "for free".
        row = jnp.concatenate([p[py][0] + i_even, p[py][1] + i_odd], axis=-1)
        o_ref[0, :, py, :, :] = row.astype(o_ref.dtype)


# ---------------------------------------------------------------------------
# Host wrapper
# ---------------------------------------------------------------------------
def upsampler_block_fwd(x_nhwc, kp, up_h, up_w):
    """x_nhwc: (N, H, W, Cin) -> (N, 2H, 2W, Cout) (NHWC, f32)."""
    N, H, W, Cin = x_nhwc.shape
    Cout = kp["dsh"].shape[-1]
    # The final add requires the interpolation target to match the transposed
    # conv output resolution (2H, 2W).
    assert up_h == 2 * H and up_w == 2 * W

    out = pl.pallas_call(
        _upsampler_kernel,
        out_shape=jax.ShapeDtypeStruct((N, H, 2, W, 2 * Cout), jnp.float32),
        grid=(N,),
        in_specs=[
            pl.BlockSpec((1, H, W, Cin), lambda n: (n, 0, 0, 0)),
            pl.BlockSpec(kp["dw_ee"].shape, lambda n: (0, 0)),
            pl.BlockSpec(kp["dw_eo"].shape, lambda n: (0, 0)),
            pl.BlockSpec(kp["dw_oe"].shape, lambda n: (0, 0)),
            pl.BlockSpec(kp["dw_oo"].shape, lambda n: (0, 0)),
            pl.BlockSpec(kp["dsh"].shape, lambda n: (0, 0)),
            pl.BlockSpec(kp["iw"].shape, lambda n: (0, 0)),
            pl.BlockSpec(kp["ish"].shape, lambda n: (0, 0)),
            pl.BlockSpec(kp["fw"].shape, lambda n: (0, 0, 0, 0)),
            pl.BlockSpec(kp["fsh"].shape, lambda n: (0, 0, 0, 0)),
        ],
        out_specs=pl.BlockSpec((1, H, 2, W, 2 * Cout),
                               lambda n: (n, 0, 0, 0, 0)),
        compiler_params=pltpu.CompilerParams(
            dimension_semantics=("parallel",)),
    )(x_nhwc, kp["dw_ee"], kp["dw_eo"], kp["dw_oe"], kp["dw_oo"], kp["dsh"],
      kp["iw"], kp["ish"], kp["fw"], kp["fsh"])

    # (N, H, 2, W, 2*Cout) and (N, 2H, 2W, Cout) share the same linear layout,
    # so this reshape is metadata-only (no extra HBM pass).
    return out.reshape(N, 2 * H, 2 * W, Cout)


# ---------------------------------------------------------------------------
# Parameter init (PyTorch layouts) and host-side packing / BN folding
# ---------------------------------------------------------------------------
_BN_EPS = 1e-3  # matches nn.BatchNorm2d(..., eps=0.001) in the reference


def _nrm(key, shape, s=0.1):
    return s * jax.random.normal(key, shape, jnp.float32)


def _bn_init(key, c):
    k1, k2, k3, k4 = jax.random.split(key, 4)
    return dict(w=1.0 + _nrm(k1, (c,)), b=_nrm(k2, (c,)), rm=_nrm(k3, (c,)),
                rv=0.5 + jax.random.uniform(k4, (c,), jnp.float32))


def init_non_bottleneck_params(key, c):
    ks = jax.random.split(key, 10)
    return dict(
        w31_1=_nrm(ks[0], (c, c, 3, 1)), b31_1=_nrm(ks[1], (c,)),
        w13_1=_nrm(ks[2], (c, c, 1, 3)), b13_1=_nrm(ks[3], (c,)),
        bn1=_bn_init(ks[4], c),
        w31_2=_nrm(ks[5], (c, c, 3, 1)), b31_2=_nrm(ks[6], (c,)),
        w13_2=_nrm(ks[7], (c, c, 1, 3)), b13_2=_nrm(ks[8], (c,)),
        bn2=_bn_init(ks[9], c),
    )


def init_upsampler_params(key, cin, cout):
    ks = jax.random.split(key, 7)
    return dict(
        deconv_w=_nrm(ks[0], (cin, cout, 3, 3)),   # ConvTranspose2d layout
        deconv_b=_nrm(ks[1], (cout,)),
        bn=_bn_init(ks[2], cout),
        iconv_w=_nrm(ks[3], (cout, cin, 1, 1)),    # Conv2d 1x1, bias=False
        ibn=_bn_init(ks[4], cout),
        follow0=init_non_bottleneck_params(ks[5], cout),
        follow1=init_non_bottleneck_params(ks[6], cout),
    )


def _fold_bn(bn, conv_bias=None, eps=_BN_EPS):
    scale = bn["w"] / jnp.sqrt(bn["rv"] + eps)
    bias = conv_bias if conv_bias is not None else jnp.zeros_like(bn["rm"])
    shift = bn["b"] + (bias - bn["rm"]) * scale
    return scale, shift


def pack_params(p):
    """Fold BN (eval mode) into weights and pack into the kernel's layout."""
    cout = p["deconv_b"].shape[0]

    # transposed conv -> sub-pixel taps, BN scale folded into the weights
    wt = p["deconv_w"]                                     # (Cin, Cout, 3, 3)
    sc, sh = _fold_bn(p["bn"], p["deconv_b"])

    def dcat(taps):
        return jnp.concatenate([wt[:, :, ky, kx] for ky, kx in taps],
                               axis=0) * sc[None, :]

    dw_ee = dcat([(1, 1)])                          # input: [x[m,n]]
    dw_eo = dcat([(1, 0), (1, 2)])                  # [x[m,n+1], x[m,n]]
    dw_oe = dcat([(0, 1), (2, 1)])                  # [x[m+1,n], x[m,n]]
    dw_oo = dcat([(0, 0), (0, 2), (2, 0), (2, 2)])  # [x[m+1,n+1], x[m+1,n],
                                                    #  x[m,n+1], x[m,n]]

    # interpolate branch: 1x1 conv (no bias) + BN
    isc, ish = _fold_bn(p["ibn"], None)
    iw = jnp.transpose(p["iconv_w"][:, :, 0, 0]) * isc[None, :]

    def follow_pack(fp):
        def cat31(w):   # (C, C, 3, 1) -> (3C, C), tap order [r-1, r, r+1]
            return jnp.concatenate(
                [jnp.transpose(w[:, :, k, 0]) for k in range(3)], axis=0)

        def cat13(w):   # (C, C, 1, 3) -> (3C, C), tap order [c-1, c, c+1]
            return jnp.concatenate(
                [jnp.transpose(w[:, :, 0, k]) for k in range(3)], axis=0)

        sc1, sh1 = _fold_bn(fp["bn1"], fp["b13_1"])
        sc2, sh2 = _fold_bn(fp["bn2"], fp["b13_2"])
        ws = [cat31(fp["w31_1"]),
              cat13(fp["w13_1"]) * sc1[None, :],
              cat31(fp["w31_2"]),
              cat13(fp["w13_2"]) * sc2[None, :]]
        shs = [fp["b31_1"], sh1, fp["b31_2"], sh2]
        return (jnp.stack(ws, axis=0),
                jnp.stack([s.reshape(1, cout) for s in shs], axis=0))

    fw0, fs0 = follow_pack(p["follow0"])
    fw1, fs1 = follow_pack(p["follow1"])

    return dict(
        dw_ee=dw_ee, dw_eo=dw_eo, dw_oe=dw_oe, dw_oo=dw_oo,
        dsh=sh.reshape(1, cout),
        iw=iw, ish=ish.reshape(1, cout),
        fw=jnp.stack([fw0, fw1], axis=0),      # (2, 4, 3*Cout, Cout)
        fsh=jnp.stack([fs0, fs1], axis=0),     # (2, 4, 1, Cout)
    )


# ---------------------------------------------------------------------------
# Pure-JAX (XLA) reference of the PyTorch module, for the correctness check
# ---------------------------------------------------------------------------
def _bn_ref(x, bn):
    sc = bn["w"] / jnp.sqrt(bn["rv"] + _BN_EPS)
    return ((x - bn["rm"][None, :, None, None]) * sc[None, :, None, None]
            + bn["b"][None, :, None, None])


def _conv_ref(x, w, b=None, padding=((0, 0), (0, 0)), lhs_dilation=None):
    out = jax.lax.conv_general_dilated(
        x, w, (1, 1), padding, lhs_dilation=lhs_dilation,
        dimension_numbers=("NCHW", "OIHW", "NCHW"),
        precision=jax.lax.Precision.HIGHEST)
    if b is not None:
        out = out + b[None, :, None, None]
    return out


def _non_bottleneck_ref(x, p):
    out = jax.nn.relu(_conv_ref(x, p["w31_1"], p["b31_1"], ((1, 1), (0, 0))))
    out = jax.nn.relu(_bn_ref(
        _conv_ref(out, p["w13_1"], p["b13_1"], ((0, 0), (1, 1))), p["bn1"]))
    out = jax.nn.relu(_conv_ref(out, p["w31_2"], p["b31_2"], ((1, 1), (0, 0))))
    out = _bn_ref(_conv_ref(out, p["w13_2"], p["b13_2"], ((0, 0), (1, 1))),
                  p["bn2"])
    return jax.nn.relu(out + x)


def _bilinear_x2_ref(y):
    """F.interpolate(scale 2, mode='bilinear', align_corners=False), NCHW."""
    def taps(n):
        src = jnp.maximum(
            (jnp.arange(2 * n, dtype=jnp.float32) + 0.5) / 2.0 - 0.5, 0.0)
        i0 = jnp.minimum(jnp.floor(src).astype(jnp.int32), n - 1)
        i1 = jnp.minimum(i0 + 1, n - 1)
        lam = src - i0.astype(jnp.float32)
        return i0, i1, lam

    H, W = y.shape[-2:]
    i0, i1, lr = taps(H)
    y = (y[:, :, i0, :] * (1.0 - lr)[None, None, :, None]
         + y[:, :, i1, :] * lr[None, None, :, None])
    j0, j1, lc = taps(W)
    y = (y[:, :, :, j0] * (1.0 - lc)[None, None, None, :]
         + y[:, :, :, j1] * lc[None, None, None, :])
    return y


def upsampler_block_ref(x_nchw, p):
    # ConvTranspose2d(3, s=2, p=1, op=1) == conv of the x2-dilated input with
    # the (channel-transposed, spatially flipped) kernel and padding (1, 2).
    w_conv = jnp.flip(jnp.transpose(p["deconv_w"], (1, 0, 2, 3)), axis=(2, 3))
    out = _conv_ref(x_nchw, w_conv, p["deconv_b"], ((1, 2), (1, 2)),
                    lhs_dilation=(2, 2))
    out = jax.nn.relu(_bn_ref(out, p["bn"]))
    out = _non_bottleneck_ref(out, p["follow0"])
    out = _non_bottleneck_ref(out, p["follow1"])
    itp = jax.nn.relu(_bn_ref(_conv_ref(x_nchw, p["iconv_w"]), p["ibn"]))
    return out + _bilinear_x2_ref(itp)


# ---------------------------------------------------------------------------
if __name__ == "__main__":
    key = jax.random.PRNGKey(0)
    k_x, k_p = jax.random.split(key)

    # small but TPU-friendly shapes (realistic RESA channel counts: 128 -> 64)
    N, CIN, H, W = 2, 128, 8, 8
    COUT, UP_H, UP_W = 64, 16, 16

    x_nchw = jax.random.normal(k_x, (N, CIN, H, W), jnp.float32)
    x_nhwc = jnp.transpose(x_nchw, (0, 2, 3, 1))   # NCHW -> NHWC for kernels

    params = init_upsampler_params(k_p, CIN, COUT)
    kparams = pack_params(params)

    fwd = jax.jit(functools.partial(upsampler_block_fwd, up_h=UP_H, up_w=UP_W))
    out_nhwc = fwd(x_nhwc, kparams)
    out_nchw = jnp.transpose(out_nhwc, (0, 3, 1, 2))   # back to NCHW
    jax.block_until_ready(out_nchw)

    assert out_nchw.shape == (N, COUT, UP_H, UP_W)
    assert bool(jnp.all(jnp.isfinite(out_nchw)))

    # correctness check against a pure-JAX (XLA) reference of the module
    ref_nchw = upsampler_block_ref(x_nchw, params)
    rel_err = float(jnp.max(jnp.abs(out_nchw - ref_nchw))
                    / (jnp.max(jnp.abs(ref_nchw)) + 1e-6))
    assert rel_err < 2e-2, f"mismatch vs reference: rel_err={rel_err}"

    print("KERNEL_OK")
</pallas_src>

<mosaic_0001>
module attributes {stable_mosaic.version = 11 : i64} {
  func.func @_upsampler_kernel(%arg0: i32, %arg1: memref<1x8x8x128xf32, #tpu.memory_space<vmem>>, %arg2: memref<128x64xf32, #tpu.memory_space<vmem>>, %arg3: memref<256x64xf32, #tpu.memory_space<vmem>>, %arg4: memref<256x64xf32, #tpu.memory_space<vmem>>, %arg5: memref<512x64xf32, #tpu.memory_space<vmem>>, %arg6: memref<1x64xf32, #tpu.memory_space<vmem>>, %arg7: memref<128x64xf32, #tpu.memory_space<vmem>>, %arg8: memref<1x64xf32, #tpu.memory_space<vmem>>, %arg9: memref<2x4x192x64xf32, #tpu.memory_space<vmem>>, %arg10: memref<2x4x1x64xf32, #tpu.memory_space<vmem>>, %arg11: memref<1x8x2x8x128xf32, #tpu.memory_space<vmem>>) attributes {dimension_semantics = [#tpu.dimension_semantics<parallel>], iteration_bounds = array<i64: 2>, scalar_prefetch = 0 : i64, scratch_operands = 0 : i64, tpu.core_type = #tpu.core_type<tc>, window_params = [{transform_indices = @transform_0, window_bounds = array<i64: 1, 8, 8, 128>}, {pipeline_mode = #tpu.pipeline_mode<synchronous>, transform_indices = @transform_1, window_bounds = array<i64: 128, 64>}, {pipeline_mode = #tpu.pipeline_mode<synchronous>, transform_indices = @transform_2, window_bounds = array<i64: 256, 64>}, {pipeline_mode = #tpu.pipeline_mode<synchronous>, transform_indices = @transform_3, window_bounds = array<i64: 256, 64>}, {pipeline_mode = #tpu.pipeline_mode<synchronous>, transform_indices = @transform_4, window_bounds = array<i64: 512, 64>}, {pipeline_mode = #tpu.pipeline_mode<synchronous>, transform_indices = @transform_5, window_bounds = array<i64: 1, 64>}, {pipeline_mode = #tpu.pipeline_mode<synchronous>, transform_indices = @transform_6, window_bounds = array<i64: 128, 64>}, {pipeline_mode = #tpu.pipeline_mode<synchronous>, transform_indices = @transform_7, window_bounds = array<i64: 1, 64>}, {pipeline_mode = #tpu.pipeline_mode<synchronous>, transform_indices = @transform_8, window_bounds = array<i64: 2, 4, 192, 64>}, {pipeline_mode = #tpu.pipeline_mode<synchronous>, transform_indices = @transform_9, window_bounds = array<i64: 2, 4, 1, 64>}, {transform_indices = @transform_10, window_bounds = array<i64: 1, 8, 2, 8, 128>}]} {
    %c0 = arith.constant 0 : index
    %c0_0 = arith.constant 0 : index
    %c0_1 = arith.constant 0 : index
    %c0_2 = arith.constant 0 : index
    %0 = vector.load %arg1[%c0, %c0_0, %c0_1, %c0_2] : memref<1x8x8x128xf32, #tpu.memory_space<vmem>>, vector<1x8x8x128xf32>
    %1 = vector.shape_cast %0 : vector<1x8x8x128xf32> to vector<8x8x128xf32>
    %c0_3 = arith.constant 0 : index
    %c0_4 = arith.constant 0 : index
    %2 = vector.load %arg6[%c0_3, %c0_4] : memref<1x64xf32, #tpu.memory_space<vmem>>, vector<1x64xf32>
    %3 = vector.extract_strided_slice %1 {offsets = [1, 0, 0], sizes = [7, 8, 128], strides = [1, 1, 1]} : vector<8x8x128xf32> to vector<7x8x128xf32>
    %cst = arith.constant 0.000000e+00 : f32
    %4 = vector.broadcast %cst : f32 to vector<1x8x128xf32>
    %5 = tpu.concatenate %3, %4 in 0 : vector<7x8x128xf32>, vector<1x8x128xf32> -> vector<8x8x128xf32>
    %6 = vector.extract_strided_slice %1 {offsets = [0, 1, 0], sizes = [8, 7, 128], strides = [1, 1, 1]} : vector<8x8x128xf32> to vector<8x7x128xf32>
    %cst_5 = arith.constant 0.000000e+00 : f32
    %7 = vector.broadcast %cst_5 : f32 to vector<8x1x128xf32>
    %8 = tpu.concatenate %6, %7 in 1 : vector<8x7x128xf32>, vector<8x1x128xf32> -> vector<8x8x128xf32>
    %9 = vector.extract_strided_slice %5 {offsets = [0, 1, 0], sizes = [8, 7, 128], strides = [1, 1, 1]} : vector<8x8x128xf32> to vector<8x7x128xf32>
    %cst_6 = arith.constant 0.000000e+00 : f32
    %10 = vector.broadcast %cst_6 : f32 to vector<8x1x128xf32>
    %11 = tpu.concatenate %9, %10 in 1 : vector<8x7x128xf32>, vector<8x1x128xf32> -> vector<8x8x128xf32>
    %c0_7 = arith.constant 0 : index
    %c0_8 = arith.constant 0 : index
    %12 = vector.load %arg2[%c0_7, %c0_8] : memref<128x64xf32, #tpu.memory_space<vmem>>, vector<128x64xf32>
    %13 = vector.shape_cast %1 : vector<8x8x128xf32> to vector<64x128xf32>
    %cst_9 = arith.constant dense<0.000000e+00> : vector<64x64xf32>
    %14 = tpu.matmul %13, %12, %cst_9 {dimension_numbers = #tpu.dot_dimension_numbers<[1], [0], [0], [1], [0, 0, 1, 1], [], []>} : vector<64x128xf32>, vector<128x64xf32>, vector<64x64xf32> -> vector<64x64xf32>
    %15 = vector.broadcast %2 : vector<1x64xf32> to vector<64x64xf32>
    %16 = arith.addf %14, %15 : vector<64x64xf32>
    %17 = vector.shape_cast %16 : vector<64x64xf32> to vector<8x8x64xf32>
    %cst_10 = arith.constant 0.000000e+00 : f32
    %18 = vector.broadcast %cst_10 : f32 to vector<8x8x64xf32>
    %19 = arith.maximumf %17, %18 : vector<8x8x64xf32>
    %20 = tpu.concatenate %8, %1 in 2 : vector<8x8x128xf32>, vector<8x8x128xf32> -> vector<8x8x256xf32>
    %c0_11 = arith.constant 0 : index
    %c0_12 = arith.constant 0 : index
    %21 = vector.load %arg3[%c0_11, %c0_12] : memref<256x64xf32, #tpu.memory_space<vmem>>, vector<256x64xf32>
    %22 = vector.shape_cast %20 : vector<8x8x256xf32> to vector<64x256xf32>
    %cst_13 = arith.constant dense<0.000000e+00> : vector<64x64xf32>
    %23 = tpu.matmul %22, %21, %cst_13 {dimension_numbers = #tpu.dot_dimension_numbers<[1], [0], [0], [1], [0, 0, 1, 1], [], []>} : vector<64x256xf32>, vector<256x64xf32>, vector<64x64xf32> -> vector<64x64xf32>
    %24 = vector.broadcast %2 : vector<1x64xf32> to vector<64x64xf32>
    %25 = arith.addf %23, %24 : vector<64x64xf32>
    %26 = vector.shape_cast %25 : vector<64x64xf32> to vector<8x8x64xf32>
    %cst_14 = arith.constant 0.000000e+00 : f32
    %27 = vector.broadcast %cst_14 : f32 to vector<8x8x64xf32>
    %28 = arith.maximumf %26, %27 : vector<8x8x64xf32>
    %29 = tpu.concatenate %5, %1 in 2 : vector<8x8x128xf32>, vector<8x8x128xf32> -> vector<8x8x256xf32>
    %c0_15 = arith.constant 0 : index
    %c0_16 = arith.constant 0 : index
    %30 = vector.load %arg4[%c0_15, %c0_16] : memref<256x64xf32, #tpu.memory_space<vmem>>, vector<256x64xf32>
    %31 = vector.shape_cast %29 : vector<8x8x256xf32> to vector<64x256xf32>
    %cst_17 = arith.constant dense<0.000000e+00> : vector<64x64xf32>
    %32 = tpu.matmul %31, %30, %cst_17 {dimension_numbers = #tpu.dot_dimension_numbers<[1], [0], [0], [1], [0, 0, 1, 1], [], []>} : vector<64x256xf32>, vector<256x64xf32>, vector<64x64xf32> -> vector<64x64xf32>
    %33 = vector.broadcast %2 : vector<1x64xf32> to vector<64x64xf32>
    %34 = arith.addf %32, %33 : vector<64x64xf32>
    %35 = vector.shape_cast %34 : vector<64x64xf32> to vector<8x8x64xf32>
    %cst_18 = arith.constant 0.000000e+00 : f32
    %36 = vector.broadcast %cst_18 : f32 to vector<8x8x64xf32>
    %37 = arith.maximumf %35, %36 : vector<8x8x64xf32>
    %38 = tpu.concatenate %11, %5, %8, %1 in 2 : vector<8x8x128xf32>, vector<8x8x128xf32>, vector<8x8x128xf32>, vector<8x8x128xf32> -> vector<8x8x512xf32>
    %c0_19 = arith.constant 0 : index
    %c0_20 = arith.constant 0 : index
    %39 = vector.load %arg5[%c0_19, %c0_20] : memref<512x64xf32, #tpu.memory_space<vmem>>, vector<512x64xf32>
    %40 = vector.shape_cast %38 : vector<8x8x512xf32> to vector<64x512xf32>
    %cst_21 = arith.constant dense<0.000000e+00> : vector<64x64xf32>
    %41 = tpu.matmul %40, %39, %cst_21 {dimension_numbers = #tpu.dot_dimension_numbers<[1], [0], [0], [1], [0, 0, 1, 1], [], []>} : vector<64x512xf32>, vector<512x64xf32>, vector<64x64xf32> -> vector<64x64xf32>
    %42 = vector.broadcast %2 : vector<1x64xf32> to vector<64x64xf32>
    %43 = arith.addf %41, %42 : vector<64x64xf32>
    %44 = vector.shape_cast %43 : vector<64x64xf32> to vector<8x8x64xf32>
    %cst_22 = arith.constant 0.000000e+00 : f32
    %45 = vector.broadcast %cst_22 : f32 to vector<8x8x64xf32>
    %46 = arith.maximumf %44, %45 : vector<8x8x64xf32>
    %c0_23 = arith.constant 0 : index
    %c0_24 = arith.constant 0 : index
    %c0_25 = arith.constant 0 : index
    %c0_26 = arith.constant 0 : index
    %47 = vector.load %arg9[%c0_23, %c0_24, %c0_25, %c0_26] : memref<2x4x192x64xf32, #tpu.memory_space<vmem>>, vector<1x1x192x64xf32>
    %48 = vector.shape_cast %47 : vector<1x1x192x64xf32> to vector<192x64xf32>
    %c0_27 = arith.constant 0 : index
    %c0_28 = arith.constant 0 : index
    %c0_29 = arith.constant 0 : index
    %c0_30 = arith.constant 0 : index
    %49 = vector.load %arg10[%c0_27, %c0_28, %c0_29, %c0_30] : memref<2x4x1x64xf32, #tpu.memory_space<vmem>>, vector<1x1x1x64xf32>
    %50 = vector.shape_cast %49 : vector<1x1x1x64xf32> to vector<1x64xf32>
    %cst_31 = arith.constant 0.000000e+00 : f32
    %51 = vector.broadcast %cst_31 : f32 to vector<1x8x64xf32>
    %52 = vector.extract_strided_slice %37 {offsets = [0, 0, 0], sizes = [7, 8, 64], strides = [1, 1, 1]} : vector<8x8x64xf32> to vector<7x8x64xf32>
    %53 = tpu.concatenate %51, %52 in 0 : vector<1x8x64xf32>, vector<7x8x64xf32> -> vector<8x8x64xf32>
    %54 = tpu.concatenate %53, %19, %37 in 2 : vector<8x8x64xf32>, vector<8x8x64xf32>, vector<8x8x64xf32> -> vector<8x8x192xf32>
    %55 = vector.extract_strided_slice %19 {offsets = [1, 0, 0], sizes = [7, 8, 64], strides = [1, 1, 1]} : vector<8x8x64xf32> to vector<7x8x64xf32>
    %cst_32 = arith.constant 0.000000e+00 : f32
    %56 = vector.broadcast %cst_32 : f32 to vector<1x8x64xf32>
    %57 = tpu.concatenate %55, %56 in 0 : vector<7x8x64xf32>, vector<1x8x64xf32> -> vector<8x8x64xf32>
    %58 = tpu.concatenate %19, %37, %57 in 2 : vector<8x8x64xf32>, vector<8x8x64xf32>, vector<8x8x64xf32> -> vector<8x8x192xf32>
    %cst_33 = arith.constant 0.000000e+00 : f32
    %59 = vector.broadcast %cst_33 : f32 to vector<1x8x64xf32>
    %60 = vector.extract_strided_slice %46 {offsets = [0, 0, 0], sizes = [7, 8, 64], strides = [1, 1, 1]} : vector<8x8x64xf32> to vector<7x8x64xf32>
    %61 = tpu.concatenate %59, %60 in 0 : vector<1x8x64xf32>, vector<7x8x64xf32> -> vector<8x8x64xf32>
    %62 = tpu.concatenate %61, %28, %46 in 2 : vector<8x8x64xf32>, vector<8x8x64xf32>, vector<8x8x64xf32> -> vector<8x8x192xf32>
    %63 = vector.extract_strided_slice %28 {offsets = [1, 0, 0], sizes = [7, 8, 64], strides = [1, 1, 1]} : vector<8x8x64xf32> to vector<7x8x64xf32>
    %cst_34 = arith.constant 0.000000e+00 : f32
    %64 = vector.broadcast %cst_34 : f32 to vector<1x8x64xf32>
    %65 = tpu.concatenate %63, %64 in 0 : vector<7x8x64xf32>, vector<1x8x64xf32> -> vector<8x8x64xf32>
    %66 = tpu.concatenate %28, %46, %65 in 2 : vector<8x8x64xf32>, vector<8x8x64xf32>, vector<8x8x64xf32> -> vector<8x8x192xf32>
    %67 = vector.shape_cast %54 : vector<8x8x192xf32> to vector<64x192xf32>
    %68 = vector.shape_cast %62 : vector<8x8x192xf32> to vector<64x192xf32>
    %69 = vector.shape_cast %58 : vector<8x8x192xf32> to vector<64x192xf32>
    %70 = vector.shape_cast %66 : vector<8x8x192xf32> to vector<64x192xf32>
    %71 = tpu.concatenate %67, %68, %69, %70 in 0 : vector<64x192xf32>, vector<64x192xf32>, vector<64x192xf32>, vector<64x192xf32> -> vector<256x192xf32>
    %cst_35 = arith.constant dense<0.000000e+00> : vector<256x64xf32>
    %72 = tpu.matmul %71, %48, %cst_35 {dimension_numbers = #tpu.dot_dimension_numbers<[1], [0], [0], [1], [0, 0, 1, 1], [], []>} : vector<256x192xf32>, vector<192x64xf32>, vector<256x64xf32> -> vector<256x64xf32>
    %73 = vector.broadcast %50 : vector<1x64xf32> to vector<256x64xf32>
    %74 = arith.addf %72, %73 : vector<256x64xf32>
    %75 = vector.extract_strided_slice %74 {offsets = [0, 0], sizes = [64, 64], strides = [1, 1]} : vector<256x64xf32> to vector<64x64xf32>
    %76 = vector.shape_cast %75 : vector<64x64xf32> to vector<8x8x64xf32>
    %cst_36 = arith.constant 0.000000e+00 : f32
    %77 = vector.broadcast %cst_36 : f32 to vector<8x8x64xf32>
    %78 = arith.maximumf %76, %77 : vector<8x8x64xf32>
    %79 = vector.extract_strided_slice %74 {offsets = [64, 0], sizes = [64, 64], strides = [1, 1]} : vector<256x64xf32> to vector<64x64xf32>
    %80 = vector.shape_cast %79 : vector<64x64xf32> to vector<8x8x64xf32>
    %cst_37 = arith.constant 0.000000e+00 : f32
    %81 = vector.broadcast %cst_37 : f32 to vector<8x8x64xf32>
    %82 = arith.maximumf %80, %81 : vector<8x8x64xf32>
    %83 = vector.extract_strided_slice %74 {offsets = [128, 0], sizes = [64, 64], strides = [1, 1]} : vector<256x64xf32> to vector<64x64xf32>
    %84 = vector.shape_cast %83 : vector<64x64xf32> to vector<8x8x64xf32>
    %cst_38 = arith.constant 0.000000e+00 : f32
    %85 = vector.broadcast %cst_38 : f32 to vector<8x8x64xf32>
    %86 = arith.maximumf %84, %85 : vector<8x8x64xf32>
    %87 = vector.extract_strided_slice %74 {offsets = [192, 0], sizes = [64, 64], strides = [1, 1]} : vector<256x64xf32> to vector<64x64xf32>
    %88 = vector.shape_cast %87 : vector<64x64xf32> to vector<8x8x64xf32>
    %cst_39 = arith.constant 0.000000e+00 : f32
    %89 = vector.broadcast %cst_39 : f32 to vector<8x8x64xf32>
    %90 = arith.maximumf %88, %89 : vector<8x8x64xf32>
    %c0_40 = arith.constant 0 : index
    %c1 = arith.constant 1 : index
    %c0_41 = arith.constant 0 : index
    %c0_42 = arith.constant 0 : index
    %91 = vector.load %arg9[%c0_40, %c1, %c0_41, %c0_42] : memref<2x4x192x64xf32, #tpu.memory_space<vmem>>, vector<1x1x192x64xf32>
    %92 = vector.shape_cast %91 : vector<1x1x192x64xf32> to vector<192x64xf32>
    %c0_43 = arith.constant 0 : index
    %c1_44 = arith.constant 1 : index
    %c0_45 = arith.constant 0 : index
    %c0_46 = arith.constant 0 : index
    %93 = vector.load %arg10[%c0_43, %c1_44, %c0_45, %c0_46] : memref<2x4x1x64xf32, #tpu.memory_space<vmem>>, vector<1x1x1x64xf32>
    %94 = vector.shape_cast %93 : vector<1x1x1x64xf32> to vector<1x64xf32>
    %cst_47 = arith.constant 0.000000e+00 : f32
    %95 = vector.broadcast %cst_47 : f32 to vector<8x1x64xf32>
    %96 = vector.extract_strided_slice %82 {offsets = [0, 0, 0], sizes = [8, 7, 64], strides = [1, 1, 1]} : vector<8x8x64xf32> to vector<8x7x64xf32>
    %97 = tpu.concatenate %95, %96 in 1 : vector<8x1x64xf32>, vector<8x7x64xf32> -> vector<8x8x64xf32>
    %98 = tpu.concatenate %97, %78, %82 in 2 : vector<8x8x64xf32>, vector<8x8x64xf32>, vector<8x8x64xf32> -> vector<8x8x192xf32>
    %99 = vector.extract_strided_slice %78 {offsets = [0, 1, 0], sizes = [8, 7, 64], strides = [1, 1, 1]} : vector<8x8x64xf32> to vector<8x7x64xf32>
    %cst_48 = arith.constant 0.000000e+00 : f32
    %100 = vector.broadcast %cst_48 : f32 to vector<8x1x64xf32>
    %101 = tpu.concatenate %99, %100 in 1 : vector<8x7x64xf32>, vector<8x1x64xf32> -> vector<8x8x64xf32>
    %102 = tpu.concatenate %78, %82, %101 in 2 : vector<8x8x64xf32>, vector<8x8x64xf32>, vector<8x8x64xf32> -> vector<8x8x192xf32>
    %cst_49 = arith.constant 0.000000e+00 : f32
    %103 = vector.broadcast %cst_49 : f32 to vector<8x1x64xf32>
    %104 = vector.extract_strided_slice %90 {offsets = [0, 0, 0], sizes = [8, 7, 64], strides = [1, 1, 1]} : vector<8x8x64xf32> to vector<8x7x64xf32>
    %105 = tpu.concatenate %103, %104 in 1 : vector<8x1x64xf32>, vector<8x7x64xf32> -> vector<8x8x64xf32>
    %106 = tpu.concatenate %105, %86, %90 in 2 : vector<8x8x64xf32>, vector<8x8x64xf32>, vector<8x8x64xf32> -> vector<8x8x192xf32>
    %107 = vector.extract_strided_slice %86 {offsets = [0, 1, 0], sizes = [8, 7, 64], strides = [1, 1, 1]} : vector<8x8x64xf32> to vector<8x7x64xf32>
    %cst_50 = arith.constant 0.000000e+00 : f32
    %108 = vector.broadcast %cst_50 : f32 to vector<8x1x64xf32>
    %109 = tpu.concatenate %107, %108 in 1 : vector<8x7x64xf32>, vector<8x1x64xf32> -> vector<8x8x64xf32>
    %110 = tpu.concatenate %86, %90, %109 in 2 : vector<8x8x64xf32>, vector<8x8x64xf32>, vector<8x8x64xf32> -> vector<8x8x192xf32>
    %111 = vector.shape_cast %98 : vector<8x8x192xf32> to vector<64x192xf32>
    %112 = vector.shape_cast %102 : vector<8x8x192xf32> to vector<64x192xf32>
    %113 = vector.shape_cast %106 : vector<8x8x192xf32> to vector<64x192xf32>
    %114 = vector.shape_cast %110 : vector<8x8x192xf32> to vector<64x192xf32>
    %115 = tpu.concatenate %111, %112, %113, %114 in 0 : vector<64x192xf32>, vector<64x192xf32>, vector<64x192xf32>, vector<64x192xf32> -> vector<256x192xf32>
    %cst_51 = arith.constant dense<0.000000e+00> : vector<256x64xf32>
    %116 = tpu.matmul %115, %92, %cst_51 {dimension_numbers = #tpu.dot_dimension_numbers<[1], [0], [0], [1], [0, 0, 1, 1], [], []>} : vector<256x192xf32>, vector<192x64xf32>, vector<256x64xf32> -> vector<256x64xf32>
    %117 = vector.broadcast %94 : vector<1x64xf32> to vector<256x64xf32>
    %118 = arith.addf %116, %117 : vector<256x64xf32>
    %119 = vector.extract_strided_slice %118 {offsets = [0, 0], sizes = [64, 64], strides = [1, 1]} : vector<256x64xf32> to vector<64x64xf32>
    %120 = vector.shape_cast %119 : vector<64x64xf32> to vector<8x8x64xf32>
    %cst_52 = arith.constant 0.000000e+00 : f32
    %121 = vector.broadcast %cst_52 : f32 to vector<8x8x64xf32>
    %122 = arith.maximumf %120, %121 : vector<8x8x64xf32>
    %123 = vector.extract_strided_slice %118 {offsets = [64, 0], sizes = [64, 64], strides = [1, 1]} : vector<256x64xf32> to vector<64x64xf32>
    %124 = vector.shape_cast %123 : vector<64x64xf32> to vector<8x8x64xf32>
    %cst_53 = arith.constant 0.000000e+00 : f32
    %125 = vector.broadcast %cst_53 : f32 to vector<8x8x64xf32>
    %126 = arith.maximumf %124, %125 : vector<8x8x64xf32>
    %127 = vector.extract_strided_slice %118 {offsets = [128, 0], sizes = [64, 64], strides = [1, 1]} : vector<256x64xf32> to vector<64x64xf32>
    %128 = vector.shape_cast %127 : vector<64x64xf32> to vector<8x8x64xf32>
    %cst_54 = arith.constant 0.000000e+00 : f32
    %129 = vector.broadcast %cst_54 : f32 to vector<8x8x64xf32>
    %130 = arith.maximumf %128, %129 : vector<8x8x64xf32>
    %131 = vector.extract_strided_slice %118 {offsets = [192, 0], sizes = [64, 64], strides = [1, 1]} : vector<256x64xf32> to vector<64x64xf32>
    %132 = vector.shape_cast %131 : vector<64x64xf32> to vector<8x8x64xf32>
    %cst_55 = arith.constant 0.000000e+00 : f32
    %133 = vector.broadcast %cst_55 : f32 to vector<8x8x64xf32>
    %134 = arith.maximumf %132, %133 : vector<8x8x64xf32>
    %c0_56 = arith.constant 0 : index
    %c2 = arith.constant 2 : index
    %c0_57 = arith.constant 0 : index
    %c0_58 = arith.constant 0 : index
    %135 = vector.load %arg9[%c0_56, %c2, %c0_57, %c0_58] : memref<2x4x192x64xf32, #tpu.memory_space<vmem>>, vector<1x1x192x64xf32>
    %136 = vector.shape_cast %135 : vector<1x1x192x64xf32> to vector<192x64xf32>
    %c0_59 = arith.constant 0 : index
    %c2_60 = arith.constant 2 : index
    %c0_61 = arith.constant 0 : index
    %c0_62 = arith.constant 0 : index
    %137 = vector.load %arg10[%c0_59, %c2_60, %c0_61, %c0_62] : memref<2x4x1x64xf32, #tpu.memory_space<vmem>>, vector<1x1x1x64xf32>
    %138 = vector.shape_cast %137 : vector<1x1x1x64xf32> to vector<1x64xf32>
    %cst_63 = arith.constant 0.000000e+00 : f32
    %139 = vector.broadcast %cst_63 : f32 to vector<1x8x64xf32>
    %140 = vector.extract_strided_slice %130 {offsets = [0, 0, 0], sizes = [7, 8, 64], strides = [1, 1, 1]} : vector<8x8x64xf32> to vector<7x8x64xf32>
    %141 = tpu.concatenate %139, %140 in 0 : vector<1x8x64xf32>, vector<7x8x64xf32> -> vector<8x8x64xf32>
    %142 = tpu.concatenate %141, %122, %130 in 2 : vector<8x8x64xf32>, vector<8x8x64xf32>, vector<8x8x64xf32> -> vector<8x8x192xf32>
    %143 = vector.extract_strided_slice %122 {offsets = [1, 0, 0], sizes = [7, 8, 64], strides = [1, 1, 1]} : vector<8x8x64xf32> to vector<7x8x64xf32>
    %cst_64 = arith.constant 0.000000e+00 : f32
    %144 = vector.broadcast %cst_64 : f32 to vector<1x8x64xf32>
    %145 = tpu.concatenate %143, %144 in 0 : vector<7x8x64xf32>, vector<1x8x64xf32> -> vector<8x8x64xf32>
    %146 = tpu.concatenate %122, %130, %145 in 2 : vector<8x8x64xf32>, vector<8x8x64xf32>, vector<8x8x64xf32> -> vector<8x8x192xf32>
    %cst_65 = arith.constant 0.000000e+00 : f32
    %147 = vector.broadcast %cst_65 : f32 to vector<1x8x64xf32>
    %148 = vector.extract_strided_slice %134 {offsets = [0, 0, 0], sizes = [7, 8, 64], strides = [1, 1, 1]} : vector<8x8x64xf32> to vector<7x8x64xf32>
    %149 = tpu.concatenate %147, %148 in 0 : vector<1x8x64xf32>, vector<7x8x64xf32> -> vector<8x8x64xf32>
    %150 = tpu.concatenate %149, %126, %134 in 2 : vector<8x8x64xf32>, vector<8x8x64xf32>, vector<8x8x64xf32> -> vector<8x8x192xf32>
    %151 = vector.extract_strided_slice %126 {offsets = [1, 0, 0], sizes = [7, 8, 64], strides = [1, 1, 1]} : vector<8x8x64xf32> to vector<7x8x64xf32>
    %cst_66 = arith.constant 0.000000e+00 : f32
    %152 = vector.broadcast %cst_66 : f32 to vector<1x8x64xf32>
    %153 = tpu.concatenate %151, %152 in 0 : vector<7x8x64xf32>, vector<1x8x64xf32> -> vector<8x8x64xf32>
    %154 = tpu.concatenate %126, %134, %153 in 2 : vector<8x8x64xf32>, vector<8x8x64xf32>, vector<8x8x64xf32> -> vector<8x8x192xf32>
    %155 = vector.shape_cast %142 : vector<8x8x192xf32> to vector<64x192xf32>
    %156 = vector.shape_cast %150 : vector<8x8x192xf32> to vector<64x192xf32>
    %157 = vector.shape_cast %146 : vector<8x8x192xf32> to vector<64x192xf32>
    %158 = vector.shape_cast %154 : vector<8x8x192xf32> to vector<64x192xf32>
    %159 = tpu.concatenate %155, %156, %157, %158 in 0 : vector<64x192xf32>, vector<64x192xf32>, vector<64x192xf32>, vector<64x192xf32> -> vector<256x192xf32>
    %cst_67 = arith.constant dense<0.000000e+00> : vector<256x64xf32>
    %160 = tpu.matmul %159, %136, %cst_67 {dimension_numbers = #tpu.dot_dimension_numbers<[1], [0], [0], [1], [0, 0, 1, 1], [], []>} : vector<256x192xf32>, vector<192x64xf32>, vector<256x64xf32> -> vector<256x64xf32>
    %161 = vector.broadcast %138 : vector<1x64xf32> to vector<256x64xf32>
    %162 = arith.addf %160, %161 : vector<256x64xf32>
    %163 = vector.extract_strided_slice %162 {offsets = [0, 0], sizes = [64, 64], strides = [1, 1]} : vector<256x64xf32> to vector<64x64xf32>
    %164 = vector.shape_cast %163 : vector<64x64xf32> to vector<8x8x64xf32>
    %cst_68 = arith.constant 0.000000e+00 : f32
    %165 = vector.broadcast %cst_68 : f32 to vector<8x8x64xf32>
    %166 = arith.maximumf %164, %165 : vector<8x8x64xf32>
    %167 = vector.extract_strided_slice %162 {offsets = [64, 0], sizes = [64, 64], strides = [1, 1]} : vector<256x64xf32> to vector<64x64xf32>
    %168 = vector.shape_cast %167 : vector<64x64xf32> to vector<8x8x64xf32>
    %cst_69 = arith.constant 0.000000e+00 : f32
    %169 = vector.broadcast %cst_69 : f32 to vector<8x8x64xf32>
    %170 = arith.maximumf %168, %169 : vector<8x8x64xf32>
    %171 = vector.extract_strided_slice %162 {offsets = [128, 0], sizes = [64, 64], strides = [1, 1]} : vector<256x64xf32> to vector<64x64xf32>
    %172 = vector.shape_cast %171 : vector<64x64xf32> to vector<8x8x64xf32>
    %cst_70 = arith.constant 0.000000e+00 : f32
    %173 = vector.broadcast %cst_70 : f32 to vector<8x8x64xf32>
    %174 = arith.maximumf %172, %173 : vector<8x8x64xf32>
    %175 = vector.extract_strided_slice %162 {offsets = [192, 0], sizes = [64, 64], strides = [1, 1]} : vector<256x64xf32> to vector<64x64xf32>
    %176 = vector.shape_cast %175 : vector<64x64xf32> to vector<8x8x64xf32>
    %cst_71 = arith.constant 0.000000e+00 : f32
    %177 = vector.broadcast %cst_71 : f32 to vector<8x8x64xf32>
    %178 = arith.maximumf %176, %177 : vector<8x8x64xf32>
    %c0_72 = arith.constant 0 : index
    %c3 = arith.constant 3 : index
    %c0_73 = arith.constant 0 : index
    %c0_74 = arith.constant 0 : index
    %179 = vector.load %arg9[%c0_72, %c3, %c0_73, %c0_74] : memref<2x4x192x64xf32, #tpu.memory_space<vmem>>, vector<1x1x192x64xf32>
    %180 = vector.shape_cast %179 : vector<1x1x192x64xf32> to vector<192x64xf32>
    %c0_75 = arith.constant 0 : index
    %c3_76 = arith.constant 3 : index
    %c0_77 = arith.constant 0 : index
    %c0_78 = arith.constant 0 : index
    %181 = vector.load %arg10[%c0_75, %c3_76, %c0_77, %c0_78] : memref<2x4x1x64xf32, #tpu.memory_space<vmem>>, vector<1x1x1x64xf32>
    %182 = vector.shape_cast %181 : vector<1x1x1x64xf32> to vector<1x64xf32>
    %cst_79 = arith.constant 0.000000e+00 : f32
    %183 = vector.broadcast %cst_79 : f32 to vector<8x1x64xf32>
    %184 = vector.extract_strided_slice %170 {offsets = [0, 0, 0], sizes = [8, 7, 64], strides = [1, 1, 1]} : vector<8x8x64xf32> to vector<8x7x64xf32>
    %185 = tpu.concatenate %183, %184 in 1 : vector<8x1x64xf32>, vector<8x7x64xf32> -> vector<8x8x64xf32>
    %186 = tpu.concatenate %185, %166, %170 in 2 : vector<8x8x64xf32>, vector<8x8x64xf32>, vector<8x8x64xf32> -> vector<8x8x192xf32>
    %187 = vector.extract_strided_slice %166 {offsets = [0, 1, 0], sizes = [8, 7, 64], strides = [1, 1, 1]} : vector<8x8x64xf32> to vector<8x7x64xf32>
    %cst_80 = arith.constant 0.000000e+00 : f32
    %188 = vector.broadcast %cst_80 : f32 to vector<8x1x64xf32>
    %189 = tpu.concatenate %187, %188 in 1 : vector<8x7x64xf32>, vector<8x1x64xf32> -> vector<8x8x64xf32>
    %190 = tpu.concatenate %166, %170, %189 in 2 : vector<8x8x64xf32>, vector<8x8x64xf32>, vector<8x8x64xf32> -> vector<8x8x192xf32>
    %cst_81 = arith.constant 0.000000e+00 : f32
    %191 = vector.broadcast %cst_81 : f32 to vector<8x1x64xf32>
    %192 = vector.extract_strided_slice %178 {offsets = [0, 0, 0], sizes = [8, 7, 64], strides = [1, 1, 1]} : vector<8x8x64xf32> to vector<8x7x64xf32>
    %193 = tpu.concatenate %191, %192 in 1 : vector<8x1x64xf32>, vector<8x7x64xf32> -> vector<8x8x64xf32>
    %194 = tpu.concatenate %193, %174, %178 in 2 : vector<8x8x64xf32>, vector<8x8x64xf32>, vector<8x8x64xf32> -> vector<8x8x192xf32>
    %195 = vector.extract_strided_slice %174 {offsets = [0, 1, 0], sizes = [8, 7, 64], strides = [1, 1, 1]} : vector<8x8x64xf32> to vector<8x7x64xf32>
    %cst_82 = arith.constant 0.000000e+00 : f32
    %196 = vector.broadcast %cst_82 : f32 to vector<8x1x64xf32>
    %197 = tpu.concatenate %195, %196 in 1 : vector<8x7x64xf32>, vector<8x1x64xf32> -> vector<8x8x64xf32>
    %198 = tpu.concatenate %174, %178, %197 in 2 : vector<8x8x64xf32>, vector<8x8x64xf32>, vector<8x8x64xf32> -> vector<8x8x192xf32>
    %199 = vector.shape_cast %186 : vector<8x8x192xf32> to vector<64x192xf32>
    %200 = vector.shape_cast %190 : vector<8x8x192xf32> to vector<64x192xf32>
    %201 = vector.shape_cast %194 : vector<8x8x192xf32> to vector<64x192xf32>
    %202 = vector.shape_cast %198 : vector<8x8x192xf32> to vector<64x192xf32>
    %203 = tpu.concatenate %199, %200, %201, %202 in 0 : vector<64x192xf32>, vector<64x192xf32>, vector<64x192xf32>, vector<64x192xf32> -> vector<256x192xf32>
    %cst_83 = arith.constant dense<0.000000e+00> : vector<256x64xf32>
    %204 = tpu.matmul %203, %180, %cst_83 {dimension_numbers = #tpu.dot_dimension_numbers<[1], [0], [0], [1], [0, 0, 1, 1], [], []>} : vector<256x192xf32>, vector<192x64xf32>, vector<256x64xf32> -> vector<256x64xf32>
    %205 = vector.broadcast %182 : vector<1x64xf32> to vector<256x64xf32>
    %206 = arith.addf %204, %205 : vector<256x64xf32>
    %207 = vector.extract_strided_slice %206 {offsets = [0, 0], sizes = [64, 64], strides = [1, 1]} : vector<256x64xf32> to vector<64x64xf32>
    %208 = vector.shape_cast %207 : vector<64x64xf32> to vector<8x8x64xf32>
    %209 = arith.addf %208, %19 : vector<8x8x64xf32>
    %cst_84 = arith.constant 0.000000e+00 : f32
    %210 = vector.broadcast %cst_84 : f32 to vector<8x8x64xf32>
    %211 = arith.maximumf %209, %210 : vector<8x8x64xf32>
    %212 = vector.extract_strided_slice %206 {offsets = [64, 0], sizes = [64, 64], strides = [1, 1]} : vector<256x64xf32> to vector<64x64xf32>
    %213 = vector.shape_cast %212 : vector<64x64xf32> to vector<8x8x64xf32>
    %214 = arith.addf %213, %28 : vector<8x8x64xf32>
    %cst_85 = arith.constant 0.000000e+00 : f32
    %215 = vector.broadcast %cst_85 : f32 to vector<8x8x64xf32>
    %216 = arith.maximumf %214, %215 : vector<8x8x64xf32>
    %217 = vector.extract_strided_slice %206 {offsets = [128, 0], sizes = [64, 64], strides = [1, 1]} : vector<256x64xf32> to vector<64x64xf32>
    %218 = vector.shape_cast %217 : vector<64x64xf32> to vector<8x8x64xf32>
    %219 = arith.addf %218, %37 : vector<8x8x64xf32>
    %cst_86 = arith.constant 0.000000e+00 : f32
    %220 = vector.broadcast %cst_86 : f32 to vector<8x8x64xf32>
    %221 = arith.maximumf %219, %220 : vector<8x8x64xf32>
    %222 = vector.extract_strided_slice %206 {offsets = [192, 0], sizes = [64, 64], strides = [1, 1]} : vector<256x64xf32> to vector<64x64xf32>
    %223 = vector.shape_cast %222 : vector<64x64xf32> to vector<8x8x64xf32>
    %224 = arith.addf %223, %46 : vector<8x8x64xf32>
    %cst_87 = arith.constant 0.000000e+00 : f32
    %225 = vector.broadcast %cst_87 : f32 to vector<8x8x64xf32>
    %226 = arith.maximumf %224, %225 : vector<8x8x64xf32>
    %c1_88 = arith.constant 1 : index
    %c0_89 = arith.constant 0 : index
    %c0_90 = arith.constant 0 : index
    %c0_91 = arith.constant 0 : index
    %227 = vector.load %arg9[%c1_88, %c0_89, %c0_90, %c0_91] : memref<2x4x192x64xf32, #tpu.memory_space<vmem>>, vector<1x1x192x64xf32>
    %228 = vector.shape_cast %227 : vector<1x1x192x64xf32> to vector<192x64xf32>
    %c1_92 = arith.constant 1 : index
    %c0_93 = arith.constant 0 : index
    %c0_94 = arith.constant 0 : index
    %c0_95 = arith.constant 0 : index
    %229 = vector.load %arg10[%c1_92, %c0_93, %c0_94, %c0_95] : memref<2x4x1x64xf32, #tpu.memory_space<vmem>>, vector<1x1x1x64xf32>
    %230 = vector.shape_cast %229 : vector<1x1x1x64xf32> to vector<1x64xf32>
    %cst_96 = arith.constant 0.000000e+00 : f32
    %231 = vector.broadcast %cst_96 : f32 to vector<1x8x64xf32>
    %232 = vector.extract_strided_slice %221 {offsets = [0, 0, 0], sizes = [7, 8, 64], strides = [1, 1, 1]} : vector<8x8x64xf32> to vector<7x8x64xf32>
    %233 = tpu.concatenate %231, %232 in 0 : vector<1x8x64xf32>, vector<7x8x64xf32> -> vector<8x8x64xf32>
    %234 = tpu.concatenate %233, %211, %221 in 2 : vector<8x8x64xf32>, vector<8x8x64xf32>, vector<8x8x64xf32> -> vector<8x8x192xf32>
    %235 = vector.extract_strided_slice %211 {offsets = [1, 0, 0], sizes = [7, 8, 64], strides = [1, 1, 1]} : vector<8x8x64xf32> to vector<7x8x64xf32>
    %cst_97 = arith.constant 0.000000e+00 : f32
    %236 = vector.broadcast %cst_97 : f32 to vector<1x8x64xf32>
    %237 = tpu.concatenate %235, %236 in 0 : vector<7x8x64xf32>, vector<1x8x64xf32> -> vector<8x8x64xf32>
    %238 = tpu.concatenate %211, %221, %237 in 2 : vector<8x8x64xf32>, vector<8x8x64xf32>, vector<8x8x64xf32> -> vector<8x8x192xf32>
    %cst_98 = arith.constant 0.000000e+00 : f32
    %239 = vector.broadcast %cst_98 : f32 to vector<1x8x64xf32>
    %240 = vector.extract_strided_slice %226 {offsets = [0, 0, 0], sizes = [7, 8, 64], strides = [1, 1, 1]} : vector<8x8x64xf32> to vector<7x8x64xf32>
    %241 = tpu.concatenate %239, %240 in 0 : vector<1x8x64xf32>, vector<7x8x64xf32> -> vector<8x8x64xf32>
    %242 = tpu.concatenate %241, %216, %226 in 2 : vector<8x8x64xf32>, vector<8x8x64xf32>, vector<8x8x64xf32> -> vector<8x8x192xf32>
    %243 = vector.extract_strided_slice %216 {offsets = [1, 0, 0], sizes = [7, 8, 64], strides = [1, 1, 1]} : vector<8x8x64xf32> to vector<7x8x64xf32>
    %cst_99 = arith.constant 0.000000e+00 : f32
    %244 = vector.broadcast %cst_99 : f32 to vector<1x8x64xf32>
    %245 = tpu.concatenate %243, %244 in 0 : vector<7x8x64xf32>, vector<1x8x64xf32> -> vector<8x8x64xf32>
    %246 = tpu.concatenate %216, %226, %245 in 2 : vector<8x8x64xf32>, vector<8x8x64xf32>, vector<8x8x64xf32> -> vector<8x8x192xf32>
    %247 = vector.shape_cast %234 : vector<8x8x192xf32> to vector<64x192xf32>
    %248 = vector.shape_cast %242 : vector<8x8x192xf32> to vector<64x192xf32>
    %249 = vector.shape_cast %238 : vector<8x8x192xf32> to vector<64x192xf32>
    %250 = vector.shape_cast %246 : vector<8x8x192xf32> to vector<64x192xf32>
    %251 = tpu.concatenate %247, %248, %249, %250 in 0 : vector<64x192xf32>, vector<64x192xf32>, vector<64x192xf32>, vector<64x192xf32> -> vector<256x192xf32>
    %cst_100 = arith.constant dense<0.000000e+00> : vector<256x64xf32>
    %252 = tpu.matmul %251, %228, %cst_100 {dimension_numbers = #tpu.dot_dimension_numbers<[1], [0], [0], [1], [0, 0, 1, 1], [], []>} : vector<256x192xf32>, vector<192x64xf32>, vector<256x64xf32> -> vector<256x64xf32>
    %253 = vector.broadcast %230 : vector<1x64xf32> to vector<256x64xf32>
    %254 = arith.addf %252, %253 : vector<256x64xf32>
    %255 = vector.extract_strided_slice %254 {offsets = [0, 0], sizes = [64, 64], strides = [1, 1]} : vector<256x64xf32> to vector<64x64xf32>
    %256 = vector.shape_cast %255 : vector<64x64xf32> to vector<8x8x64xf32>
    %cst_101 = arith.constant 0.000000e+00 : f32
    %257 = vector.broadcast %cst_101 : f32 to vector<8x8x64xf32>
    %258 = arith.maximumf %256, %257 : vector<8x8x64xf32>
    %259 = vector.extract_strided_slice %254 {offsets = [64, 0], sizes = [64, 64], strides = [1, 1]} : vector<256x64xf32> to vector<64x64xf32>
    %260 = vector.shape_cast %259 : vector<64x64xf32> to vector<8x8x64xf32>
    %cst_102 = arith.constant 0.000000e+00 : f32
    %261 = vector.broadcast %cst_102 : f32 to vector<8x8x64xf32>
    %262 = arith.maximumf %260, %261 : vector<8x8x64xf32>
    %263 = vector.extract_strided_slice %254 {offsets = [128, 0], sizes = [64, 64], strides = [1, 1]} : vector<256x64xf32> to vector<64x64xf32>
    %264 = vector.shape_cast %263 : vector<64x64xf32> to vector<8x8x64xf32>
    %cst_103 = arith.constant 0.000000e+00 : f32
    %265 = vector.broadcast %cst_103 : f32 to vector<8x8x64xf32>
    %266 = arith.maximumf %264, %265 : vector<8x8x64xf32>
    %267 = vector.extract_strided_slice %254 {offsets = [192, 0], sizes = [64, 64], strides = [1, 1]} : vector<256x64xf32> to vector<64x64xf32>
    %268 = vector.shape_cast %267 : vector<64x64xf32> to vector<8x8x64xf32>
    %cst_104 = arith.constant 0.000000e+00 : f32
    %269 = vector.broadcast %cst_104 : f32 to vector<8x8x64xf32>
    %270 = arith.maximumf %268, %269 : vector<8x8x64xf32>
    %c1_105 = arith.constant 1 : index
    %c1_106 = arith.constant 1 : index
    %c0_107 = arith.constant 0 : index
    %c0_108 = arith.constant 0 : index
    %271 = vector.load %arg9[%c1_105, %c1_106, %c0_107, %c0_108] : memref<2x4x192x64xf32, #tpu.memory_space<vmem>>, vector<1x1x192x64xf32>
    %272 = vector.shape_cast %271 : vector<1x1x192x64xf32> to vector<192x64xf32>
    %c1_109 = arith.constant 1 : index
    %c1_110 = arith.constant 1 : index
    %c0_111 = arith.constant 0 : index
    %c0_112 = arith.constant 0 : index
    %273 = vector.load %arg10[%c1_109, %c1_110, %c0_111, %c0_112] : memref<2x4x1x64xf32, #tpu.memory_space<vmem>>, vector<1x1x1x64xf32>
    %274 = vector.shape_cast %273 : vector<1x1x1x64xf32> to vector<1x64xf32>
    %cst_113 = arith.constant 0.000000e+00 : f32
    %275 = vector.broadcast %cst_113 : f32 to vector<8x1x64xf32>
    %276 = vector.extract_strided_slice %262 {offsets = [0, 0, 0], sizes = [8, 7, 64], strides = [1, 1, 1]} : vector<8x8x64xf32> to vector<8x7x64xf32>
    %277 = tpu.concatenate %275, %276 in 1 : vector<8x1x64xf32>, vector<8x7x64xf32> -> vector<8x8x64xf32>
    %278 = tpu.concatenate %277, %258, %262 in 2 : vector<8x8x64xf32>, vector<8x8x64xf32>, vector<8x8x64xf32> -> vector<8x8x192xf32>
    %279 = vector.extract_strided_slice %258 {offsets = [0, 1, 0], sizes = [8, 7, 64], strides = [1, 1, 1]} : vector<8x8x64xf32> to vector<8x7x64xf32>
    %cst_114 = arith.constant 0.000000e+00 : f32
    %280 = vector.broadcast %cst_114 : f32 to vector<8x1x64xf32>
    %281 = tpu.concatenate %279, %280 in 1 : vector<8x7x64xf32>, vector<8x1x64xf32> -> vector<8x8x64xf32>
    %282 = tpu.concatenate %258, %262, %281 in 2 : vector<8x8x64xf32>, vector<8x8x64xf32>, vector<8x8x64xf32> -> vector<8x8x192xf32>
    %cst_115 = arith.constant 0.000000e+00 : f32
    %283 = vector.broadcast %cst_115 : f32 to vector<8x1x64xf32>
    %284 = vector.extract_strided_slice %270 {offsets = [0, 0, 0], sizes = [8, 7, 64], strides = [1, 1, 1]} : vector<8x8x64xf32> to vector<8x7x64xf32>
    %285 = tpu.concatenate %283, %284 in 1 : vector<8x1x64xf32>, vector<8x7x64xf32> -> vector<8x8x64xf32>
    %286 = tpu.concatenate %285, %266, %270 in 2 : vector<8x8x64xf32>, vector<8x8x64xf32>, vector<8x8x64xf32> -> vector<8x8x192xf32>
    %287 = vector.extract_strided_slice %266 {offsets = [0, 1, 0], sizes = [8, 7, 64], strides = [1, 1, 1]} : vector<8x8x64xf32> to vector<8x7x64xf32>
    %cst_116 = arith.constant 0.000000e+00 : f32
    %288 = vector.broadcast %cst_116 : f32 to vector<8x1x64xf32>
    %289 = tpu.concatenate %287, %288 in 1 : vector<8x7x64xf32>, vector<8x1x64xf32> -> vector<8x8x64xf32>
    %290 = tpu.concatenate %266, %270, %289 in 2 : vector<8x8x64xf32>, vector<8x8x64xf32>, vector<8x8x64xf32> -> vector<8x8x192xf32>
    %291 = vector.shape_cast %278 : vector<8x8x192xf32> to vector<64x192xf32>
    %292 = vector.shape_cast %282 : vector<8x8x192xf32> to vector<64x192xf32>
    %293 = vector.shape_cast %286 : vector<8x8x192xf32> to vector<64x192xf32>
    %294 = vector.shape_cast %290 : vector<8x8x192xf32> to vector<64x192xf32>
    %295 = tpu.concatenate %291, %292, %293, %294 in 0 : vector<64x192xf32>, vector<64x192xf32>, vector<64x192xf32>, vector<64x192xf32> -> vector<256x192xf32>
    %cst_117 = arith.constant dense<0.000000e+00> : vector<256x64xf32>
    %296 = tpu.matmul %295, %272, %cst_117 {dimension_numbers = #tpu.dot_dimension_numbers<[1], [0], [0], [1], [0, 0, 1, 1], [], []>} : vector<256x192xf32>, vector<192x64xf32>, vector<256x64xf32> -> vector<256x64xf32>
    %297 = vector.broadcast %274 : vector<1x64xf32> to vector<256x64xf32>
    %298 = arith.addf %296, %297 : vector<256x64xf32>
    %299 = vector.extract_strided_slice %298 {offsets = [0, 0], sizes = [64, 64], strides = [1, 1]} : vector<256x64xf32> to vector<64x64xf32>
    %300 = vector.shape_cast %299 : vector<64x64xf32> to vector<8x8x64xf32>
    %cst_118 = arith.constant 0.000000e+00 : f32
    %301 = vector.broadcast %cst_118 : f32 to vector<8x8x64xf32>
    %302 = arith.maximumf %300, %301 : vector<8x8x64xf32>
    %303 = vector.extract_strided_slice %298 {offsets = [64, 0], sizes = [64, 64], strides = [1, 1]} : vector<256x64xf32> to vector<64x64xf32>
    %304 = vector.shape_cast %303 : vector<64x64xf32> to vector<8x8x64xf32>
    %cst_119 = arith.constant 0.000000e+00 : f32
    %305 = vector.broadcast %cst_119 : f32 to vector<8x8x64xf32>
    %306 = arith.maximumf %304, %305 : vector<8x8x64xf32>
    %307 = vector.extract_strided_slice %298 {offsets = [128, 0], sizes = [64, 64], strides = [1, 1]} : vector<256x64xf32> to vector<64x64xf32>
    %308 = vector.shape_cast %307 : vector<64x64xf32> to vector<8x8x64xf32>
    %cst_120 = arith.constant 0.000000e+00 : f32
    %309 = vector.broadcast %cst_120 : f32 to vector<8x8x64xf32>
    %310 = arith.maximumf %308, %309 : vector<8x8x64xf32>
    %311 = vector.extract_strided_slice %298 {offsets = [192, 0], sizes = [64, 64], strides = [1, 1]} : vector<256x64xf32> to vector<64x64xf32>
    %312 = vector.shape_cast %311 : vector<64x64xf32> to vector<8x8x64xf32>
    %cst_121 = arith.constant 0.000000e+00 : f32
    %313 = vector.broadcast %cst_121 : f32 to vector<8x8x64xf32>
    %314 = arith.maximumf %312, %313 : vector<8x8x64xf32>
    %c1_122 = arith.constant 1 : index
    %c2_123 = arith.constant 2 : index
    %c0_124 = arith.constant 0 : index
    %c0_125 = arith.constant 0 : index
    %315 = vector.load %arg9[%c1_122, %c2_123, %c0_124, %c0_125] : memref<2x4x192x64xf32, #tpu.memory_space<vmem>>, vector<1x1x192x64xf32>
    %316 = vector.shape_cast %315 : vector<1x1x192x64xf32> to vector<192x64xf32>
    %c1_126 = arith.constant 1 : index
    %c2_127 = arith.constant 2 : index
    %c0_128 = arith.constant 0 : index
    %c0_129 = arith.constant 0 : index
    %317 = vector.load %arg10[%c1_126, %c2_127, %c0_128, %c0_129] : memref<2x4x1x64xf32, #tpu.memory_space<vmem>>, vector<1x1x1x64xf32>
    %318 = vector.shape_cast %317 : vector<1x1x1x64xf32> to vector<1x64xf32>
    %cst_130 = arith.constant 0.000000e+00 : f32
    %319 = vector.broadcast %cst_130 : f32 to vector<1x8x64xf32>
    %320 = vector.extract_strided_slice %310 {offsets = [0, 0, 0], sizes = [7, 8, 64], strides = [1, 1, 1]} : vector<8x8x64xf32> to vector<7x8x64xf32>
    %321 = tpu.concatenate %319, %320 in 0 : vector<1x8x64xf32>, vector<7x8x64xf32> -> vector<8x8x64xf32>
    %322 = tpu.concatenate %321, %302, %310 in 2 : vector<8x8x64xf32>, vector<8x8x64xf32>, vector<8x8x64xf32> -> vector<8x8x192xf32>
    %323 = vector.extract_strided_slice %302 {offsets = [1, 0, 0], sizes = [7, 8, 64], strides = [1, 1, 1]} : vector<8x8x64xf32> to vector<7x8x64xf32>
    %cst_131 = arith.constant 0.000000e+00 : f32
    %324 = vector.broadcast %cst_131 : f32 to vector<1x8x64xf32>
    %325 = tpu.concatenate %323, %324 in 0 : vector<7x8x64xf32>, vector<1x8x64xf32> -> vector<8x8x64xf32>
    %326 = tpu.concatenate %302, %310, %325 in 2 : vector<8x8x64xf32>, vector<8x8x64xf32>, vector<8x8x64xf32> -> vector<8x8x192xf32>
    %cst_132 = arith.constant 0.000000e+00 : f32
    %327 = vector.broadcast %cst_132 : f32 to vector<1x8x64xf32>
    %328 = vector.extract_strided_slice %314 {offsets = [0, 0, 0], sizes = [7, 8, 64], strides = [1, 1, 1]} : vector<8x8x64xf32> to vector<7x8x64xf32>
    %329 = tpu.concatenate %327, %328 in 0 : vector<1x8x64xf32>, vector<7x8x64xf32> -> vector<8x8x64xf32>
    %330 = tpu.concatenate %329, %306, %314 in 2 : vector<8x8x64xf32>, vector<8x8x64xf32>, vector<8x8x64xf32> -> vector<8x8x192xf32>
    %331 = vector.extract_strided_slice %306 {offsets = [1, 0, 0], sizes = [7, 8, 64], strides = [1, 1, 1]} : vector<8x8x64xf32> to vector<7x8x64xf32>
    %cst_133 = arith.constant 0.000000e+00 : f32
    %332 = vector.broadcast %cst_133 : f32 to vector<1x8x64xf32>
    %333 = tpu.concatenate %331, %332 in 0 : vector<7x8x64xf32>, vector<1x8x64xf32> -> vector<8x8x64xf32>
    %334 = tpu.concatenate %306, %314, %333 in 2 : vector<8x8x64xf32>, vector<8x8x64xf32>, vector<8x8x64xf32> -> vector<8x8x192xf32>
    %335 = vector.shape_cast %322 : vector<8x8x192xf32> to vector<64x192xf32>
    %336 = vector.shape_cast %330 : vector<8x8x192xf32> to vector<64x192xf32>
    %337 = vector.shape_cast %326 : vector<8x8x192xf32> to vector<64x192xf32>
    %338 = vector.shape_cast %334 : vector<8x8x192xf32> to vector<64x192xf32>
    %339 = tpu.concatenate %335, %336, %337, %338 in 0 : vector<64x192xf32>, vector<64x192xf32>, vector<64x192xf32>, vector<64x192xf32> -> vector<256x192xf32>
    %cst_134 = arith.constant dense<0.000000e+00> : vector<256x64xf32>
    %340 = tpu.matmul %339, %316, %cst_134 {dimension_numbers = #tpu.dot_dimension_numbers<[1], [0], [0], [1], [0, 0, 1, 1], [], []>} : vector<256x192xf32>, vector<192x64xf32>, vector<256x64xf32> -> vector<256x64xf32>
    %341 = vector.broadcast %318 : vector<1x64xf32> to vector<256x64xf32>
    %342 = arith.addf %340, %341 : vector<256x64xf32>
    %343 = vector.extract_strided_slice %342 {offsets = [0, 0], sizes = [64, 64], strides = [1, 1]} : vector<256x64xf32> to vector<64x64xf32>
    %344 = vector.shape_cast %343 : vector<64x64xf32> to vector<8x8x64xf32>
    %cst_135 = arith.constant 0.000000e+00 : f32
    %345 = vector.broadcast %cst_135 : f32 to vector<8x8x64xf32>
    %346 = arith.maximumf %344, %345 : vector<8x8x64xf32>
    %347 = vector.extract_strided_slice %342 {offsets = [64, 0], sizes = [64, 64], strides = [1, 1]} : vector<256x64xf32> to vector<64x64xf32>
    %348 = vector.shape_cast %347 : vector<64x64xf32> to vector<8x8x64xf32>
    %cst_136 = arith.constant 0.000000e+00 : f32
    %349 = vector.broadcast %cst_136 : f32 to vector<8x8x64xf32>
    %350 = arith.maximumf %348, %349 : vector<8x8x64xf32>
    %351 = vector.extract_strided_slice %342 {offsets = [128, 0], sizes = [64, 64], strides = [1, 1]} : vector<256x64xf32> to vector<64x64xf32>
    %352 = vector.shape_cast %351 : vector<64x64xf32> to vector<8x8x64xf32>
    %cst_137 = arith.constant 0.000000e+00 : f32
    %353 = vector.broadcast %cst_137 : f32 to vector<8x8x64xf32>
    %354 = arith.maximumf %352, %353 : vector<8x8x64xf32>
    %355 = vector.extract_strided_slice %342 {offsets = [192, 0], sizes = [64, 64], strides = [1, 1]} : vector<256x64xf32> to vector<64x64xf32>
    %356 = vector.shape_cast %355 : vector<64x64xf32> to vector<8x8x64xf32>
    %cst_138 = arith.constant 0.000000e+00 : f32
    %357 = vector.broadcast %cst_138 : f32 to vector<8x8x64xf32>
    %358 = arith.maximumf %356, %357 : vector<8x8x64xf32>
    %c1_139 = arith.constant 1 : index
    %c3_140 = arith.constant 3 : index
    %c0_141 = arith.constant 0 : index
    %c0_142 = arith.constant 0 : index
    %359 = vector.load %arg9[%c1_139, %c3_140, %c0_141, %c0_142] : memref<2x4x192x64xf32, #tpu.memory_space<vmem>>, vector<1x1x192x64xf32>
    %360 = vector.shape_cast %359 : vector<1x1x192x64xf32> to vector<192x64xf32>
    %c1_143 = arith.constant 1 : index
    %c3_144 = arith.constant 3 : index
    %c0_145 = arith.constant 0 : index
    %c0_146 = arith.constant 0 : index
    %361 = vector.load %arg10[%c1_143, %c3_144, %c0_145, %c0_146] : memref<2x4x1x64xf32, #tpu.memory_space<vmem>>, vector<1x1x1x64xf32>
    %362 = vector.shape_cast %361 : vector<1x1x1x64xf32> to vector<1x64xf32>
    %cst_147 = arith.constant 0.000000e+00 : f32
    %363 = vector.broadcast %cst_147 : f32 to vector<8x1x64xf32>
    %364 = vector.extract_strided_slice %350 {offsets = [0, 0, 0], sizes = [8, 7, 64], strides = [1, 1, 1]} : vector<8x8x64xf32> to vector<8x7x64xf32>
    %365 = tpu.concatenate %363, %364 in 1 : vector<8x1x64xf32>, vector<8x7x64xf32> -> vector<8x8x64xf32>
    %366 = tpu.concatenate %365, %346, %350 in 2 : vector<8x8x64xf32>, vector<8x8x64xf32>, vector<8x8x64xf32> -> vector<8x8x192xf32>
    %367 = vector.extract_strided_slice %346 {offsets = [0, 1, 0], sizes = [8, 7, 64], strides = [1, 1, 1]} : vector<8x8x64xf32> to vector<8x7x64xf32>
    %cst_148 = arith.constant 0.000000e+00 : f32
    %368 = vector.broadcast %cst_148 : f32 to vector<8x1x64xf32>
    %369 = tpu.concatenate %367, %368 in 1 : vector<8x7x64xf32>, vector<8x1x64xf32> -> vector<8x8x64xf32>
    %370 = tpu.concatenate %346, %350, %369 in 2 : vector<8x8x64xf32>, vector<8x8x64xf32>, vector<8x8x64xf32> -> vector<8x8x192xf32>
    %cst_149 = arith.constant 0.000000e+00 : f32
    %371 = vector.broadcast %cst_149 : f32 to vector<8x1x64xf32>
    %372 = vector.extract_strided_slice %358 {offsets = [0, 0, 0], sizes = [8, 7, 64], strides = [1, 1, 1]} : vector<8x8x64xf32> to vector<8x7x64xf32>
    %373 = tpu.concatenate %371, %372 in 1 : vector<8x1x64xf32>, vector<8x7x64xf32> -> vector<8x8x64xf32>
    %374 = tpu.concatenate %373, %354, %358 in 2 : vector<8x8x64xf32>, vector<8x8x64xf32>, vector<8x8x64xf32> -> vector<8x8x192xf32>
    %375 = vector.extract_strided_slice %354 {offsets = [0, 1, 0], sizes = [8, 7, 64], strides = [1, 1, 1]} : vector<8x8x64xf32> to vector<8x7x64xf32>
    %cst_150 = arith.constant 0.000000e+00 : f32
    %376 = vector.broadcast %cst_150 : f32 to vector<8x1x64xf32>
    %377 = tpu.concatenate %375, %376 in 1 : vector<8x7x64xf32>, vector<8x1x64xf32> -> vector<8x8x64xf32>
    %378 = tpu.concatenate %354, %358, %377 in 2 : vector<8x8x64xf32>, vector<8x8x64xf32>, vector<8x8x64xf32> -> vector<8x8x192xf32>
    %379 = vector.shape_cast %366 : vector<8x8x192xf32> to vector<64x192xf32>
    %380 = vector.shape_cast %370 : vector<8x8x192xf32> to vector<64x192xf32>
    %381 = vector.shape_cast %374 : vector<8x8x192xf32> to vector<64x192xf32>
    %382 = vector.shape_cast %378 : vector<8x8x192xf32> to vector<64x192xf32>
    %383 = tpu.concatenate %379, %380, %381, %382 in 0 : vector<64x192xf32>, vector<64x192xf32>, vector<64x192xf32>, vector<64x192xf32> -> vector<256x192xf32>
    %cst_151 = arith.constant dense<0.000000e+00> : vector<256x64xf32>
    %384 = tpu.matmul %383, %360, %cst_151 {dimension_numbers = #tpu.dot_dimension_numbers<[1], [0], [0], [1], [0, 0, 1, 1], [], []>} : vector<256x192xf32>, vector<192x64xf32>, vector<256x64xf32> -> vector<256x64xf32>
    %385 = vector.broadcast %362 : vector<1x64xf32> to vector<256x64xf32>
    %386 = arith.addf %384, %385 : vector<256x64xf32>
    %387 = vector.extract_strided_slice %386 {offsets = [0, 0], sizes = [64, 64], strides = [1, 1]} : vector<256x64xf32> to vector<64x64xf32>
    %388 = vector.shape_cast %387 : vector<64x64xf32> to vector<8x8x64xf32>
    %389 = arith.addf %388, %211 : vector<8x8x64xf32>
    %cst_152 = arith.constant 0.000000e+00 : f32
    %390 = vector.broadcast %cst_152 : f32 to vector<8x8x64xf32>
    %391 = arith.maximumf %389, %390 : vector<8x8x64xf32>
    %392 = vector.extract_strided_slice %386 {offsets = [64, 0], sizes = [64, 64], strides = [1, 1]} : vector<256x64xf32> to vector<64x64xf32>
    %393 = vector.shape_cast %392 : vector<64x64xf32> to vector<8x8x64xf32>
    %394 = arith.addf %393, %216 : vector<8x8x64xf32>
    %cst_153 = arith.constant 0.000000e+00 : f32
    %395 = vector.broadcast %cst_153 : f32 to vector<8x8x64xf32>
    %396 = arith.maximumf %394, %395 : vector<8x8x64xf32>
    %397 = vector.extract_strided_slice %386 {offsets = [128, 0], sizes = [64, 64], strides = [1, 1]} : vector<256x64xf32> to vector<64x64xf32>
    %398 = vector.shape_cast %397 : vector<64x64xf32> to vector<8x8x64xf32>
    %399 = arith.addf %398, %221 : vector<8x8x64xf32>
    %cst_154 = arith.constant 0.000000e+00 : f32
    %400 = vector.broadcast %cst_154 : f32 to vector<8x8x64xf32>
    %401 = arith.maximumf %399, %400 : vector<8x8x64xf32>
    %402 = vector.extract_strided_slice %386 {offsets = [192, 0], sizes = [64, 64], strides = [1, 1]} : vector<256x64xf32> to vector<64x64xf32>
    %403 = vector.shape_cast %402 : vector<64x64xf32> to vector<8x8x64xf32>
    %404 = arith.addf %403, %226 : vector<8x8x64xf32>
    %cst_155 = arith.constant 0.000000e+00 : f32
    %405 = vector.broadcast %cst_155 : f32 to vector<8x8x64xf32>
    %406 = arith.maximumf %404, %405 : vector<8x8x64xf32>
    %c0_156 = arith.constant 0 : index
    %c0_157 = arith.constant 0 : index
    %407 = vector.load %arg7[%c0_156, %c0_157] : memref<128x64xf32, #tpu.memory_space<vmem>>, vector<128x64xf32>
    %c0_158 = arith.constant 0 : index
    %c0_159 = arith.constant 0 : index
    %408 = vector.load %arg8[%c0_158, %c0_159] : memref<1x64xf32, #tpu.memory_space<vmem>>, vector<1x64xf32>
    %409 = vector.shape_cast %1 : vector<8x8x128xf32> to vector<64x128xf32>
    %cst_160 = arith.constant dense<0.000000e+00> : vector<64x64xf32>
    %410 = tpu.matmul %409, %407, %cst_160 {dimension_numbers = #tpu.dot_dimension_numbers<[1], [0], [0], [1], [0, 0, 1, 1], [], []>} : vector<64x128xf32>, vector<128x64xf32>, vector<64x64xf32> -> vector<64x64xf32>
    %411 = vector.broadcast %408 : vector<1x64xf32> to vector<64x64xf32>
    %412 = arith.addf %410, %411 : vector<64x64xf32>
    %413 = vector.shape_cast %412 : vector<64x64xf32> to vector<8x8x64xf32>
    %cst_161 = arith.constant 0.000000e+00 : f32
    %414 = vector.broadcast %cst_161 : f32 to vector<8x8x64xf32>
    %415 = arith.maximumf %413, %414 : vector<8x8x64xf32>
    %416 = vector.extract_strided_slice %415 {offsets = [0, 0, 0], sizes = [1, 8, 64], strides = [1, 1, 1]} : vector<8x8x64xf32> to vector<1x8x64xf32>
    %417 = vector.extract_strided_slice %415 {offsets = [0, 0, 0], sizes = [7, 8, 64], strides = [1, 1, 1]} : vector<8x8x64xf32> to vector<7x8x64xf32>
    %418 = tpu.concatenate %416, %417 in 0 : vector<1x8x64xf32>, vector<7x8x64xf32> -> vector<8x8x64xf32>
    %cst_162 = arith.constant 2.500000e-01 : f32
    %419 = vector.broadcast %cst_162 : f32 to vector<8x8x64xf32>
    %420 = arith.mulf %419, %418 : vector<8x8x64xf32>
    %cst_163 = arith.constant 7.500000e-01 : f32
    %421 = vector.broadcast %cst_163 : f32 to vector<8x8x64xf32>
    %422 = arith.mulf %421, %415 : vector<8x8x64xf32>
    %423 = arith.addf %420, %422 : vector<8x8x64xf32>
    %cst_164 = arith.constant 7.500000e-01 : f32
    %424 = vector.broadcast %cst_164 : f32 to vector<8x8x64xf32>
    %425 = arith.mulf %424, %415 : vector<8x8x64xf32>
    %426 = vector.extract_strided_slice %415 {offsets = [1, 0, 0], sizes = [7, 8, 64], strides = [1, 1, 1]} : vector<8x8x64xf32> to vector<7x8x64xf32>
    %427 = vector.extract_strided_slice %415 {offsets = [7, 0, 0], sizes = [1, 8, 64], strides = [1, 1, 1]} : vector<8x8x64xf32> to vector<1x8x64xf32>
    %428 = tpu.concatenate %426, %427 in 0 : vector<7x8x64xf32>, vector<1x8x64xf32> -> vector<8x8x64xf32>
    %cst_165 = arith.constant 2.500000e-01 : f32
    %429 = vector.broadcast %cst_165 : f32 to vector<8x8x64xf32>
    %430 = arith.mulf %429, %428 : vector<8x8x64xf32>
    %431 = arith.addf %425, %430 : vector<8x8x64xf32>
    %432 = vector.extract_strided_slice %423 {offsets = [0, 0, 0], sizes = [8, 1, 64], strides = [1, 1, 1]} : vector<8x8x64xf32> to vector<8x1x64xf32>
    %433 = vector.extract_strided_slice %423 {offsets = [0, 0, 0], sizes = [8, 7, 64], strides = [1, 1, 1]} : vector<8x8x64xf32> to vector<8x7x64xf32>
    %434 = tpu.concatenate %432, %433 in 1 : vector<8x1x64xf32>, vector<8x7x64xf32> -> vector<8x8x64xf32>
    %cst_166 = arith.constant 2.500000e-01 : f32
    %435 = vector.broadcast %cst_166 : f32 to vector<8x8x64xf32>
    %436 = arith.mulf %435, %434 : vector<8x8x64xf32>
    %cst_167 = arith.constant 7.500000e-01 : f32
    %437 = vector.broadcast %cst_167 : f32 to vector<8x8x64xf32>
    %438 = arith.mulf %437, %423 : vector<8x8x64xf32>
    %439 = arith.addf %436, %438 : vector<8x8x64xf32>
    %cst_168 = arith.constant 7.500000e-01 : f32
    %440 = vector.broadcast %cst_168 : f32 to vector<8x8x64xf32>
    %441 = arith.mulf %440, %423 : vector<8x8x64xf32>
    %442 = vector.extract_strided_slice %423 {offsets = [0, 1, 0], sizes = [8, 7, 64], strides = [1, 1, 1]} : vector<8x8x64xf32> to vector<8x7x64xf32>
    %443 = vector.extract_strided_slice %423 {offsets = [0, 7, 0], sizes = [8, 1, 64], strides = [1, 1, 1]} : vector<8x8x64xf32> to vector<8x1x64xf32>
    %444 = tpu.concatenate %442, %443 in 1 : vector<8x7x64xf32>, vector<8x1x64xf32> -> vector<8x8x64xf32>
    %cst_169 = arith.constant 2.500000e-01 : f32
    %445 = vector.broadcast %cst_169 : f32 to vector<8x8x64xf32>
    %446 = arith.mulf %445, %444 : vector<8x8x64xf32>
    %447 = arith.addf %441, %446 : vector<8x8x64xf32>
    %448 = arith.addf %391, %439 : vector<8x8x64xf32>
    %449 = arith.addf %396, %447 : vector<8x8x64xf32>
    %450 = tpu.concatenate %448, %449 in 2 : vector<8x8x64xf32>, vector<8x8x64xf32> -> vector<8x8x128xf32>
    %c0_170 = arith.constant 0 : index
    %c0_171 = arith.constant 0 : index
    %c0_172 = arith.constant 0 : index
    %c0_173 = arith.constant 0 : index
    %c0_174 = arith.constant 0 : index
    %451 = vector.load %arg11[%c0_170, %c0_171, %c0_172, %c0_173, %c0_174] : memref<1x8x2x8x128xf32, #tpu.memory_space<vmem>>, vector<1x8x1x8x128xf32>
    %452 = vector.shape_cast %451 : vector<1x8x1x8x128xf32> to vector<8x8x128xf32>
    %453 = vector.shape_cast %450 : vector<8x8x128xf32> to vector<1x8x1x8x128xf32>
    tpu.vector_store %arg11[%c0_170, %c0_171, %c0_172, %c0_173, %c0_174], %453 {strides = array<i32>} : memref<1x8x2x8x128xf32, #tpu.memory_space<vmem>>, vector<1x8x1x8x128xf32>,
    %454 = vector.extract_strided_slice %431 {offsets = [0, 0, 0], sizes = [8, 1, 64], strides = [1, 1, 1]} : vector<8x8x64xf32> to vector<8x1x64xf32>
    %455 = vector.extract_strided_slice %431 {offsets = [0, 0, 0], sizes = [8, 7, 64], strides = [1, 1, 1]} : vector<8x8x64xf32> to vector<8x7x64xf32>
    %456 = tpu.concatenate %454, %455 in 1 : vector<8x1x64xf32>, vector<8x7x64xf32> -> vector<8x8x64xf32>
    %cst_175 = arith.constant 2.500000e-01 : f32
    %457 = vector.broadcast %cst_175 : f32 to vector<8x8x64xf32>
    %458 = arith.mulf %457, %456 : vector<8x8x64xf32>
    %cst_176 = arith.constant 7.500000e-01 : f32
    %459 = vector.broadcast %cst_176 : f32 to vector<8x8x64xf32>
    %460 = arith.mulf %459, %431 : vector<8x8x64xf32>
    %461 = arith.addf %458, %460 : vector<8x8x64xf32>
    %cst_177 = arith.constant 7.500000e-01 : f32
    %462 = vector.broadcast %cst_177 : f32 to vector<8x8x64xf32>
    %463 = arith.mulf %462, %431 : vector<8x8x64xf32>
    %464 = vector.extract_strided_slice %431 {offsets = [0, 1, 0], sizes = [8, 7, 64], strides = [1, 1, 1]} : vector<8x8x64xf32> to vector<8x7x64xf32>
    %465 = vector.extract_strided_slice %431 {offsets = [0, 7, 0], sizes = [8, 1, 64], strides = [1, 1, 1]} : vector<8x8x64xf32> to vector<8x1x64xf32>
    %466 = tpu.concatenate %464, %465 in 1 : vector<8x7x64xf32>, vector<8x1x64xf32> -> vector<8x8x64xf32>
    %cst_178 = arith.constant 2.500000e-01 : f32
    %467 = vector.broadcast %cst_178 : f32 to vector<8x8x64xf32>
    %468 = arith.mulf %467, %466 : vector<8x8x64xf32>
    %469 = arith.addf %463, %468 : vector<8x8x64xf32>
    %470 = arith.addf %401, %461 : vector<8x8x64xf32>
    %471 = arith.addf %406, %469 : vector<8x8x64xf32>
    %472 = tpu.concatenate %470, %471 in 2 : vector<8x8x64xf32>, vector<8x8x64xf32> -> vector<8x8x128xf32>
    %c0_179 = arith.constant 0 : index
    %c0_180 = arith.constant 0 : index
    %c1_181 = arith.constant 1 : index
    %c0_182 = arith.constant 0 : index
    %c0_183 = arith.constant 0 : index
    %473 = vector.load %arg11[%c0_179, %c0_180, %c1_181, %c0_182, %c0_183] : memref<1x8x2x8x128xf32, #tpu.memory_space<vmem>>, vector<1x8x1x8x128xf32>
    %474 = vector.shape_cast %473 : vector<1x8x1x8x128xf32> to vector<8x8x128xf32>
    %475 = vector.shape_cast %472 : vector<8x8x128xf32> to vector<1x8x1x8x128xf32>
    tpu.vector_store %arg11[%c0_179, %c0_180, %c1_181, %c0_182, %c0_183], %475 {strides = array<i32>} : memref<1x8x2x8x128xf32, #tpu.memory_space<vmem>>, vector<1x8x1x8x128xf32>,
    return
  }
  func.func @transform_0(%arg0: i32) -> (i32, i32, i32, i32) {
    %c0_i32 = arith.constant 0 : i32
    %c0_i32_0 = arith.constant 0 : i32
    %c0_i32_1 = arith.constant 0 : i32
    %c0_i32_2 = arith.constant 0 : i32
    return %arg0, %c0_i32, %c0_i32_0, %c0_i32_1 : i32, i32, i32, i32
  }
  func.func @transform_1(%arg0: i32) -> (i32, i32) {
    %c0_i32 = arith.constant 0 : i32
    %c0_i32_0 = arith.constant 0 : i32
    %c0_i32_1 = arith.constant 0 : i32
    return %c0_i32, %c0_i32_0 : i32, i32
  }
  func.func @transform_2(%arg0: i32) -> (i32, i32) {
    %c0_i32 = arith.constant 0 : i32
    %c0_i32_0 = arith.constant 0 : i32
    %c0_i32_1 = arith.constant 0 : i32
    return %c0_i32, %c0_i32_0 : i32, i32
  }
  func.func @transform_3(%arg0: i32) -> (i32, i32) {
    %c0_i32 = arith.constant 0 : i32
    %c0_i32_0 = arith.constant 0 : i32
    %c0_i32_1 = arith.constant 0 : i32
    return %c0_i32, %c0_i32_0 : i32, i32
  }
  func.func @transform_4(%arg0: i32) -> (i32, i32) {
    %c0_i32 = arith.constant 0 : i32
    %c0_i32_0 = arith.constant 0 : i32
    %c0_i32_1 = arith.constant 0 : i32
    return %c0_i32, %c0_i32_0 : i32, i32
  }
  func.func @transform_5(%arg0: i32) -> (i32, i32) {
    %c0_i32 = arith.constant 0 : i32
    %c0_i32_0 = arith.constant 0 : i32
    %c0_i32_1 = arith.constant 0 : i32
    return %c0_i32, %c0_i32_0 : i32, i32
  }
  func.func @transform_6(%arg0: i32) -> (i32, i32) {
    %c0_i32 = arith.constant 0 : i32
    %c0_i32_0 = arith.constant 0 : i32
    %c0_i32_1 = arith.constant 0 : i32
    return %c0_i32, %c0_i32_0 : i32, i32
  }
  func.func @transform_7(%arg0: i32) -> (i32, i32) {
    %c0_i32 = arith.constant 0 : i32
    %c0_i32_0 = arith.constant 0 : i32
    %c0_i32_1 = arith.constant 0 : i32
    return %c0_i32, %c0_i32_0 : i32, i32
  }
  func.func @transform_8(%arg0: i32) -> (i32, i32, i32, i32) {
    %c0_i32 = arith.constant 0 : i32
    %c0_i32_0 = arith.constant 0 : i32
    %c0_i32_1 = arith.constant 0 : i32
    %c0_i32_2 = arith.constant 0 : i32
    %c0_i32_3 = arith.constant 0 : i32
    return %c0_i32, %c0_i32_0, %c0_i32_1, %c0_i32_2 : i32, i32, i32, i32
  }
  func.func @transform_9(%arg0: i32) -> (i32, i32, i32, i32) {
    %c0_i32 = arith.constant 0 : i32
    %c0_i32_0 = arith.constant 0 : i32
    %c0_i32_1 = arith.constant 0 : i32
    %c0_i32_2 = arith.constant 0 : i32
    %c0_i32_3 = arith.constant 0 : i32
    return %c0_i32, %c0_i32_0, %c0_i32_1, %c0_i32_2 : i32, i32, i32, i32
  }
  func.func @transform_10(%arg0: i32) -> (i32, i32, i32, i32, i32) {
    %c0_i32 = arith.constant 0 : i32
    %c0_i32_0 = arith.constant 0 : i32
    %c0_i32_1 = arith.constant 0 : i32
    %c0_i32_2 = arith.constant 0 : i32
    %c0_i32_3 = arith.constant 0 : i32
    return %arg0, %c0_i32, %c0_i32_0, %c0_i32_1, %c0_i32_2 : i32, i32, i32, i32, i32
  }
}

</mosaic_0001>

<llo_original>
// kernel: upsampler_block_fwd.1
$region0: #{upsampler_block_fwd.1}
  #allocation0 [shape = 'u32[]', space=smem, size = 0x4, offset = 0x4, fixed_abs, tag = 'smem constant byte address 0x4 - core index']
  #allocation1 [shape = 'u32[144,128]{1,0:T(1,128)}', space=vmem, size = 0x12000, scoped, tag = 'internal scratch']
  %s0 = inlined_call_operand.vmem [shape: f32[2,8,8,128], index: 0, kind: input, shape index: {}]
  %s1 = inlined_call_operand.vmem [shape: f32[128,64], index: 1, kind: input, shape index: {}]
  %s2 = inlined_call_operand.vmem [shape: f32[256,64], index: 2, kind: input, shape index: {}]
  %s3 = inlined_call_operand.vmem [shape: f32[256,64], index: 3, kind: input, shape index: {}]
  %s4 = inlined_call_operand.vmem [shape: f32[512,64], index: 4, kind: input, shape index: {}]
  %s5 = inlined_call_operand.vmem [shape: f32[1,64], index: 5, kind: input, shape index: {}]
  %s6 = inlined_call_operand.vmem [shape: f32[128,64], index: 6, kind: input, shape index: {}]
  %s7 = inlined_call_operand.vmem [shape: f32[1,64], index: 7, kind: input, shape index: {}]
  %s8 = inlined_call_operand.vmem [shape: f32[2,4,192,64], index: 8, kind: input, shape index: {}]
  %s9 = inlined_call_operand.vmem [shape: f32[2,4,1,64], index: 9, kind: input, shape index: {}]
  %s10 = inlined_call_operand.vmem [shape: f32[2,8,2,8,128], index: 10, kind: output, shape index: {}]
  %s11 = sld [smem:[#allocation0]]
  $region73: #{upsampler_block_fwd.1} parent=0
    _
  %s13 = ssub.s32 1, %s11
  %s14 = scalar_select 0, %s13, %s11
  loop: start=0, step=1, limit=4
  $region2: #{upsampler_block_fwd.1} parent=0 // loop_pre_header
    _
  $region3: #{upsampler_block_fwd.1} parent=0 // loop_header
    %s16 = sphi 0, %s20
    %p17 = scmp.ge.s32.totalorder %s16, 4
    %s26 = sphi 0, %s28
    %s29 = sphi 0, %s26
    %s30 = sphi 0, %s29
    %s46 = sphi 0, %s30
    %s50 = sphi 0, %s50
    %s52 = sphi 0, %s50
    %s53 = sphi 0, %s52
    %s67 = sphi 0, %s53
    %s71 = sphi 0, %s71
    %s73 = sphi 0, %s71
    %s74 = sphi 0, %s73
    %s88 = sphi 0, %s74
    %s92 = sphi 0, %s92
    %s94 = sphi 0, %s92
    %s95 = sphi 0, %s94
    %s109 = sphi 0, %s95
    %s113 = sphi 0, %s113
    %s115 = sphi 0, %s113
    %s116 = sphi 0, %s115
    %s130 = sphi 0, %s116
    %s134 = sphi 0, %s134
    %s136 = sphi 0, %s134
    %s137 = sphi 0, %s136
    %s151 = sphi 0, %s137
    %s155 = sphi 0, %s155
    %s157 = sphi 0, %s155
    %s158 = sphi 0, %s157
    %s172 = sphi 0, %s158
    %s176 = sphi 0, %s176
    %s178 = sphi 0, %s176
    %s179 = sphi 0, %s178
    %s193 = sphi 0, %s179
    %s197 = sphi 0, %s197
    %s199 = sphi 0, %s197
    %s200 = sphi 0, %s199
    %s214 = sphi 0, %s200
    %s218 = sphi 0, %s218
    %s220 = sphi 0, %s218
    %s221 = sphi 0, %s220
    %s235 = sphi 0, %s221
    %s241 = sphi 0, %s243
    %s244 = sphi 0, %s241
    %s245 = sphi 0, %s244
    %s261 = sphi 0, %s245
  $region4: #{upsampler_block_fwd.1} parent=0 // loop_header_branch
    %19 = sbr.rel (%p17) target = $region8
  $region5: #{upsampler_block_fwd.1} parent=0 // loop_body
    %s21 = ssub.s32 %s16, 1
    %s22 = ssub.s32 %s16, 2
    %s23 = sadd.s32 %s16, 1
    %s24 = ssub.s32 %s16, %s23
    %p25 = scmp.eq.s32.totalorder %s24, 0
    %s27 = sadd.s32 %s26, 1
    %s28 = scalar_select %p25, %s26, %s27
    %p31 = pneg %p25
    %p32 = scmp.eq.s32.totalorder %s16, 1
    %p33 = por %p31, %p32
    %p34 = scmp.ne.s32.totalorder %s26, %s29
    %p35 = scmp.eq.s32.totalorder %s16, 0
    %p36 = por %p34, %p35
    %p37 = scmp.ne.s32.totalorder %s26, %s29
    %p38 = scmp.eq.s32.totalorder %s21, 1
    %p39 = por %p37, %p38
    %p40 = scmp.ne.s32.totalorder %s29, %s30
    %p41 = scmp.eq.s32.totalorder %s21, 0
    %p42 = por %p40, %p41
    %p43 = scmp.ne.s32.totalorder %s29, %s30
    %p44 = scmp.eq.s32.totalorder %s22, 1
    %p45 = por %p43, %p44
    %p47 = scmp.ne.s32.totalorder %s30, %s46
    %p48 = scmp.eq.s32.totalorder %s22, 0
    %p49 = por %p47, %p48
    %s51 = sadd.s32 %s50, 1
    %p54 = scmp.eq.s32.totalorder %s16, 1
    %p55 = scmp.ne.s32.totalorder %s50, %s52
    %p56 = scmp.eq.s32.totalorder %s16, 0
    %p57 = por %p55, %p56
    %p58 = scmp.ne.s32.totalorder %s50, %s52
    %p59 = scmp.eq.s32.totalorder %s21, 1
    %p60 = por %p58, %p59
    %p61 = scmp.ne.s32.totalorder %s52, %s53
    %p62 = scmp.eq.s32.totalorder %s21, 0
    %p63 = por %p61, %p62
    %p64 = scmp.ne.s32.totalorder %s52, %s53
    %p65 = scmp.eq.s32.totalorder %s22, 1
    %p66 = por %p64, %p65
    %p68 = scmp.ne.s32.totalorder %s53, %s67
    %p69 = scmp.eq.s32.totalorder %s22, 0
    %p70 = por %p68, %p69
    %s72 = sadd.s32 %s71, 1
    %p75 = scmp.eq.s32.totalorder %s16, 1
    %p76 = scmp.ne.s32.totalorder %s71, %s73
    %p77 = scmp.eq.s32.totalorder %s16, 0
    %p78 = por %p76, %p77
    %p79 = scmp.ne.s32.totalorder %s71, %s73
    %p80 = scmp.eq.s32.totalorder %s21, 1
    %p81 = por %p79, %p80
    %p82 = scmp.ne.s32.totalorder %s73, %s74
    %p83 = scmp.eq.s32.totalorder %s21, 0
    %p84 = por %p82, %p83
    %p85 = scmp.ne.s32.totalorder %s73, %s74
    %p86 = scmp.eq.s32.totalorder %s22, 1
    %p87 = por %p85, %p86
    %p89 = scmp.ne.s32.totalorder %s74, %s88
    %p90 = scmp.eq.s32.totalorder %s22, 0
    %p91 = por %p89, %p90
    %s93 = sadd.s32 %s92, 1
    %p96 = scmp.eq.s32.totalorder %s16, 1
    %p97 = scmp.ne.s32.totalorder %s92, %s94
    %p98 = scmp.eq.s32.totalorder %s16, 0
    %p99 = por %p97, %p98
    %p100 = scmp.ne.s32.totalorder %s92, %s94
    %p101 = scmp.eq.s32.totalorder %s21, 1
    %p102 = por %p100, %p101
    %p103 = scmp.ne.s32.totalorder %s94, %s95
    %p104 = scmp.eq.s32.totalorder %s21, 0
    %p105 = por %p103, %p104
    %p106 = scmp.ne.s32.totalorder %s94, %s95
    %p107 = scmp.eq.s32.totalorder %s22, 1
    %p108 = por %p106, %p107
    %p110 = scmp.ne.s32.totalorder %s95, %s109
    %p111 = scmp.eq.s32.totalorder %s22, 0
    %p112 = por %p110, %p111
    %s114 = sadd.s32 %s113, 1
    %p117 = scmp.eq.s32.totalorder %s16, 1
    %p118 = scmp.ne.s32.totalorder %s113, %s115
    %p119 = scmp.eq.s32.totalorder %s16, 0
    %p120 = por %p118, %p119
    %p121 = scmp.ne.s32.totalorder %s113, %s115
    %p122 = scmp.eq.s32.totalorder %s21, 1
    %p123 = por %p121, %p122
    %p124 = scmp.ne.s32.totalorder %s115, %s116
    %p125 = scmp.eq.s32.totalorder %s21, 0
    %p126 = por %p124, %p125
    %p127 = scmp.ne.s32.totalorder %s115, %s116
    %p128 = scmp.eq.s32.totalorder %s22, 1
    %p129 = por %p127, %p128
    %p131 = scmp.ne.s32.totalorder %s116, %s130
    %p132 = scmp.eq.s32.totalorder %s22, 0
    %p133 = por %p131, %p132
    %s135 = sadd.s32 %s134, 1
    %p138 = scmp.eq.s32.totalorder %s16, 1
    %p139 = scmp.ne.s32.totalorder %s134, %s136
    %p140 = scmp.eq.s32.totalorder %s16, 0
    %p141 = por %p139, %p140
    %p142 = scmp.ne.s32.totalorder %s134, %s136
    %p143 = scmp.eq.s32.totalorder %s21, 1
    %p144 = por %p142, %p143
    %p145 = scmp.ne.s32.totalorder %s136, %s137
    %p146 = scmp.eq.s32.totalorder %s21, 0
    %p147 = por %p145, %p146
    %p148 = scmp.ne.s32.totalorder %s136, %s137
    %p149 = scmp.eq.s32.totalorder %s22, 1
    %p150 = por %p148, %p149
    %p152 = scmp.ne.s32.totalorder %s137, %s151
    %p153 = scmp.eq.s32.totalorder %s22, 0
    %p154 = por %p152, %p153
    %s156 = sadd.s32 %s155, 1
    %p159 = scmp.eq.s32.totalorder %s16, 1
    %p160 = scmp.ne.s32.totalorder %s155, %s157
    %p161 = scmp.eq.s32.totalorder %s16, 0
    %p162 = por %p160, %p161
    %p163 = scmp.ne.s32.totalorder %s155, %s157
    %p164 = scmp.eq.s32.totalorder %s21, 1
    %p165 = por %p163, %p164
    %p166 = scmp.ne.s32.totalorder %s157, %s158
    %p167 = scmp.eq.s32.totalorder %s21, 0
    %p168 = por %p166, %p167
    %p169 = scmp.ne.s32.totalorder %s157, %s158
    %p170 = scmp.eq.s32.totalorder %s22, 1
    %p171 = por %p169, %p170
    %p173 = scmp.ne.s32.totalorder %s158, %s172
    %p174 = scmp.eq.s32.totalorder %s22, 0
    %p175 = por %p173, %p174
    %s177 = sadd.s32 %s176, 1
    %p180 = scmp.eq.s32.totalorder %s16, 1
    %p181 = scmp.ne.s32.totalorder %s176, %s178
    %p182 = scmp.eq.s32.totalorder %s16, 0
    %p183 = por %p181, %p182
    %p184 = scmp.ne.s32.totalorder %s176, %s178
    %p185 = scmp.eq.s32.totalorder %s21, 1
    %p186 = por %p184, %p185
    %p187 = scmp.ne.s32.totalorder %s178, %s179
    %p188 = scmp.eq.s32.totalorder %s21, 0
    %p189 = por %p187, %p188
    %p190 = scmp.ne.s32.totalorder %s178, %s179
    %p191 = scmp.eq.s32.totalorder %s22, 1
    %p192 = por %p190, %p191
    %p194 = scmp.ne.s32.totalorder %s179, %s193
    %p195 = scmp.eq.s32.totalorder %s22, 0
    %p196 = por %p194, %p195
    %s198 = sadd.s32 %s197, 1
    %p201 = scmp.eq.s32.totalorder %s16, 1
    %p202 = scmp.ne.s32.totalorder %s197, %s199
    %p203 = scmp.eq.s32.totalorder %s16, 0
    %p204 = por %p202, %p203
    %p205 = scmp.ne.s32.totalorder %s197, %s199
    %p206 = scmp.eq.s32.totalorder %s21, 1
    %p207 = por %p205, %p206
    %p208 = scmp.ne.s32.totalorder %s199, %s200
    %p209 = scmp.eq.s32.totalorder %s21, 0
    %p210 = por %p208, %p209
    %p211 = scmp.ne.s32.totalorder %s199, %s200
    %p212 = scmp.eq.s32.totalorder %s22, 1
    %p213 = por %p211, %p212
    %p215 = scmp.ne.s32.totalorder %s200, %s214
    %p216 = scmp.eq.s32.totalorder %s22, 0
    %p217 = por %p215, %p216
    %s219 = sadd.s32 %s218, 1
    %p222 = scmp.eq.s32.totalorder %s16, 1
    %p223 = scmp.ne.s32.totalorder %s218, %s220
    %p224 = scmp.eq.s32.totalorder %s16, 0
    %p225 = por %p223, %p224
    %p226 = scmp.ne.s32.totalorder %s218, %s220
    %p227 = scmp.eq.s32.totalorder %s21, 1
    %p228 = por %p226, %p227
    %p229 = scmp.ne.s32.totalorder %s220, %s221
    %p230 = scmp.eq.s32.totalorder %s21, 0
    %p231 = por %p229, %p230
    %p232 = scmp.ne.s32.totalorder %s220, %s221
    %p233 = scmp.eq.s32.totalorder %s22, 1
    %p234 = por %p232, %p233
    %p236 = scmp.ne.s32.totalorder %s221, %s235
    %p237 = scmp.eq.s32.totalorder %s22, 0
    %p238 = por %p236, %p237
    %s239 = ssub.s32 %s16, %s23
    %p240 = scmp.eq.s32.totalorder %s239, 0
    %s242 = sadd.s32 %s241, 1
    %s243 = scalar_select %p240, %s241, %s242
    %p246 = pneg %p240
    %p247 = scmp.eq.s32.totalorder %s16, 1
    %p248 = por %p246, %p247
    %p249 = scmp.ne.s32.totalorder %s241, %s244
    %p250 = scmp.eq.s32.totalorder %s16, 0
    %p251 = por %p249, %p250
    %p252 = scmp.ne.s32.totalorder %s241, %s244
    %p253 = scmp.eq.s32.totalorder %s21, 1
    %p254 = por %p252, %p253
    %p255 = scmp.ne.s32.totalorder %s244, %s245
    %p256 = scmp.eq.s32.totalorder %s21, 0
    %p257 = por %p255, %p256
    %p258 = scmp.ne.s32.totalorder %s244, %s245
    %p259 = scmp.eq.s32.totalorder %s22, 1
    %p260 = por %p258, %p259
    %p262 = scmp.ne.s32.totalorder %s245, %s261
    %p263 = scmp.eq.s32.totalorder %s22, 0
    %p264 = por %p262, %p263
    %p265 = scmp.le.s32.totalorder 1, %s16
    %p266 = scmp.lt.s32.totalorder %s16, 3
    %p267 = pnand %p265, %p266
    %p268 = pneg %p267
    // Predicated region
    $region9: #{upsampler_block_fwd.1} parent=5 // pred_check
      _
    $region10: #{upsampler_block_fwd.1} parent=5 // pred_check_branch
      %270 = sbr.rel (%p267) target = $region12
    $region11: #{upsampler_block_fwd.1} parent=5 // pred_region
      %s271 = ssub.s32 %s16, 1
      // Predicated region
      $region13: #{upsampler_block_fwd.1} parent=11 // pred_check
        %p272 = pneg %p63
      $region14: #{upsampler_block_fwd.1} parent=11 // pred_check_branch
        %274 = sbr.rel (%p272) target = $region16
      $region15: #{upsampler_block_fwd.1} parent=11 // pred_region
        _
      $region16: #{upsampler_block_fwd.1} parent=11 // pred_fallthru
        _
      // Predicated region
      $region17: #{upsampler_block_fwd.1} parent=11 // pred_check
        %p275 = pneg %p84
      $region18: #{upsampler_block_fwd.1} parent=11 // pred_check_branch
        %277 = sbr.rel (%p275) target = $region20
      $region19: #{upsampler_block_fwd.1} parent=11 // pred_region
        _
      $region20: #{upsampler_block_fwd.1} parent=11 // pred_fallthru
        _
      // Predicated region
      $region21: #{upsampler_block_fwd.1} parent=11 // pred_check
        %p278 = pneg %p105
      $region22: #{upsampler_block_fwd.1} parent=11 // pred_check_branch
        %280 = sbr.rel (%p278) target = $region24
      $region23: #{upsampler_block_fwd.1} parent=11 // pred_region
        _
      $region24: #{upsampler_block_fwd.1} parent=11 // pred_fallthru
        _
      // Predicated region
      $region25: #{upsampler_block_fwd.1} parent=11 // pred_check
        %p281 = pneg %p126
      $region26: #{upsampler_block_fwd.1} parent=11 // pred_check_branch
        %283 = sbr.rel (%p281) target = $region28
      $region27: #{upsampler_block_fwd.1} parent=11 // pred_region
        _
      $region28: #{upsampler_block_fwd.1} parent=11 // pred_fallthru
        _
      // Predicated region
      $region29: #{upsampler_block_fwd.1} parent=11 // pred_check
        %p284 = pneg %p147
      $region30: #{upsampler_block_fwd.1} parent=11 // pred_check_branch
        %286 = sbr.rel (%p284) target = $region32
      $region31: #{upsampler_block_fwd.1} parent=11 // pred_region
        _
      $region32: #{upsampler_block_fwd.1} parent=11 // pred_fallthru
        _
      // Predicated region
      $region33: #{upsampler_block_fwd.1} parent=11 // pred_check
        %p287 = pneg %p168
      $region34: #{upsampler_block_fwd.1} parent=11 // pred_check_branch
        %289 = sbr.rel (%p287) target = $region36
      $region35: #{upsampler_block_fwd.1} parent=11 // pred_region
        _
      $region36: #{upsampler_block_fwd.1} parent=11 // pred_fallthru
        _
      // Predicated region
      $region37: #{upsampler_block_fwd.1} parent=11 // pred_check
        %p290 = pneg %p189
      $region38: #{upsampler_block_fwd.1} parent=11 // pred_check_branch
        %292 = sbr.rel (%p290) target = $region40
      $region39: #{upsampler_block_fwd.1} parent=11 // pred_region
        _
      $region40: #{upsampler_block_fwd.1} parent=11 // pred_fallthru
        _
      // Predicated region
      $region41: #{upsampler_block_fwd.1} parent=11 // pred_check
        %p293 = pneg %p210
      $region42: #{upsampler_block_fwd.1} parent=11 // pred_check_branch
        %295 = sbr.rel (%p293) target = $region44
      $region43: #{upsampler_block_fwd.1} parent=11 // pred_region
        _
      $region44: #{upsampler_block_fwd.1} parent=11 // pred_fallthru
        _
      // Predicated region
      $region45: #{upsampler_block_fwd.1} parent=11 // pred_check
        %p296 = pneg %p231
      $region46: #{upsampler_block_fwd.1} parent=11 // pred_check_branch
        %298 = sbr.rel (%p296) target = $region48
      $region47: #{upsampler_block_fwd.1} parent=11 // pred_region
        _
      $region48: #{upsampler_block_fwd.1} parent=11 // pred_fallthru
        _
    $region12: #{upsampler_block_fwd.1} parent=5 // pred_fallthru
      _
    %p299 = scmp.lt.s32.totalorder %s16, 2
    // Predicated region
    $region49: #{upsampler_block_fwd.1} parent=5 // pred_check
      %p300 = pneg %p299
    $region50: #{upsampler_block_fwd.1} parent=5 // pred_check_branch
      %302 = sbr.rel (%p300) target = $region52
    $region51: #{upsampler_block_fwd.1} parent=5 // pred_region
      // Predicated region
      $region53: #{upsampler_block_fwd.1} parent=51 // pred_check
        %p303 = pneg %p36
      $region54: #{upsampler_block_fwd.1} parent=51 // pred_check_branch
        %305 = sbr.rel (%p303) target = $region56
      $region55: #{upsampler_block_fwd.1} parent=51 // pred_region
        %p306 = scmp.lt.s32.totalorder %s16, 1
        %s307 = scalar_select %p306, %s16, 1
        %s308 = smul.addr %s307, 8
        %s309 = smul.addr %s308, 8
        %s310 = scalar_lea.vmem %s0, %s309
      $region56: #{upsampler_block_fwd.1} parent=51 // pred_fallthru
        _
    $region52: #{upsampler_block_fwd.1} parent=5 // pred_fallthru
      _
    %p311 = scmp.le.s32.totalorder 1, %s16
    %p312 = scmp.lt.s32.totalorder %s16, 3
    %p313 = pnand %p311, %p312
    %p314 = pneg %p313
    // Predicated region
    $region57: #{upsampler_block_fwd.1} parent=5 // pred_check
      _
    $region58: #{upsampler_block_fwd.1} parent=5 // pred_check_branch
      %316 = sbr.rel (%p313) target = $region60
    $region59: #{upsampler_block_fwd.1} parent=5 // pred_region
      %s317 = ssub.s32 %s16, 1
      %p318 = scmp.lt.s32.totalorder %s21, 1
      %s319 = scalar_select %p318, %s21, 1
      %s320 = smul.addr %s319, 8
      %s321 = smul.addr %s320, 8
      %s322 = scalar_lea.vmem %s0, %s321
      %p323 = pneg %p42
      %p324 = pneg %p39
      %p325 = pneg %p63
      %p326 = pneg %p60
      %p327 = pneg %p84
      %p328 = pneg %p81
      %p329 = pneg %p105
      %p330 = pneg %p102
      %p331 = pneg %p126
      %p332 = pneg %p123
      %p333 = pneg %p147
      %p334 = pneg %p144
      %p335 = pneg %p168
      %p336 = pneg %p165
      %p337 = pneg %p189
      %p338 = pneg %p186
      %p339 = pneg %p210
      %p340 = pneg %p207
      %p341 = pneg %p231
      %p342 = pneg %p228
      %p343 = pneg %p257
      %p344 = pneg %p254
      %p345 = scmp.lt.s32.totalorder %s21, 1
      %s346 = scalar_select %p345, %s21, 1
      %s347 = smul.addr %s346, 16
      %s348 = smul.addr %s347, 8
      %s349 = scalar_lea.vmem %s10, %s348
      %p350 = scmp.lt.s32.totalorder %s21, 1
      %s351 = scalar_select %p350, %s21, 1
      %s352 = smul.addr %s351, 8
      %s353 = smul.addr %s352, 8
      %s354 = scalar_lea.vmem %s0, %s353
      %p355 = scmp.lt.s32.totalorder %s21, 1
      %s356 = scalar_select %p355, %s21, 1
      %s357 = smul.addr %s356, 16
      %s358 = smul.addr %s357, 8
      %s359 = scalar_lea.vmem %s10, %s358
      %v360 = vld [vmem:[%s354] sm:$0xff]
      %v361 = vld [vmem:[%s354 + $0x8] sm:$0xff]
      %v362 = vld [vmem:[%s354 + $0x10] sm:$0xff]
      %v363 = vld [vmem:[%s354 + $0x18] sm:$0xff]
      %v364 = vld [vmem:[%s354 + $0x20] sm:$0xff]
      %v365 = vld [vmem:[%s354 + $0x28] sm:$0xff]
      %v366 = vld [vmem:[%s354 + $0x30] sm:$0xff]
      %v367 = vld [vmem:[%s354 + $0x38] sm:$0xff]
      %v368 = vld [vmem:[%s5] sm:$0x1]
      %v377 = vrot.slane %v360, 1
      %v378 = vrot.slane %v361, 1
      %v379 = vrot.slane %v362, 1
      %v380 = vrot.slane %v363, 1
      %v381 = vrot.slane %v364, 1
      %v382 = vrot.slane %v365, 1
      %v383 = vrot.slane %v366, 1
      %v384 = vrot.slane %v367, 1
      %vm393 = vcmask 1046528
      %v394 = vsel %vm393, %v377, 0.0
      %v395 = vsel %vm393, %v378, 0.0
      %v396 = vsel %vm393, %v379, 0.0
      %v397 = vsel %vm393, %v380, 0.0
      %v398 = vsel %vm393, %v381, 0.0
      %v399 = vsel %vm393, %v382, 0.0
      %v400 = vsel %vm393, %v383, 0.0
      %v401 = vsel %vm393, %v384, 0.0
      %v403 = vrot.slane 0.0, 1
      %v405 = vsel %vm393, %v403, 0.0
      %v406 = vld [vmem:[%s1] sm:$0xff]
      %v407 = vld [vmem:[%s1 + $0x8] sm:$0xff]
      %v408 = vld [vmem:[%s1 + $0x10] sm:$0xff]
      %v409 = vld [vmem:[%s1 + $0x18] sm:$0xff]
      %v410 = vld [vmem:[%s1 + $0x20] sm:$0xff]
      %v411 = vld [vmem:[%s1 + $0x28] sm:$0xff]
      %v412 = vld [vmem:[%s1 + $0x30] sm:$0xff]
      %v413 = vld [vmem:[%s1 + $0x38] sm:$0xff]
      %v414 = vld [vmem:[%s1 + $0x40] sm:$0xff]
      %v415 = vld [vmem:[%s1 + $0x48] sm:$0xff]
      %v416 = vld [vmem:[%s1 + $0x50] sm:$0xff]
      %v417 = vld [vmem:[%s1 + $0x58] sm:$0xff]
      %v418 = vld [vmem:[%s1 + $0x60] sm:$0xff]
      %v419 = vld [vmem:[%s1 + $0x68] sm:$0xff]
      %v420 = vld [vmem:[%s1 + $0x70] sm:$0xff]
      %v421 = vld [vmem:[%s1 + $0x78] sm:$0xff]
      %v423 = vlaneseq
      %v424 = vshrl.u32 %v423, 7
      %v425 = vsub.s32 0, %v424
      %v426 = vrot.slane %v368, %v425
      %428 = vmatprep.subr.mxu0 0.0
      %429 = vmatpush1.msra.mxu0 %v406
      %430 = vmatprep.subr.mxu0 0.0
      %431 = vmatpush1.msra.mxu0 %v407
      %432 = vmatprep.subr.mxu0 0.0
      %433 = vmatpush1.msra.mxu0 %v408
      %434 = vmatprep.subr.mxu0 0.0
      %435 = vmatpush1.msra.mxu0 %v409
      %436 = vmatprep.subr.mxu0 0.0
      %437 = vmatpush1.msra.mxu0 %v410
      %438 = vmatprep.subr.mxu0 0.0
      %439 = vmatpush1.msra.mxu0 %v411
      %440 = vmatprep.subr.mxu0 0.0
      %441 = vmatpush1.msra.mxu0 %v412
      %442 = vmatprep.subr.mxu0 0.0
      %443 = vmatpush1.msra.mxu0 %v413
      %444 = vmatprep.subr.mxu0 0.0
      %445 = vmatpush1.msra.mxu0 %v414
      %446 = vmatprep.subr.mxu0 0.0
      %447 = vmatpush1.msra.mxu0 %v415
      %448 = vmatprep.subr.mxu0 0.0
      %449 = vmatpush1.msra.mxu0 %v416
      %450 = vmatprep.subr.mxu0 0.0
      %451 = vmatpush1.msra.mxu0 %v417
      %452 = vmatprep.subr.mxu0 0.0
      %453 = vmatpush1.msra.mxu0 %v418
      %454 = vmatprep.subr.mxu0 0.0
      %455 = vmatpush1.msra.mxu0 %v419
      %456 = vmatprep.subr.mxu0 0.0
      %457 = vmatpush1.msra.mxu0 %v420
      %458 = vmatprep.subr.mxu0 0.0
      %459 = vmatpush1.msra.mxu0 %v421
      %460 = vmatprep.subr.mxu0 0.0
      %461 = vmatpush1.msra.mxu0 0.0
      %462 = vmatprep.subr.mxu0 0.0
      %463 = vmatpush1.msra.mxu0 0.0
      %464 = vmatprep.subr.mxu0 0.0
      %465 = vmatpush1.msra.mxu0 0.0
      %466 = vmatprep.subr.mxu0 0.0
      %467 = vmatpush1.msra.mxu0 0.0
      %468 = vmatprep.subr.mxu0 0.0
      %469 = vmatpush1.msra.mxu0 0.0
      %470 = vmatprep.subr.mxu0 0.0
      %471 = vmatpush1.msra.mxu0 0.0
      %472 = vmatprep.subr.mxu0 0.0
      %473 = vmatpush1.msra.mxu0 0.0
      %474 = vmatprep.subr.mxu0 0.0
      %475 = vmatpush1.msra.mxu0 0.0
      %476 = vmatprep.subr.mxu0 0.0
      %477 = vmatpush1.msra.mxu0 0.0
      %478 = vmatprep.subr.mxu0 0.0
      %479 = vmatpush1.msra.mxu0 0.0
      %480 = vmatprep.subr.mxu0 0.0
      %481 = vmatpush1.msra.mxu0 0.0
      %482 = vmatprep.subr.mxu0 0.0
      %483 = vmatpush1.msra.mxu0 0.0
      %484 = vmatprep.subr.mxu0 0.0
      %485 = vmatpush1.msra.mxu0 0.0
      %486 = vmatprep.subr.mxu0 0.0
      %487 = vmatpush1.msra.mxu0 0.0
      %488 = vmatprep.subr.mxu0 0.0
      %489 = vmatpush1.msra.mxu0 0.0
      %490 = vmatprep.subr.mxu0 0.0
      %491 = vmatpush1.msra.mxu0 0.0
      %492 = vmatprep.mubr.f32.mxu0 0.0
      %493 = vmatmul.mubr.f32.gmra.mrb[0].mxu0 %v360
      %v494 = vpop.f32.mrb[0].mxu0
      %v495 = vadd.f32 %v426, %v494
      %v496 = vpop.f32.mrb[0].mxu0
      %497 = vmatprep.mubr.f32.mxu0 0.0
      %498 = vmatmul.mubr.f32.gmra.mrb[0].mxu0 %v361
      %v499 = vpop.f32.mrb[0].mxu0
      %v500 = vadd.f32 %v426, %v499
      %v501 = vpop.f32.mrb[0].mxu0
      %502 = vmatprep.mubr.f32.mxu0 0.0
      %503 = vmatmul.mubr.f32.gmra.mrb[0].mxu0 %v362
      %v504 = vpop.f32.mrb[0].mxu0
      %v505 = vadd.f32 %v426, %v504
      %v506 = vpop.f32.mrb[0].mxu0
      %507 = vmatprep.mubr.f32.mxu0 0.0
      %508 = vmatmul.mubr.f32.gmra.mrb[0].mxu0 %v363
      %v509 = vpop.f32.mrb[0].mxu0
      %v510 = vadd.f32 %v426, %v509
      %v511 = vpop.f32.mrb[0].mxu0
      %512 = vmatprep.mubr.f32.mxu0 0.0
      %513 = vmatmul.mubr.f32.gmra.mrb[0].mxu0 %v364
      %v514 = vpop.f32.mrb[0].mxu0
      %v515 = vadd.f32 %v426, %v514
      %v516 = vpop.f32.mrb[0].mxu0
      %517 = vmatprep.mubr.f32.mxu0 0.0
      %518 = vmatmul.mubr.f32.gmra.mrb[0].mxu0 %v365
      %v519 = vpop.f32.mrb[0].mxu0
      %v520 = vadd.f32 %v426, %v519
      %v521 = vpop.f32.mrb[0].mxu0
      %522 = vmatprep.mubr.f32.mxu0 0.0
      %523 = vmatmul.mubr.f32.gmra.mrb[0].mxu0 %v366
      %v524 = vpop.f32.mrb[0].mxu0
      %v525 = vadd.f32 %v426, %v524
      %v526 = vpop.f32.mrb[0].mxu0
      %527 = vmatprep.mubr.f32.mxu0 0.0
      %528 = vmatmul.mubr.f32.gmra.mrb[0].mxu0 %v367
      %v529 = vpop.f32.mrb[0].mxu0
      %v530 = vadd.f32 %v426, %v529
      %v531 = vpop.f32.mrb[0].mxu0
      %532 = vdwg.mxu0
      %v533 = vmax.f32 %v495, 0.0
      %v534 = vmax.f32 %v500, 0.0
      %v535 = vmax.f32 %v505, 0.0
      %v536 = vmax.f32 %v510, 0.0
      %v537 = vmax.f32 %v515, 0.0
      %v538 = vmax.f32 %v520, 0.0
      %v539 = vmax.f32 %v525, 0.0
      %v540 = vmax.f32 %v530, 0.0
      %v541 = vld [vmem:[%s2] sm:$0xff]
      %v542 = vld [vmem:[%s2 + $0x8] sm:$0xff]
      %v543 = vld [vmem:[%s2 + $0x10] sm:$0xff]
      %v544 = vld [vmem:[%s2 + $0x18] sm:$0xff]
      %v545 = vld [vmem:[%s2 + $0x20] sm:$0xff]
      %v546 = vld [vmem:[%s2 + $0x28] sm:$0xff]
      %v547 = vld [vmem:[%s2 + $0x30] sm:$0xff]
      %v548 = vld [vmem:[%s2 + $0x38] sm:$0xff]
      %v549 = vld [vmem:[%s2 + $0x40] sm:$0xff]
      %v550 = vld [vmem:[%s2 + $0x48] sm:$0xff]
      %v551 = vld [vmem:[%s2 + $0x50] sm:$0xff]
      %v552 = vld [vmem:[%s2 + $0x58] sm:$0xff]
      %v553 = vld [vmem:[%s2 + $0x60] sm:$0xff]
      %v554 = vld [vmem:[%s2 + $0x68] sm:$0xff]
      %v555 = vld [vmem:[%s2 + $0x70] sm:$0xff]
      %v556 = vld [vmem:[%s2 + $0x78] sm:$0xff]
      %v557 = vld [vmem:[%s2 + $0x80] sm:$0xff]
      %v558 = vld [vmem:[%s2 + $0x88] sm:$0xff]
      %v559 = vld [vmem:[%s2 + $0x90] sm:$0xff]
      %v560 = vld [vmem:[%s2 + $0x98] sm:$0xff]
      %v561 = vld [vmem:[%s2 + $0xa0] sm:$0xff]
      %v562 = vld [vmem:[%s2 + $0xa8] sm:$0xff]
      %v563 = vld [vmem:[%s2 + $0xb0] sm:$0xff]
      %v564 = vld [vmem:[%s2 + $0xb8] sm:$0xff]
      %v565 = vld [vmem:[%s2 + $0xc0] sm:$0xff]
      %v566 = vld [vmem:[%s2 + $0xc8] sm:$0xff]
      %v567 = vld [vmem:[%s2 + $0xd0] sm:$0xff]
      %v568 = vld [vmem:[%s2 + $0xd8] sm:$0xff]
      %v569 = vld [vmem:[%s2 + $0xe0] sm:$0xff]
      %v570 = vld [vmem:[%s2 + $0xe8] sm:$0xff]
      %v571 = vld [vmem:[%s2 + $0xf0] sm:$0xff]
      %v572 = vld [vmem:[%s2 + $0xf8] sm:$0xff]
      %573 = vmatprep.subr.mxu0 0.0
      %574 = vmatpush1.msra.mxu0 %v541
      %575 = vmatprep.subr.mxu0 0.0
      %576 = vmatpush1.msra.mxu0 %v542
      %577 = vmatprep.subr.mxu0 0.0
      %578 = vmatpush1.msra.mxu0 %v543
      %579 = vmatprep.subr.mxu0 0.0
      %580 = vmatpush1.msra.mxu0 %v544
      %581 = vmatprep.subr.mxu0 0.0
      %582 = vmatpush1.msra.mxu0 %v545
      %583 = vmatprep.subr.mxu0 0.0
      %584 = vmatpush1.msra.mxu0 %v546
      %585 = vmatprep.subr.mxu0 0.0
      %586 = vmatpush1.msra.mxu0 %v547
      %587 = vmatprep.subr.mxu0 0.0
      %588 = vmatpush1.msra.mxu0 %v548
      %589 = vmatprep.subr.mxu0 0.0
      %590 = vmatpush1.msra.mxu0 %v549
      %591 = vmatprep.subr.mxu0 0.0
      %592 = vmatpush1.msra.mxu0 %v550
      %593 = vmatprep.subr.mxu0 0.0
      %594 = vmatpush1.msra.mxu0 %v551
      %595 = vmatprep.subr.mxu0 0.0
      %596 = vmatpush1.msra.mxu0 %v552
      %597 = vmatprep.subr.mxu0 0.0
      %598 = vmatpush1.msra.mxu0 %v553
      %599 = vmatprep.subr.mxu0 0.0
      %600 = vmatpush1.msra.mxu0 %v554
      %601 = vmatprep.subr.mxu0 0.0
      %602 = vmatpush1.msra.mxu0 %v555
      %603 = vmatprep.subr.mxu0 0.0
      %604 = vmatpush1.msra.mxu0 %v556
      %605 = vmatprep.subr.mxu0 0.0
      %606 = vmatpush1.msra.mxu0 %v557
      %607 = vmatprep.subr.mxu0 0.0
      %608 = vmatpush1.msra.mxu0 %v558
      %609 = vmatprep.subr.mxu0 0.0
      %610 = vmatpush1.msra.mxu0 %v559
      %611 = vmatprep.subr.mxu0 0.0
      %612 = vmatpush1.msra.mxu0 %v560
      %613 = vmatprep.subr.mxu0 0.0
      %614 = vmatpush1.msra.mxu0 %v561
      %615 = vmatprep.subr.mxu0 0.0
      %616 = vmatpush1.msra.mxu0 %v562
      %617 = vmatprep.subr.mxu0 0.0
      %618 = vmatpush1.msra.mxu0 %v563
      %619 = vmatprep.subr.mxu0 0.0
      %620 = vmatpush1.msra.mxu0 %v564
      %621 = vmatprep.subr.mxu0 0.0
      %622 = vmatpush1.msra.mxu0 %v565
      %623 = vmatprep.subr.mxu0 0.0
      %624 = vmatpush1.msra.mxu0 %v566
      %625 = vmatprep.subr.mxu0 0.0
      %626 = vmatpush1.msra.mxu0 %v567
      %627 = vmatprep.subr.mxu0 0.0
      %628 = vmatpush1.msra.mxu0 %v568
      %629 = vmatprep.subr.mxu0 0.0
      %630 = vmatpush1.msra.mxu0 %v569
      %631 = vmatprep.subr.mxu0 0.0
      %632 = vmatpush1.msra.mxu0 %v570
      %633 = vmatprep.subr.mxu0 0.0
      %634 = vmatpush1.msra.mxu0 %v571
      %635 = vmatprep.subr.mxu0 0.0
      %636 = vmatpush1.msra.mxu0 %v572
      %637 = vmatprep.mubr.f32.mxu0 %v360
      %638 = vmatmul.mubr.f32.gmra.mrb[0].mxu0 %v394
      %v639 = vpop.f32.mrb[0].mxu0
      %v640 = vadd.f32 %v426, %v639
      %v641 = vpop.f32.mrb[0].mxu0
      %642 = vmatprep.mubr.f32.mxu0 %v361
      %643 = vmatmul.mubr.f32.gmra.mrb[0].mxu0 %v395
      %v644 = vpop.f32.mrb[0].mxu0
      %v645 = vadd.f32 %v426, %v644
      %v646 = vpop.f32.mrb[0].mxu0
      %647 = vmatprep.mubr.f32.mxu0 %v362
      %648 = vmatmul.mubr.f32.gmra.mrb[0].mxu0 %v396
      %v649 = vpop.f32.mrb[0].mxu0
      %v650 = vadd.f32 %v426, %v649
      %v651 = vpop.f32.mrb[0].mxu0
      %652 = vmatprep.mubr.f32.mxu0 %v363
      %653 = vmatmul.mubr.f32.gmra.mrb[0].mxu0 %v397
      %v654 = vpop.f32.mrb[0].mxu0
      %v655 = vadd.f32 %v426, %v654
      %v656 = vpop.f32.mrb[0].mxu0
      %657 = vmatprep.mubr.f32.mxu0 %v364
      %658 = vmatmul.mubr.f32.gmra.mrb[0].mxu0 %v398
      %v659 = vpop.f32.mrb[0].mxu0
      %v660 = vadd.f32 %v426, %v659
      %v661 = vpop.f32.mrb[0].mxu0
      %662 = vmatprep.mubr.f32.mxu0 %v365
      %663 = vmatmul.mubr.f32.gmra.mrb[0].mxu0 %v399
      %v664 = vpop.f32.mrb[0].mxu0
      %v665 = vadd.f32 %v426, %v664
      %v666 = vpop.f32.mrb[0].mxu0
      %667 = vmatprep.mubr.f32.mxu0 %v366
      %668 = vmatmul.mubr.f32.gmra.mrb[0].mxu0 %v400
      %v669 = vpop.f32.mrb[0].mxu0
      %v670 = vadd.f32 %v426, %v669
      %v671 = vpop.f32.mrb[0].mxu0
      %672 = vmatprep.mubr.f32.mxu0 %v367
      %673 = vmatmul.mubr.f32.gmra.mrb[0].mxu0 %v401
      %v674 = vpop.f32.mrb[0].mxu0
      %v675 = vadd.f32 %v426, %v674
      %v676 = vpop.f32.mrb[0].mxu0
      %677 = vdwg.mxu0
      %v678 = vmax.f32 %v640, 0.0
      %v679 = vmax.f32 %v645, 0.0
      %v680 = vmax.f32 %v650, 0.0
      %v681 = vmax.f32 %v655, 0.0
      %v682 = vmax.f32 %v660, 0.0
      %v683 = vmax.f32 %v665, 0.0
      %v684 = vmax.f32 %v670, 0.0
      %v685 = vmax.f32 %v675, 0.0
      %v686 = vld [vmem:[%s3] sm:$0xff]
      %v687 = vld [vmem:[%s3 + $0x8] sm:$0xff]
      %v688 = vld [vmem:[%s3 + $0x10] sm:$0xff]
      %v689 = vld [vmem:[%s3 + $0x18] sm:$0xff]
      %v690 = vld [vmem:[%s3 + $0x20] sm:$0xff]
      %v691 = vld [vmem:[%s3 + $0x28] sm:$0xff]
      %v692 = vld [vmem:[%s3 + $0x30] sm:$0xff]
      %v693 = vld [vmem:[%s3 + $0x38] sm:$0xff]
      %v694 = vld [vmem:[%s3 + $0x40] sm:$0xff]
      %v695 = vld [vmem:[%s3 + $0x48] sm:$0xff]
      %v696 = vld [vmem:[%s3 + $0x50] sm:$0xff]
      %v697 = vld [vmem:[%s3 + $0x58] sm:$0xff]
      %v698 = vld [vmem:[%s3 + $0x60] sm:$0xff]
      %v699 = vld [vmem:[%s3 + $0x68] sm:$0xff]
      %v700 = vld [vmem:[%s3 + $0x70] sm:$0xff]
      %v701 = vld [vmem:[%s3 + $0x78] sm:$0xff]
      %v702 = vld [vmem:[%s3 + $0x80] sm:$0xff]
      %v703 = vld [vmem:[%s3 + $0x88] sm:$0xff]
      %v704 = vld [vmem:[%s3 + $0x90] sm:$0xff]
      %v705 = vld [vmem:[%s3 + $0x98] sm:$0xff]
      %v706 = vld [vmem:[%s3 + $0xa0] sm:$0xff]
      %v707 = vld [vmem:[%s3 + $0xa8] sm:$0xff]
      %v708 = vld [vmem:[%s3 + $0xb0] sm:$0xff]
      %v709 = vld [vmem:[%s3 + $0xb8] sm:$0xff]
      %v710 = vld [vmem:[%s3 + $0xc0] sm:$0xff]
      %v711 = vld [vmem:[%s3 + $0xc8] sm:$0xff]
      %v712 = vld [vmem:[%s3 + $0xd0] sm:$0xff]
      %v713 = vld [vmem:[%s3 + $0xd8] sm:$0xff]
      %v714 = vld [vmem:[%s3 + $0xe0] sm:$0xff]
      %v715 = vld [vmem:[%s3 + $0xe8] sm:$0xff]
      %v716 = vld [vmem:[%s3 + $0xf0] sm:$0xff]
      %v717 = vld [vmem:[%s3 + $0xf8] sm:$0xff]
      %718 = vmatprep.subr.mxu0 0.0
      %719 = vmatpush1.msra.mxu0 %v686
      %720 = vmatprep.subr.mxu0 0.0
      %721 = vmatpush1.msra.mxu0 %v687
      %722 = vmatprep.subr.mxu0 0.0
      %723 = vmatpush1.msra.mxu0 %v688
      %724 = vmatprep.subr.mxu0 0.0
      %725 = vmatpush1.msra.mxu0 %v689
      %726 = vmatprep.subr.mxu0 0.0
      %727 = vmatpush1.msra.mxu0 %v690
      %728 = vmatprep.subr.mxu0 0.0
      %729 = vmatpush1.msra.mxu0 %v691
      %730 = vmatprep.subr.mxu0 0.0
      %731 = vmatpush1.msra.mxu0 %v692
      %732 = vmatprep.subr.mxu0 0.0
      %733 = vmatpush1.msra.mxu0 %v693
      %734 = vmatprep.subr.mxu0 0.0
      %735 = vmatpush1.msra.mxu0 %v694
      %736 = vmatprep.subr.mxu0 0.0
      %737 = vmatpush1.msra.mxu0 %v695
      %738 = vmatprep.subr.mxu0 0.0
      %739 = vmatpush1.msra.mxu0 %v696
      %740 = vmatprep.subr.mxu0 0.0
      %741 = vmatpush1.msra.mxu0 %v697
      %742 = vmatprep.subr.mxu0 0.0
      %743 = vmatpush1.msra.mxu0 %v698
      %744 = vmatprep.subr.mxu0 0.0
      %745 = vmatpush1.msra.mxu0 %v699
      %746 = vmatprep.subr.mxu0 0.0
      %747 = vmatpush1.msra.mxu0 %v700
      %748 = vmatprep.subr.mxu0 0.0
      %749 = vmatpush1.msra.mxu0 %v701
      %750 = vmatprep.subr.mxu0 0.0
      %751 = vmatpush1.msra.mxu0 %v702
      %752 = vmatprep.subr.mxu0 0.0
      %753 = vmatpush1.msra.mxu0 %v703
      %754 = vmatprep.subr.mxu0 0.0
      %755 = vmatpush1.msra.mxu0 %v704
      %756 = vmatprep.subr.mxu0 0.0
      %757 = vmatpush1.msra.mxu0 %v705
      %758 = vmatprep.subr.mxu0 0.0
      %759 = vmatpush1.msra.mxu0 %v706
      %760 = vmatprep.subr.mxu0 0.0
      %761 = vmatpush1.msra.mxu0 %v707
      %762 = vmatprep.subr.mxu0 0.0
      %763 = vmatpush1.msra.mxu0 %v708
      %764 = vmatprep.subr.mxu0 0.0
      %765 = vmatpush1.msra.mxu0 %v709
      %766 = vmatprep.subr.mxu0 0.0
      %767 = vmatpush1.msra.mxu0 %v710
      %768 = vmatprep.subr.mxu0 0.0
      %769 = vmatpush1.msra.mxu0 %v711
      %770 = vmatprep.subr.mxu0 0.0
      %771 = vmatpush1.msra.mxu0 %v712
      %772 = vmatprep.subr.mxu0 0.0
      %773 = vmatpush1.msra.mxu0 %v713
      %774 = vmatprep.subr.mxu0 0.0
      %775 = vmatpush1.msra.mxu0 %v714
      %776 = vmatprep.subr.mxu0 0.0
      %777 = vmatpush1.msra.mxu0 %v715
      %778 = vmatprep.subr.mxu0 0.0
      %779 = vmatpush1.msra.mxu0 %v716
      %780 = vmatprep.subr.mxu0 0.0
      %781 = vmatpush1.msra.mxu0 %v717
      %782 = vmatprep.mubr.f32.mxu0 %v360
      %783 = vmatmul.mubr.f32.gmra.mrb[0].mxu0 %v361
      %v784 = vpop.f32.mrb[0].mxu0
      %v785 = vadd.f32 %v426, %v784
      %v786 = vpop.f32.mrb[0].mxu0
      %787 = vmatprep.mubr.f32.mxu0 %v361
      %788 = vmatmul.mubr.f32.gmra.mrb[0].mxu0 %v362
      %v789 = vpop.f32.mrb[0].mxu0
      %v790 = vadd.f32 %v426, %v789
      %v791 = vpop.f32.mrb[0].mxu0
      %792 = vmatprep.mubr.f32.mxu0 %v362
      %793 = vmatmul.mubr.f32.gmra.mrb[0].mxu0 %v363
      %v794 = vpop.f32.mrb[0].mxu0
      %v795 = vadd.f32 %v426, %v794
      %v796 = vpop.f32.mrb[0].mxu0
      %797 = vmatprep.mubr.f32.mxu0 %v363
      %798 = vmatmul.mubr.f32.gmra.mrb[0].mxu0 %v364
      %v799 = vpop.f32.mrb[0].mxu0
      %v800 = vadd.f32 %v426, %v799
      %v801 = vpop.f32.mrb[0].mxu0
      %802 = vmatprep.mubr.f32.mxu0 %v364
      %803 = vmatmul.mubr.f32.gmra.mrb[0].mxu0 %v365
      %v804 = vpop.f32.mrb[0].mxu0
      %v805 = vadd.f32 %v426, %v804
      %v806 = vpop.f32.mrb[0].mxu0
      %807 = vmatprep.mubr.f32.mxu0 %v365
      %808 = vmatmul.mubr.f32.gmra.mrb[0].mxu0 %v366
      %v809 = vpop.f32.mrb[0].mxu0
      %v810 = vadd.f32 %v426, %v809
      %v811 = vpop.f32.mrb[0].mxu0
      %812 = vmatprep.mubr.f32.mxu0 %v366
      %813 = vmatmul.mubr.f32.gmra.mrb[0].mxu0 %v367
      %v814 = vpop.f32.mrb[0].mxu0
      %v815 = vadd.f32 %v426, %v814
      %v816 = vpop.f32.mrb[0].mxu0
      %817 = vmatprep.mubr.f32.mxu0 %v367
      %818 = vmatmul.mubr.f32.gmra.mrb[0].mxu0 0.0
      %v819 = vpop.f32.mrb[0].mxu0
      %v820 = vadd.f32 %v426, %v819
      %v821 = vpop.f32.mrb[0].mxu0
      %822 = vdwg.mxu0
      %v823 = vmax.f32 %v785, 0.0
      %v824 = vmax.f32 %v790, 0.0
      %v825 = vmax.f32 %v795, 0.0
      %v826 = vmax.f32 %v800, 0.0
      %v827 = vmax.f32 %v805, 0.0
      %v828 = vmax.f32 %v810, 0.0
      %v829 = vmax.f32 %v815, 0.0
      %v830 = vmax.f32 %v820, 0.0
      %v831 = vld [vmem:[%s4] sm:$0xff]
      %v832 = vld [vmem:[%s4 + $0x8] sm:$0xff]
      %v833 = vld [vmem:[%s4 + $0x10] sm:$0xff]
      %v834 = vld [vmem:[%s4 + $0x18] sm:$0xff]
      %v835 = vld [vmem:[%s4 + $0x20] sm:$0xff]
      %v836 = vld [vmem:[%s4 + $0x28] sm:$0xff]
      %v837 = vld [vmem:[%s4 + $0x30] sm:$0xff]
      %v838 = vld [vmem:[%s4 + $0x38] sm:$0xff]
      %v839 = vld [vmem:[%s4 + $0x40] sm:$0xff]
      %v840 = vld [vmem:[%s4 + $0x48] sm:$0xff]
      %v841 = vld [vmem:[%s4 + $0x50] sm:$0xff]
      %v842 = vld [vmem:[%s4 + $0x58] sm:$0xff]
      %v843 = vld [vmem:[%s4 + $0x60] sm:$0xff]
      %v844 = vld [vmem:[%s4 + $0x68] sm:$0xff]
      %v845 = vld [vmem:[%s4 + $0x70] sm:$0xff]
      %v846 = vld [vmem:[%s4 + $0x78] sm:$0xff]
      %v847 = vld [vmem:[%s4 + $0x80] sm:$0xff]
      %v848 = vld [vmem:[%s4 + $0x88] sm:$0xff]
      %v849 = vld [vmem:[%s4 + $0x90] sm:$0xff]
      %v850 = vld [vmem:[%s4 + $0x98] sm:$0xff]
      %v851 = vld [vmem:[%s4 + $0xa0] sm:$0xff]
      %v852 = vld [vmem:[%s4 + $0xa8] sm:$0xff]
      %v853 = vld [vmem:[%s4 + $0xb0] sm:$0xff]
      %v854 = vld [vmem:[%s4 + $0xb8] sm:$0xff]
      %v855 = vld [vmem:[%s4 + $0xc0] sm:$0xff]
      %v856 = vld [vmem:[%s4 + $0xc8] sm:$0xff]
      %v857 = vld [vmem:[%s4 + $0xd0] sm:$0xff]
      %v858 = vld [vmem:[%s4 + $0xd8] sm:$0xff]
      %v859 = vld [vmem:[%s4 + $0xe0] sm:$0xff]
      %v860 = vld [vmem:[%s4 + $0xe8] sm:$0xff]
      %v861 = vld [vmem:[%s4 + $0xf0] sm:$0xff]
      %v862 = vld [vmem:[%s4 + $0xf8] sm:$0xff]
      %v863 = vld [vmem:[%s4 + $0x100] sm:$0xff]
      %v864 = vld [vmem:[%s4 + $0x108] sm:$0xff]
      %v865 = vld [vmem:[%s4 + $0x110] sm:$0xff]
      %v866 = vld [vmem:[%s4 + $0x118] sm:$0xff]
      %v867 = vld [vmem:[%s4 + $0x120] sm:$0xff]
      %v868 = vld [vmem:[%s4 + $0x128] sm:$0xff]
      %v869 = vld [vmem:[%s4 + $0x130] sm:$0xff]
      %v870 = vld [vmem:[%s4 + $0x138] sm:$0xff]
      %v871 = vld [vmem:[%s4 + $0x140] sm:$0xff]
      %v872 = vld [vmem:[%s4 + $0x148] sm:$0xff]
      %v873 = vld [vmem:[%s4 + $0x150] sm:$0xff]
      %v874 = vld [vmem:[%s4 + $0x158] sm:$0xff]
      %v875 = vld [vmem:[%s4 + $0x160] sm:$0xff]
      %v876 = vld [vmem:[%s4 + $0x168] sm:$0xff]
      %v877 = vld [vmem:[%s4 + $0x170] sm:$0xff]
      %v878 = vld [vmem:[%s4 + $0x178] sm:$0xff]
      %v879 = vld [vmem:[%s4 + $0x180] sm:$0xff]
      %v880 = vld [vmem:[%s4 + $0x188] sm:$0xff]
      %v881 = vld [vmem:[%s4 + $0x190] sm:$0xff]
      %v882 = vld [vmem:[%s4 + $0x198] sm:$0xff]
      %v883 = vld [vmem:[%s4 + $0x1a0] sm:$0xff]
      %v884 = vld [vmem:[%s4 + $0x1a8] sm:$0xff]
      %v885 = vld [vmem:[%s4 + $0x1b0] sm:$0xff]
      %v886 = vld [vmem:[%s4 + $0x1b8] sm:$0xff]
      %v887 = vld [vmem:[%s4 + $0x1c0] sm:$0xff]
      %v888 = vld [vmem:[%s4 + $0x1c8] sm:$0xff]
      %v889 = vld [vmem:[%s4 + $0x1d0] sm:$0xff]
      %v890 = vld [vmem:[%s4 + $0x1d8] sm:$0xff]
      %v891 = vld [vmem:[%s4 + $0x1e0] sm:$0xff]
      %v892 = vld [vmem:[%s4 + $0x1e8] sm:$0xff]
      %v893 = vld [vmem:[%s4 + $0x1f0] sm:$0xff]
      %v894 = vld [vmem:[%s4 + $0x1f8] sm:$0xff]
      %895 = vmatprep.subr.mxu0 0.0
      %896 = vmatpush1.msra.mxu0 %v831
      %897 = vmatprep.subr.mxu0 0.0
      %898 = vmatpush1.msra.mxu0 %v832
      %899 = vmatprep.subr.mxu0 0.0
      %900 = vmatpush1.msra.mxu0 %v833
      %901 = vmatprep.subr.mxu0 0.0
      %902 = vmatpush1.msra.mxu0 %v834
      %903 = vmatprep.subr.mxu0 0.0
      %904 = vmatpush1.msra.mxu0 %v835
      %905 = vmatprep.subr.mxu0 0.0
      %906 = vmatpush1.msra.mxu0 %v836
      %907 = vmatprep.subr.mxu0 0.0
      %908 = vmatpush1.msra.mxu0 %v837
      %909 = vmatprep.subr.mxu0 0.0
      %910 = vmatpush1.msra.mxu0 %v838
      %911 = vmatprep.subr.mxu0 0.0
      %912 = vmatpush1.msra.mxu0 %v839
      %913 = vmatprep.subr.mxu0 0.0
      %914 = vmatpush1.msra.mxu0 %v840
      %915 = vmatprep.subr.mxu0 0.0
      %916 = vmatpush1.msra.mxu0 %v841
      %917 = vmatprep.subr.mxu0 0.0
      %918 = vmatpush1.msra.mxu0 %v842
      %919 = vmatprep.subr.mxu0 0.0
      %920 = vmatpush1.msra.mxu0 %v843
      %921 = vmatprep.subr.mxu0 0.0
      %922 = vmatpush1.msra.mxu0 %v844
      %923 = vmatprep.subr.mxu0 0.0
      %924 = vmatpush1.msra.mxu0 %v845
      %925 = vmatprep.subr.mxu0 0.0
      %926 = vmatpush1.msra.mxu0 %v846
      %927 = vmatprep.subr.mxu0 0.0
      %928 = vmatpush1.msra.mxu0 %v847
      %929 = vmatprep.subr.mxu0 0.0
      %930 = vmatpush1.msra.mxu0 %v848
      %931 = vmatprep.subr.mxu0 0.0
      %932 = vmatpush1.msra.mxu0 %v849
      %933 = vmatprep.subr.mxu0 0.0
      %934 = vmatpush1.msra.mxu0 %v850
      %935 = vmatprep.subr.mxu0 0.0
      %936 = vmatpush1.msra.mxu0 %v851
      %937 = vmatprep.subr.mxu0 0.0
      %938 = vmatpush1.msra.mxu0 %v852
      %939 = vmatprep.subr.mxu0 0.0
      %940 = vmatpush1.msra.mxu0 %v853
      %941 = vmatprep.subr.mxu0 0.0
      %942 = vmatpush1.msra.mxu0 %v854
      %943 = vmatprep.subr.mxu0 0.0
      %944 = vmatpush1.msra.mxu0 %v855
      %945 = vmatprep.subr.mxu0 0.0
      %946 = vmatpush1.msra.mxu0 %v856
      %947 = vmatprep.subr.mxu0 0.0
      %948 = vmatpush1.msra.mxu0 %v857
      %949 = vmatprep.subr.mxu0 0.0
      %950 = vmatpush1.msra.mxu0 %v858
      %951 = vmatprep.subr.mxu0 0.0
      %952 = vmatpush1.msra.mxu0 %v859
      %953 = vmatprep.subr.mxu0 0.0
      %954 = vmatpush1.msra.mxu0 %v860
      %955 = vmatprep.subr.mxu0 0.0
      %956 = vmatpush1.msra.mxu0 %v861
      %957 = vmatprep.subr.mxu0 0.0
      %958 = vmatpush1.msra.mxu0 %v862
      %959 = vmatprep.mubr.f32.mxu0 %v361
      %960 = vmatmul.mubr.f32.gmra.mrb[0].mxu0 %v395
      %v961 = vpop.f32.mrb[0].mxu0
      %v962 = vadd.f32 %v426, %v961
      %v963 = vpop.f32.mrb[0].mxu0
      %964 = vmatprep.mubr.f32.mxu0 %v362
      %965 = vmatmul.mubr.f32.gmra.mrb[0].mxu0 %v396
      %v966 = vpop.f32.mrb[0].mxu0
      %v967 = vadd.f32 %v426, %v966
      %v968 = vpop.f32.mrb[0].mxu0
      %969 = vmatprep.mubr.f32.mxu0 %v363
      %970 = vmatmul.mubr.f32.gmra.mrb[0].mxu0 %v397
      %v971 = vpop.f32.mrb[0].mxu0
      %v972 = vadd.f32 %v426, %v971
      %v973 = vpop.f32.mrb[0].mxu0
      %974 = vmatprep.mubr.f32.mxu0 %v364
      %975 = vmatmul.mubr.f32.gmra.mrb[0].mxu0 %v398
      %v976 = vpop.f32.mrb[0].mxu0
      %v977 = vadd.f32 %v426, %v976
      %v978 = vpop.f32.mrb[0].mxu0
      %979 = vmatprep.mubr.f32.mxu0 %v365
      %980 = vmatmul.mubr.f32.gmra.mrb[0].mxu0 %v399
      %v981 = vpop.f32.mrb[0].mxu0
      %v982 = vadd.f32 %v426, %v981
      %v983 = vpop.f32.mrb[0].mxu0
      %984 = vmatprep.mubr.f32.mxu0 %v366
      %985 = vmatmul.mubr.f32.gmra.mrb[0].mxu0 %v400
      %v986 = vpop.f32.mrb[0].mxu0
      %v987 = vadd.f32 %v426, %v986
      %v988 = vpop.f32.mrb[0].mxu0
      %989 = vmatprep.mubr.f32.mxu0 %v367
      %990 = vmatmul.mubr.f32.gmra.mrb[0].mxu0 %v401
      %v991 = vpop.f32.mrb[0].mxu0
      %v992 = vadd.f32 %v426, %v991
      %v993 = vpop.f32.mrb[0].mxu0
      %994 = vmatprep.mubr.f32.mxu0 0.0
      %995 = vmatmul.mubr.f32.gmra.mrb[0].mxu0 %v405
      %v996 = vpop.f32.mrb[0].mxu0
      %v997 = vadd.f32 %v426, %v996
      %v998 = vpop.f32.mrb[0].mxu0
      %999 = vdwg.mxu0
      %1000 = vmatprep.subr.mxu0 0.0
      %1001 = vmatpush1.msra.mxu0 %v863
      %1002 = vmatprep.subr.mxu0 0.0
      %1003 = vmatpush1.msra.mxu0 %v864
      %1004 = vmatprep.subr.mxu0 0.0
      %1005 = vmatpush1.msra.mxu0 %v865
      %1006 = vmatprep.subr.mxu0 0.0
      %1007 = vmatpush1.msra.mxu0 %v866
      %1008 = vmatprep.subr.mxu0 0.0
      %1009 = vmatpush1.msra.mxu0 %v867
      %1010 = vmatprep.subr.mxu0 0.0
      %1011 = vmatpush1.msra.mxu0 %v868
      %1012 = vmatprep.subr.mxu0 0.0
      %1013 = vmatpush1.msra.mxu0 %v869
      %1014 = vmatprep.subr.mxu0 0.0
      %1015 = vmatpush1.msra.mxu0 %v870
      %1016 = vmatprep.subr.mxu0 0.0
      %1017 = vmatpush1.msra.mxu0 %v871
      %1018 = vmatprep.subr.mxu0 0.0
      %1019 = vmatpush1.msra.mxu0 %v872
      %1020 = vmatprep.subr.mxu0 0.0
      %1021 = vmatpush1.msra.mxu0 %v873
      %1022 = vmatprep.subr.mxu0 0.0
      %1023 = vmatpush1.msra.mxu0 %v874
      %1024 = vmatprep.subr.mxu0 0.0
      %1025 = vmatpush1.msra.mxu0 %v875
      %1026 = vmatprep.subr.mxu0 0.0
      %1027 = vmatpush1.msra.mxu0 %v876
      %1028 = vmatprep.subr.mxu0 0.0
      %1029 = vmatpush1.msra.mxu0 %v877
      %1030 = vmatprep.subr.mxu0 0.0
      %1031 = vmatpush1.msra.mxu0 %v878
      %1032 = vmatprep.subr.mxu0 0.0
      %1033 = vmatpush1.msra.mxu0 %v879
      %1034 = vmatprep.subr.mxu0 0.0
      %1035 = vmatpush1.msra.mxu0 %v880
      %1036 = vmatprep.subr.mxu0 0.0
      %1037 = vmatpush1.msra.mxu0 %v881
      %1038 = vmatprep.subr.mxu0 0.0
      %1039 = vmatpush1.msra.mxu0 %v882
      %1040 = vmatprep.subr.mxu0 0.0
      %1041 = vmatpush1.msra.mxu0 %v883
      %1042 = vmatprep.subr.mxu0 0.0
      %1043 = vmatpush1.msra.mxu0 %v884
      %1044 = vmatprep.subr.mxu0 0.0
      %1045 = vmatpush1.msra.mxu0 %v885
      %1046 = vmatprep.subr.mxu0 0.0
      %1047 = vmatpush1.msra.mxu0 %v886
      %1048 = vmatprep.subr.mxu0 0.0
      %1049 = vmatpush1.msra.mxu0 %v887
      %1050 = vmatprep.subr.mxu0 0.0
      %1051 = vmatpush1.msra.mxu0 %v888
      %1052 = vmatprep.subr.mxu0 0.0
      %1053 = vmatpush1.msra.mxu0 %v889
      %1054 = vmatprep.subr.mxu0 0.0
      %1055 = vmatpush1.msra.mxu0 %v890
      %1056 = vmatprep.subr.mxu0 0.0
      %1057 = vmatpush1.msra.mxu0 %v891
      %1058 = vmatprep.subr.mxu0 0.0
      %1059 = vmatpush1.msra.mxu0 %v892
      %1060 = vmatprep.subr.mxu0 0.0
      %1061 = vmatpush1.msra.mxu0 %v893
      %1062 = vmatprep.subr.mxu0 0.0
      %1063 = vmatpush1.msra.mxu0 %v894
      %1064 = vmatprep.mubr.f32.mxu0 %v360
      %1065 = vmatmul.mubr.f32.gmra.mrb[0].mxu0 %v394
      %v1066 = vpop.f32.mrb[0].mxu0
      %v1067 = vadd.f32 %v962, %v1066
      %v1068 = vpop.f32.mrb[0].mxu0
      %1069 = vmatprep.mubr.f32.mxu0 %v361
      %1070 = vmatmul.mubr.f32.gmra.mrb[0].mxu0 %v395
      %v1071 = vpop.f32.mrb[0].mxu0
      %v1072 = vadd.f32 %v967, %v1071
      %v1073 = vpop.f32.mrb[0].mxu0
      %1074 = vmatprep.mubr.f32.mxu0 %v362
      %1075 = vmatmul.mubr.f32.gmra.mrb[0].mxu0 %v396
      %v1076 = vpop.f32.mrb[0].mxu0
      %v1077 = vadd.f32 %v972, %v1076
      %v1078 = vpop.f32.mrb[0].mxu0
      %1079 = vmatprep.mubr.f32.mxu0 %v363
      %1080 = vmatmul.mubr.f32.gmra.mrb[0].mxu0 %v397
      %v1081 = vpop.f32.mrb[0].mxu0
      %v1082 = vadd.f32 %v977, %v1081
      %v1083 = vpop.f32.mrb[0].mxu0
      %1084 = vmatprep.mubr.f32.mxu0 %v364
      %1085 = vmatmul.mubr.f32.gmra.mrb[0].mxu0 %v398
      %v1086 = vpop.f32.mrb[0].mxu0
      %v1087 = vadd.f32 %v982, %v1086
      %v1088 = vpop.f32.mrb[0].mxu0
      %1089 = vmatprep.mubr.f32.mxu0 %v365
      %1090 = vmatmul.mubr.f32.gmra.mrb[0].mxu0 %v399
      %v1091 = vpop.f32.mrb[0].mxu0
      %v1092 = vadd.f32 %v987, %v1091
      %v1093 = vpop.f32.mrb[0].mxu0
      %1094 = vmatprep.mubr.f32.mxu0 %v366
      %1095 = vmatmul.mubr.f32.gmra.mrb[0].mxu0 %v400
      %v1096 = vpop.f32.mrb[0].mxu0
      %v1097 = vadd.f32 %v992, %v1096
      %v1098 = vpop.f32.mrb[0].mxu0
      %1099 = vmatprep.mubr.f32.mxu0 %v367
      %1100 = vmatmul.mubr.f32.gmra.mrb[0].mxu0 %v401
      %v1101 = vpop.f32.mrb[0].mxu0
      %v1102 = vadd.f32 %v997, %v1101
      %v1103 = vpop.f32.mrb[0].mxu0
      %1104 = vdwg.mxu0
      %v1105 = vmax.f32 %v1067, 0.0
      %v1106 = vmax.f32 %v1072, 0.0
      %v1107 = vmax.f32 %v1077, 0.0
      %v1108 = vmax.f32 %v1082, 0.0
      %v1109 = vmax.f32 %v1087, 0.0
      %v1110 = vmax.f32 %v1092, 0.0
      %v1111 = vmax.f32 %v1097, 0.0
      %v1112 = vmax.f32 %v1102, 0.0
      %v1113 = vld [vmem:[%s8] sm:$0xff]
      %v1114 = vld [vmem:[%s8 + $0x8] sm:$0xff]
      %v1115 = vld [vmem:[%s8 + $0x10] sm:$0xff]
      %v1116 = vld [vmem:[%s8 + $0x18] sm:$0xff]
      %v1117 = vld [vmem:[%s8 + $0x20] sm:$0xff]
      %v1118 = vld [vmem:[%s8 + $0x28] sm:$0xff]
      %v1119 = vld [vmem:[%s8 + $0x30] sm:$0xff]
      %v1120 = vld [vmem:[%s8 + $0x38] sm:$0xff]
      %v1121 = vld [vmem:[%s8 + $0x40] sm:$0xff]
      %v1122 = vld [vmem:[%s8 + $0x48] sm:$0xff]
      %v1123 = vld [vmem:[%s8 + $0x50] sm:$0xff]
      %v1124 = vld [vmem:[%s8 + $0x58] sm:$0xff]
      %v1125 = vld [vmem:[%s8 + $0x60] sm:$0xff]
      %v1126 = vld [vmem:[%s8 + $0x68] sm:$0xff]
      %v1127 = vld [vmem:[%s8 + $0x70] sm:$0xff]
      %v1128 = vld [vmem:[%s8 + $0x78] sm:$0xff]
      %v1129 = vld [vmem:[%s8 + $0x80] sm:$0xff]
      %v1130 = vld [vmem:[%s8 + $0x88] sm:$0xff]
      %v1131 = vld [vmem:[%s8 + $0x90] sm:$0xff]
      %v1132 = vld [vmem:[%s8 + $0x98] sm:$0xff]
      %v1133 = vld [vmem:[%s8 + $0xa0] sm:$0xff]
      %v1134 = vld [vmem:[%s8 + $0xa8] sm:$0xff]
      %v1135 = vld [vmem:[%s8 + $0xb0] sm:$0xff]
      %v1136 = vld [vmem:[%s8 + $0xb8] sm:$0xff]
      %v1137 = vld [vmem:[%s9] sm:$0x1]
      %1146 = vrot.lane.b32.xlu0 %v533, 64
      %v1147 = vpop.permute.xlu0 %1146
      %1148 = vrot.lane.b32.xlu0 %v534, 64
      %v1149 = vpop.permute.xlu0 %1148
      %1150 = vrot.lane.b32.xlu0 %v535, 64
      %v1151 = vpop.permute.xlu0 %1150
      %1152 = vrot.lane.b32.xlu0 %v536, 64
      %v1153 = vpop.permute.xlu0 %1152
      %1154 = vrot.lane.b32.xlu0 %v537, 64
      %v1155 = vpop.permute.xlu0 %1154
      %1156 = vrot.lane.b32.xlu0 %v538, 64
      %v1157 = vpop.permute.xlu0 %1156
      %1158 = vrot.lane.b32.xlu0 %v539, 64
      %v1159 = vpop.permute.xlu0 %1158
      %1160 = vrot.lane.b32.xlu0 %v540, 64
      %v1161 = vpop.permute.xlu0 %1160
      %vm1170 = vcmask 523264
      %v1171 = vsel %vm1170, 0.0, %v1147
      %v1172 = vsel %vm1170, %v823, %v1149
      %v1173 = vsel %vm1170, %v824, %v1151
      %v1174 = vsel %vm1170, %v825, %v1153
      %v1175 = vsel %vm1170, %v826, %v1155
      %v1176 = vsel %vm1170, %v827, %v1157
      %v1177 = vsel %vm1170, %v828, %v1159
      %v1178 = vsel %vm1170, %v829, %v1161
      %1187 = vrot.lane.b32.xlu0 %v823, 64
      %v1188 = vpop.permute.xlu0 %1187
      %1189 = vrot.lane.b32.xlu0 %v824, 64
      %v1190 = vpop.permute.xlu0 %1189
      %1191 = vrot.lane.b32.xlu0 %v825, 64
      %v1192 = vpop.permute.xlu0 %1191
      %1193 = vrot.lane.b32.xlu0 %v826, 64
      %v1194 = vpop.permute.xlu0 %1193
      %1195 = vrot.lane.b32.xlu0 %v827, 64
      %v1196 = vpop.permute.xlu0 %1195
      %1197 = vrot.lane.b32.xlu0 %v828, 64
      %v1198 = vpop.permute.xlu0 %1197
      %1199 = vrot.lane.b32.xlu0 %v829, 64
      %v1200 = vpop.permute.xlu0 %1199
      %1201 = vrot.lane.b32.xlu0 %v830, 64
      %v1202 = vpop.permute.xlu0 %1201
      %v1211 = vsel %vm1170, %v533, %v1188
      %v1212 = vsel %vm1170, %v534, %v1190
      %v1213 = vsel %vm1170, %v535, %v1192
      %v1214 = vsel %vm1170, %v536, %v1194
      %v1215 = vsel %vm1170, %v537, %v1196
      %v1216 = vsel %vm1170, %v538, %v1198
      %v1217 = vsel %vm1170, %v539, %v1200
      %v1218 = vsel %vm1170, %v540, %v1202
      %1227 = vrot.lane.b32.xlu0 %v678, 64
      %v1228 = vpop.permute.xlu0 %1227
      %1229 = vrot.lane.b32.xlu0 %v679, 64
      %v1230 = vpop.permute.xlu0 %1229
      %1231 = vrot.lane.b32.xlu0 %v680, 64
      %v1232 = vpop.permute.xlu0 %1231
      %1233 = vrot.lane.b32.xlu0 %v681, 64
      %v1234 = vpop.permute.xlu0 %1233
      %1235 = vrot.lane.b32.xlu0 %v682, 64
      %v1236 = vpop.permute.xlu0 %1235
      %1237 = vrot.lane.b32.xlu0 %v683, 64
      %v1238 = vpop.permute.xlu0 %1237
      %1239 = vrot.lane.b32.xlu0 %v684, 64
      %v1240 = vpop.permute.xlu0 %1239
      %1241 = vrot.lane.b32.xlu0 %v685, 64
      %v1242 = vpop.permute.xlu0 %1241
      %v1251 = vsel %vm1170, 0.0, %v1228
      %v1252 = vsel %vm1170, %v1105, %v1230
      %v1253 = vsel %vm1170, %v1106, %v1232
      %v1254 = vsel %vm1170, %v1107, %v1234
      %v1255 = vsel %vm1170, %v1108, %v1236
      %v1256 = vsel %vm1170, %v1109, %v1238
      %v1257 = vsel %vm1170, %v1110, %v1240
      %v1258 = vsel %vm1170, %v1111, %v1242
      %1267 = vrot.lane.b32.xlu0 %v1105, 64
      %v1268 = vpop.permute.xlu0 %1267
      %1269 = vrot.lane.b32.xlu0 %v1106, 64
      %v1270 = vpop.permute.xlu0 %1269
      %1271 = vrot.lane.b32.xlu0 %v1107, 64
      %v1272 = vpop.permute.xlu0 %1271
      %1273 = vrot.lane.b32.xlu0 %v1108, 64
      %v1274 = vpop.permute.xlu0 %1273
      %1275 = vrot.lane.b32.xlu0 %v1109, 64
      %v1276 = vpop.permute.xlu0 %1275
      %1277 = vrot.lane.b32.xlu0 %v1110, 64
      %v1278 = vpop.permute.xlu0 %1277
      %1279 = vrot.lane.b32.xlu0 %v1111, 64
      %v1280 = vpop.permute.xlu0 %1279
      %1281 = vrot.lane.b32.xlu0 %v1112, 64
      %v1282 = vpop.permute.xlu0 %1281
      %v1291 = vsel %vm1170, %v678, %v1268
      %v1292 = vsel %vm1170, %v679, %v1270
      %v1293 = vsel %vm1170, %v680, %v1272
      %v1294 = vsel %vm1170, %v681, %v1274
      %v1295 = vsel %vm1170, %v682, %v1276
      %v1296 = vsel %vm1170, %v683, %v1278
      %v1297 = vsel %vm1170, %v684, %v1280
      %v1298 = vsel %vm1170, %v685, %v1282
      %v1300 = vlaneseq
      %v1301 = vshrl.u32 %v1300, 7
      %v1302 = vsub.s32 0, %v1301
      %v1303 = vrot.slane %v1137, %v1302
      %v1305 = vsel %vm1170, %v823, 0
      %v1307 = vsel %vm1170, %v824, 0
      %v1309 = vsel %vm1170, %v825, 0
      %v1311 = vsel %vm1170, %v826, 0
      %v1313 = vsel %vm1170, %v827, 0
      %v1315 = vsel %vm1170, %v828, 0
      %v1317 = vsel %vm1170, %v829, 0
      %v1319 = vsel %vm1170, %v830, 0
      %v1321 = vsel %vm1170, %v1105, 0
      %v1323 = vsel %vm1170, %v1106, 0
      %v1325 = vsel %vm1170, %v1107, 0
      %v1327 = vsel %vm1170, %v1108, 0
      %v1329 = vsel %vm1170, %v1109, 0
      %v1331 = vsel %vm1170, %v1110, 0
      %v1333 = vsel %vm1170, %v1111, 0
      %v1335 = vsel %vm1170, %v1112, 0
      %v1337 = vsel %vm1170, %v534, 0
      %v1339 = vsel %vm1170, %v535, 0
      %v1341 = vsel %vm1170, %v536, 0
      %v1343 = vsel %vm1170, %v537, 0
      %v1345 = vsel %vm1170, %v538, 0
      %v1347 = vsel %vm1170, %v539, 0
      %v1349 = vsel %vm1170, %v540, 0
      %v1351 = vsel %vm1170, 0.0, 0
      %v1353 = vsel %vm1170, %v679, 0
      %v1355 = vsel %vm1170, %v680, 0
      %v1357 = vsel %vm1170, %v681, 0
      %v1359 = vsel %vm1170, %v682, 0
      %v1361 = vsel %vm1170, %v683, 0
      %v1363 = vsel %vm1170, %v684, 0
      %v1365 = vsel %vm1170, %v685, 0
      %1367 = vmatprep.subr.mxu0 0.0
      %1368 = vmatpush1.msra.mxu0 %v1113
      %1369 = vmatprep.subr.mxu0 0.0
      %1370 = vmatpush1.msra.mxu0 %v1114
      %1371 = vmatprep.subr.mxu0 0.0
      %1372 = vmatpush1.msra.mxu0 %v1115
      %1373 = vmatprep.subr.mxu0 0.0
      %1374 = vmatpush1.msra.mxu0 %v1116
      %1375 = vmatprep.subr.mxu0 0.0
      %1376 = vmatpush1.msra.mxu0 %v1117
      %1377 = vmatprep.subr.mxu0 0.0
      %1378 = vmatpush1.msra.mxu0 %v1118
      %1379 = vmatprep.subr.mxu0 0.0
      %1380 = vmatpush1.msra.mxu0 %v1119
      %1381 = vmatprep.subr.mxu0 0.0
      %1382 = vmatpush1.msra.mxu0 %v1120
      %1383 = vmatprep.subr.mxu0 0.0
      %1384 = vmatpush1.msra.mxu0 %v1121
      %1385 = vmatprep.subr.mxu0 0.0
      %1386 = vmatpush1.msra.mxu0 %v1122
      %1387 = vmatprep.subr.mxu0 0.0
      %1388 = vmatpush1.msra.mxu0 %v1123
      %1389 = vmatprep.subr.mxu0 0.0
      %1390 = vmatpush1.msra.mxu0 %v1124
      %1391 = vmatprep.subr.mxu0 0.0
      %1392 = vmatpush1.msra.mxu0 %v1125
      %1393 = vmatprep.subr.mxu0 0.0
      %1394 = vmatpush1.msra.mxu0 %v1126
      %1395 = vmatprep.subr.mxu0 0.0
      %1396 = vmatpush1.msra.mxu0 %v1127
      %1397 = vmatprep.subr.mxu0 0.0
      %1398 = vmatpush1.msra.mxu0 %v1128
      %1399 = vmatprep.subr.mxu0 0.0
      %1400 = vmatpush1.msra.mxu0 %v1129
      %1401 = vmatprep.subr.mxu0 0.0
      %1402 = vmatpush1.msra.mxu0 %v1130
      %1403 = vmatprep.subr.mxu0 0.0
      %1404 = vmatpush1.msra.mxu0 %v1131
      %1405 = vmatprep.subr.mxu0 0.0
      %1406 = vmatpush1.msra.mxu0 %v1132
      %1407 = vmatprep.subr.mxu0 0.0
      %1408 = vmatpush1.msra.mxu0 %v1133
      %1409 = vmatprep.subr.mxu0 0.0
      %1410 = vmatpush1.msra.mxu0 %v1134
      %1411 = vmatprep.subr.mxu0 0.0
      %1412 = vmatpush1.msra.mxu0 %v1135
      %1413 = vmatprep.subr.mxu0 0.0
      %1414 = vmatpush1.msra.mxu0 %v1136
      %1415 = vmatprep.subr.mxu0 0.0
      %1416 = vmatpush1.msra.mxu0 0.0
      %1417 = vmatprep.subr.mxu0 0.0
      %1418 = vmatpush1.msra.mxu0 0.0
      %1419 = vmatprep.subr.mxu0 0.0
      %1420 = vmatpush1.msra.mxu0 0.0
      %1421 = vmatprep.subr.mxu0 0.0
      %1422 = vmatpush1.msra.mxu0 0.0
      %1423 = vmatprep.subr.mxu0 0.0
      %1424 = vmatpush1.msra.mxu0 0.0
      %1425 = vmatprep.subr.mxu0 0.0
      %1426 = vmatpush1.msra.mxu0 0.0
      %1427 = vmatprep.subr.mxu0 0.0
      %1428 = vmatpush1.msra.mxu0 0.0
      %1429 = vmatprep.subr.mxu0 0.0
      %1430 = vmatpush1.msra.mxu0 0.0
      %1431 = vmatprep.mubr.f32.mxu0 %v1305
      %1432 = vmatmul.mubr.f32.gmra.mrb[0].mxu0 %v1171
      %v1433 = vpop.f32.mrb[0].mxu0
      %v1434 = vadd.f32 %v1303, %v1433
      %v1435 = vpop.f32.mrb[0].mxu0
      %1436 = vmatprep.mubr.f32.mxu0 %v1307
      %1437 = vmatmul.mubr.f32.gmra.mrb[0].mxu0 %v1172
      %v1438 = vpop.f32.mrb[0].mxu0
      %v1439 = vadd.f32 %v1303, %v1438
      %v1440 = vpop.f32.mrb[0].mxu0
      %1441 = vmatprep.mubr.f32.mxu0 %v1309
      %1442 = vmatmul.mubr.f32.gmra.mrb[0].mxu0 %v1173
      %v1443 = vpop.f32.mrb[0].mxu0
      %v1444 = vadd.f32 %v1303, %v1443
      %v1445 = vpop.f32.mrb[0].mxu0
      %1446 = vmatprep.mubr.f32.mxu0 %v1311
      %1447 = vmatmul.mubr.f32.gmra.mrb[0].mxu0 %v1174
      %v1448 = vpop.f32.mrb[0].mxu0
      %v1449 = vadd.f32 %v1303, %v1448
      %v1450 = vpop.f32.mrb[0].mxu0
      %1451 = vmatprep.mubr.f32.mxu0 %v1313
      %1452 = vmatmul.mubr.f32.gmra.mrb[0].mxu0 %v1175
      %v1453 = vpop.f32.mrb[0].mxu0
      %v1454 = vadd.f32 %v1303, %v1453
      %v1455 = vpop.f32.mrb[0].mxu0
      %1456 = vmatprep.mubr.f32.mxu0 %v1315
      %1457 = vmatmul.mubr.f32.gmra.mrb[0].mxu0 %v1176
      %v1458 = vpop.f32.mrb[0].mxu0
      %v1459 = vadd.f32 %v1303, %v1458
      %v1460 = vpop.f32.mrb[0].mxu0
      %1461 = vmatprep.mubr.f32.mxu0 %v1317
      %1462 = vmatmul.mubr.f32.gmra.mrb[0].mxu0 %v1177
      %v1463 = vpop.f32.mrb[0].mxu0
      %v1464 = vadd.f32 %v1303, %v1463
      %v1465 = vpop.f32.mrb[0].mxu0
      %1466 = vmatprep.mubr.f32.mxu0 %v1319
      %1467 = vmatmul.mubr.f32.gmra.mrb[0].mxu0 %v1178
      %v1468 = vpop.f32.mrb[0].mxu0
      %v1469 = vadd.f32 %v1303, %v1468
      %v1470 = vpop.f32.mrb[0].mxu0
      %1471 = vmatprep.mubr.f32.mxu0 %v1321
      %1472 = vmatmul.mubr.f32.gmra.mrb[0].mxu0 %v1251
      %v1473 = vpop.f32.mrb[0].mxu0
      %v1474 = vadd.f32 %v1303, %v1473
      %v1475 = vpop.f32.mrb[0].mxu0
      %1476 = vmatprep.mubr.f32.mxu0 %v1323
      %1477 = vmatmul.mubr.f32.gmra.mrb[0].mxu0 %v1252
      %v1478 = vpop.f32.mrb[0].mxu0
      %v1479 = vadd.f32 %v1303, %v1478
      %v1480 = vpop.f32.mrb[0].mxu0
      %1481 = vmatprep.mubr.f32.mxu0 %v1325
      %1482 = vmatmul.mubr.f32.gmra.mrb[0].mxu0 %v1253
      %v1483 = vpop.f32.mrb[0].mxu0
      %v1484 = vadd.f32 %v1303, %v1483
      %v1485 = vpop.f32.mrb[0].mxu0
      %1486 = vmatprep.mubr.f32.mxu0 %v1327
      %1487 = vmatmul.mubr.f32.gmra.mrb[0].mxu0 %v1254
      %v1488 = vpop.f32.mrb[0].mxu0
      %v1489 = vadd.f32 %v1303, %v1488
      %v1490 = vpop.f32.mrb[0].mxu0
      %1491 = vmatprep.mubr.f32.mxu0 %v1329
      %1492 = vmatmul.mubr.f32.gmra.mrb[0].mxu0 %v1255
      %v1493 = vpop.f32.mrb[0].mxu0
      %v1494 = vadd.f32 %v1303, %v1493
      %v1495 = vpop.f32.mrb[0].mxu0
      %1496 = vmatprep.mubr.f32.mxu0 %v1331
      %1497 = vmatmul.mubr.f32.gmra.mrb[0].mxu0 %v1256
      %v1498 = vpop.f32.mrb[0].mxu0
      %v1499 = vadd.f32 %v1303, %v1498
      %v1500 = vpop.f32.mrb[0].mxu0
      %1501 = vmatprep.mubr.f32.mxu0 %v1333
      %1502 = vmatmul.mubr.f32.gmra.mrb[0].mxu0 %v1257
      %v1503 = vpop.f32.mrb[0].mxu0
      %v1504 = vadd.f32 %v1303, %v1503
      %v1505 = vpop.f32.mrb[0].mxu0
      %1506 = vmatprep.mubr.f32.mxu0 %v1335
      %1507 = vmatmul.mubr.f32.gmra.mrb[0].mxu0 %v1258
      %v1508 = vpop.f32.mrb[0].mxu0
      %v1509 = vadd.f32 %v1303, %v1508
      %v1510 = vpop.f32.mrb[0].mxu0
      %1511 = vmatprep.mubr.f32.mxu0 %v1337
      %1512 = vmatmul.mubr.f32.gmra.mrb[0].mxu0 %v1211
      %v1513 = vpop.f32.mrb[0].mxu0
      %v1514 = vadd.f32 %v1303, %v1513
      %v1515 = vpop.f32.mrb[0].mxu0
      %1516 = vmatprep.mubr.f32.mxu0 %v1339
      %1517 = vmatmul.mubr.f32.gmra.mrb[0].mxu0 %v1212
      %v1518 = vpop.f32.mrb[0].mxu0
      %v1519 = vadd.f32 %v1303, %v1518
      %v1520 = vpop.f32.mrb[0].mxu0
      %1521 = vmatprep.mubr.f32.mxu0 %v1341
      %1522 = vmatmul.mubr.f32.gmra.mrb[0].mxu0 %v1213
      %v1523 = vpop.f32.mrb[0].mxu0
      %v1524 = vadd.f32 %v1303, %v1523
      %v1525 = vpop.f32.mrb[0].mxu0
      %1526 = vmatprep.mubr.f32.mxu0 %v1343
      %1527 = vmatmul.mubr.f32.gmra.mrb[0].mxu0 %v1214
      %v1528 = vpop.f32.mrb[0].mxu0
      %v1529 = vadd.f32 %v1303, %v1528
      %v1530 = vpop.f32.mrb[0].mxu0
      %1531 = vmatprep.mubr.f32.mxu0 %v1345
      %1532 = vmatmul.mubr.f32.gmra.mrb[0].mxu0 %v1215
      %v1533 = vpop.f32.mrb[0].mxu0
      %v1534 = vadd.f32 %v1303, %v1533
      %v1535 = vpop.f32.mrb[0].mxu0
      %1536 = vmatprep.mubr.f32.mxu0 %v1347
      %1537 = vmatmul.mubr.f32.gmra.mrb[0].mxu0 %v1216
      %v1538 = vpop.f32.mrb[0].mxu0
      %v1539 = vadd.f32 %v1303, %v1538
      %v1540 = vpop.f32.mrb[0].mxu0
      %1541 = vmatprep.mubr.f32.mxu0 %v1349
      %1542 = vmatmul.mubr.f32.gmra.mrb[0].mxu0 %v1217
      %v1543 = vpop.f32.mrb[0].mxu0
      %v1544 = vadd.f32 %v1303, %v1543
      %v1545 = vpop.f32.mrb[0].mxu0
      %1546 = vmatprep.mubr.f32.mxu0 %v1351
      %1547 = vmatmul.mubr.f32.gmra.mrb[0].mxu0 %v1218
      %v1548 = vpop.f32.mrb[0].mxu0
      %v1549 = vadd.f32 %v1303, %v1548
      %v1550 = vpop.f32.mrb[0].mxu0
      %1551 = vmatprep.mubr.f32.mxu0 %v1353
      %1552 = vmatmul.mubr.f32.gmra.mrb[0].mxu0 %v1291
      %v1553 = vpop.f32.mrb[0].mxu0
      %v1554 = vadd.f32 %v1303, %v1553
      %v1555 = vpop.f32.mrb[0].mxu0
      %1556 = vmatprep.mubr.f32.mxu0 %v1355
      %1557 = vmatmul.mubr.f32.gmra.mrb[0].mxu0 %v1292
      %v1558 = vpop.f32.mrb[0].mxu0
      %v1559 = vadd.f32 %v1303, %v1558
      %v1560 = vpop.f32.mrb[0].mxu0
      %1561 = vmatprep.mubr.f32.mxu0 %v1357
      %1562 = vmatmul.mubr.f32.gmra.mrb[0].mxu0 %v1293
      %v1563 = vpop.f32.mrb[0].mxu0
      %v1564 = vadd.f32 %v1303, %v1563
      %v1565 = vpop.f32.mrb[0].mxu0
      %1566 = vmatprep.mubr.f32.mxu0 %v1359
      %1567 = vmatmul.mubr.f32.gmra.mrb[0].mxu0 %v1294
      %v1568 = vpop.f32.mrb[0].mxu0
      %v1569 = vadd.f32 %v1303, %v1568
      %v1570 = vpop.f32.mrb[0].mxu0
      %1571 = vmatprep.mubr.f32.mxu0 %v1361
      %1572 = vmatmul.mubr.f32.gmra.mrb[0].mxu0 %v1295
      %v1573 = vpop.f32.mrb[0].mxu0
      %v1574 = vadd.f32 %v1303, %v1573
      %v1575 = vpop.f32.mrb[0].mxu0
      %1576 = vmatprep.mubr.f32.mxu0 %v1363
      %1577 = vmatmul.mubr.f32.gmra.mrb[0].mxu0 %v1296
      %v1578 = vpop.f32.mrb[0].mxu0
      %v1579 = vadd.f32 %v1303, %v1578
      %v1580 = vpop.f32.mrb[0].mxu0
      %1581 = vmatprep.mubr.f32.mxu0 %v1365
      %1582 = vmatmul.mubr.f32.gmra.mrb[0].mxu0 %v1297
      %v1583 = vpop.f32.mrb[0].mxu0
      %v1584 = vadd.f32 %v1303, %v1583
      %v1585 = vpop.f32.mrb[0].mxu0
      %1586 = vmatprep.mubr.f32.mxu0 %v1351
      %1587 = vmatmul.mubr.f32.gmra.mrb[0].mxu0 %v1298
      %v1588 = vpop.f32.mrb[0].mxu0
      %v1589 = vadd.f32 %v1303, %v1588
      %v1590 = vpop.f32.mrb[0].mxu0
      %1591 = vdwg.mxu0
      %v1592 = vmax.f32 %v1434, 0.0
      %v1593 = vmax.f32 %v1439, 0.0
      %v1594 = vmax.f32 %v1444, 0.0
      %v1595 = vmax.f32 %v1449, 0.0
      %v1596 = vmax.f32 %v1454, 0.0
      %v1597 = vmax.f32 %v1459, 0.0
      %v1598 = vmax.f32 %v1464, 0.0
      %v1599 = vmax.f32 %v1469, 0.0
      %v1600 = vmax.f32 %v1474, 0.0
      %v1601 = vmax.f32 %v1479, 0.0
      %v1602 = vmax.f32 %v1484, 0.0
      %v1603 = vmax.f32 %v1489, 0.0
      %v1604 = vmax.f32 %v1494, 0.0
      %v1605 = vmax.f32 %v1499, 0.0
      %v1606 = vmax.f32 %v1504, 0.0
      %v1607 = vmax.f32 %v1509, 0.0
      %v1608 = vmax.f32 %v1514, 0.0
      %v1609 = vmax.f32 %v1519, 0.0
      %v1610 = vmax.f32 %v1524, 0.0
      %v1611 = vmax.f32 %v1529, 0.0
      %v1612 = vmax.f32 %v1534, 0.0
      %v1613 = vmax.f32 %v1539, 0.0
      %v1614 = vmax.f32 %v1544, 0.0
      %v1615 = vmax.f32 %v1549, 0.0
      %v1616 = vmax.f32 %v1554, 0.0
      %v1617 = vmax.f32 %v1559, 0.0
      %v1618 = vmax.f32 %v1564, 0.0
      %v1619 = vmax.f32 %v1569, 0.0
      %v1620 = vmax.f32 %v1574, 0.0
      %v1621 = vmax.f32 %v1579, 0.0
      %v1622 = vmax.f32 %v1584, 0.0
      %v1623 = vmax.f32 %v1589, 0.0
      %s1624 = scalar_lea.vmem %s8, 192
      %v1625 = vld [vmem:[%s1624] sm:$0xff]
      %v1626 = vld [vmem:[%s1624 + $0x8] sm:$0xff]
      %v1627 = vld [vmem:[%s1624 + $0x10] sm:$0xff]
      %v1628 = vld [vmem:[%s1624 + $0x18] sm:$0xff]
      %v1629 = vld [vmem:[%s1624 + $0x20] sm:$0xff]
      %v1630 = vld [vmem:[%s1624 + $0x28] sm:$0xff]
      %v1631 = vld [vmem:[%s1624 + $0x30] sm:$0xff]
      %v1632 = vld [vmem:[%s1624 + $0x38] sm:$0xff]
      %v1633 = vld [vmem:[%s1624 + $0x40] sm:$0xff]
      %v1634 = vld [vmem:[%s1624 + $0x48] sm:$0xff]
      %v1635 = vld [vmem:[%s1624 + $0x50] sm:$0xff]
      %v1636 = vld [vmem:[%s1624 + $0x58] sm:$0xff]
      %v1637 = vld [vmem:[%s1624 + $0x60] sm:$0xff]
      %v1638 = vld [vmem:[%s1624 + $0x68] sm:$0xff]
      %v1639 = vld [vmem:[%s1624 + $0x70] sm:$0xff]
      %v1640 = vld [vmem:[%s1624 + $0x78] sm:$0xff]
      %v1641 = vld [vmem:[%s1624 + $0x80] sm:$0xff]
      %v1642 = vld [vmem:[%s1624 + $0x88] sm:$0xff]
      %v1643 = vld [vmem:[%s1624 + $0x90] sm:$0xff]
      %v1644 = vld [vmem:[%s1624 + $0x98] sm:$0xff]
      %v1645 = vld [vmem:[%s1624 + $0xa0] sm:$0xff]
      %v1646 = vld [vmem:[%s1624 + $0xa8] sm:$0xff]
      %v1647 = vld [vmem:[%s1624 + $0xb0] sm:$0xff]
      %v1648 = vld [vmem:[%s1624 + $0xb8] sm:$0xff]
      %s1649 = scalar_lea.vmem %s9, 1
      %v1650 = vld [vmem:[%s1649] sm:$0x1]
      %v1659 = vrot.slane %v1600, 7
      %v1660 = vrot.slane %v1601, 7
      %v1661 = vrot.slane %v1602, 7
      %v1662 = vrot.slane %v1603, 7
      %v1663 = vrot.slane %v1604, 7
      %v1664 = vrot.slane %v1605, 7
      %v1665 = vrot.slane %v1606, 7
      %v1666 = vrot.slane %v1607, 7
      %vm1675 = vcmask 1040384
      %v1676 = vsel %vm1675, 0.0, %v1659
      %v1677 = vsel %vm1675, 0.0, %v1660
      %v1678 = vsel %vm1675, 0.0, %v1661
      %v1679 = vsel %vm1675, 0.0, %v1662
      %v1680 = vsel %vm1675, 0.0, %v1663
      %v1681 = vsel %vm1675, 0.0, %v1664
      %v1682 = vsel %vm1675, 0.0, %v1665
      %v1683 = vsel %vm1675, 0.0, %v1666
      %1692 = vrot.lane.b32.xlu0 %v1592, 64
      %v1693 = vpop.permute.xlu0 %1692
      %1694 = vrot.lane.b32.xlu0 %v1593, 64
      %v1695 = vpop.permute.xlu0 %1694
      %1696 = vrot.lane.b32.xlu0 %v1594, 64
      %v1697 = vpop.permute.xlu0 %1696
      %1698 = vrot.lane.b32.xlu0 %v1595, 64
      %v1699 = vpop.permute.xlu0 %1698
      %1700 = vrot.lane.b32.xlu0 %v1596, 64
      %v1701 = vpop.permute.xlu0 %1700
      %1702 = vrot.lane.b32.xlu0 %v1597, 64
      %v1703 = vpop.permute.xlu0 %1702
      %1704 = vrot.lane.b32.xlu0 %v1598, 64
      %v1705 = vpop.permute.xlu0 %1704
      %1706 = vrot.lane.b32.xlu0 %v1599, 64
      %v1707 = vpop.permute.xlu0 %1706
      %v1716 = vsel %vm1170, %v1676, %v1693
      %v1717 = vsel %vm1170, %v1677, %v1695
      %v1718 = vsel %vm1170, %v1678, %v1697
      %v1719 = vsel %vm1170, %v1679, %v1699
      %v1720 = vsel %vm1170, %v1680, %v1701
      %v1721 = vsel %vm1170, %v1681, %v1703
      %v1722 = vsel %vm1170, %v1682, %v1705
      %v1723 = vsel %vm1170, %v1683, %v1707
      %v1724 = vrot.slane %v1592, 1
      %v1725 = vrot.slane %v1593, 1
      %v1726 = vrot.slane %v1594, 1
      %v1727 = vrot.slane %v1595, 1
      %v1728 = vrot.slane %v1596, 1
      %v1729 = vrot.slane %v1597, 1
      %v1730 = vrot.slane %v1598, 1
      %v1731 = vrot.slane %v1599, 1
      %v1740 = vsel %vm393, %v1724, 0.0
      %v1741 = vsel %vm393, %v1725, 0.0
      %v1742 = vsel %vm393, %v1726, 0.0
      %v1743 = vsel %vm393, %v1727, 0.0
      %v1744 = vsel %vm393, %v1728, 0.0
      %v1745 = vsel %vm393, %v1729, 0.0
      %v1746 = vsel %vm393, %v1730, 0.0
      %v1747 = vsel %vm393, %v1731, 0.0
      %1748 = vrot.lane.b32.xlu0 %v1600, 64
      %v1749 = vpop.permute.xlu0 %1748
      %1750 = vrot.lane.b32.xlu0 %v1601, 64
      %v1751 = vpop.permute.xlu0 %1750
      %1752 = vrot.lane.b32.xlu0 %v1602, 64
      %v1753 = vpop.permute.xlu0 %1752
      %1754 = vrot.lane.b32.xlu0 %v1603, 64
      %v1755 = vpop.permute.xlu0 %1754
      %1756 = vrot.lane.b32.xlu0 %v1604, 64
      %v1757 = vpop.permute.xlu0 %1756
      %1758 = vrot.lane.b32.xlu0 %v1605, 64
      %v1759 = vpop.permute.xlu0 %1758
      %1760 = vrot.lane.b32.xlu0 %v1606, 64
      %v1761 = vpop.permute.xlu0 %1760
      %1762 = vrot.lane.b32.xlu0 %v1607, 64
      %v1763 = vpop.permute.xlu0 %1762
      %v1772 = vsel %vm1170, %v1592, %v1749
      %v1773 = vsel %vm1170, %v1593, %v1751
      %v1774 = vsel %vm1170, %v1594, %v1753
      %v1775 = vsel %vm1170, %v1595, %v1755
      %v1776 = vsel %vm1170, %v1596, %v1757
      %v1777 = vsel %vm1170, %v1597, %v1759
      %v1778 = vsel %vm1170, %v1598, %v1761
      %v1779 = vsel %vm1170, %v1599, %v1763
      %v1788 = vrot.slane %v1616, 7
      %v1789 = vrot.slane %v1617, 7
      %v1790 = vrot.slane %v1618, 7
      %v1791 = vrot.slane %v1619, 7
      %v1792 = vrot.slane %v1620, 7
      %v1793 = vrot.slane %v1621, 7
      %v1794 = vrot.slane %v1622, 7
      %v1795 = vrot.slane %v1623, 7
      %v1804 = vsel %vm1675, 0.0, %v1788
      %v1805 = vsel %vm1675, 0.0, %v1789
      %v1806 = vsel %vm1675, 0.0, %v1790
      %v1807 = vsel %vm1675, 0.0, %v1791
      %v1808 = vsel %vm1675, 0.0, %v1792
      %v1809 = vsel %vm1675, 0.0, %v1793
      %v1810 = vsel %vm1675, 0.0, %v1794
      %v1811 = vsel %vm1675, 0.0, %v1795
      %1820 = vrot.lane.b32.xlu0 %v1608, 64
      %v1821 = vpop.permute.xlu0 %1820
      %1822 = vrot.lane.b32.xlu0 %v1609, 64
      %v1823 = vpop.permute.xlu0 %1822
      %1824 = vrot.lane.b32.xlu0 %v1610, 64
      %v1825 = vpop.permute.xlu0 %1824
      %1826 = vrot.lane.b32.xlu0 %v1611, 64
      %v1827 = vpop.permute.xlu0 %1826
      %1828 = vrot.lane.b32.xlu0 %v1612, 64
      %v1829 = vpop.permute.xlu0 %1828
      %1830 = vrot.lane.b32.xlu0 %v1613, 64
      %v1831 = vpop.permute.xlu0 %1830
      %1832 = vrot.lane.b32.xlu0 %v1614, 64
      %v1833 = vpop.permute.xlu0 %1832
      %1834 = vrot.lane.b32.xlu0 %v1615, 64
      %v1835 = vpop.permute.xlu0 %1834
      %v1844 = vsel %vm1170, %v1804, %v1821
      %v1845 = vsel %vm1170, %v1805, %v1823
      %v1846 = vsel %vm1170, %v1806, %v1825
      %v1847 = vsel %vm1170, %v1807, %v1827
      %v1848 = vsel %vm1170, %v1808, %v1829
      %v1849 = vsel %vm1170, %v1809, %v1831
      %v1850 = vsel %vm1170, %v1810, %v1833
      %v1851 = vsel %vm1170, %v1811, %v1835
      %v1852 = vrot.slane %v1608, 1
      %v1853 = vrot.slane %v1609, 1
      %v1854 = vrot.slane %v1610, 1
      %v1855 = vrot.slane %v1611, 1
      %v1856 = vrot.slane %v1612, 1
      %v1857 = vrot.slane %v1613, 1
      %v1858 = vrot.slane %v1614, 1
      %v1859 = vrot.slane %v1615, 1
      %v1868 = vsel %vm393, %v1852, 0.0
      %v1869 = vsel %vm393, %v1853, 0.0
      %v1870 = vsel %vm393, %v1854, 0.0
      %v1871 = vsel %vm393, %v1855, 0.0
      %v1872 = vsel %vm393, %v1856, 0.0
      %v1873 = vsel %vm393, %v1857, 0.0
      %v1874 = vsel %vm393, %v1858, 0.0
      %v1875 = vsel %vm393, %v1859, 0.0
      %1876 = vrot.lane.b32.xlu0 %v1616, 64
      %v1877 = vpop.permute.xlu0 %1876
      %1878 = vrot.lane.b32.xlu0 %v1617, 64
      %v1879 = vpop.permute.xlu0 %1878
      %1880 = vrot.lane.b32.xlu0 %v1618, 64
      %v1881 = vpop.permute.xlu0 %1880
      %1882 = vrot.lane.b32.xlu0 %v1619, 64
      %v1883 = vpop.permute.xlu0 %1882
      %1884 = vrot.lane.b32.xlu0 %v1620, 64
      %v1885 = vpop.permute.xlu0 %1884
      %1886 = vrot.lane.b32.xlu0 %v1621, 64
      %v1887 = vpop.permute.xlu0 %1886
      %1888 = vrot.lane.b32.xlu0 %v1622, 64
      %v1889 = vpop.permute.xlu0 %1888
      %1890 = vrot.lane.b32.xlu0 %v1623, 64
      %v1891 = vpop.permute.xlu0 %1890
      %v1900 = vsel %vm1170, %v1608, %v1877
      %v1901 = vsel %vm1170, %v1609, %v1879
      %v1902 = vsel %vm1170, %v1610, %v1881
      %v1903 = vsel %vm1170, %v1611, %v1883
      %v1904 = vsel %vm1170, %v1612, %v1885
      %v1905 = vsel %vm1170, %v1613, %v1887
      %v1906 = vsel %vm1170, %v1614, %v1889
      %v1907 = vsel %vm1170, %v1615, %v1891
      %v1909 = vlaneseq
      %v1910 = vshrl.u32 %v1909, 7
      %v1911 = vsub.s32 0, %v1910
      %v1912 = vrot.slane %v1650, %v1911
      %v1914 = vsel %vm1170, %v1600, 0
      %v1916 = vsel %vm1170, %v1601, 0
      %v1918 = vsel %vm1170, %v1602, 0
      %v1920 = vsel %vm1170, %v1603, 0
      %v1922 = vsel %vm1170, %v1604, 0
      %v1924 = vsel %vm1170, %v1605, 0
      %v1926 = vsel %vm1170, %v1606, 0
      %v1928 = vsel %vm1170, %v1607, 0
      %v1931 = vsel %vm1170, %v1740, 0
      %v1934 = vsel %vm1170, %v1741, 0
      %v1937 = vsel %vm1170, %v1742, 0
      %v1940 = vsel %vm1170, %v1743, 0
      %v1943 = vsel %vm1170, %v1744, 0
      %v1946 = vsel %vm1170, %v1745, 0
      %v1949 = vsel %vm1170, %v1746, 0
      %v1952 = vsel %vm1170, %v1747, 0
      %v1954 = vsel %vm1170, %v1616, 0
      %v1956 = vsel %vm1170, %v1617, 0
      %v1958 = vsel %vm1170, %v1618, 0
      %v1960 = vsel %vm1170, %v1619, 0
      %v1962 = vsel %vm1170, %v1620, 0
      %v1964 = vsel %vm1170, %v1621, 0
      %v1966 = vsel %vm1170, %v1622, 0
      %v1968 = vsel %vm1170, %v1623, 0
      %v1971 = vsel %vm1170, %v1868, 0
      %v1974 = vsel %vm1170, %v1869, 0
      %v1977 = vsel %vm1170, %v1870, 0
      %v1980 = vsel %vm1170, %v1871, 0
      %v1983 = vsel %vm1170, %v1872, 0
      %v1986 = vsel %vm1170, %v1873, 0
      %v1989 = vsel %vm1170, %v1874, 0
      %v1992 = vsel %vm1170, %v1875, 0
      %1994 = vmatprep.subr.mxu0 0.0
      %1995 = vmatpush1.msra.mxu0 %v1625
      %1996 = vmatprep.subr.mxu0 0.0
      %1997 = vmatpush1.msra.mxu0 %v1626
      %1998 = vmatprep.subr.mxu0 0.0
      %1999 = vmatpush1.msra.mxu0 %v1627
      %2000 = vmatprep.subr.mxu0 0.0
      %2001 = vmatpush1.msra.mxu0 %v1628
      %2002 = vmatprep.subr.mxu0 0.0
      %2003 = vmatpush1.msra.mxu0 %v1629
      %2004 = vmatprep.subr.mxu0 0.0
      %2005 = vmatpush1.msra.mxu0 %v1630
      %2006 = vmatprep.subr.mxu0 0.0
      %2007 = vmatpush1.msra.mxu0 %v1631
      %2008 = vmatprep.subr.mxu0 0.0
      %2009 = vmatpush1.msra.mxu0 %v1632
      %2010 = vmatprep.subr.mxu0 0.0
      %2011 = vmatpush1.msra.mxu0 %v1633
      %2012 = vmatprep.subr.mxu0 0.0
      %2013 = vmatpush1.msra.mxu0 %v1634
      %2014 = vmatprep.subr.mxu0 0.0
      %2015 = vmatpush1.msra.mxu0 %v1635
      %2016 = vmatprep.subr.mxu0 0.0
      %2017 = vmatpush1.msra.mxu0 %v1636
      %2018 = vmatprep.subr.mxu0 0.0
      %2019 = vmatpush1.msra.mxu0 %v1637
      %2020 = vmatprep.subr.mxu0 0.0
      %2021 = vmatpush1.msra.mxu0 %v1638
      %2022 = vmatprep.subr.mxu0 0.0
      %2023 = vmatpush1.msra.mxu0 %v1639
      %2024 = vmatprep.subr.mxu0 0.0
      %2025 = vmatpush1.msra.mxu0 %v1640
      %2026 = vmatprep.subr.mxu0 0.0
      %2027 = vmatpush1.msra.mxu0 %v1641
      %2028 = vmatprep.subr.mxu0 0.0
      %2029 = vmatpush1.msra.mxu0 %v1642
      %2030 = vmatprep.subr.mxu0 0.0
      %2031 = vmatpush1.msra.mxu0 %v1643
      %2032 = vmatprep.subr.mxu0 0.0
      %2033 = vmatpush1.msra.mxu0 %v1644
      %2034 = vmatprep.subr.mxu0 0.0
      %2035 = vmatpush1.msra.mxu0 %v1645
      %2036 = vmatprep.subr.mxu0 0.0
      %2037 = vmatpush1.msra.mxu0 %v1646
      %2038 = vmatprep.subr.mxu0 0.0
      %2039 = vmatpush1.msra.mxu0 %v1647
      %2040 = vmatprep.subr.mxu0 0.0
      %2041 = vmatpush1.msra.mxu0 %v1648
      %2042 = vmatprep.subr.mxu0 0.0
      %2043 = vmatpush1.msra.mxu0 0.0
      %2044 = vmatprep.subr.mxu0 0.0
      %2045 = vmatpush1.msra.mxu0 0.0
      %2046 = vmatprep.subr.mxu0 0.0
      %2047 = vmatpush1.msra.mxu0 0.0
      %2048 = vmatprep.subr.mxu0 0.0
      %2049 = vmatpush1.msra.mxu0 0.0
      %2050 = vmatprep.subr.mxu0 0.0
      %2051 = vmatpush1.msra.mxu0 0.0
      %2052 = vmatprep.subr.mxu0 0.0
      %2053 = vmatpush1.msra.mxu0 0.0
      %2054 = vmatprep.subr.mxu0 0.0
      %2055 = vmatpush1.msra.mxu0 0.0
      %2056 = vmatprep.subr.mxu0 0.0
      %2057 = vmatpush1.msra.mxu0 0.0
      %2058 = vmatprep.mubr.f32.mxu0 %v1914
      %2059 = vmatmul.mubr.f32.gmra.mrb[0].mxu0 %v1716
      %v2060 = vpop.f32.mrb[0].mxu0
      %v2061 = vadd.f32 %v1912, %v2060
      %v2062 = vpop.f32.mrb[0].mxu0
      %2063 = vmatprep.mubr.f32.mxu0 %v1916
      %2064 = vmatmul.mubr.f32.gmra.mrb[0].mxu0 %v1717
      %v2065 = vpop.f32.mrb[0].mxu0
      %v2066 = vadd.f32 %v1912, %v2065
      %v2067 = vpop.f32.mrb[0].mxu0
      %2068 = vmatprep.mubr.f32.mxu0 %v1918
      %2069 = vmatmul.mubr.f32.gmra.mrb[0].mxu0 %v1718
      %v2070 = vpop.f32.mrb[0].mxu0
      %v2071 = vadd.f32 %v1912, %v2070
      %v2072 = vpop.f32.mrb[0].mxu0
      %2073 = vmatprep.mubr.f32.mxu0 %v1920
      %2074 = vmatmul.mubr.f32.gmra.mrb[0].mxu0 %v1719
      %v2075 = vpop.f32.mrb[0].mxu0
      %v2076 = vadd.f32 %v1912, %v2075
      %v2077 = vpop.f32.mrb[0].mxu0
      %2078 = vmatprep.mubr.f32.mxu0 %v1922
      %2079 = vmatmul.mubr.f32.gmra.mrb[0].mxu0 %v1720
      %v2080 = vpop.f32.mrb[0].mxu0
      %v2081 = vadd.f32 %v1912, %v2080
      %v2082 = vpop.f32.mrb[0].mxu0
      %2083 = vmatprep.mubr.f32.mxu0 %v1924
      %2084 = vmatmul.mubr.f32.gmra.mrb[0].mxu0 %v1721
      %v2085 = vpop.f32.mrb[0].mxu0
      %v2086 = vadd.f32 %v1912, %v2085
      %v2087 = vpop.f32.mrb[0].mxu0
      %2088 = vmatprep.mubr.f32.mxu0 %v1926
      %2089 = vmatmul.mubr.f32.gmra.mrb[0].mxu0 %v1722
      %v2090 = vpop.f32.mrb[0].mxu0
      %v2091 = vadd.f32 %v1912, %v2090
      %v2092 = vpop.f32.mrb[0].mxu0
      %2093 = vmatprep.mubr.f32.mxu0 %v1928
      %2094 = vmatmul.mubr.f32.gmra.mrb[0].mxu0 %v1723
      %v2095 = vpop.f32.mrb[0].mxu0
      %v2096 = vadd.f32 %v1912, %v2095
      %v2097 = vpop.f32.mrb[0].mxu0
      %2098 = vmatprep.mubr.f32.mxu0 %v1931
      %2099 = vmatmul.mubr.f32.gmra.mrb[0].mxu0 %v1772
      %v2100 = vpop.f32.mrb[0].mxu0
      %v2101 = vadd.f32 %v1912, %v2100
      %v2102 = vpop.f32.mrb[0].mxu0
      %2103 = vmatprep.mubr.f32.mxu0 %v1934
      %2104 = vmatmul.mubr.f32.gmra.mrb[0].mxu0 %v1773
      %v2105 = vpop.f32.mrb[0].mxu0
      %v2106 = vadd.f32 %v1912, %v2105
      %v2107 = vpop.f32.mrb[0].mxu0
      %2108 = vmatprep.mubr.f32.mxu0 %v1937
      %2109 = vmatmul.mubr.f32.gmra.mrb[0].mxu0 %v1774
      %v2110 = vpop.f32.mrb[0].mxu0
      %v2111 = vadd.f32 %v1912, %v2110
      %v2112 = vpop.f32.mrb[0].mxu0
      %2113 = vmatprep.mubr.f32.mxu0 %v1940
      %2114 = vmatmul.mubr.f32.gmra.mrb[0].mxu0 %v1775
      %v2115 = vpop.f32.mrb[0].mxu0
      %v2116 = vadd.f32 %v1912, %v2115
      %v2117 = vpop.f32.mrb[0].mxu0
      %2118 = vmatprep.mubr.f32.mxu0 %v1943
      %2119 = vmatmul.mubr.f32.gmra.mrb[0].mxu0 %v1776
      %v2120 = vpop.f32.mrb[0].mxu0
      %v2121 = vadd.f32 %v1912, %v2120
      %v2122 = vpop.f32.mrb[0].mxu0
      %2123 = vmatprep.mubr.f32.mxu0 %v1946
      %2124 = vmatmul.mubr.f32.gmra.mrb[0].mxu0 %v1777
      %v2125 = vpop.f32.mrb[0].mxu0
      %v2126 = vadd.f32 %v1912, %v2125
      %v2127 = vpop.f32.mrb[0].mxu0
      %2128 = vmatprep.mubr.f32.mxu0 %v1949
      %2129 = vmatmul.mubr.f32.gmra.mrb[0].mxu0 %v1778
      %v2130 = vpop.f32.mrb[0].mxu0
      %v2131 = vadd.f32 %v1912, %v2130
      %v2132 = vpop.f32.mrb[0].mxu0
      %2133 = vmatprep.mubr.f32.mxu0 %v1952
      %2134 = vmatmul.mubr.f32.gmra.mrb[0].mxu0 %v1779
      %v2135 = vpop.f32.mrb[0].mxu0
      %v2136 = vadd.f32 %v1912, %v2135
      %v2137 = vpop.f32.mrb[0].mxu0
      %2138 = vmatprep.mubr.f32.mxu0 %v1954
      %2139 = vmatmul.mubr.f32.gmra.mrb[0].mxu0 %v1844
      %v2140 = vpop.f32.mrb[0].mxu0
      %v2141 = vadd.f32 %v1912, %v2140
      %v2142 = vpop.f32.mrb[0].mxu0
      %2143 = vmatprep.mubr.f32.mxu0 %v1956
      %2144 = vmatmul.mubr.f32.gmra.mrb[0].mxu0 %v1845
      %v2145 = vpop.f32.mrb[0].mxu0
      %v2146 = vadd.f32 %v1912, %v2145
      %v2147 = vpop.f32.mrb[0].mxu0
      %2148 = vmatprep.mubr.f32.mxu0 %v1958
      %2149 = vmatmul.mubr.f32.gmra.mrb[0].mxu0 %v1846
      %v2150 = vpop.f32.mrb[0].mxu0
      %v2151 = vadd.f32 %v1912, %v2150
      %v2152 = vpop.f32.mrb[0].mxu0
      %2153 = vmatprep.mubr.f32.mxu0 %v1960
      %2154 = vmatmul.mubr.f32.gmra.mrb[0].mxu0 %v1847
      %v2155 = vpop.f32.mrb[0].mxu0
      %v2156 = vadd.f32 %v1912, %v2155
      %v2157 = vpop.f32.mrb[0].mxu0
      %2158 = vmatprep.mubr.f32.mxu0 %v1962
      %2159 = vmatmul.mubr.f32.gmra.mrb[0].mxu0 %v1848
      %v2160 = vpop.f32.mrb[0].mxu0
      %v2161 = vadd.f32 %v1912, %v2160
      %v2162 = vpop.f32.mrb[0].mxu0
      %2163 = vmatprep.mubr.f32.mxu0 %v1964
      %2164 = vmatmul.mubr.f32.gmra.mrb[0].mxu0 %v1849
      %v2165 = vpop.f32.mrb[0].mxu0
      %v2166 = vadd.f32 %v1912, %v2165
      %v2167 = vpop.f32.mrb[0].mxu0
      %2168 = vmatprep.mubr.f32.mxu0 %v1966
      %2169 = vmatmul.mubr.f32.gmra.mrb[0].mxu0 %v1850
      %v2170 = vpop.f32.mrb[0].mxu0
      %v2171 = vadd.f32 %v1912, %v2170
      %v2172 = vpop.f32.mrb[0].mxu0
      %2173 = vmatprep.mubr.f32.mxu0 %v1968
      %2174 = vmatmul.mubr.f32.gmra.mrb[0].mxu0 %v1851
      %v2175 = vpop.f32.mrb[0].mxu0
      %v2176 = vadd.f32 %v1912, %v2175
      %v2177 = vpop.f32.mrb[0].mxu0
      %2178 = vmatprep.mubr.f32.mxu0 %v1971
      %2179 = vmatmul.mubr.f32.gmra.mrb[0].mxu0 %v1900
      %v2180 = vpop.f32.mrb[0].mxu0
      %v2181 = vadd.f32 %v1912, %v2180
      %v2182 = vpop.f32.mrb[0].mxu0
      %2183 = vmatprep.mubr.f32.mxu0 %v1974
      %2184 = vmatmul.mubr.f32.gmra.mrb[0].mxu0 %v1901
      %v2185 = vpop.f32.mrb[0].mxu0
      %v2186 = vadd.f32 %v1912, %v2185
      %v2187 = vpop.f32.mrb[0].mxu0
      %2188 = vmatprep.mubr.f32.mxu0 %v1977
      %2189 = vmatmul.mubr.f32.gmra.mrb[0].mxu0 %v1902
      %v2190 = vpop.f32.mrb[0].mxu0
      %v2191 = vadd.f32 %v1912, %v2190
      %v2192 = vpop.f32.mrb[0].mxu0
      %2193 = vmatprep.mubr.f32.mxu0 %v1980
      %2194 = vmatmul.mubr.f32.gmra.mrb[0].mxu0 %v1903
      %v2195 = vpop.f32.mrb[0].mxu0
      %v2196 = vadd.f32 %v1912, %v2195
      %v2197 = vpop.f32.mrb[0].mxu0
      %2198 = vmatprep.mubr.f32.mxu0 %v1983
      %2199 = vmatmul.mubr.f32.gmra.mrb[0].mxu0 %v1904
      %v2200 = vpop.f32.mrb[0].mxu0
      %v2201 = vadd.f32 %v1912, %v2200
      %v2202 = vpop.f32.mrb[0].mxu0
      %2203 = vmatprep.mubr.f32.mxu0 %v1986
      %2204 = vmatmul.mubr.f32.gmra.mrb[0].mxu0 %v1905
      %v2205 = vpop.f32.mrb[0].mxu0
      %v2206 = vadd.f32 %v1912, %v2205
      %v2207 = vpop.f32.mrb[0].mxu0
      %2208 = vmatprep.mubr.f32.mxu0 %v1989
      %2209 = vmatmul.mubr.f32.gmra.mrb[0].mxu0 %v1906
      %v2210 = vpop.f32.mrb[0].mxu0
      %v2211 = vadd.f32 %v1912, %v2210
      %v2212 = vpop.f32.mrb[0].mxu0
      %2213 = vmatprep.mubr.f32.mxu0 %v1992
      %2214 = vmatmul.mubr.f32.gmra.mrb[0].mxu0 %v1907
      %v2215 = vpop.f32.mrb[0].mxu0
      %v2216 = vadd.f32 %v1912, %v2215
      %v2217 = vpop.f32.mrb[0].mxu0
      %2218 = vdwg.mxu0
      %v2219 = vmax.f32 %v2061, 0.0
      %v2220 = vmax.f32 %v2066, 0.0
      %v2221 = vmax.f32 %v2071, 0.0
      %v2222 = vmax.f32 %v2076, 0.0
      %v2223 = vmax.f32 %v2081, 0.0
      %v2224 = vmax.f32 %v2086, 0.0
      %v2225 = vmax.f32 %v2091, 0.0
      %v2226 = vmax.f32 %v2096, 0.0
      %v2227 = vmax.f32 %v2101, 0.0
      %v2228 = vmax.f32 %v2106, 0.0
      %v2229 = vmax.f32 %v2111, 0.0
      %v2230 = vmax.f32 %v2116, 0.0
      %v2231 = vmax.f32 %v2121, 0.0
      %v2232 = vmax.f32 %v2126, 0.0
      %v2233 = vmax.f32 %v2131, 0.0
      %v2234 = vmax.f32 %v2136, 0.0
      %v2235 = vmax.f32 %v2141, 0.0
      %v2236 = vmax.f32 %v2146, 0.0
      %v2237 = vmax.f32 %v2151, 0.0
      %v2238 = vmax.f32 %v2156, 0.0
      %v2239 = vmax.f32 %v2161, 0.0
      %v2240 = vmax.f32 %v2166, 0.0
      %v2241 = vmax.f32 %v2171, 0.0
      %v2242 = vmax.f32 %v2176, 0.0
      %v2243 = vmax.f32 %v2181, 0.0
      %v2244 = vmax.f32 %v2186, 0.0
      %v2245 = vmax.f32 %v2191, 0.0
      %v2246 = vmax.f32 %v2196, 0.0
      %v2247 = vmax.f32 %v2201, 0.0
      %v2248 = vmax.f32 %v2206, 0.0
      %v2249 = vmax.f32 %v2211, 0.0
      %v2250 = vmax.f32 %v2216, 0.0
      %s2251 = scalar_lea.vmem %s8, 384
      %v2252 = vld [vmem:[%s2251] sm:$0xff]
      %v2253 = vld [vmem:[%s2251 + $0x8] sm:$0xff]
      %v2254 = vld [vmem:[%s2251 + $0x10] sm:$0xff]
      %v2255 = vld [vmem:[%s2251 + $0x18] sm:$0xff]
      %v2256 = vld [vmem:[%s2251 + $0x20] sm:$0xff]
      %v2257 = vld [vmem:[%s2251 + $0x28] sm:$0xff]
      %v2258 = vld [vmem:[%s2251 + $0x30] sm:$0xff]
      %v2259 = vld [vmem:[%s2251 + $0x38] sm:$0xff]
      %v2260 = vld [vmem:[%s2251 + $0x40] sm:$0xff]
      %v2261 = vld [vmem:[%s2251 + $0x48] sm:$0xff]
      %v2262 = vld [vmem:[%s2251 + $0x50] sm:$0xff]
      %v2263 = vld [vmem:[%s2251 + $0x58] sm:$0xff]
      %v2264 = vld [vmem:[%s2251 + $0x60] sm:$0xff]
      %v2265 = vld [vmem:[%s2251 + $0x68] sm:$0xff]
      %v2266 = vld [vmem:[%s2251 + $0x70] sm:$0xff]
      %v2267 = vld [vmem:[%s2251 + $0x78] sm:$0xff]
      %v2268 = vld [vmem:[%s2251 + $0x80] sm:$0xff]
      %v2269 = vld [vmem:[%s2251 + $0x88] sm:$0xff]
      %v2270 = vld [vmem:[%s2251 + $0x90] sm:$0xff]
      %v2271 = vld [vmem:[%s2251 + $0x98] sm:$0xff]
      %v2272 = vld [vmem:[%s2251 + $0xa0] sm:$0xff]
      %v2273 = vld [vmem:[%s2251 + $0xa8] sm:$0xff]
      %v2274 = vld [vmem:[%s2251 + $0xb0] sm:$0xff]
      %v2275 = vld [vmem:[%s2251 + $0xb8] sm:$0xff]
      %s2276 = scalar_lea.vmem %s9, 2
      %v2277 = vld [vmem:[%s2276] sm:$0x1]
      %2286 = vrot.lane.b32.xlu0 %v2219, 64
      %v2287 = vpop.permute.xlu0 %2286
      %2288 = vrot.lane.b32.xlu0 %v2220, 64
      %v2289 = vpop.permute.xlu0 %2288
      %2290 = vrot.lane.b32.xlu0 %v2221, 64
      %v2291 = vpop.permute.xlu0 %2290
      %2292 = vrot.lane.b32.xlu0 %v2222, 64
      %v2293 = vpop.permute.xlu0 %2292
      %2294 = vrot.lane.b32.xlu0 %v2223, 64
      %v2295 = vpop.permute.xlu0 %2294
      %2296 = vrot.lane.b32.xlu0 %v2224, 64
      %v2297 = vpop.permute.xlu0 %2296
      %2298 = vrot.lane.b32.xlu0 %v2225, 64
      %v2299 = vpop.permute.xlu0 %2298
      %2300 = vrot.lane.b32.xlu0 %v2226, 64
      %v2301 = vpop.permute.xlu0 %2300
      %v2310 = vsel %vm1170, 0.0, %v2287
      %v2311 = vsel %vm1170, %v2235, %v2289
      %v2312 = vsel %vm1170, %v2236, %v2291
      %v2313 = vsel %vm1170, %v2237, %v2293
      %v2314 = vsel %vm1170, %v2238, %v2295
      %v2315 = vsel %vm1170, %v2239, %v2297
      %v2316 = vsel %vm1170, %v2240, %v2299
      %v2317 = vsel %vm1170, %v2241, %v2301
      %2326 = vrot.lane.b32.xlu0 %v2235, 64
      %v2327 = vpop.permute.xlu0 %2326
      %2328 = vrot.lane.b32.xlu0 %v2236, 64
      %v2329 = vpop.permute.xlu0 %2328
      %2330 = vrot.lane.b32.xlu0 %v2237, 64
      %v2331 = vpop.permute.xlu0 %2330
      %2332 = vrot.lane.b32.xlu0 %v2238, 64
      %v2333 = vpop.permute.xlu0 %2332
      %2334 = vrot.lane.b32.xlu0 %v2239, 64
      %v2335 = vpop.permute.xlu0 %2334
      %2336 = vrot.lane.b32.xlu0 %v2240, 64
      %v2337 = vpop.permute.xlu0 %2336
      %2338 = vrot.lane.b32.xlu0 %v2241, 64
      %v2339 = vpop.permute.xlu0 %2338
      %2340 = vrot.lane.b32.xlu0 %v2242, 64
      %v2341 = vpop.permute.xlu0 %2340
      %v2350 = vsel %vm1170, %v2219, %v2327
      %v2351 = vsel %vm1170, %v2220, %v2329
      %v2352 = vsel %vm1170, %v2221, %v2331
      %v2353 = vsel %vm1170, %v2222, %v2333
      %v2354 = vsel %vm1170, %v2223, %v2335
      %v2355 = vsel %vm1170, %v2224, %v2337
      %v2356 = vsel %vm1170, %v2225, %v2339
      %v2357 = vsel %vm1170, %v2226, %v2341
      %2366 = vrot.lane.b32.xlu0 %v2227, 64
      %v2367 = vpop.permute.xlu0 %2366
      %2368 = vrot.lane.b32.xlu0 %v2228, 64
      %v2369 = vpop.permute.xlu0 %2368
      %2370 = vrot.lane.b32.xlu0 %v2229, 64
      %v2371 = vpop.permute.xlu0 %2370
      %2372 = vrot.lane.b32.xlu0 %v2230, 64
      %v2373 = vpop.permute.xlu0 %2372
      %2374 = vrot.lane.b32.xlu0 %v2231, 64
      %v2375 = vpop.permute.xlu0 %2374
      %2376 = vrot.lane.b32.xlu0 %v2232, 64
      %v2377 = vpop.permute.xlu0 %2376
      %2378 = vrot.lane.b32.xlu0 %v2233, 64
      %v2379 = vpop.permute.xlu0 %2378
      %2380 = vrot.lane.b32.xlu0 %v2234, 64
      %v2381 = vpop.permute.xlu0 %2380
      %v2390 = vsel %vm1170, 0.0, %v2367
      %v2391 = vsel %vm1170, %v2243, %v2369
      %v2392 = vsel %vm1170, %v2244, %v2371
      %v2393 = vsel %vm1170, %v2245, %v2373
      %v2394 = vsel %vm1170, %v2246, %v2375
      %v2395 = vsel %vm1170, %v2247, %v2377
      %v2396 = vsel %vm1170, %v2248, %v2379
      %v2397 = vsel %vm1170, %v2249, %v2381
      %2406 = vrot.lane.b32.xlu0 %v2243, 64
      %v2407 = vpop.permute.xlu0 %2406
      %2408 = vrot.lane.b32.xlu0 %v2244, 64
      %v2409 = vpop.permute.xlu0 %2408
      %2410 = vrot.lane.b32.xlu0 %v2245, 64
      %v2411 = vpop.permute.xlu0 %2410
      %2412 = vrot.lane.b32.xlu0 %v2246, 64
      %v2413 = vpop.permute.xlu0 %2412
      %2414 = vrot.lane.b32.xlu0 %v2247, 64
      %v2415 = vpop.permute.xlu0 %2414
      %2416 = vrot.lane.b32.xlu0 %v2248, 64
      %v2417 = vpop.permute.xlu0 %2416
      %2418 = vrot.lane.b32.xlu0 %v2249, 64
      %v2419 = vpop.permute.xlu0 %2418
      %2420 = vrot.lane.b32.xlu0 %v2250, 64
      %v2421 = vpop.permute.xlu0 %2420
      %v2430 = vsel %vm1170, %v2227, %v2407
      %v2431 = vsel %vm1170, %v2228, %v2409
      %v2432 = vsel %vm1170, %v2229, %v2411
      %v2433 = vsel %vm1170, %v2230, %v2413
      %v2434 = vsel %vm1170, %v2231, %v2415
      %v2435 = vsel %vm1170, %v2232, %v2417
      %v2436 = vsel %vm1170, %v2233, %v2419
      %v2437 = vsel %vm1170, %v2234, %v2421
      %v2439 = vlaneseq
      %v2440 = vshrl.u32 %v2439, 7
      %v2441 = vsub.s32 0, %v2440
      %v2442 = vrot.slane %v2277, %v2441
      %v2444 = vsel %vm1170, %v2235, 0
      %v2446 = vsel %vm1170, %v2236, 0
      %v2448 = vsel %vm1170, %v2237, 0
      %v2450 = vsel %vm1170, %v2238, 0
      %v2452 = vsel %vm1170, %v2239, 0
      %v2454 = vsel %vm1170, %v2240, 0
      %v2456 = vsel %vm1170, %v2241, 0
      %v2458 = vsel %vm1170, %v2242, 0
      %v2460 = vsel %vm1170, %v2243, 0
      %v2462 = vsel %vm1170, %v2244, 0
      %v2464 = vsel %vm1170, %v2245, 0
      %v2466 = vsel %vm1170, %v2246, 0
      %v2468 = vsel %vm1170, %v2247, 0
      %v2470 = vsel %vm1170, %v2248, 0
      %v2472 = vsel %vm1170, %v2249, 0
      %v2474 = vsel %vm1170, %v2250, 0
      %v2476 = vsel %vm1170, %v2220, 0
      %v2478 = vsel %vm1170, %v2221, 0
      %v2480 = vsel %vm1170, %v2222, 0
      %v2482 = vsel %vm1170, %v2223, 0
      %v2484 = vsel %vm1170, %v2224, 0
      %v2486 = vsel %vm1170, %v2225, 0
      %v2488 = vsel %vm1170, %v2226, 0
      %v2490 = vsel %vm1170, %v2228, 0
      %v2492 = vsel %vm1170, %v2229, 0
      %v2494 = vsel %vm1170, %v2230, 0
      %v2496 = vsel %vm1170, %v2231, 0
      %v2498 = vsel %vm1170, %v2232, 0
      %v2500 = vsel %vm1170, %v2233, 0
      %v2502 = vsel %vm1170, %v2234, 0
      %2504 = vmatprep.subr.mxu0 0.0
      %2505 = vmatpush1.msra.mxu0 %v2252
      %2506 = vmatprep.subr.mxu0 0.0
      %2507 = vmatpush1.msra.mxu0 %v2253
      %2508 = vmatprep.subr.mxu0 0.0
      %2509 = vmatpush1.msra.mxu0 %v2254
      %2510 = vmatprep.subr.mxu0 0.0
      %2511 = vmatpush1.msra.mxu0 %v2255
      %2512 = vmatprep.subr.mxu0 0.0
      %2513 = vmatpush1.msra.mxu0 %v2256
      %2514 = vmatprep.subr.mxu0 0.0
      %2515 = vmatpush1.msra.mxu0 %v2257
      %2516 = vmatprep.subr.mxu0 0.0
      %2517 = vmatpush1.msra.mxu0 %v2258
      %2518 = vmatprep.subr.mxu0 0.0
      %2519 = vmatpush1.msra.mxu0 %v2259
      %2520 = vmatprep.subr.mxu0 0.0
      %2521 = vmatpush1.msra.mxu0 %v2260
      %2522 = vmatprep.subr.mxu0 0.0
      %2523 = vmatpush1.msra.mxu0 %v2261
      %2524 = vmatprep.subr.mxu0 0.0
      %2525 = vmatpush1.msra.mxu0 %v2262
      %2526 = vmatprep.subr.mxu0 0.0
      %2527 = vmatpush1.msra.mxu0 %v2263
      %2528 = vmatprep.subr.mxu0 0.0
      %2529 = vmatpush1.msra.mxu0 %v2264
      %2530 = vmatprep.subr.mxu0 0.0
      %2531 = vmatpush1.msra.mxu0 %v2265
      %2532 = vmatprep.subr.mxu0 0.0
      %2533 = vmatpush1.msra.mxu0 %v2266
      %2534 = vmatprep.subr.mxu0 0.0
      %2535 = vmatpush1.msra.mxu0 %v2267
      %2536 = vmatprep.subr.mxu0 0.0
      %2537 = vmatpush1.msra.mxu0 %v2268
      %2538 = vmatprep.subr.mxu0 0.0
      %2539 = vmatpush1.msra.mxu0 %v2269
      %2540 = vmatprep.subr.mxu0 0.0
      %2541 = vmatpush1.msra.mxu0 %v2270
      %2542 = vmatprep.subr.mxu0 0.0
      %2543 = vmatpush1.msra.mxu0 %v2271
      %2544 = vmatprep.subr.mxu0 0.0
      %2545 = vmatpush1.msra.mxu0 %v2272
      %2546 = vmatprep.subr.mxu0 0.0
      %2547 = vmatpush1.msra.mxu0 %v2273
      %2548 = vmatprep.subr.mxu0 0.0
      %2549 = vmatpush1.msra.mxu0 %v2274
      %2550 = vmatprep.subr.mxu0 0.0
      %2551 = vmatpush1.msra.mxu0 %v2275
      %2552 = vmatprep.subr.mxu0 0.0
      %2553 = vmatpush1.msra.mxu0 0.0
      %2554 = vmatprep.subr.mxu0 0.0
      %2555 = vmatpush1.msra.mxu0 0.0
      %2556 = vmatprep.subr.mxu0 0.0
      %2557 = vmatpush1.msra.mxu0 0.0
      %2558 = vmatprep.subr.mxu0 0.0
      %2559 = vmatpush1.msra.mxu0 0.0
      %2560 = vmatprep.subr.mxu0 0.0
      %2561 = vmatpush1.msra.mxu0 0.0
      %2562 = vmatprep.subr.mxu0 0.0
      %2563 = vmatpush1.msra.mxu0 0.0
      %2564 = vmatprep.subr.mxu0 0.0
      %2565 = vmatpush1.msra.mxu0 0.0
      %2566 = vmatprep.subr.mxu0 0.0
      %2567 = vmatpush1.msra.mxu0 0.0
      %2568 = vmatprep.mubr.f32.mxu0 %v2444
      %2569 = vmatmul.mubr.f32.gmra.mrb[0].mxu0 %v2310
      %v2570 = vpop.f32.mrb[0].mxu0
      %v2571 = vadd.f32 %v2442, %v2570
      %v2572 = vpop.f32.mrb[0].mxu0
      %2573 = vmatprep.mubr.f32.mxu0 %v2446
      %2574 = vmatmul.mubr.f32.gmra.mrb[0].mxu0 %v2311
      %v2575 = vpop.f32.mrb[0].mxu0
      %v2576 = vadd.f32 %v2442, %v2575
      %v2577 = vpop.f32.mrb[0].mxu0
      %2578 = vmatprep.mubr.f32.mxu0 %v2448
      %2579 = vmatmul.mubr.f32.gmra.mrb[0].mxu0 %v2312
      %v2580 = vpop.f32.mrb[0].mxu0
      %v2581 = vadd.f32 %v2442, %v2580
      %v2582 = vpop.f32.mrb[0].mxu0
      %2583 = vmatprep.mubr.f32.mxu0 %v2450
      %2584 = vmatmul.mubr.f32.gmra.mrb[0].mxu0 %v2313
      %v2585 = vpop.f32.mrb[0].mxu0
      %v2586 = vadd.f32 %v2442, %v2585
      %v2587 = vpop.f32.mrb[0].mxu0
      %2588 = vmatprep.mubr.f32.mxu0 %v2452
      %2589 = vmatmul.mubr.f32.gmra.mrb[0].mxu0 %v2314
      %v2590 = vpop.f32.mrb[0].mxu0
      %v2591 = vadd.f32 %v2442, %v2590
      %v2592 = vpop.f32.mrb[0].mxu0
      %2593 = vmatprep.mubr.f32.mxu0 %v2454
      %2594 = vmatmul.mubr.f32.gmra.mrb[0].mxu0 %v2315
      %v2595 = vpop.f32.mrb[0].mxu0
      %v2596 = vadd.f32 %v2442, %v2595
      %v2597 = vpop.f32.mrb[0].mxu0
      %2598 = vmatprep.mubr.f32.mxu0 %v2456
      %2599 = vmatmul.mubr.f32.gmra.mrb[0].mxu0 %v2316
      %v2600 = vpop.f32.mrb[0].mxu0
      %v2601 = vadd.f32 %v2442, %v2600
      %v2602 = vpop.f32.mrb[0].mxu0
      %2603 = vmatprep.mubr.f32.mxu0 %v2458
      %2604 = vmatmul.mubr.f32.gmra.mrb[0].mxu0 %v2317
      %v2605 = vpop.f32.mrb[0].mxu0
      %v2606 = vadd.f32 %v2442, %v2605
      %v2607 = vpop.f32.mrb[0].mxu0
      %2608 = vmatprep.mubr.f32.mxu0 %v2460
      %2609 = vmatmul.mubr.f32.gmra.mrb[0].mxu0 %v2390
      %v2610 = vpop.f32.mrb[0].mxu0
      %v2611 = vadd.f32 %v2442, %v2610
      %v2612 = vpop.f32.mrb[0].mxu0
      %2613 = vmatprep.mubr.f32.mxu0 %v2462
      %2614 = vmatmul.mubr.f32.gmra.mrb[0].mxu0 %v2391
      %v2615 = vpop.f32.mrb[0].mxu0
      %v2616 = vadd.f32 %v2442, %v2615
      %v2617 = vpop.f32.mrb[0].mxu0
      %2618 = vmatprep.mubr.f32.mxu0 %v2464
      %2619 = vmatmul.mubr.f32.gmra.mrb[0].mxu0 %v2392
      %v2620 = vpop.f32.mrb[0].mxu0
      %v2621 = vadd.f32 %v2442, %v2620
      %v2622 = vpop.f32.mrb[0].mxu0
      %2623 = vmatprep.mubr.f32.mxu0 %v2466
      %2624 = vmatmul.mubr.f32.gmra.mrb[0].mxu0 %v2393
      %v2625 = vpop.f32.mrb[0].mxu0
      %v2626 = vadd.f32 %v2442, %v2625
      %v2627 = vpop.f32.mrb[0].mxu0
      %2628 = vmatprep.mubr.f32.mxu0 %v2468
      %2629 = vmatmul.mubr.f32.gmra.mrb[0].mxu0 %v2394
      %v2630 = vpop.f32.mrb[0].mxu0
      %v2631 = vadd.f32 %v2442, %v2630
      %v2632 = vpop.f32.mrb[0].mxu0
      %2633 = vmatprep.mubr.f32.mxu0 %v2470
      %2634 = vmatmul.mubr.f32.gmra.mrb[0].mxu0 %v2395
      %v2635 = vpop.f32.mrb[0].mxu0
      %v2636 = vadd.f32 %v2442, %v2635
      %v2637 = vpop.f32.mrb[0].mxu0
      %2638 = vmatprep.mubr.f32.mxu0 %v2472
      %2639 = vmatmul.mubr.f32.gmra.mrb[0].mxu0 %v2396
      %v2640 = vpop.f32.mrb[0].mxu0
      %v2641 = vadd.f32 %v2442, %v2640
      %v2642 = vpop.f32.mrb[0].mxu0
      %2643 = vmatprep.mubr.f32.mxu0 %v2474
      %2644 = vmatmul.mubr.f32.gmra.mrb[0].mxu0 %v2397
      %v2645 = vpop.f32.mrb[0].mxu0
      %v2646 = vadd.f32 %v2442, %v2645
      %v2647 = vpop.f32.mrb[0].mxu0
      %2648 = vmatprep.mubr.f32.mxu0 %v2476
      %2649 = vmatmul.mubr.f32.gmra.mrb[0].mxu0 %v2350
      %v2650 = vpop.f32.mrb[0].mxu0
      %v2651 = vadd.f32 %v2442, %v2650
      %v2652 = vpop.f32.mrb[0].mxu0
      %2653 = vmatprep.mubr.f32.mxu0 %v2478
      %2654 = vmatmul.mubr.f32.gmra.mrb[0].mxu0 %v2351
      %v2655 = vpop.f32.mrb[0].mxu0
      %v2656 = vadd.f32 %v2442, %v2655
      %v2657 = vpop.f32.mrb[0].mxu0
      %2658 = vmatprep.mubr.f32.mxu0 %v2480
      %2659 = vmatmul.mubr.f32.gmra.mrb[0].mxu0 %v2352
      %v2660 = vpop.f32.mrb[0].mxu0
      %v2661 = vadd.f32 %v2442, %v2660
      %v2662 = vpop.f32.mrb[0].mxu0
      %2663 = vmatprep.mubr.f32.mxu0 %v2482
      %2664 = vmatmul.mubr.f32.gmra.mrb[0].mxu0 %v2353
      %v2665 = vpop.f32.mrb[0].mxu0
      %v2666 = vadd.f32 %v2442, %v2665
      %v2667 = vpop.f32.mrb[0].mxu0
      %2668 = vmatprep.mubr.f32.mxu0 %v2484
      %2669 = vmatmul.mubr.f32.gmra.mrb[0].mxu0 %v2354
      %v2670 = vpop.f32.mrb[0].mxu0
      %v2671 = vadd.f32 %v2442, %v2670
      %v2672 = vpop.f32.mrb[0].mxu0
      %2673 = vmatprep.mubr.f32.mxu0 %v2486
      %2674 = vmatmul.mubr.f32.gmra.mrb[0].mxu0 %v2355
      %v2675 = vpop.f32.mrb[0].mxu0
      %v2676 = vadd.f32 %v2442, %v2675
      %v2677 = vpop.f32.mrb[0].mxu0
      %2678 = vmatprep.mubr.f32.mxu0 %v2488
      %2679 = vmatmul.mubr.f32.gmra.mrb[0].mxu0 %v2356
      %v2680 = vpop.f32.mrb[0].mxu0
      %v2681 = vadd.f32 %v2442, %v2680
      %v2682 = vpop.f32.mrb[0].mxu0
      %2683 = vmatprep.mubr.f32.mxu0 %v1351
      %2684 = vmatmul.mubr.f32.gmra.mrb[0].mxu0 %v2357
      %v2685 = vpop.f32.mrb[0].mxu0
      %v2686 = vadd.f32 %v2442, %v2685
      %v2687 = vpop.f32.mrb[0].mxu0
      %2688 = vmatprep.mubr.f32.mxu0 %v2490
      %2689 = vmatmul.mubr.f32.gmra.mrb[0].mxu0 %v2430
      %v2690 = vpop.f32.mrb[0].mxu0
      %v2691 = vadd.f32 %v2442, %v2690
      %v2692 = vpop.f32.mrb[0].mxu0
      %2693 = vmatprep.mubr.f32.mxu0 %v2492
      %2694 = vmatmul.mubr.f32.gmra.mrb[0].mxu0 %v2431
      %v2695 = vpop.f32.mrb[0].mxu0
      %v2696 = vadd.f32 %v2442, %v2695
      %v2697 = vpop.f32.mrb[0].mxu0
      %2698 = vmatprep.mubr.f32.mxu0 %v2494
      %2699 = vmatmul.mubr.f32.gmra.mrb[0].mxu0 %v2432
      %v2700 = vpop.f32.mrb[0].mxu0
      %v2701 = vadd.f32 %v2442, %v2700
      %v2702 = vpop.f32.mrb[0].mxu0
      %2703 = vmatprep.mubr.f32.mxu0 %v2496
      %2704 = vmatmul.mubr.f32.gmra.mrb[0].mxu0 %v2433
      %v2705 = vpop.f32.mrb[0].mxu0
      %v2706 = vadd.f32 %v2442, %v2705
      %v2707 = vpop.f32.mrb[0].mxu0
      %2708 = vmatprep.mubr.f32.mxu0 %v2498
      %2709 = vmatmul.mubr.f32.gmra.mrb[0].mxu0 %v2434
      %v2710 = vpop.f32.mrb[0].mxu0
      %v2711 = vadd.f32 %v2442, %v2710
      %v2712 = vpop.f32.mrb[0].mxu0
      %2713 = vmatprep.mubr.f32.mxu0 %v2500
      %2714 = vmatmul.mubr.f32.gmra.mrb[0].mxu0 %v2435
      %v2715 = vpop.f32.mrb[0].mxu0
      %v2716 = vadd.f32 %v2442, %v2715
      %v2717 = vpop.f32.mrb[0].mxu0
      %2718 = vmatprep.mubr.f32.mxu0 %v2502
      %2719 = vmatmul.mubr.f32.gmra.mrb[0].mxu0 %v2436
      %v2720 = vpop.f32.mrb[0].mxu0
      %v2721 = vadd.f32 %v2442, %v2720
      %v2722 = vpop.f32.mrb[0].mxu0
      %2723 = vmatprep.mubr.f32.mxu0 %v1351
      %2724 = vmatmul.mubr.f32.gmra.mrb[0].mxu0 %v2437
      %v2725 = vpop.f32.mrb[0].mxu0
      %v2726 = vadd.f32 %v2442, %v2725
      %v2727 = vpop.f32.mrb[0].mxu0
      %2728 = vdwg.mxu0
      %v2729 = vmax.f32 %v2571, 0.0
      %v2730 = vmax.f32 %v2576, 0.0
      %v2731 = vmax.f32 %v2581, 0.0
      %v2732 = vmax.f32 %v2586, 0.0
      %v2733 = vmax.f32 %v2591, 0.0
      %v2734 = vmax.f32 %v2596, 0.0
      %v2735 = vmax.f32 %v2601, 0.0
      %v2736 = vmax.f32 %v2606, 0.0
      %v2737 = vmax.f32 %v2611, 0.0
      %v2738 = vmax.f32 %v2616, 0.0
      %v2739 = vmax.f32 %v2621, 0.0
      %v2740 = vmax.f32 %v2626, 0.0
      %v2741 = vmax.f32 %v2631, 0.0
      %v2742 = vmax.f32 %v2636, 0.0
      %v2743 = vmax.f32 %v2641, 0.0
      %v2744 = vmax.f32 %v2646, 0.0
      %v2745 = vmax.f32 %v2651, 0.0
      %v2746 = vmax.f32 %v2656, 0.0
      %v2747 = vmax.f32 %v2661, 0.0
      %v2748 = vmax.f32 %v2666, 0.0
      %v2749 = vmax.f32 %v2671, 0.0
      %v2750 = vmax.f32 %v2676, 0.0
      %v2751 = vmax.f32 %v2681, 0.0
      %v2752 = vmax.f32 %v2686, 0.0
      %v2753 = vmax.f32 %v2691, 0.0
      %v2754 = vmax.f32 %v2696, 0.0
      %v2755 = vmax.f32 %v2701, 0.0
      %v2756 = vmax.f32 %v2706, 0.0
      %v2757 = vmax.f32 %v2711, 0.0
      %v2758 = vmax.f32 %v2716, 0.0
      %v2759 = vmax.f32 %v2721, 0.0
      %v2760 = vmax.f32 %v2726, 0.0
      %s2761 = scalar_lea.vmem %s8, 576
      %v2762 = vld [vmem:[%s2761] sm:$0xff]
      %v2763 = vld [vmem:[%s2761 + $0x8] sm:$0xff]
      %v2764 = vld [vmem:[%s2761 + $0x10] sm:$0xff]
      %v2765 = vld [vmem:[%s2761 + $0x18] sm:$0xff]
      %v2766 = vld [vmem:[%s2761 + $0x20] sm:$0xff]
      %v2767 = vld [vmem:[%s2761 + $0x28] sm:$0xff]
      %v2768 = vld [vmem:[%s2761 + $0x30] sm:$0xff]
      %v2769 = vld [vmem:[%s2761 + $0x38] sm:$0xff]
      %v2770 = vld [vmem:[%s2761 + $0x40] sm:$0xff]
      %v2771 = vld [vmem:[%s2761 + $0x48] sm:$0xff]
      %v2772 = vld [vmem:[%s2761 + $0x50] sm:$0xff]
      %v2773 = vld [vmem:[%s2761 + $0x58] sm:$0xff]
      %v2774 = vld [vmem:[%s2761 + $0x60] sm:$0xff]
      %v2775 = vld [vmem:[%s2761 + $0x68] sm:$0xff]
      %v2776 = vld [vmem:[%s2761 + $0x70] sm:$0xff]
      %v2777 = vld [vmem:[%s2761 + $0x78] sm:$0xff]
      %v2778 = vld [vmem:[%s2761 + $0x80] sm:$0xff]
      %v2779 = vld [vmem:[%s2761 + $0x88] sm:$0xff]
      %v2780 = vld [vmem:[%s2761 + $0x90] sm:$0xff]
      %v2781 = vld [vmem:[%s2761 + $0x98] sm:$0xff]
      %v2782 = vld [vmem:[%s2761 + $0xa0] sm:$0xff]
      %v2783 = vld [vmem:[%s2761 + $0xa8] sm:$0xff]
      %v2784 = vld [vmem:[%s2761 + $0xb0] sm:$0xff]
      %v2785 = vld [vmem:[%s2761 + $0xb8] sm:$0xff]
      %s2786 = scalar_lea.vmem %s9, 3
      %v2787 = vld [vmem:[%s2786] sm:$0x1]
      %v2796 = vrot.slane %v2737, 7
      %v2797 = vrot.slane %v2738, 7
      %v2798 = vrot.slane %v2739, 7
      %v2799 = vrot.slane %v2740, 7
      %v2800 = vrot.slane %v2741, 7
      %v2801 = vrot.slane %v2742, 7
      %v2802 = vrot.slane %v2743, 7
      %v2803 = vrot.slane %v2744, 7
      %v2812 = vsel %vm1675, 0.0, %v2796
      %v2813 = vsel %vm1675, 0.0, %v2797
      %v2814 = vsel %vm1675, 0.0, %v2798
      %v2815 = vsel %vm1675, 0.0, %v2799
      %v2816 = vsel %vm1675, 0.0, %v2800
      %v2817 = vsel %vm1675, 0.0, %v2801
      %v2818 = vsel %vm1675, 0.0, %v2802
      %v2819 = vsel %vm1675, 0.0, %v2803
      %2828 = vrot.lane.b32.xlu0 %v2729, 64
      %v2829 = vpop.permute.xlu0 %2828
      %2830 = vrot.lane.b32.xlu0 %v2730, 64
      %v2831 = vpop.permute.xlu0 %2830
      %2832 = vrot.lane.b32.xlu0 %v2731, 64
      %v2833 = vpop.permute.xlu0 %2832
      %2834 = vrot.lane.b32.xlu0 %v2732, 64
      %v2835 = vpop.permute.xlu0 %2834
      %2836 = vrot.lane.b32.xlu0 %v2733, 64
      %v2837 = vpop.permute.xlu0 %2836
      %2838 = vrot.lane.b32.xlu0 %v2734, 64
      %v2839 = vpop.permute.xlu0 %2838
      %2840 = vrot.lane.b32.xlu0 %v2735, 64
      %v2841 = vpop.permute.xlu0 %2840
      %2842 = vrot.lane.b32.xlu0 %v2736, 64
      %v2843 = vpop.permute.xlu0 %2842
      %v2852 = vsel %vm1170, %v2812, %v2829
      %v2853 = vsel %vm1170, %v2813, %v2831
      %v2854 = vsel %vm1170, %v2814, %v2833
      %v2855 = vsel %vm1170, %v2815, %v2835
      %v2856 = vsel %vm1170, %v2816, %v2837
      %v2857 = vsel %vm1170, %v2817, %v2839
      %v2858 = vsel %vm1170, %v2818, %v2841
      %v2859 = vsel %vm1170, %v2819, %v2843
      %v2860 = vrot.slane %v2729, 1
      %v2861 = vrot.slane %v2730, 1
      %v2862 = vrot.slane %v2731, 1
      %v2863 = vrot.slane %v2732, 1
      %v2864 = vrot.slane %v2733, 1
      %v2865 = vrot.slane %v2734, 1
      %v2866 = vrot.slane %v2735, 1
      %v2867 = vrot.slane %v2736, 1
      %v2876 = vsel %vm393, %v2860, 0.0
      %v2877 = vsel %vm393, %v2861, 0.0
      %v2878 = vsel %vm393, %v2862, 0.0
      %v2879 = vsel %vm393, %v2863, 0.0
      %v2880 = vsel %vm393, %v2864, 0.0
      %v2881 = vsel %vm393, %v2865, 0.0
      %v2882 = vsel %vm393, %v2866, 0.0
      %v2883 = vsel %vm393, %v2867, 0.0
      %2884 = vrot.lane.b32.xlu0 %v2737, 64
      %v2885 = vpop.permute.xlu0 %2884
      %2886 = vrot.lane.b32.xlu0 %v2738, 64
      %v2887 = vpop.permute.xlu0 %2886
      %2888 = vrot.lane.b32.xlu0 %v2739, 64
      %v2889 = vpop.permute.xlu0 %2888
      %2890 = vrot.lane.b32.xlu0 %v2740, 64
      %v2891 = vpop.permute.xlu0 %2890
      %2892 = vrot.lane.b32.xlu0 %v2741, 64
      %v2893 = vpop.permute.xlu0 %2892
      %2894 = vrot.lane.b32.xlu0 %v2742, 64
      %v2895 = vpop.permute.xlu0 %2894
      %2896 = vrot.lane.b32.xlu0 %v2743, 64
      %v2897 = vpop.permute.xlu0 %2896
      %2898 = vrot.lane.b32.xlu0 %v2744, 64
      %v2899 = vpop.permute.xlu0 %2898
      %v2908 = vsel %vm1170, %v2729, %v2885
      %v2909 = vsel %vm1170, %v2730, %v2887
      %v2910 = vsel %vm1170, %v2731, %v2889
      %v2911 = vsel %vm1170, %v2732, %v2891
      %v2912 = vsel %vm1170, %v2733, %v2893
      %v2913 = vsel %vm1170, %v2734, %v2895
      %v2914 = vsel %vm1170, %v2735, %v2897
      %v2915 = vsel %vm1170, %v2736, %v2899
      %v2924 = vrot.slane %v2753, 7
      %v2925 = vrot.slane %v2754, 7
      %v2926 = vrot.slane %v2755, 7
      %v2927 = vrot.slane %v2756, 7
      %v2928 = vrot.slane %v2757, 7
      %v2929 = vrot.slane %v2758, 7
      %v2930 = vrot.slane %v2759, 7
      %v2931 = vrot.slane %v2760, 7
      %v2940 = vsel %vm1675, 0.0, %v2924
      %v2941 = vsel %vm1675, 0.0, %v2925
      %v2942 = vsel %vm1675, 0.0, %v2926
      %v2943 = vsel %vm1675, 0.0, %v2927
      %v2944 = vsel %vm1675, 0.0, %v2928
      %v2945 = vsel %vm1675, 0.0, %v2929
      %v2946 = vsel %vm1675, 0.0, %v2930
      %v2947 = vsel %vm1675, 0.0, %v2931
      %2956 = vrot.lane.b32.xlu0 %v2745, 64
      %v2957 = vpop.permute.xlu0 %2956
      %2958 = vrot.lane.b32.xlu0 %v2746, 64
      %v2959 = vpop.permute.xlu0 %2958
      %2960 = vrot.lane.b32.xlu0 %v2747, 64
      %v2961 = vpop.permute.xlu0 %2960
      %2962 = vrot.lane.b32.xlu0 %v2748, 64
      %v2963 = vpop.permute.xlu0 %2962
      %2964 = vrot.lane.b32.xlu0 %v2749, 64
      %v2965 = vpop.permute.xlu0 %2964
      %2966 = vrot.lane.b32.xlu0 %v2750, 64
      %v2967 = vpop.permute.xlu0 %2966
      %2968 = vrot.lane.b32.xlu0 %v2751, 64
      %v2969 = vpop.permute.xlu0 %2968
      %2970 = vrot.lane.b32.xlu0 %v2752, 64
      %v2971 = vpop.permute.xlu0 %2970
      %v2980 = vsel %vm1170, %v2940, %v2957
      %v2981 = vsel %vm1170, %v2941, %v2959
      %v2982 = vsel %vm1170, %v2942, %v2961
      %v2983 = vsel %vm1170, %v2943, %v2963
      %v2984 = vsel %vm1170, %v2944, %v2965
      %v2985 = vsel %vm1170, %v2945, %v2967
      %v2986 = vsel %vm1170, %v2946, %v2969
      %v2987 = vsel %vm1170, %v2947, %v2971
      %v2988 = vrot.slane %v2745, 1
      %v2989 = vrot.slane %v2746, 1
      %v2990 = vrot.slane %v2747, 1
      %v2991 = vrot.slane %v2748, 1
      %v2992 = vrot.slane %v2749, 1
      %v2993 = vrot.slane %v2750, 1
      %v2994 = vrot.slane %v2751, 1
      %v2995 = vrot.slane %v2752, 1
      %v3004 = vsel %vm393, %v2988, 0.0
      %v3005 = vsel %vm393, %v2989, 0.0
      %v3006 = vsel %vm393, %v2990, 0.0
      %v3007 = vsel %vm393, %v2991, 0.0
      %v3008 = vsel %vm393, %v2992, 0.0
      %v3009 = vsel %vm393, %v2993, 0.0
      %v3010 = vsel %vm393, %v2994, 0.0
      %v3011 = vsel %vm393, %v2995, 0.0
      %3012 = vrot.lane.b32.xlu0 %v2753, 64
      %v3013 = vpop.permute.xlu0 %3012
      %3014 = vrot.lane.b32.xlu0 %v2754, 64
      %v3015 = vpop.permute.xlu0 %3014
      %3016 = vrot.lane.b32.xlu0 %v2755, 64
      %v3017 = vpop.permute.xlu0 %3016
      %3018 = vrot.lane.b32.xlu0 %v2756, 64
      %v3019 = vpop.permute.xlu0 %3018
      %3020 = vrot.lane.b32.xlu0 %v2757, 64
      %v3021 = vpop.permute.xlu0 %3020
      %3022 = vrot.lane.b32.xlu0 %v2758, 64
      %v3023 = vpop.permute.xlu0 %3022
      %3024 = vrot.lane.b32.xlu0 %v2759, 64
      %v3025 = vpop.permute.xlu0 %3024
      %3026 = vrot.lane.b32.xlu0 %v2760, 64
      %v3027 = vpop.permute.xlu0 %3026
      %v3036 = vsel %vm1170, %v2745, %v3013
      %v3037 = vsel %vm1170, %v2746, %v3015
      %v3038 = vsel %vm1170, %v2747, %v3017
      %v3039 = vsel %vm1170, %v2748, %v3019
      %v3040 = vsel %vm1170, %v2749, %v3021
      %v3041 = vsel %vm1170, %v2750, %v3023
      %v3042 = vsel %vm1170, %v2751, %v3025
      %v3043 = vsel %vm1170, %v2752, %v3027
      %v3045 = vlaneseq
      %v3046 = vshrl.u32 %v3045, 7
      %v3047 = vsub.s32 0, %v3046
      %v3048 = vrot.slane %v2787, %v3047
      %v3050 = vsel %vm1170, %v2737, 0
      %v3052 = vsel %vm1170, %v2738, 0
      %v3054 = vsel %vm1170, %v2739, 0
      %v3056 = vsel %vm1170, %v2740, 0
      %v3058 = vsel %vm1170, %v2741, 0
      %v3060 = vsel %vm1170, %v2742, 0
      %v3062 = vsel %vm1170, %v2743, 0
      %v3064 = vsel %vm1170, %v2744, 0
      %v3067 = vsel %vm1170, %v2876, 0
      %v3070 = vsel %vm1170, %v2877, 0
      %v3073 = vsel %vm1170, %v2878, 0
      %v3076 = vsel %vm1170, %v2879, 0
      %v3079 = vsel %vm1170, %v2880, 0
      %v3082 = vsel %vm1170, %v2881, 0
      %v3085 = vsel %vm1170, %v2882, 0
      %v3088 = vsel %vm1170, %v2883, 0
      %v3090 = vsel %vm1170, %v2753, 0
      %v3092 = vsel %vm1170, %v2754, 0
      %v3094 = vsel %vm1170, %v2755, 0
      %v3096 = vsel %vm1170, %v2756, 0
      %v3098 = vsel %vm1170, %v2757, 0
      %v3100 = vsel %vm1170, %v2758, 0
      %v3102 = vsel %vm1170, %v2759, 0
      %v3104 = vsel %vm1170, %v2760, 0
      %v3107 = vsel %vm1170, %v3004, 0
      %v3110 = vsel %vm1170, %v3005, 0
      %v3113 = vsel %vm1170, %v3006, 0
      %v3116 = vsel %vm1170, %v3007, 0
      %v3119 = vsel %vm1170, %v3008, 0
      %v3122 = vsel %vm1170, %v3009, 0
      %v3125 = vsel %vm1170, %v3010, 0
      %v3128 = vsel %vm1170, %v3011, 0
      %3130 = vmatprep.subr.mxu0 0.0
      %3131 = vmatpush1.msra.mxu0 %v2762
      %3132 = vmatprep.subr.mxu0 0.0
      %3133 = vmatpush1.msra.mxu0 %v2763
      %3134 = vmatprep.subr.mxu0 0.0
      %3135 = vmatpush1.msra.mxu0 %v2764
      %3136 = vmatprep.subr.mxu0 0.0
      %3137 = vmatpush1.msra.mxu0 %v2765
      %3138 = vmatprep.subr.mxu0 0.0
      %3139 = vmatpush1.msra.mxu0 %v2766
      %3140 = vmatprep.subr.mxu0 0.0
      %3141 = vmatpush1.msra.mxu0 %v2767
      %3142 = vmatprep.subr.mxu0 0.0
      %3143 = vmatpush1.msra.mxu0 %v2768
      %3144 = vmatprep.subr.mxu0 0.0
      %3145 = vmatpush1.msra.mxu0 %v2769
      %3146 = vmatprep.subr.mxu0 0.0
      %3147 = vmatpush1.msra.mxu0 %v2770
      %3148 = vmatprep.subr.mxu0 0.0
      %3149 = vmatpush1.msra.mxu0 %v2771
      %3150 = vmatprep.subr.mxu0 0.0
      %3151 = vmatpush1.msra.mxu0 %v2772
      %3152 = vmatprep.subr.mxu0 0.0
      %3153 = vmatpush1.msra.mxu0 %v2773
      %3154 = vmatprep.subr.mxu0 0.0
      %3155 = vmatpush1.msra.mxu0 %v2774
      %3156 = vmatprep.subr.mxu0 0.0
      %3157 = vmatpush1.msra.mxu0 %v2775
      %3158 = vmatprep.subr.mxu0 0.0
      %3159 = vmatpush1.msra.mxu0 %v2776
      %3160 = vmatprep.subr.mxu0 0.0
      %3161 = vmatpush1.msra.mxu0 %v2777
      %3162 = vmatprep.subr.mxu0 0.0
      %3163 = vmatpush1.msra.mxu0 %v2778
      %3164 = vmatprep.subr.mxu0 0.0
      %3165 = vmatpush1.msra.mxu0 %v2779
      %3166 = vmatprep.subr.mxu0 0.0
      %3167 = vmatpush1.msra.mxu0 %v2780
      %3168 = vmatprep.subr.mxu0 0.0
      %3169 = vmatpush1.msra.mxu0 %v2781
      %3170 = vmatprep.subr.mxu0 0.0
      %3171 = vmatpush1.msra.mxu0 %v2782
      %3172 = vmatprep.subr.mxu0 0.0
      %3173 = vmatpush1.msra.mxu0 %v2783
      %3174 = vmatprep.subr.mxu0 0.0
      %3175 = vmatpush1.msra.mxu0 %v2784
      %3176 = vmatprep.subr.mxu0 0.0
      %3177 = vmatpush1.msra.mxu0 %v2785
      %3178 = vmatprep.subr.mxu0 0.0
      %3179 = vmatpush1.msra.mxu0 0.0
      %3180 = vmatprep.subr.mxu0 0.0
      %3181 = vmatpush1.msra.mxu0 0.0
      %3182 = vmatprep.subr.mxu0 0.0
      %3183 = vmatpush1.msra.mxu0 0.0
      %3184 = vmatprep.subr.mxu0 0.0
      %3185 = vmatpush1.msra.mxu0 0.0
      %3186 = vmatprep.subr.mxu0 0.0
      %3187 = vmatpush1.msra.mxu0 0.0
      %3188 = vmatprep.subr.mxu0 0.0
      %3189 = vmatpush1.msra.mxu0 0.0
      %3190 = vmatprep.subr.mxu0 0.0
      %3191 = vmatpush1.msra.mxu0 0.0
      %3192 = vmatprep.subr.mxu0 0.0
      %3193 = vmatpush1.msra.mxu0 0.0
      %3194 = vmatprep.mubr.f32.mxu0 %v3050
      %3195 = vmatmul.mubr.f32.gmra.mrb[0].mxu0 %v2852
      %v3196 = vpop.f32.mrb[0].mxu0
      %v3197 = vadd.f32 %v3048, %v3196
      %v3198 = vpop.f32.mrb[0].mxu0
      %3199 = vmatprep.mubr.f32.mxu0 %v3052
      %3200 = vmatmul.mubr.f32.gmra.mrb[0].mxu0 %v2853
      %v3201 = vpop.f32.mrb[0].mxu0
      %v3202 = vadd.f32 %v3048, %v3201
      %v3203 = vpop.f32.mrb[0].mxu0
      %3204 = vmatprep.mubr.f32.mxu0 %v3054
      %3205 = vmatmul.mubr.f32.gmra.mrb[0].mxu0 %v2854
      %v3206 = vpop.f32.mrb[0].mxu0
      %v3207 = vadd.f32 %v3048, %v3206
      %v3208 = vpop.f32.mrb[0].mxu0
      %3209 = vmatprep.mubr.f32.mxu0 %v3056
      %3210 = vmatmul.mubr.f32.gmra.mrb[0].mxu0 %v2855
      %v3211 = vpop.f32.mrb[0].mxu0
      %v3212 = vadd.f32 %v3048, %v3211
      %v3213 = vpop.f32.mrb[0].mxu0
      %3214 = vmatprep.mubr.f32.mxu0 %v3058
      %3215 = vmatmul.mubr.f32.gmra.mrb[0].mxu0 %v2856
      %v3216 = vpop.f32.mrb[0].mxu0
      %v3217 = vadd.f32 %v3048, %v3216
      %v3218 = vpop.f32.mrb[0].mxu0
      %3219 = vmatprep.mubr.f32.mxu0 %v3060
      %3220 = vmatmul.mubr.f32.gmra.mrb[0].mxu0 %v2857
      %v3221 = vpop.f32.mrb[0].mxu0
      %v3222 = vadd.f32 %v3048, %v3221
      %v3223 = vpop.f32.mrb[0].mxu0
      %3224 = vmatprep.mubr.f32.mxu0 %v3062
      %3225 = vmatmul.mubr.f32.gmra.mrb[0].mxu0 %v2858
      %v3226 = vpop.f32.mrb[0].mxu0
      %v3227 = vadd.f32 %v3048, %v3226
      %v3228 = vpop.f32.mrb[0].mxu0
      %3229 = vmatprep.mubr.f32.mxu0 %v3064
      %3230 = vmatmul.mubr.f32.gmra.mrb[0].mxu0 %v2859
      %v3231 = vpop.f32.mrb[0].mxu0
      %v3232 = vadd.f32 %v3048, %v3231
      %v3233 = vpop.f32.mrb[0].mxu0
      %3234 = vmatprep.mubr.f32.mxu0 %v3067
      %3235 = vmatmul.mubr.f32.gmra.mrb[0].mxu0 %v2908
      %v3236 = vpop.f32.mrb[0].mxu0
      %v3237 = vadd.f32 %v3048, %v3236
      %v3238 = vpop.f32.mrb[0].mxu0
      %3239 = vmatprep.mubr.f32.mxu0 %v3070
      %3240 = vmatmul.mubr.f32.gmra.mrb[0].mxu0 %v2909
      %v3241 = vpop.f32.mrb[0].mxu0
      %v3242 = vadd.f32 %v3048, %v3241
      %v3243 = vpop.f32.mrb[0].mxu0
      %3244 = vmatprep.mubr.f32.mxu0 %v3073
      %3245 = vmatmul.mubr.f32.gmra.mrb[0].mxu0 %v2910
      %v3246 = vpop.f32.mrb[0].mxu0
      %v3247 = vadd.f32 %v3048, %v3246
      %v3248 = vpop.f32.mrb[0].mxu0
      %3249 = vmatprep.mubr.f32.mxu0 %v3076
      %3250 = vmatmul.mubr.f32.gmra.mrb[0].mxu0 %v2911
      %v3251 = vpop.f32.mrb[0].mxu0
      %v3252 = vadd.f32 %v3048, %v3251
      %v3253 = vpop.f32.mrb[0].mxu0
      %3254 = vmatprep.mubr.f32.mxu0 %v3079
      %3255 = vmatmul.mubr.f32.gmra.mrb[0].mxu0 %v2912
      %v3256 = vpop.f32.mrb[0].mxu0
      %v3257 = vadd.f32 %v3048, %v3256
      %v3258 = vpop.f32.mrb[0].mxu0
      %3259 = vmatprep.mubr.f32.mxu0 %v3082
      %3260 = vmatmul.mubr.f32.gmra.mrb[0].mxu0 %v2913
      %v3261 = vpop.f32.mrb[0].mxu0
      %v3262 = vadd.f32 %v3048, %v3261
      %v3263 = vpop.f32.mrb[0].mxu0
      %3264 = vmatprep.mubr.f32.mxu0 %v3085
      %3265 = vmatmul.mubr.f32.gmra.mrb[0].mxu0 %v2914
      %v3266 = vpop.f32.mrb[0].mxu0
      %v3267 = vadd.f32 %v3048, %v3266
      %v3268 = vpop.f32.mrb[0].mxu0
      %3269 = vmatprep.mubr.f32.mxu0 %v3088
      %3270 = vmatmul.mubr.f32.gmra.mrb[0].mxu0 %v2915
      %v3271 = vpop.f32.mrb[0].mxu0
      %v3272 = vadd.f32 %v3048, %v3271
      %v3273 = vpop.f32.mrb[0].mxu0
      %3274 = vmatprep.mubr.f32.mxu0 %v3090
      %3275 = vmatmul.mubr.f32.gmra.mrb[0].mxu0 %v2980
      %v3276 = vpop.f32.mrb[0].mxu0
      %v3277 = vadd.f32 %v3048, %v3276
      %v3278 = vpop.f32.mrb[0].mxu0
      %3279 = vmatprep.mubr.f32.mxu0 %v3092
      %3280 = vmatmul.mubr.f32.gmra.mrb[0].mxu0 %v2981
      %v3281 = vpop.f32.mrb[0].mxu0
      %v3282 = vadd.f32 %v3048, %v3281
      %v3283 = vpop.f32.mrb[0].mxu0
      %3284 = vmatprep.mubr.f32.mxu0 %v3094
      %3285 = vmatmul.mubr.f32.gmra.mrb[0].mxu0 %v2982
      %v3286 = vpop.f32.mrb[0].mxu0
      %v3287 = vadd.f32 %v3048, %v3286
      %v3288 = vpop.f32.mrb[0].mxu0
      %3289 = vmatprep.mubr.f32.mxu0 %v3096
      %3290 = vmatmul.mubr.f32.gmra.mrb[0].mxu0 %v2983
      %v3291 = vpop.f32.mrb[0].mxu0
      %v3292 = vadd.f32 %v3048, %v3291
      %v3293 = vpop.f32.mrb[0].mxu0
      %3294 = vmatprep.mubr.f32.mxu0 %v3098
      %3295 = vmatmul.mubr.f32.gmra.mrb[0].mxu0 %v2984
      %v3296 = vpop.f32.mrb[0].mxu0
      %v3297 = vadd.f32 %v3048, %v3296
      %v3298 = vpop.f32.mrb[0].mxu0
      %3299 = vmatprep.mubr.f32.mxu0 %v3100
      %3300 = vmatmul.mubr.f32.gmra.mrb[0].mxu0 %v2985
      %v3301 = vpop.f32.mrb[0].mxu0
      %v3302 = vadd.f32 %v3048, %v3301
      %v3303 = vpop.f32.mrb[0].mxu0
      %3304 = vmatprep.mubr.f32.mxu0 %v3102
      %3305 = vmatmul.mubr.f32.gmra.mrb[0].mxu0 %v2986
      %v3306 = vpop.f32.mrb[0].mxu0
      %v3307 = vadd.f32 %v3048, %v3306
      %v3308 = vpop.f32.mrb[0].mxu0
      %3309 = vmatprep.mubr.f32.mxu0 %v3104
      %3310 = vmatmul.mubr.f32.gmra.mrb[0].mxu0 %v2987
      %v3311 = vpop.f32.mrb[0].mxu0
      %v3312 = vadd.f32 %v3048, %v3311
      %v3313 = vpop.f32.mrb[0].mxu0
      %3314 = vmatprep.mubr.f32.mxu0 %v3107
      %3315 = vmatmul.mubr.f32.gmra.mrb[0].mxu0 %v3036
      %v3316 = vpop.f32.mrb[0].mxu0
      %v3317 = vadd.f32 %v3048, %v3316
      %v3318 = vpop.f32.mrb[0].mxu0
      %3319 = vmatprep.mubr.f32.mxu0 %v3110
      %3320 = vmatmul.mubr.f32.gmra.mrb[0].mxu0 %v3037
      %v3321 = vpop.f32.mrb[0].mxu0
      %v3322 = vadd.f32 %v3048, %v3321
      %v3323 = vpop.f32.mrb[0].mxu0
      %3324 = vmatprep.mubr.f32.mxu0 %v3113
      %3325 = vmatmul.mubr.f32.gmra.mrb[0].mxu0 %v3038
      %v3326 = vpop.f32.mrb[0].mxu0
      %v3327 = vadd.f32 %v3048, %v3326
      %v3328 = vpop.f32.mrb[0].mxu0
      %3329 = vmatprep.mubr.f32.mxu0 %v3116
      %3330 = vmatmul.mubr.f32.gmra.mrb[0].mxu0 %v3039
      %v3331 = vpop.f32.mrb[0].mxu0
      %v3332 = vadd.f32 %v3048, %v3331
      %v3333 = vpop.f32.mrb[0].mxu0
      %3334 = vmatprep.mubr.f32.mxu0 %v3119
      %3335 = vmatmul.mubr.f32.gmra.mrb[0].mxu0 %v3040
      %v3336 = vpop.f32.mrb[0].mxu0
      %v3337 = vadd.f32 %v3048, %v3336
      %v3338 = vpop.f32.mrb[0].mxu0
      %3339 = vmatprep.mubr.f32.mxu0 %v3122
      %3340 = vmatmul.mubr.f32.gmra.mrb[0].mxu0 %v3041
      %v3341 = vpop.f32.mrb[0].mxu0
      %v3342 = vadd.f32 %v3048, %v3341
      %v3343 = vpop.f32.mrb[0].mxu0
      %3344 = vmatprep.mubr.f32.mxu0 %v3125
      %3345 = vmatmul.mubr.f32.gmra.mrb[0].mxu0 %v3042
      %v3346 = vpop.f32.mrb[0].mxu0
      %v3347 = vadd.f32 %v3048, %v3346
      %v3348 = vpop.f32.mrb[0].mxu0
      %3349 = vmatprep.mubr.f32.mxu0 %v3128
      %3350 = vmatmul.mubr.f32.gmra.mrb[0].mxu0 %v3043
      %v3351 = vpop.f32.mrb[0].mxu0
      %v3352 = vadd.f32 %v3048, %v3351
      %v3353 = vpop.f32.mrb[0].mxu0
      %3354 = vdwg.mxu0
      %v3355 = vadd.f32 %v3197, %v533
      %v3356 = vadd.f32 %v3202, %v534
      %v3357 = vadd.f32 %v3207, %v535
      %v3358 = vadd.f32 %v3212, %v536
      %v3359 = vadd.f32 %v3217, %v537
      %v3360 = vadd.f32 %v3222, %v538
      %v3361 = vadd.f32 %v3227, %v539
      %v3362 = vadd.f32 %v3232, %v540
      %v3363 = vmax.f32 %v3355, 0.0
      %v3364 = vmax.f32 %v3356, 0.0
      %v3365 = vmax.f32 %v3357, 0.0
      %v3366 = vmax.f32 %v3358, 0.0
      %v3367 = vmax.f32 %v3359, 0.0
      %v3368 = vmax.f32 %v3360, 0.0
      %v3369 = vmax.f32 %v3361, 0.0
      %v3370 = vmax.f32 %v3362, 0.0
      %v3371 = vadd.f32 %v3237, %v678
      %v3372 = vadd.f32 %v3242, %v679
      %v3373 = vadd.f32 %v3247, %v680
      %v3374 = vadd.f32 %v3252, %v681
      %v3375 = vadd.f32 %v3257, %v682
      %v3376 = vadd.f32 %v3262, %v683
      %v3377 = vadd.f32 %v3267, %v684
      %v3378 = vadd.f32 %v3272, %v685
      %v3379 = vmax.f32 %v3371, 0.0
      %v3380 = vmax.f32 %v3372, 0.0
      %v3381 = vmax.f32 %v3373, 0.0
      %v3382 = vmax.f32 %v3374, 0.0
      %v3383 = vmax.f32 %v3375, 0.0
      %v3384 = vmax.f32 %v3376, 0.0
      %v3385 = vmax.f32 %v3377, 0.0
      %v3386 = vmax.f32 %v3378, 0.0
      %v3387 = vadd.f32 %v3277, %v823
      %v3388 = vadd.f32 %v3282, %v824
      %v3389 = vadd.f32 %v3287, %v825
      %v3390 = vadd.f32 %v3292, %v826
      %v3391 = vadd.f32 %v3297, %v827
      %v3392 = vadd.f32 %v3302, %v828
      %v3393 = vadd.f32 %v3307, %v829
      %v3394 = vadd.f32 %v3312, %v830
      %v3395 = vmax.f32 %v3387, 0.0
      %v3396 = vmax.f32 %v3388, 0.0
      %v3397 = vmax.f32 %v3389, 0.0
      %v3398 = vmax.f32 %v3390, 0.0
      %v3399 = vmax.f32 %v3391, 0.0
      %v3400 = vmax.f32 %v3392, 0.0
      %v3401 = vmax.f32 %v3393, 0.0
      %v3402 = vmax.f32 %v3394, 0.0
      %v3403 = vadd.f32 %v3317, %v1105
      %v3404 = vadd.f32 %v3322, %v1106
      %v3405 = vadd.f32 %v3327, %v1107
      %v3406 = vadd.f32 %v3332, %v1108
      %v3407 = vadd.f32 %v3337, %v1109
      %v3408 = vadd.f32 %v3342, %v1110
      %v3409 = vadd.f32 %v3347, %v1111
      %v3410 = vadd.f32 %v3352, %v1112
      %v3411 = vmax.f32 %v3403, 0.0
      %v3412 = vmax.f32 %v3404, 0.0
      %v3413 = vmax.f32 %v3405, 0.0
      %v3414 = vmax.f32 %v3406, 0.0
      %v3415 = vmax.f32 %v3407, 0.0
      %v3416 = vmax.f32 %v3408, 0.0
      %v3417 = vmax.f32 %v3409, 0.0
      %v3418 = vmax.f32 %v3410, 0.0
      %s3419 = scalar_lea.vmem %s8, 768
      %v3420 = vld [vmem:[%s3419] sm:$0xff]
      %v3421 = vld [vmem:[%s3419 + $0x8] sm:$0xff]
      %v3422 = vld [vmem:[%s3419 + $0x10] sm:$0xff]
      %v3423 = vld [vmem:[%s3419 + $0x18] sm:$0xff]
      %v3424 = vld [vmem:[%s3419 + $0x20] sm:$0xff]
      %v3425 = vld [vmem:[%s3419 + $0x28] sm:$0xff]
      %v3426 = vld [vmem:[%s3419 + $0x30] sm:$0xff]
      %v3427 = vld [vmem:[%s3419 + $0x38] sm:$0xff]
      %v3428 = vld [vmem:[%s3419 + $0x40] sm:$0xff]
      %v3429 = vld [vmem:[%s3419 + $0x48] sm:$0xff]
      %v3430 = vld [vmem:[%s3419 + $0x50] sm:$0xff]
      %v3431 = vld [vmem:[%s3419 + $0x58] sm:$0xff]
      %v3432 = vld [vmem:[%s3419 + $0x60] sm:$0xff]
      %v3433 = vld [vmem:[%s3419 + $0x68] sm:$0xff]
      %v3434 = vld [vmem:[%s3419 + $0x70] sm:$0xff]
      %v3435 = vld [vmem:[%s3419 + $0x78] sm:$0xff]
      %v3436 = vld [vmem:[%s3419 + $0x80] sm:$0xff]
      %v3437 = vld [vmem:[%s3419 + $0x88] sm:$0xff]
      %v3438 = vld [vmem:[%s3419 + $0x90] sm:$0xff]
      %v3439 = vld [vmem:[%s3419 + $0x98] sm:$0xff]
      %v3440 = vld [vmem:[%s3419 + $0xa0] sm:$0xff]
      %v3441 = vld [vmem:[%s3419 + $0xa8] sm:$0xff]
      %v3442 = vld [vmem:[%s3419 + $0xb0] sm:$0xff]
      %v3443 = vld [vmem:[%s3419 + $0xb8] sm:$0xff]
      %s3444 = scalar_lea.vmem %s9, 4
      %v3445 = vld [vmem:[%s3444] sm:$0x1]
      %3454 = vrot.lane.b32.xlu0 %v3363, 64
      %v3455 = vpop.permute.xlu0 %3454
      %3456 = vrot.lane.b32.xlu0 %v3364, 64
      %v3457 = vpop.permute.xlu0 %3456
      %3458 = vrot.lane.b32.xlu0 %v3365, 64
      %v3459 = vpop.permute.xlu0 %3458
      %3460 = vrot.lane.b32.xlu0 %v3366, 64
      %v3461 = vpop.permute.xlu0 %3460
      %3462 = vrot.lane.b32.xlu0 %v3367, 64
      %v3463 = vpop.permute.xlu0 %3462
      %3464 = vrot.lane.b32.xlu0 %v3368, 64
      %v3465 = vpop.permute.xlu0 %3464
      %3466 = vrot.lane.b32.xlu0 %v3369, 64
      %v3467 = vpop.permute.xlu0 %3466
      %3468 = vrot.lane.b32.xlu0 %v3370, 64
      %v3469 = vpop.permute.xlu0 %3468
      %v3478 = vsel %vm1170, 0.0, %v3455
      %v3479 = vsel %vm1170, %v3395, %v3457
      %v3480 = vsel %vm1170, %v3396, %v3459
      %v3481 = vsel %vm1170, %v3397, %v3461
      %v3482 = vsel %vm1170, %v3398, %v3463
      %v3483 = vsel %vm1170, %v3399, %v3465
      %v3484 = vsel %vm1170, %v3400, %v3467
      %v3485 = vsel %vm1170, %v3401, %v3469
      %3494 = vrot.lane.b32.xlu0 %v3395, 64
      %v3495 = vpop.permute.xlu0 %3494
      %3496 = vrot.lane.b32.xlu0 %v3396, 64
      %v3497 = vpop.permute.xlu0 %3496
      %3498 = vrot.lane.b32.xlu0 %v3397, 64
      %v3499 = vpop.permute.xlu0 %3498
      %3500 = vrot.lane.b32.xlu0 %v3398, 64
      %v3501 = vpop.permute.xlu0 %3500
      %3502 = vrot.lane.b32.xlu0 %v3399, 64
      %v3503 = vpop.permute.xlu0 %3502
      %3504 = vrot.lane.b32.xlu0 %v3400, 64
      %v3505 = vpop.permute.xlu0 %3504
      %3506 = vrot.lane.b32.xlu0 %v3401, 64
      %v3507 = vpop.permute.xlu0 %3506
      %3508 = vrot.lane.b32.xlu0 %v3402, 64
      %v3509 = vpop.permute.xlu0 %3508
      %v3518 = vsel %vm1170, %v3363, %v3495
      %v3519 = vsel %vm1170, %v3364, %v3497
      %v3520 = vsel %vm1170, %v3365, %v3499
      %v3521 = vsel %vm1170, %v3366, %v3501
      %v3522 = vsel %vm1170, %v3367, %v3503
      %v3523 = vsel %vm1170, %v3368, %v3505
      %v3524 = vsel %vm1170, %v3369, %v3507
      %v3525 = vsel %vm1170, %v3370, %v3509
      %3534 = vrot.lane.b32.xlu0 %v3379, 64
      %v3535 = vpop.permute.xlu0 %3534
      %3536 = vrot.lane.b32.xlu0 %v3380, 64
      %v3537 = vpop.permute.xlu0 %3536
      %3538 = vrot.lane.b32.xlu0 %v3381, 64
      %v3539 = vpop.permute.xlu0 %3538
      %3540 = vrot.lane.b32.xlu0 %v3382, 64
      %v3541 = vpop.permute.xlu0 %3540
      %3542 = vrot.lane.b32.xlu0 %v3383, 64
      %v3543 = vpop.permute.xlu0 %3542
      %3544 = vrot.lane.b32.xlu0 %v3384, 64
      %v3545 = vpop.permute.xlu0 %3544
      %3546 = vrot.lane.b32.xlu0 %v3385, 64
      %v3547 = vpop.permute.xlu0 %3546
      %3548 = vrot.lane.b32.xlu0 %v3386, 64
      %v3549 = vpop.permute.xlu0 %3548
      %v3558 = vsel %vm1170, 0.0, %v3535
      %v3559 = vsel %vm1170, %v3411, %v3537
      %v3560 = vsel %vm1170, %v3412, %v3539
      %v3561 = vsel %vm1170, %v3413, %v3541
      %v3562 = vsel %vm1170, %v3414, %v3543
      %v3563 = vsel %vm1170, %v3415, %v3545
      %v3564 = vsel %vm1170, %v3416, %v3547
      %v3565 = vsel %vm1170, %v3417, %v3549
      %3574 = vrot.lane.b32.xlu0 %v3411, 64
      %v3575 = vpop.permute.xlu0 %3574
      %3576 = vrot.lane.b32.xlu0 %v3412, 64
      %v3577 = vpop.permute.xlu0 %3576
      %3578 = vrot.lane.b32.xlu0 %v3413, 64
      %v3579 = vpop.permute.xlu0 %3578
      %3580 = vrot.lane.b32.xlu0 %v3414, 64
      %v3581 = vpop.permute.xlu0 %3580
      %3582 = vrot.lane.b32.xlu0 %v3415, 64
      %v3583 = vpop.permute.xlu0 %3582
      %3584 = vrot.lane.b32.xlu0 %v3416, 64
      %v3585 = vpop.permute.xlu0 %3584
      %3586 = vrot.lane.b32.xlu0 %v3417, 64
      %v3587 = vpop.permute.xlu0 %3586
      %3588 = vrot.lane.b32.xlu0 %v3418, 64
      %v3589 = vpop.permute.xlu0 %3588
      %v3598 = vsel %vm1170, %v3379, %v3575
      %v3599 = vsel %vm1170, %v3380, %v3577
      %v3600 = vsel %vm1170, %v3381, %v3579
      %v3601 = vsel %vm1170, %v3382, %v3581
      %v3602 = vsel %vm1170, %v3383, %v3583
      %v3603 = vsel %vm1170, %v3384, %v3585
      %v3604 = vsel %vm1170, %v3385, %v3587
      %v3605 = vsel %vm1170, %v3386, %v3589
      %v3607 = vlaneseq
      %v3608 = vshrl.u32 %v3607, 7
      %v3609 = vsub.s32 0, %v3608
      %v3610 = vrot.slane %v3445, %v3609
      %v3612 = vsel %vm1170, %v3395, 0
      %v3614 = vsel %vm1170, %v3396, 0
      %v3616 = vsel %vm1170, %v3397, 0
      %v3618 = vsel %vm1170, %v3398, 0
      %v3620 = vsel %vm1170, %v3399, 0
      %v3622 = vsel %vm1170, %v3400, 0
      %v3624 = vsel %vm1170, %v3401, 0
      %v3626 = vsel %vm1170, %v3402, 0
      %v3628 = vsel %vm1170, %v3411, 0
      %v3630 = vsel %vm1170, %v3412, 0
      %v3632 = vsel %vm1170, %v3413, 0
      %v3634 = vsel %vm1170, %v3414, 0
      %v3636 = vsel %vm1170, %v3415, 0
      %v3638 = vsel %vm1170, %v3416, 0
      %v3640 = vsel %vm1170, %v3417, 0
      %v3642 = vsel %vm1170, %v3418, 0
      %v3644 = vsel %vm1170, %v3364, 0
      %v3646 = vsel %vm1170, %v3365, 0
      %v3648 = vsel %vm1170, %v3366, 0
      %v3650 = vsel %vm1170, %v3367, 0
      %v3652 = vsel %vm1170, %v3368, 0
      %v3654 = vsel %vm1170, %v3369, 0
      %v3656 = vsel %vm1170, %v3370, 0
      %v3658 = vsel %vm1170, %v3380, 0
      %v3660 = vsel %vm1170, %v3381, 0
      %v3662 = vsel %vm1170, %v3382, 0
      %v3664 = vsel %vm1170, %v3383, 0
      %v3666 = vsel %vm1170, %v3384, 0
      %v3668 = vsel %vm1170, %v3385, 0
      %v3670 = vsel %vm1170, %v3386, 0
      %3672 = vmatprep.subr.mxu0 0.0
      %3673 = vmatpush1.msra.mxu0 %v3420
      %3674 = vmatprep.subr.mxu0 0.0
      %3675 = vmatpush1.msra.mxu0 %v3421
      %3676 = vmatprep.subr.mxu0 0.0
      %3677 = vmatpush1.msra.mxu0 %v3422
      %3678 = vmatprep.subr.mxu0 0.0
      %3679 = vmatpush1.msra.mxu0 %v3423
      %3680 = vmatprep.subr.mxu0 0.0
      %3681 = vmatpush1.msra.mxu0 %v3424
      %3682 = vmatprep.subr.mxu0 0.0
      %3683 = vmatpush1.msra.mxu0 %v3425
      %3684 = vmatprep.subr.mxu0 0.0
      %3685 = vmatpush1.msra.mxu0 %v3426
      %3686 = vmatprep.subr.mxu0 0.0
      %3687 = vmatpush1.msra.mxu0 %v3427
      %3688 = vmatprep.subr.mxu0 0.0
      %3689 = vmatpush1.msra.mxu0 %v3428
      %3690 = vmatprep.subr.mxu0 0.0
      %3691 = vmatpush1.msra.mxu0 %v3429
      %3692 = vmatprep.subr.mxu0 0.0
      %3693 = vmatpush1.msra.mxu0 %v3430
      %3694 = vmatprep.subr.mxu0 0.0
      %3695 = vmatpush1.msra.mxu0 %v3431
      %3696 = vmatprep.subr.mxu0 0.0
      %3697 = vmatpush1.msra.mxu0 %v3432
      %3698 = vmatprep.subr.mxu0 0.0
      %3699 = vmatpush1.msra.mxu0 %v3433
      %3700 = vmatprep.subr.mxu0 0.0
      %3701 = vmatpush1.msra.mxu0 %v3434
      %3702 = vmatprep.subr.mxu0 0.0
      %3703 = vmatpush1.msra.mxu0 %v3435
      %3704 = vmatprep.subr.mxu0 0.0
      %3705 = vmatpush1.msra.mxu0 %v3436
      %3706 = vmatprep.subr.mxu0 0.0
      %3707 = vmatpush1.msra.mxu0 %v3437
      %3708 = vmatprep.subr.mxu0 0.0
      %3709 = vmatpush1.msra.mxu0 %v3438
      %3710 = vmatprep.subr.mxu0 0.0
      %3711 = vmatpush1.msra.mxu0 %v3439
      %3712 = vmatprep.subr.mxu0 0.0
      %3713 = vmatpush1.msra.mxu0 %v3440
      %3714 = vmatprep.subr.mxu0 0.0
      %3715 = vmatpush1.msra.mxu0 %v3441
      %3716 = vmatprep.subr.mxu0 0.0
      %3717 = vmatpush1.msra.mxu0 %v3442
      %3718 = vmatprep.subr.mxu0 0.0
      %3719 = vmatpush1.msra.mxu0 %v3443
      %3720 = vmatprep.subr.mxu0 0.0
      %3721 = vmatpush1.msra.mxu0 0.0
      %3722 = vmatprep.subr.mxu0 0.0
      %3723 = vmatpush1.msra.mxu0 0.0
      %3724 = vmatprep.subr.mxu0 0.0
      %3725 = vmatpush1.msra.mxu0 0.0
      %3726 = vmatprep.subr.mxu0 0.0
      %3727 = vmatpush1.msra.mxu0 0.0
      %3728 = vmatprep.subr.mxu0 0.0
      %3729 = vmatpush1.msra.mxu0 0.0
      %3730 = vmatprep.subr.mxu0 0.0
      %3731 = vmatpush1.msra.mxu0 0.0
      %3732 = vmatprep.subr.mxu0 0.0
      %3733 = vmatpush1.msra.mxu0 0.0
      %3734 = vmatprep.subr.mxu0 0.0
      %3735 = vmatpush1.msra.mxu0 0.0
      %3736 = vmatprep.mubr.f32.mxu0 %v3612
      %3737 = vmatmul.mubr.f32.gmra.mrb[0].mxu0 %v3478
      %v3738 = vpop.f32.mrb[0].mxu0
      %v3739 = vadd.f32 %v3610, %v3738
      %v3740 = vpop.f32.mrb[0].mxu0
      %3741 = vmatprep.mubr.f32.mxu0 %v3614
      %3742 = vmatmul.mubr.f32.gmra.mrb[0].mxu0 %v3479
      %v3743 = vpop.f32.mrb[0].mxu0
      %v3744 = vadd.f32 %v3610, %v3743
      %v3745 = vpop.f32.mrb[0].mxu0
      %3746 = vmatprep.mubr.f32.mxu0 %v3616
      %3747 = vmatmul.mubr.f32.gmra.mrb[0].mxu0 %v3480
      %v3748 = vpop.f32.mrb[0].mxu0
      %v3749 = vadd.f32 %v3610, %v3748
      %v3750 = vpop.f32.mrb[0].mxu0
      %3751 = vmatprep.mubr.f32.mxu0 %v3618
      %3752 = vmatmul.mubr.f32.gmra.mrb[0].mxu0 %v3481
      %v3753 = vpop.f32.mrb[0].mxu0
      %v3754 = vadd.f32 %v3610, %v3753
      %v3755 = vpop.f32.mrb[0].mxu0
      %3756 = vmatprep.mubr.f32.mxu0 %v3620
      %3757 = vmatmul.mubr.f32.gmra.mrb[0].mxu0 %v3482
      %v3758 = vpop.f32.mrb[0].mxu0
      %v3759 = vadd.f32 %v3610, %v3758
      %v3760 = vpop.f32.mrb[0].mxu0
      %3761 = vmatprep.mubr.f32.mxu0 %v3622
      %3762 = vmatmul.mubr.f32.gmra.mrb[0].mxu0 %v3483
      %v3763 = vpop.f32.mrb[0].mxu0
      %v3764 = vadd.f32 %v3610, %v3763
      %v3765 = vpop.f32.mrb[0].mxu0
      %3766 = vmatprep.mubr.f32.mxu0 %v3624
      %3767 = vmatmul.mubr.f32.gmra.mrb[0].mxu0 %v3484
      %v3768 = vpop.f32.mrb[0].mxu0
      %v3769 = vadd.f32 %v3610, %v3768
      %v3770 = vpop.f32.mrb[0].mxu0
      %3771 = vmatprep.mubr.f32.mxu0 %v3626
      %3772 = vmatmul.mubr.f32.gmra.mrb[0].mxu0 %v3485
      %v3773 = vpop.f32.mrb[0].mxu0
      %v3774 = vadd.f32 %v3610, %v3773
      %v3775 = vpop.f32.mrb[0].mxu0
      %3776 = vmatprep.mubr.f32.mxu0 %v3628
      %3777 = vmatmul.mubr.f32.gmra.mrb[0].mxu0 %v3558
      %v3778 = vpop.f32.mrb[0].mxu0
      %v3779 = vadd.f32 %v3610, %v3778
      %v3780 = vpop.f32.mrb[0].mxu0
      %3781 = vmatprep.mubr.f32.mxu0 %v3630
      %3782 = vmatmul.mubr.f32.gmra.mrb[0].mxu0 %v3559
      %v3783 = vpop.f32.mrb[0].mxu0
      %v3784 = vadd.f32 %v3610, %v3783
      %v3785 = vpop.f32.mrb[0].mxu0
      %3786 = vmatprep.mubr.f32.mxu0 %v3632
      %3787 = vmatmul.mubr.f32.gmra.mrb[0].mxu0 %v3560
      %v3788 = vpop.f32.mrb[0].mxu0
      %v3789 = vadd.f32 %v3610, %v3788
      %v3790 = vpop.f32.mrb[0].mxu0
      %3791 = vmatprep.mubr.f32.mxu0 %v3634
      %3792 = vmatmul.mubr.f32.gmra.mrb[0].mxu0 %v3561
      %v3793 = vpop.f32.mrb[0].mxu0
      %v3794 = vadd.f32 %v3610, %v3793
      %v3795 = vpop.f32.mrb[0].mxu0
      %3796 = vmatprep.mubr.f32.mxu0 %v3636
      %3797 = vmatmul.mubr.f32.gmra.mrb[0].mxu0 %v3562
      %v3798 = vpop.f32.mrb[0].mxu0
      %v3799 = vadd.f32 %v3610, %v3798
      %v3800 = vpop.f32.mrb[0].mxu0
      %3801 = vmatprep.mubr.f32.mxu0 %v3638
      %3802 = vmatmul.mubr.f32.gmra.mrb[0].mxu0 %v3563
      %v3803 = vpop.f32.mrb[0].mxu0
      %v3804 = vadd.f32 %v3610, %v3803
      %v3805 = vpop.f32.mrb[0].mxu0
      %3806 = vmatprep.mubr.f32.mxu0 %v3640
      %3807 = vmatmul.mubr.f32.gmra.mrb[0].mxu0 %v3564
      %v3808 = vpop.f32.mrb[0].mxu0
      %v3809 = vadd.f32 %v3610, %v3808
      %v3810 = vpop.f32.mrb[0].mxu0
      %3811 = vmatprep.mubr.f32.mxu0 %v3642
      %3812 = vmatmul.mubr.f32.gmra.mrb[0].mxu0 %v3565
      %v3813 = vpop.f32.mrb[0].mxu0
      %v3814 = vadd.f32 %v3610, %v3813
      %v3815 = vpop.f32.mrb[0].mxu0
      %3816 = vmatprep.mubr.f32.mxu0 %v3644
      %3817 = vmatmul.mubr.f32.gmra.mrb[0].mxu0 %v3518
      %v3818 = vpop.f32.mrb[0].mxu0
      %v3819 = vadd.f32 %v3610, %v3818
      %v3820 = vpop.f32.mrb[0].mxu0
      %3821 = vmatprep.mubr.f32.mxu0 %v3646
      %3822 = vmatmul.mubr.f32.gmra.mrb[0].mxu0 %v3519
      %v3823 = vpop.f32.mrb[0].mxu0
      %v3824 = vadd.f32 %v3610, %v3823
      %v3825 = vpop.f32.mrb[0].mxu0
      %3826 = vmatprep.mubr.f32.mxu0 %v3648
      %3827 = vmatmul.mubr.f32.gmra.mrb[0].mxu0 %v3520
      %v3828 = vpop.f32.mrb[0].mxu0
      %v3829 = vadd.f32 %v3610, %v3828
      %v3830 = vpop.f32.mrb[0].mxu0
      %3831 = vmatprep.mubr.f32.mxu0 %v3650
      %3832 = vmatmul.mubr.f32.gmra.mrb[0].mxu0 %v3521
      %v3833 = vpop.f32.mrb[0].mxu0
      %v3834 = vadd.f32 %v3610, %v3833
      %v3835 = vpop.f32.mrb[0].mxu0
      %3836 = vmatprep.mubr.f32.mxu0 %v3652
      %3837 = vmatmul.mubr.f32.gmra.mrb[0].mxu0 %v3522
      %v3838 = vpop.f32.mrb[0].mxu0
      %v3839 = vadd.f32 %v3610, %v3838
      %v3840 = vpop.f32.mrb[0].mxu0
      %3841 = vmatprep.mubr.f32.mxu0 %v3654
      %3842 = vmatmul.mubr.f32.gmra.mrb[0].mxu0 %v3523
      %v3843 = vpop.f32.mrb[0].mxu0
      %v3844 = vadd.f32 %v3610, %v3843
      %v3845 = vpop.f32.mrb[0].mxu0
      %3846 = vmatprep.mubr.f32.mxu0 %v3656
      %3847 = vmatmul.mubr.f32.gmra.mrb[0].mxu0 %v3524
      %v3848 = vpop.f32.mrb[0].mxu0
      %v3849 = vadd.f32 %v3610, %v3848
      %v3850 = vpop.f32.mrb[0].mxu0
      %3851 = vmatprep.mubr.f32.mxu0 %v1351
      %3852 = vmatmul.mubr.f32.gmra.mrb[0].mxu0 %v3525
      %v3853 = vpop.f32.mrb[0].mxu0
      %v3854 = vadd.f32 %v3610, %v3853
      %v3855 = vpop.f32.mrb[0].mxu0
      %3856 = vmatprep.mubr.f32.mxu0 %v3658
      %3857 = vmatmul.mubr.f32.gmra.mrb[0].mxu0 %v3598
      %v3858 = vpop.f32.mrb[0].mxu0
      %v3859 = vadd.f32 %v3610, %v3858
      %v3860 = vpop.f32.mrb[0].mxu0
      %3861 = vmatprep.mubr.f32.mxu0 %v3660
      %3862 = vmatmul.mubr.f32.gmra.mrb[0].mxu0 %v3599
      %v3863 = vpop.f32.mrb[0].mxu0
      %v3864 = vadd.f32 %v3610, %v3863
      %v3865 = vpop.f32.mrb[0].mxu0
      %3866 = vmatprep.mubr.f32.mxu0 %v3662
      %3867 = vmatmul.mubr.f32.gmra.mrb[0].mxu0 %v3600
      %v3868 = vpop.f32.mrb[0].mxu0
      %v3869 = vadd.f32 %v3610, %v3868
      %v3870 = vpop.f32.mrb[0].mxu0
      %3871 = vmatprep.mubr.f32.mxu0 %v3664
      %3872 = vmatmul.mubr.f32.gmra.mrb[0].mxu0 %v3601
      %v3873 = vpop.f32.mrb[0].mxu0
      %v3874 = vadd.f32 %v3610, %v3873
      %v3875 = vpop.f32.mrb[0].mxu0
      %3876 = vmatprep.mubr.f32.mxu0 %v3666
      %3877 = vmatmul.mubr.f32.gmra.mrb[0].mxu0 %v3602
      %v3878 = vpop.f32.mrb[0].mxu0
      %v3879 = vadd.f32 %v3610, %v3878
      %v3880 = vpop.f32.mrb[0].mxu0
      %3881 = vmatprep.mubr.f32.mxu0 %v3668
      %3882 = vmatmul.mubr.f32.gmra.mrb[0].mxu0 %v3603
      %v3883 = vpop.f32.mrb[0].mxu0
      %v3884 = vadd.f32 %v3610, %v3883
      %v3885 = vpop.f32.mrb[0].mxu0
      %3886 = vmatprep.mubr.f32.mxu0 %v3670
      %3887 = vmatmul.mubr.f32.gmra.mrb[0].mxu0 %v3604
      %v3888 = vpop.f32.mrb[0].mxu0
      %v3889 = vadd.f32 %v3610, %v3888
      %v3890 = vpop.f32.mrb[0].mxu0
      %3891 = vmatprep.mubr.f32.mxu0 %v1351
      %3892 = vmatmul.mubr.f32.gmra.mrb[0].mxu0 %v3605
      %v3893 = vpop.f32.mrb[0].mxu0
      %v3894 = vadd.f32 %v3610, %v3893
      %v3895 = vpop.f32.mrb[0].mxu0
      %3896 = vdwg.mxu0
      %v3897 = vmax.f32 %v3739, 0.0
      %v3898 = vmax.f32 %v3744, 0.0
      %v3899 = vmax.f32 %v3749, 0.0
      %v3900 = vmax.f32 %v3754, 0.0
      %v3901 = vmax.f32 %v3759, 0.0
      %v3902 = vmax.f32 %v3764, 0.0
      %v3903 = vmax.f32 %v3769, 0.0
      %v3904 = vmax.f32 %v3774, 0.0
      %v3905 = vmax.f32 %v3779, 0.0
      %v3906 = vmax.f32 %v3784, 0.0
      %v3907 = vmax.f32 %v3789, 0.0
      %v3908 = vmax.f32 %v3794, 0.0
      %v3909 = vmax.f32 %v3799, 0.0
      %v3910 = vmax.f32 %v3804, 0.0
      %v3911 = vmax.f32 %v3809, 0.0
      %v3912 = vmax.f32 %v3814, 0.0
      %v3913 = vmax.f32 %v3819, 0.0
      %v3914 = vmax.f32 %v3824, 0.0
      %v3915 = vmax.f32 %v3829, 0.0
      %v3916 = vmax.f32 %v3834, 0.0
      %v3917 = vmax.f32 %v3839, 0.0
      %v3918 = vmax.f32 %v3844, 0.0
      %v3919 = vmax.f32 %v3849, 0.0
      %v3920 = vmax.f32 %v3854, 0.0
      %v3921 = vmax.f32 %v3859, 0.0
      %v3922 = vmax.f32 %v3864, 0.0
      %v3923 = vmax.f32 %v3869, 0.0
      %v3924 = vmax.f32 %v3874, 0.0
      %v3925 = vmax.f32 %v3879, 0.0
      %v3926 = vmax.f32 %v3884, 0.0
      %v3927 = vmax.f32 %v3889, 0.0
      %v3928 = vmax.f32 %v3894, 0.0
      %s3929 = scalar_lea.vmem %s8, 960
      %v3930 = vld [vmem:[%s3929] sm:$0xff]
      %v3931 = vld [vmem:[%s3929 + $0x8] sm:$0xff]
      %v3932 = vld [vmem:[%s3929 + $0x10] sm:$0xff]
      %v3933 = vld [vmem:[%s3929 + $0x18] sm:$0xff]
      %v3934 = vld [vmem:[%s3929 + $0x20] sm:$0xff]
      %v3935 = vld [vmem:[%s3929 + $0x28] sm:$0xff]
      %v3936 = vld [vmem:[%s3929 + $0x30] sm:$0xff]
      %v3937 = vld [vmem:[%s3929 + $0x38] sm:$0xff]
      %v3938 = vld [vmem:[%s3929 + $0x40] sm:$0xff]
      %v3939 = vld [vmem:[%s3929 + $0x48] sm:$0xff]
      %v3940 = vld [vmem:[%s3929 + $0x50] sm:$0xff]
      %v3941 = vld [vmem:[%s3929 + $0x58] sm:$0xff]
      %v3942 = vld [vmem:[%s3929 + $0x60] sm:$0xff]
      %v3943 = vld [vmem:[%s3929 + $0x68] sm:$0xff]
      %v3944 = vld [vmem:[%s3929 + $0x70] sm:$0xff]
      %v3945 = vld [vmem:[%s3929 + $0x78] sm:$0xff]
      %v3946 = vld [vmem:[%s3929 + $0x80] sm:$0xff]
      %v3947 = vld [vmem:[%s3929 + $0x88] sm:$0xff]
      %v3948 = vld [vmem:[%s3929 + $0x90] sm:$0xff]
      %v3949 = vld [vmem:[%s3929 + $0x98] sm:$0xff]
      %v3950 = vld [vmem:[%s3929 + $0xa0] sm:$0xff]
      %v3951 = vld [vmem:[%s3929 + $0xa8] sm:$0xff]
      %v3952 = vld [vmem:[%s3929 + $0xb0] sm:$0xff]
      %v3953 = vld [vmem:[%s3929 + $0xb8] sm:$0xff]
      %s3954 = scalar_lea.vmem %s9, 5
      %v3955 = vld [vmem:[%s3954] sm:$0x1]
      %v3964 = vrot.slane %v3905, 7
      %v3965 = vrot.slane %v3906, 7
      %v3966 = vrot.slane %v3907, 7
      %v3967 = vrot.slane %v3908, 7
      %v3968 = vrot.slane %v3909, 7
      %v3969 = vrot.slane %v3910, 7
      %v3970 = vrot.slane %v3911, 7
      %v3971 = vrot.slane %v3912, 7
      %v3980 = vsel %vm1675, 0.0, %v3964
      %v3981 = vsel %vm1675, 0.0, %v3965
      %v3982 = vsel %vm1675, 0.0, %v3966
      %v3983 = vsel %vm1675, 0.0, %v3967
      %v3984 = vsel %vm1675, 0.0, %v3968
      %v3985 = vsel %vm1675, 0.0, %v3969
      %v3986 = vsel %vm1675, 0.0, %v3970
      %v3987 = vsel %vm1675, 0.0, %v3971
      %3996 = vrot.lane.b32.xlu0 %v3897, 64
      %v3997 = vpop.permute.xlu0 %3996
      %3998 = vrot.lane.b32.xlu0 %v3898, 64
      %v3999 = vpop.permute.xlu0 %3998
      %4000 = vrot.lane.b32.xlu0 %v3899, 64
      %v4001 = vpop.permute.xlu0 %4000
      %4002 = vrot.lane.b32.xlu0 %v3900, 64
      %v4003 = vpop.permute.xlu0 %4002
      %4004 = vrot.lane.b32.xlu0 %v3901, 64
      %v4005 = vpop.permute.xlu0 %4004
      %4006 = vrot.lane.b32.xlu0 %v3902, 64
      %v4007 = vpop.permute.xlu0 %4006
      %4008 = vrot.lane.b32.xlu0 %v3903, 64
      %v4009 = vpop.permute.xlu0 %4008
      %4010 = vrot.lane.b32.xlu0 %v3904, 64
      %v4011 = vpop.permute.xlu0 %4010
      %v4020 = vsel %vm1170, %v3980, %v3997
      %v4021 = vsel %vm1170, %v3981, %v3999
      %v4022 = vsel %vm1170, %v3982, %v4001
      %v4023 = vsel %vm1170, %v3983, %v4003
      %v4024 = vsel %vm1170, %v3984, %v4005
      %v4025 = vsel %vm1170, %v3985, %v4007
      %v4026 = vsel %vm1170, %v3986, %v4009
      %v4027 = vsel %vm1170, %v3987, %v4011
      %v4028 = vrot.slane %v3897, 1
      %v4029 = vrot.slane %v3898, 1
      %v4030 = vrot.slane %v3899, 1
      %v4031 = vrot.slane %v3900, 1
      %v4032 = vrot.slane %v3901, 1
      %v4033 = vrot.slane %v3902, 1
      %v4034 = vrot.slane %v3903, 1
      %v4035 = vrot.slane %v3904, 1
      %v4044 = vsel %vm393, %v4028, 0.0
      %v4045 = vsel %vm393, %v4029, 0.0
      %v4046 = vsel %vm393, %v4030, 0.0
      %v4047 = vsel %vm393, %v4031, 0.0
      %v4048 = vsel %vm393, %v4032, 0.0
      %v4049 = vsel %vm393, %v4033, 0.0
      %v4050 = vsel %vm393, %v4034, 0.0
      %v4051 = vsel %vm393, %v4035, 0.0
      %4052 = vrot.lane.b32.xlu0 %v3905, 64
      %v4053 = vpop.permute.xlu0 %4052
      %4054 = vrot.lane.b32.xlu0 %v3906, 64
      %v4055 = vpop.permute.xlu0 %4054
      %4056 = vrot.lane.b32.xlu0 %v3907, 64
      %v4057 = vpop.permute.xlu0 %4056
      %4058 = vrot.lane.b32.xlu0 %v3908, 64
      %v4059 = vpop.permute.xlu0 %4058
      %4060 = vrot.lane.b32.xlu0 %v3909, 64
      %v4061 = vpop.permute.xlu0 %4060
      %4062 = vrot.lane.b32.xlu0 %v3910, 64
      %v4063 = vpop.permute.xlu0 %4062
      %4064 = vrot.lane.b32.xlu0 %v3911, 64
      %v4065 = vpop.permute.xlu0 %4064
      %4066 = vrot.lane.b32.xlu0 %v3912, 64
      %v4067 = vpop.permute.xlu0 %4066
      %v4076 = vsel %vm1170, %v3897, %v4053
      %v4077 = vsel %vm1170, %v3898, %v4055
      %v4078 = vsel %vm1170, %v3899, %v4057
      %v4079 = vsel %vm1170, %v3900, %v4059
      %v4080 = vsel %vm1170, %v3901, %v4061
      %v4081 = vsel %vm1170, %v3902, %v4063
      %v4082 = vsel %vm1170, %v3903, %v4065
      %v4083 = vsel %vm1170, %v3904, %v4067
      %v4092 = vrot.slane %v3921, 7
      %v4093 = vrot.slane %v3922, 7
      %v4094 = vrot.slane %v3923, 7
      %v4095 = vrot.slane %v3924, 7
      %v4096 = vrot.slane %v3925, 7
      %v4097 = vrot.slane %v3926, 7
      %v4098 = vrot.slane %v3927, 7
      %v4099 = vrot.slane %v3928, 7
      %v4108 = vsel %vm1675, 0.0, %v4092
      %v4109 = vsel %vm1675, 0.0, %v4093
      %v4110 = vsel %vm1675, 0.0, %v4094
      %v4111 = vsel %vm1675, 0.0, %v4095
      %v4112 = vsel %vm1675, 0.0, %v4096
      %v4113 = vsel %vm1675, 0.0, %v4097
      %v4114 = vsel %vm1675, 0.0, %v4098
      %v4115 = vsel %vm1675, 0.0, %v4099
      %4124 = vrot.lane.b32.xlu0 %v3913, 64
      %v4125 = vpop.permute.xlu0 %4124
      %4126 = vrot.lane.b32.xlu0 %v3914, 64
      %v4127 = vpop.permute.xlu0 %4126
      %4128 = vrot.lane.b32.xlu0 %v3915, 64
      %v4129 = vpop.permute.xlu0 %4128
      %4130 = vrot.lane.b32.xlu0 %v3916, 64
      %v4131 = vpop.permute.xlu0 %4130
      %4132 = vrot.lane.b32.xlu0 %v3917, 64
      %v4133 = vpop.permute.xlu0 %4132
      %4134 = vrot.lane.b32.xlu0 %v3918, 64
      %v4135 = vpop.permute.xlu0 %4134
      %4136 = vrot.lane.b32.xlu0 %v3919, 64
      %v4137 = vpop.permute.xlu0 %4136
      %4138 = vrot.lane.b32.xlu0 %v3920, 64
      %v4139 = vpop.permute.xlu0 %4138
      %v4148 = vsel %vm1170, %v4108, %v4125
      %v4149 = vsel %vm1170, %v4109, %v4127
      %v4150 = vsel %vm1170, %v4110, %v4129
      %v4151 = vsel %vm1170, %v4111, %v4131
      %v4152 = vsel %vm1170, %v4112, %v4133
      %v4153 = vsel %vm1170, %v4113, %v4135
      %v4154 = vsel %vm1170, %v4114, %v4137
      %v4155 = vsel %vm1170, %v4115, %v4139
      %v4156 = vrot.slane %v3913, 1
      %v4157 = vrot.slane %v3914, 1
      %v4158 = vrot.slane %v3915, 1
      %v4159 = vrot.slane %v3916, 1
      %v4160 = vrot.slane %v3917, 1
      %v4161 = vrot.slane %v3918, 1
      %v4162 = vrot.slane %v3919, 1
      %v4163 = vrot.slane %v3920, 1
      %v4172 = vsel %vm393, %v4156, 0.0
      %v4173 = vsel %vm393, %v4157, 0.0
      %v4174 = vsel %vm393, %v4158, 0.0
      %v4175 = vsel %vm393, %v4159, 0.0
      %v4176 = vsel %vm393, %v4160, 0.0
      %v4177 = vsel %vm393, %v4161, 0.0
      %v4178 = vsel %vm393, %v4162, 0.0
      %v4179 = vsel %vm393, %v4163, 0.0
      %4180 = vrot.lane.b32.xlu0 %v3921, 64
      %v4181 = vpop.permute.xlu0 %4180
      %4182 = vrot.lane.b32.xlu0 %v3922, 64
      %v4183 = vpop.permute.xlu0 %4182
      %4184 = vrot.lane.b32.xlu0 %v3923, 64
      %v4185 = vpop.permute.xlu0 %4184
      %4186 = vrot.lane.b32.xlu0 %v3924, 64
      %v4187 = vpop.permute.xlu0 %4186
      %4188 = vrot.lane.b32.xlu0 %v3925, 64
      %v4189 = vpop.permute.xlu0 %4188
      %4190 = vrot.lane.b32.xlu0 %v3926, 64
      %v4191 = vpop.permute.xlu0 %4190
      %4192 = vrot.lane.b32.xlu0 %v3927, 64
      %v4193 = vpop.permute.xlu0 %4192
      %4194 = vrot.lane.b32.xlu0 %v3928, 64
      %v4195 = vpop.permute.xlu0 %4194
      %v4204 = vsel %vm1170, %v3913, %v4181
      %v4205 = vsel %vm1170, %v3914, %v4183
      %v4206 = vsel %vm1170, %v3915, %v4185
      %v4207 = vsel %vm1170, %v3916, %v4187
      %v4208 = vsel %vm1170, %v3917, %v4189
      %v4209 = vsel %vm1170, %v3918, %v4191
      %v4210 = vsel %vm1170, %v3919, %v4193
      %v4211 = vsel %vm1170, %v3920, %v4195
      %v4213 = vlaneseq
      %v4214 = vshrl.u32 %v4213, 7
      %v4215 = vsub.s32 0, %v4214
      %v4216 = vrot.slane %v3955, %v4215
      %v4218 = vsel %vm1170, %v3905, 0
      %v4220 = vsel %vm1170, %v3906, 0
      %v4222 = vsel %vm1170, %v3907, 0
      %v4224 = vsel %vm1170, %v3908, 0
      %v4226 = vsel %vm1170, %v3909, 0
      %v4228 = vsel %vm1170, %v3910, 0
      %v4230 = vsel %vm1170, %v3911, 0
      %v4232 = vsel %vm1170, %v3912, 0
      %v4235 = vsel %vm1170, %v4044, 0
      %v4238 = vsel %vm1170, %v4045, 0
      %v4241 = vsel %vm1170, %v4046, 0
      %v4244 = vsel %vm1170, %v4047, 0
      %v4247 = vsel %vm1170, %v4048, 0
      %v4250 = vsel %vm1170, %v4049, 0
      %v4253 = vsel %vm1170, %v4050, 0
      %v4256 = vsel %vm1170, %v4051, 0
      %v4258 = vsel %vm1170, %v3921, 0
      %v4260 = vsel %vm1170, %v3922, 0
      %v4262 = vsel %vm1170, %v3923, 0
      %v4264 = vsel %vm1170, %v3924, 0
      %v4266 = vsel %vm1170, %v3925, 0
      %v4268 = vsel %vm1170, %v3926, 0
      %v4270 = vsel %vm1170, %v3927, 0
      %v4272 = vsel %vm1170, %v3928, 0
      %v4275 = vsel %vm1170, %v4172, 0
      %v4278 = vsel %vm1170, %v4173, 0
      %v4281 = vsel %vm1170, %v4174, 0
      %v4284 = vsel %vm1170, %v4175, 0
      %v4287 = vsel %vm1170, %v4176, 0
      %v4290 = vsel %vm1170, %v4177, 0
      %v4293 = vsel %vm1170, %v4178, 0
      %v4296 = vsel %vm1170, %v4179, 0
      %4298 = vmatprep.subr.mxu0 0.0
      %4299 = vmatpush1.msra.mxu0 %v3930
      %4300 = vmatprep.subr.mxu0 0.0
      %4301 = vmatpush1.msra.mxu0 %v3931
      %4302 = vmatprep.subr.mxu0 0.0
      %4303 = vmatpush1.msra.mxu0 %v3932
      %4304 = vmatprep.subr.mxu0 0.0
      %4305 = vmatpush1.msra.mxu0 %v3933
      %4306 = vmatprep.subr.mxu0 0.0
      %4307 = vmatpush1.msra.mxu0 %v3934
      %4308 = vmatprep.subr.mxu0 0.0
      %4309 = vmatpush1.msra.mxu0 %v3935
      %4310 = vmatprep.subr.mxu0 0.0
      %4311 = vmatpush1.msra.mxu0 %v3936
      %4312 = vmatprep.subr.mxu0 0.0
      %4313 = vmatpush1.msra.mxu0 %v3937
      %4314 = vmatprep.subr.mxu0 0.0
      %4315 = vmatpush1.msra.mxu0 %v3938
      %4316 = vmatprep.subr.mxu0 0.0
      %4317 = vmatpush1.msra.mxu0 %v3939
      %4318 = vmatprep.subr.mxu0 0.0
      %4319 = vmatpush1.msra.mxu0 %v3940
      %4320 = vmatprep.subr.mxu0 0.0
      %4321 = vmatpush1.msra.mxu0 %v3941
      %4322 = vmatprep.subr.mxu0 0.0
      %4323 = vmatpush1.msra.mxu0 %v3942
      %4324 = vmatprep.subr.mxu0 0.0
      %4325 = vmatpush1.msra.mxu0 %v3943
      %4326 = vmatprep.subr.mxu0 0.0
      %4327 = vmatpush1.msra.mxu0 %v3944
      %4328 = vmatprep.subr.mxu0 0.0
      %4329 = vmatpush1.msra.mxu0 %v3945
      %4330 = vmatprep.subr.mxu0 0.0
      %4331 = vmatpush1.msra.mxu0 %v3946
      %4332 = vmatprep.subr.mxu0 0.0
      %4333 = vmatpush1.msra.mxu0 %v3947
      %4334 = vmatprep.subr.mxu0 0.0
      %4335 = vmatpush1.msra.mxu0 %v3948
      %4336 = vmatprep.subr.mxu0 0.0
      %4337 = vmatpush1.msra.mxu0 %v3949
      %4338 = vmatprep.subr.mxu0 0.0
      %4339 = vmatpush1.msra.mxu0 %v3950
      %4340 = vmatprep.subr.mxu0 0.0
      %4341 = vmatpush1.msra.mxu0 %v3951
      %4342 = vmatprep.subr.mxu0 0.0
      %4343 = vmatpush1.msra.mxu0 %v3952
      %4344 = vmatprep.subr.mxu0 0.0
      %4345 = vmatpush1.msra.mxu0 %v3953
      %4346 = vmatprep.subr.mxu0 0.0
      %4347 = vmatpush1.msra.mxu0 0.0
      %4348 = vmatprep.subr.mxu0 0.0
      %4349 = vmatpush1.msra.mxu0 0.0
      %4350 = vmatprep.subr.mxu0 0.0
      %4351 = vmatpush1.msra.mxu0 0.0
      %4352 = vmatprep.subr.mxu0 0.0
      %4353 = vmatpush1.msra.mxu0 0.0
      %4354 = vmatprep.subr.mxu0 0.0
      %4355 = vmatpush1.msra.mxu0 0.0
      %4356 = vmatprep.subr.mxu0 0.0
      %4357 = vmatpush1.msra.mxu0 0.0
      %4358 = vmatprep.subr.mxu0 0.0
      %4359 = vmatpush1.msra.mxu0 0.0
      %4360 = vmatprep.subr.mxu0 0.0
      %4361 = vmatpush1.msra.mxu0 0.0
      %4362 = vmatprep.mubr.f32.mxu0 %v4218
      %4363 = vmatmul.mubr.f32.gmra.mrb[0].mxu0 %v4020
      %v4364 = vpop.f32.mrb[0].mxu0
      %v4365 = vadd.f32 %v4216, %v4364
      %v4366 = vpop.f32.mrb[0].mxu0
      %4367 = vmatprep.mubr.f32.mxu0 %v4220
      %4368 = vmatmul.mubr.f32.gmra.mrb[0].mxu0 %v4021
      %v4369 = vpop.f32.mrb[0].mxu0
      %v4370 = vadd.f32 %v4216, %v4369
      %v4371 = vpop.f32.mrb[0].mxu0
      %4372 = vmatprep.mubr.f32.mxu0 %v4222
      %4373 = vmatmul.mubr.f32.gmra.mrb[0].mxu0 %v4022
      %v4374 = vpop.f32.mrb[0].mxu0
      %v4375 = vadd.f32 %v4216, %v4374
      %v4376 = vpop.f32.mrb[0].mxu0
      %4377 = vmatprep.mubr.f32.mxu0 %v4224
      %4378 = vmatmul.mubr.f32.gmra.mrb[0].mxu0 %v4023
      %v4379 = vpop.f32.mrb[0].mxu0
      %v4380 = vadd.f32 %v4216, %v4379
      %v4381 = vpop.f32.mrb[0].mxu0
      %4382 = vmatprep.mubr.f32.mxu0 %v4226
      %4383 = vmatmul.mubr.f32.gmra.mrb[0].mxu0 %v4024
      %v4384 = vpop.f32.mrb[0].mxu0
      %v4385 = vadd.f32 %v4216, %v4384
      %v4386 = vpop.f32.mrb[0].mxu0
      %4387 = vmatprep.mubr.f32.mxu0 %v4228
      %4388 = vmatmul.mubr.f32.gmra.mrb[0].mxu0 %v4025
      %v4389 = vpop.f32.mrb[0].mxu0
      %v4390 = vadd.f32 %v4216, %v4389
      %v4391 = vpop.f32.mrb[0].mxu0
      %4392 = vmatprep.mubr.f32.mxu0 %v4230
      %4393 = vmatmul.mubr.f32.gmra.mrb[0].mxu0 %v4026
      %v4394 = vpop.f32.mrb[0].mxu0
      %v4395 = vadd.f32 %v4216, %v4394
      %v4396 = vpop.f32.mrb[0].mxu0
      %4397 = vmatprep.mubr.f32.mxu0 %v4232
      %4398 = vmatmul.mubr.f32.gmra.mrb[0].mxu0 %v4027
      %v4399 = vpop.f32.mrb[0].mxu0
      %v4400 = vadd.f32 %v4216, %v4399
      %v4401 = vpop.f32.mrb[0].mxu0
      %4402 = vmatprep.mubr.f32.mxu0 %v4235
      %4403 = vmatmul.mubr.f32.gmra.mrb[0].mxu0 %v4076
      %v4404 = vpop.f32.mrb[0].mxu0
      %v4405 = vadd.f32 %v4216, %v4404
      %v4406 = vpop.f32.mrb[0].mxu0
      %4407 = vmatprep.mubr.f32.mxu0 %v4238
      %4408 = vmatmul.mubr.f32.gmra.mrb[0].mxu0 %v4077
      %v4409 = vpop.f32.mrb[0].mxu0
      %v4410 = vadd.f32 %v4216, %v4409
      %v4411 = vpop.f32.mrb[0].mxu0
      %4412 = vmatprep.mubr.f32.mxu0 %v4241
      %4413 = vmatmul.mubr.f32.gmra.mrb[0].mxu0 %v4078
      %v4414 = vpop.f32.mrb[0].mxu0
      %v4415 = vadd.f32 %v4216, %v4414
      %v4416 = vpop.f32.mrb[0].mxu0
      %4417 = vmatprep.mubr.f32.mxu0 %v4244
      %4418 = vmatmul.mubr.f32.gmra.mrb[0].mxu0 %v4079
      %v4419 = vpop.f32.mrb[0].mxu0
      %v4420 = vadd.f32 %v4216, %v4419
      %v4421 = vpop.f32.mrb[0].mxu0
      %4422 = vmatprep.mubr.f32.mxu0 %v4247
      %4423 = vmatmul.mubr.f32.gmra.mrb[0].mxu0 %v4080
      %v4424 = vpop.f32.mrb[0].mxu0
      %v4425 = vadd.f32 %v4216, %v4424
      %v4426 = vpop.f32.mrb[0].mxu0
      %4427 = vmatprep.mubr.f32.mxu0 %v4250
      %4428 = vmatmul.mubr.f32.gmra.mrb[0].mxu0 %v4081
      %v4429 = vpop.f32.mrb[0].mxu0
      %v4430 = vadd.f32 %v4216, %v4429
      %v4431 = vpop.f32.mrb[0].mxu0
      %4432 = vmatprep.mubr.f32.mxu0 %v4253
      %4433 = vmatmul.mubr.f32.gmra.mrb[0].mxu0 %v4082
      %v4434 = vpop.f32.mrb[0].mxu0
      %v4435 = vadd.f32 %v4216, %v4434
      %v4436 = vpop.f32.mrb[0].mxu0
      %4437 = vmatprep.mubr.f32.mxu0 %v4256
      %4438 = vmatmul.mubr.f32.gmra.mrb[0].mxu0 %v4083
      %v4439 = vpop.f32.mrb[0].mxu0
      %v4440 = vadd.f32 %v4216, %v4439
      %v4441 = vpop.f32.mrb[0].mxu0
      %4442 = vmatprep.mubr.f32.mxu0 %v4258
      %4443 = vmatmul.mubr.f32.gmra.mrb[0].mxu0 %v4148
      %v4444 = vpop.f32.mrb[0].mxu0
      %v4445 = vadd.f32 %v4216, %v4444
      %v4446 = vpop.f32.mrb[0].mxu0
      %4447 = vmatprep.mubr.f32.mxu0 %v4260
      %4448 = vmatmul.mubr.f32.gmra.mrb[0].mxu0 %v4149
      %v4449 = vpop.f32.mrb[0].mxu0
      %v4450 = vadd.f32 %v4216, %v4449
      %v4451 = vpop.f32.mrb[0].mxu0
      %4452 = vmatprep.mubr.f32.mxu0 %v4262
      %4453 = vmatmul.mubr.f32.gmra.mrb[0].mxu0 %v4150
      %v4454 = vpop.f32.mrb[0].mxu0
      %v4455 = vadd.f32 %v4216, %v4454
      %v4456 = vpop.f32.mrb[0].mxu0
      %4457 = vmatprep.mubr.f32.mxu0 %v4264
      %4458 = vmatmul.mubr.f32.gmra.mrb[0].mxu0 %v4151
      %v4459 = vpop.f32.mrb[0].mxu0
      %v4460 = vadd.f32 %v4216, %v4459
      %v4461 = vpop.f32.mrb[0].mxu0
      %4462 = vmatprep.mubr.f32.mxu0 %v4266
      %4463 = vmatmul.mubr.f32.gmra.mrb[0].mxu0 %v4152
      %v4464 = vpop.f32.mrb[0].mxu0
      %v4465 = vadd.f32 %v4216, %v4464
      %v4466 = vpop.f32.mrb[0].mxu0
      %4467 = vmatprep.mubr.f32.mxu0 %v4268
      %4468 = vmatmul.mubr.f32.gmra.mrb[0].mxu0 %v4153
      %v4469 = vpop.f32.mrb[0].mxu0
      %v4470 = vadd.f32 %v4216, %v4469
      %v4471 = vpop.f32.mrb[0].mxu0
      %4472 = vmatprep.mubr.f32.mxu0 %v4270
      %4473 = vmatmul.mubr.f32.gmra.mrb[0].mxu0 %v4154
      %v4474 = vpop.f32.mrb[0].mxu0
      %v4475 = vadd.f32 %v4216, %v4474
      %v4476 = vpop.f32.mrb[0].mxu0
      %4477 = vmatprep.mubr.f32.mxu0 %v4272
      %4478 = vmatmul.mubr.f32.gmra.mrb[0].mxu0 %v4155
      %v4479 = vpop.f32.mrb[0].mxu0
      %v4480 = vadd.f32 %v4216, %v4479
      %v4481 = vpop.f32.mrb[0].mxu0
      %4482 = vmatprep.mubr.f32.mxu0 %v4275
      %4483 = vmatmul.mubr.f32.gmra.mrb[0].mxu0 %v4204
      %v4484 = vpop.f32.mrb[0].mxu0
      %v4485 = vadd.f32 %v4216, %v4484
      %v4486 = vpop.f32.mrb[0].mxu0
      %4487 = vmatprep.mubr.f32.mxu0 %v4278
      %4488 = vmatmul.mubr.f32.gmra.mrb[0].mxu0 %v4205
      %v4489 = vpop.f32.mrb[0].mxu0
      %v4490 = vadd.f32 %v4216, %v4489
      %v4491 = vpop.f32.mrb[0].mxu0
      %4492 = vmatprep.mubr.f32.mxu0 %v4281
      %4493 = vmatmul.mubr.f32.gmra.mrb[0].mxu0 %v4206
      %v4494 = vpop.f32.mrb[0].mxu0
      %v4495 = vadd.f32 %v4216, %v4494
      %v4496 = vpop.f32.mrb[0].mxu0
      %4497 = vmatprep.mubr.f32.mxu0 %v4284
      %4498 = vmatmul.mubr.f32.gmra.mrb[0].mxu0 %v4207
      %v4499 = vpop.f32.mrb[0].mxu0
      %v4500 = vadd.f32 %v4216, %v4499
      %v4501 = vpop.f32.mrb[0].mxu0
      %4502 = vmatprep.mubr.f32.mxu0 %v4287
      %4503 = vmatmul.mubr.f32.gmra.mrb[0].mxu0 %v4208
      %v4504 = vpop.f32.mrb[0].mxu0
      %v4505 = vadd.f32 %v4216, %v4504
      %v4506 = vpop.f32.mrb[0].mxu0
      %4507 = vmatprep.mubr.f32.mxu0 %v4290
      %4508 = vmatmul.mubr.f32.gmra.mrb[0].mxu0 %v4209
      %v4509 = vpop.f32.mrb[0].mxu0
      %v4510 = vadd.f32 %v4216, %v4509
      %v4511 = vpop.f32.mrb[0].mxu0
      %4512 = vmatprep.mubr.f32.mxu0 %v4293
      %4513 = vmatmul.mubr.f32.gmra.mrb[0].mxu0 %v4210
      %v4514 = vpop.f32.mrb[0].mxu0
      %v4515 = vadd.f32 %v4216, %v4514
      %v4516 = vpop.f32.mrb[0].mxu0
      %4517 = vmatprep.mubr.f32.mxu0 %v4296
      %4518 = vmatmul.mubr.f32.gmra.mrb[0].mxu0 %v4211
      %v4519 = vpop.f32.mrb[0].mxu0
      %v4520 = vadd.f32 %v4216, %v4519
      %v4521 = vpop.f32.mrb[0].mxu0
      %4522 = vdwg.mxu0
      %v4523 = vmax.f32 %v4365, 0.0
      %v4524 = vmax.f32 %v4370, 0.0
      %v4525 = vmax.f32 %v4375, 0.0
      %v4526 = vmax.f32 %v4380, 0.0
      %v4527 = vmax.f32 %v4385, 0.0
      %v4528 = vmax.f32 %v4390, 0.0
      %v4529 = vmax.f32 %v4395, 0.0
      %v4530 = vmax.f32 %v4400, 0.0
      %v4531 = vmax.f32 %v4405, 0.0
      %v4532 = vmax.f32 %v4410, 0.0
      %v4533 = vmax.f32 %v4415, 0.0
      %v4534 = vmax.f32 %v4420, 0.0
      %v4535 = vmax.f32 %v4425, 0.0
      %v4536 = vmax.f32 %v4430, 0.0
      %v4537 = vmax.f32 %v4435, 0.0
      %v4538 = vmax.f32 %v4440, 0.0
      %v4539 = vmax.f32 %v4445, 0.0
      %v4540 = vmax.f32 %v4450, 0.0
      %v4541 = vmax.f32 %v4455, 0.0
      %v4542 = vmax.f32 %v4460, 0.0
      %v4543 = vmax.f32 %v4465, 0.0
      %v4544 = vmax.f32 %v4470, 0.0
      %v4545 = vmax.f32 %v4475, 0.0
      %v4546 = vmax.f32 %v4480, 0.0
      %v4547 = vmax.f32 %v4485, 0.0
      %v4548 = vmax.f32 %v4490, 0.0
      %v4549 = vmax.f32 %v4495, 0.0
      %v4550 = vmax.f32 %v4500, 0.0
      %v4551 = vmax.f32 %v4505, 0.0
      %v4552 = vmax.f32 %v4510, 0.0
      %v4553 = vmax.f32 %v4515, 0.0
      %v4554 = vmax.f32 %v4520, 0.0
      %s4555 = scalar_lea.vmem %s8, 1152
      %v4556 = vld [vmem:[%s4555] sm:$0xff]
      %v4557 = vld [vmem:[%s4555 + $0x8] sm:$0xff]
      %v4558 = vld [vmem:[%s4555 + $0x10] sm:$0xff]
      %v4559 = vld [vmem:[%s4555 + $0x18] sm:$0xff]
      %v4560 = vld [vmem:[%s4555 + $0x20] sm:$0xff]
      %v4561 = vld [vmem:[%s4555 + $0x28] sm:$0xff]
      %v4562 = vld [vmem:[%s4555 + $0x30] sm:$0xff]
      %v4563 = vld [vmem:[%s4555 + $0x38] sm:$0xff]
      %v4564 = vld [vmem:[%s4555 + $0x40] sm:$0xff]
      %v4565 = vld [vmem:[%s4555 + $0x48] sm:$0xff]
      %v4566 = vld [vmem:[%s4555 + $0x50] sm:$0xff]
      %v4567 = vld [vmem:[%s4555 + $0x58] sm:$0xff]
      %v4568 = vld [vmem:[%s4555 + $0x60] sm:$0xff]
      %v4569 = vld [vmem:[%s4555 + $0x68] sm:$0xff]
      %v4570 = vld [vmem:[%s4555 + $0x70] sm:$0xff]
      %v4571 = vld [vmem:[%s4555 + $0x78] sm:$0xff]
      %v4572 = vld [vmem:[%s4555 + $0x80] sm:$0xff]
      %v4573 = vld [vmem:[%s4555 + $0x88] sm:$0xff]
      %v4574 = vld [vmem:[%s4555 + $0x90] sm:$0xff]
      %v4575 = vld [vmem:[%s4555 + $0x98] sm:$0xff]
      %v4576 = vld [vmem:[%s4555 + $0xa0] sm:$0xff]
      %v4577 = vld [vmem:[%s4555 + $0xa8] sm:$0xff]
      %v4578 = vld [vmem:[%s4555 + $0xb0] sm:$0xff]
      %v4579 = vld [vmem:[%s4555 + $0xb8] sm:$0xff]
      %s4580 = scalar_lea.vmem %s9, 6
      %v4581 = vld [vmem:[%s4580] sm:$0x1]
      %4590 = vrot.lane.b32.xlu0 %v4523, 64
      %v4591 = vpop.permute.xlu0 %4590
      %4592 = vrot.lane.b32.xlu0 %v4524, 64
      %v4593 = vpop.permute.xlu0 %4592
      %4594 = vrot.lane.b32.xlu0 %v4525, 64
      %v4595 = vpop.permute.xlu0 %4594
      %4596 = vrot.lane.b32.xlu0 %v4526, 64
      %v4597 = vpop.permute.xlu0 %4596
      %4598 = vrot.lane.b32.xlu0 %v4527, 64
      %v4599 = vpop.permute.xlu0 %4598
      %4600 = vrot.lane.b32.xlu0 %v4528, 64
      %v4601 = vpop.permute.xlu0 %4600
      %4602 = vrot.lane.b32.xlu0 %v4529, 64
      %v4603 = vpop.permute.xlu0 %4602
      %4604 = vrot.lane.b32.xlu0 %v4530, 64
      %v4605 = vpop.permute.xlu0 %4604
      %v4614 = vsel %vm1170, 0.0, %v4591
      %v4615 = vsel %vm1170, %v4539, %v4593
      %v4616 = vsel %vm1170, %v4540, %v4595
      %v4617 = vsel %vm1170, %v4541, %v4597
      %v4618 = vsel %vm1170, %v4542, %v4599
      %v4619 = vsel %vm1170, %v4543, %v4601
      %v4620 = vsel %vm1170, %v4544, %v4603
      %v4621 = vsel %vm1170, %v4545, %v4605
      %4630 = vrot.lane.b32.xlu0 %v4539, 64
      %v4631 = vpop.permute.xlu0 %4630
      %4632 = vrot.lane.b32.xlu0 %v4540, 64
      %v4633 = vpop.permute.xlu0 %4632
      %4634 = vrot.lane.b32.xlu0 %v4541, 64
      %v4635 = vpop.permute.xlu0 %4634
      %4636 = vrot.lane.b32.xlu0 %v4542, 64
      %v4637 = vpop.permute.xlu0 %4636
      %4638 = vrot.lane.b32.xlu0 %v4543, 64
      %v4639 = vpop.permute.xlu0 %4638
      %4640 = vrot.lane.b32.xlu0 %v4544, 64
      %v4641 = vpop.permute.xlu0 %4640
      %4642 = vrot.lane.b32.xlu0 %v4545, 64
      %v4643 = vpop.permute.xlu0 %4642
      %4644 = vrot.lane.b32.xlu0 %v4546, 64
      %v4645 = vpop.permute.xlu0 %4644
      %v4654 = vsel %vm1170, %v4523, %v4631
      %v4655 = vsel %vm1170, %v4524, %v4633
      %v4656 = vsel %vm1170, %v4525, %v4635
      %v4657 = vsel %vm1170, %v4526, %v4637
      %v4658 = vsel %vm1170, %v4527, %v4639
      %v4659 = vsel %vm1170, %v4528, %v4641
      %v4660 = vsel %vm1170, %v4529, %v4643
      %v4661 = vsel %vm1170, %v4530, %v4645
      %4670 = vrot.lane.b32.xlu0 %v4531, 64
      %v4671 = vpop.permute.xlu0 %4670
      %4672 = vrot.lane.b32.xlu0 %v4532, 64
      %v4673 = vpop.permute.xlu0 %4672
      %4674 = vrot.lane.b32.xlu0 %v4533, 64
      %v4675 = vpop.permute.xlu0 %4674
      %4676 = vrot.lane.b32.xlu0 %v4534, 64
      %v4677 = vpop.permute.xlu0 %4676
      %4678 = vrot.lane.b32.xlu0 %v4535, 64
      %v4679 = vpop.permute.xlu0 %4678
      %4680 = vrot.lane.b32.xlu0 %v4536, 64
      %v4681 = vpop.permute.xlu0 %4680
      %4682 = vrot.lane.b32.xlu0 %v4537, 64
      %v4683 = vpop.permute.xlu0 %4682
      %4684 = vrot.lane.b32.xlu0 %v4538, 64
      %v4685 = vpop.permute.xlu0 %4684
      %v4694 = vsel %vm1170, 0.0, %v4671
      %v4695 = vsel %vm1170, %v4547, %v4673
      %v4696 = vsel %vm1170, %v4548, %v4675
      %v4697 = vsel %vm1170, %v4549, %v4677
      %v4698 = vsel %vm1170, %v4550, %v4679
      %v4699 = vsel %vm1170, %v4551, %v4681
      %v4700 = vsel %vm1170, %v4552, %v4683
      %v4701 = vsel %vm1170, %v4553, %v4685
      %4710 = vrot.lane.b32.xlu0 %v4547, 64
      %v4711 = vpop.permute.xlu0 %4710
      %4712 = vrot.lane.b32.xlu0 %v4548, 64
      %v4713 = vpop.permute.xlu0 %4712
      %4714 = vrot.lane.b32.xlu0 %v4549, 64
      %v4715 = vpop.permute.xlu0 %4714
      %4716 = vrot.lane.b32.xlu0 %v4550, 64
      %v4717 = vpop.permute.xlu0 %4716
      %4718 = vrot.lane.b32.xlu0 %v4551, 64
      %v4719 = vpop.permute.xlu0 %4718
      %4720 = vrot.lane.b32.xlu0 %v4552, 64
      %v4721 = vpop.permute.xlu0 %4720
      %4722 = vrot.lane.b32.xlu0 %v4553, 64
      %v4723 = vpop.permute.xlu0 %4722
      %4724 = vrot.lane.b32.xlu0 %v4554, 64
      %v4725 = vpop.permute.xlu0 %4724
      %v4734 = vsel %vm1170, %v4531, %v4711
      %v4735 = vsel %vm1170, %v4532, %v4713
      %v4736 = vsel %vm1170, %v4533, %v4715
      %v4737 = vsel %vm1170, %v4534, %v4717
      %v4738 = vsel %vm1170, %v4535, %v4719
      %v4739 = vsel %vm1170, %v4536, %v4721
      %v4740 = vsel %vm1170, %v4537, %v4723
      %v4741 = vsel %vm1170, %v4538, %v4725
      %v4743 = vlaneseq
      %v4744 = vshrl.u32 %v4743, 7
      %v4745 = vsub.s32 0, %v4744
      %v4746 = vrot.slane %v4581, %v4745
      %v4748 = vsel %vm1170, %v4539, 0
      %v4750 = vsel %vm1170, %v4540, 0
      %v4752 = vsel %vm1170, %v4541, 0
      %v4754 = vsel %vm1170, %v4542, 0
      %v4756 = vsel %vm1170, %v4543, 0
      %v4758 = vsel %vm1170, %v4544, 0
      %v4760 = vsel %vm1170, %v4545, 0
      %v4762 = vsel %vm1170, %v4546, 0
      %v4764 = vsel %vm1170, %v4547, 0
      %v4766 = vsel %vm1170, %v4548, 0
      %v4768 = vsel %vm1170, %v4549, 0
      %v4770 = vsel %vm1170, %v4550, 0
      %v4772 = vsel %vm1170, %v4551, 0
      %v4774 = vsel %vm1170, %v4552, 0
      %v4776 = vsel %vm1170, %v4553, 0
      %v4778 = vsel %vm1170, %v4554, 0
      %v4780 = vsel %vm1170, %v4524, 0
      %v4782 = vsel %vm1170, %v4525, 0
      %v4784 = vsel %vm1170, %v4526, 0
      %v4786 = vsel %vm1170, %v4527, 0
      %v4788 = vsel %vm1170, %v4528, 0
      %v4790 = vsel %vm1170, %v4529, 0
      %v4792 = vsel %vm1170, %v4530, 0
      %v4794 = vsel %vm1170, %v4532, 0
      %v4796 = vsel %vm1170, %v4533, 0
      %v4798 = vsel %vm1170, %v4534, 0
      %v4800 = vsel %vm1170, %v4535, 0
      %v4802 = vsel %vm1170, %v4536, 0
      %v4804 = vsel %vm1170, %v4537, 0
      %v4806 = vsel %vm1170, %v4538, 0
      %4808 = vmatprep.subr.mxu0 0.0
      %4809 = vmatpush1.msra.mxu0 %v4556
      %4810 = vmatprep.subr.mxu0 0.0
      %4811 = vmatpush1.msra.mxu0 %v4557
      %4812 = vmatprep.subr.mxu0 0.0
      %4813 = vmatpush1.msra.mxu0 %v4558
      %4814 = vmatprep.subr.mxu0 0.0
      %4815 = vmatpush1.msra.mxu0 %v4559
      %4816 = vmatprep.subr.mxu0 0.0
      %4817 = vmatpush1.msra.mxu0 %v4560
      %4818 = vmatprep.subr.mxu0 0.0
      %4819 = vmatpush1.msra.mxu0 %v4561
      %4820 = vmatprep.subr.mxu0 0.0
      %4821 = vmatpush1.msra.mxu0 %v4562
      %4822 = vmatprep.subr.mxu0 0.0
      %4823 = vmatpush1.msra.mxu0 %v4563
      %4824 = vmatprep.subr.mxu0 0.0
      %4825 = vmatpush1.msra.mxu0 %v4564
      %4826 = vmatprep.subr.mxu0 0.0
      %4827 = vmatpush1.msra.mxu0 %v4565
      %4828 = vmatprep.subr.mxu0 0.0
      %4829 = vmatpush1.msra.mxu0 %v4566
      %4830 = vmatprep.subr.mxu0 0.0
      %4831 = vmatpush1.msra.mxu0 %v4567
      %4832 = vmatprep.subr.mxu0 0.0
      %4833 = vmatpush1.msra.mxu0 %v4568
      %4834 = vmatprep.subr.mxu0 0.0
      %4835 = vmatpush1.msra.mxu0 %v4569
      %4836 = vmatprep.subr.mxu0 0.0
      %4837 = vmatpush1.msra.mxu0 %v4570
      %4838 = vmatprep.subr.mxu0 0.0
      %4839 = vmatpush1.msra.mxu0 %v4571
      %4840 = vmatprep.subr.mxu0 0.0
      %4841 = vmatpush1.msra.mxu0 %v4572
      %4842 = vmatprep.subr.mxu0 0.0
      %4843 = vmatpush1.msra.mxu0 %v4573
      %4844 = vmatprep.subr.mxu0 0.0
      %4845 = vmatpush1.msra.mxu0 %v4574
      %4846 = vmatprep.subr.mxu0 0.0
      %4847 = vmatpush1.msra.mxu0 %v4575
      %4848 = vmatprep.subr.mxu0 0.0
      %4849 = vmatpush1.msra.mxu0 %v4576
      %4850 = vmatprep.subr.mxu0 0.0
      %4851 = vmatpush1.msra.mxu0 %v4577
      %4852 = vmatprep.subr.mxu0 0.0
      %4853 = vmatpush1.msra.mxu0 %v4578
      %4854 = vmatprep.subr.mxu0 0.0
      %4855 = vmatpush1.msra.mxu0 %v4579
      %4856 = vmatprep.subr.mxu0 0.0
      %4857 = vmatpush1.msra.mxu0 0.0
      %4858 = vmatprep.subr.mxu0 0.0
      %4859 = vmatpush1.msra.mxu0 0.0
      %4860 = vmatprep.subr.mxu0 0.0
      %4861 = vmatpush1.msra.mxu0 0.0
      %4862 = vmatprep.subr.mxu0 0.0
      %4863 = vmatpush1.msra.mxu0 0.0
      %4864 = vmatprep.subr.mxu0 0.0
      %4865 = vmatpush1.msra.mxu0 0.0
      %4866 = vmatprep.subr.mxu0 0.0
      %4867 = vmatpush1.msra.mxu0 0.0
      %4868 = vmatprep.subr.mxu0 0.0
      %4869 = vmatpush1.msra.mxu0 0.0
      %4870 = vmatprep.subr.mxu0 0.0
      %4871 = vmatpush1.msra.mxu0 0.0
      %4872 = vmatprep.mubr.f32.mxu0 %v4748
      %4873 = vmatmul.mubr.f32.gmra.mrb[0].mxu0 %v4614
      %v4874 = vpop.f32.mrb[0].mxu0
      %v4875 = vadd.f32 %v4746, %v4874
      %v4876 = vpop.f32.mrb[0].mxu0
      %4877 = vmatprep.mubr.f32.mxu0 %v4750
      %4878 = vmatmul.mubr.f32.gmra.mrb[0].mxu0 %v4615
      %v4879 = vpop.f32.mrb[0].mxu0
      %v4880 = vadd.f32 %v4746, %v4879
      %v4881 = vpop.f32.mrb[0].mxu0
      %4882 = vmatprep.mubr.f32.mxu0 %v4752
      %4883 = vmatmul.mubr.f32.gmra.mrb[0].mxu0 %v4616
      %v4884 = vpop.f32.mrb[0].mxu0
      %v4885 = vadd.f32 %v4746, %v4884
      %v4886 = vpop.f32.mrb[0].mxu0
      %4887 = vmatprep.mubr.f32.mxu0 %v4754
      %4888 = vmatmul.mubr.f32.gmra.mrb[0].mxu0 %v4617
      %v4889 = vpop.f32.mrb[0].mxu0
      %v4890 = vadd.f32 %v4746, %v4889
      %v4891 = vpop.f32.mrb[0].mxu0
      %4892 = vmatprep.mubr.f32.mxu0 %v4756
      %4893 = vmatmul.mubr.f32.gmra.mrb[0].mxu0 %v4618
      %v4894 = vpop.f32.mrb[0].mxu0
      %v4895 = vadd.f32 %v4746, %v4894
      %v4896 = vpop.f32.mrb[0].mxu0
      %4897 = vmatprep.mubr.f32.mxu0 %v4758
      %4898 = vmatmul.mubr.f32.gmra.mrb[0].mxu0 %v4619
      %v4899 = vpop.f32.mrb[0].mxu0
      %v4900 = vadd.f32 %v4746, %v4899
      %v4901 = vpop.f32.mrb[0].mxu0
      %4902 = vmatprep.mubr.f32.mxu0 %v4760
      %4903 = vmatmul.mubr.f32.gmra.mrb[0].mxu0 %v4620
      %v4904 = vpop.f32.mrb[0].mxu0
      %v4905 = vadd.f32 %v4746, %v4904
      %v4906 = vpop.f32.mrb[0].mxu0
      %4907 = vmatprep.mubr.f32.mxu0 %v4762
      %4908 = vmatmul.mubr.f32.gmra.mrb[0].mxu0 %v4621
      %v4909 = vpop.f32.mrb[0].mxu0
      %v4910 = vadd.f32 %v4746, %v4909
      %v4911 = vpop.f32.mrb[0].mxu0
      %4912 = vmatprep.mubr.f32.mxu0 %v4764
      %4913 = vmatmul.mubr.f32.gmra.mrb[0].mxu0 %v4694
      %v4914 = vpop.f32.mrb[0].mxu0
      %v4915 = vadd.f32 %v4746, %v4914
      %v4916 = vpop.f32.mrb[0].mxu0
      %4917 = vmatprep.mubr.f32.mxu0 %v4766
      %4918 = vmatmul.mubr.f32.gmra.mrb[0].mxu0 %v4695
      %v4919 = vpop.f32.mrb[0].mxu0
      %v4920 = vadd.f32 %v4746, %v4919
      %v4921 = vpop.f32.mrb[0].mxu0
      %4922 = vmatprep.mubr.f32.mxu0 %v4768
      %4923 = vmatmul.mubr.f32.gmra.mrb[0].mxu0 %v4696
      %v4924 = vpop.f32.mrb[0].mxu0
      %v4925 = vadd.f32 %v4746, %v4924
      %v4926 = vpop.f32.mrb[0].mxu0
      %4927 = vmatprep.mubr.f32.mxu0 %v4770
      %4928 = vmatmul.mubr.f32.gmra.mrb[0].mxu0 %v4697
      %v4929 = vpop.f32.mrb[0].mxu0
      %v4930 = vadd.f32 %v4746, %v4929
      %v4931 = vpop.f32.mrb[0].mxu0
      %4932 = vmatprep.mubr.f32.mxu0 %v4772
      %4933 = vmatmul.mubr.f32.gmra.mrb[0].mxu0 %v4698
      %v4934 = vpop.f32.mrb[0].mxu0
      %v4935 = vadd.f32 %v4746, %v4934
      %v4936 = vpop.f32.mrb[0].mxu0
      %4937 = vmatprep.mubr.f32.mxu0 %v4774
      %4938 = vmatmul.mubr.f32.gmra.mrb[0].mxu0 %v4699
      %v4939 = vpop.f32.mrb[0].mxu0
      %v4940 = vadd.f32 %v4746, %v4939
      %v4941 = vpop.f32.mrb[0].mxu0
      %4942 = vmatprep.mubr.f32.mxu0 %v4776
      %4943 = vmatmul.mubr.f32.gmra.mrb[0].mxu0 %v4700
      %v4944 = vpop.f32.mrb[0].mxu0
      %v4945 = vadd.f32 %v4746, %v4944
      %v4946 = vpop.f32.mrb[0].mxu0
      %4947 = vmatprep.mubr.f32.mxu0 %v4778
      %4948 = vmatmul.mubr.f32.gmra.mrb[0].mxu0 %v4701
      %v4949 = vpop.f32.mrb[0].mxu0
      %v4950 = vadd.f32 %v4746, %v4949
      %v4951 = vpop.f32.mrb[0].mxu0
      %4952 = vmatprep.mubr.f32.mxu0 %v4780
      %4953 = vmatmul.mubr.f32.gmra.mrb[0].mxu0 %v4654
      %v4954 = vpop.f32.mrb[0].mxu0
      %v4955 = vadd.f32 %v4746, %v4954
      %v4956 = vpop.f32.mrb[0].mxu0
      %4957 = vmatprep.mubr.f32.mxu0 %v4782
      %4958 = vmatmul.mubr.f32.gmra.mrb[0].mxu0 %v4655
      %v4959 = vpop.f32.mrb[0].mxu0
      %v4960 = vadd.f32 %v4746, %v4959
      %v4961 = vpop.f32.mrb[0].mxu0
      %4962 = vmatprep.mubr.f32.mxu0 %v4784
      %4963 = vmatmul.mubr.f32.gmra.mrb[0].mxu0 %v4656
      %v4964 = vpop.f32.mrb[0].mxu0
      %v4965 = vadd.f32 %v4746, %v4964
      %v4966 = vpop.f32.mrb[0].mxu0
      %4967 = vmatprep.mubr.f32.mxu0 %v4786
      %4968 = vmatmul.mubr.f32.gmra.mrb[0].mxu0 %v4657
      %v4969 = vpop.f32.mrb[0].mxu0
      %v4970 = vadd.f32 %v4746, %v4969
      %v4971 = vpop.f32.mrb[0].mxu0
      %4972 = vmatprep.mubr.f32.mxu0 %v4788
      %4973 = vmatmul.mubr.f32.gmra.mrb[0].mxu0 %v4658
      %v4974 = vpop.f32.mrb[0].mxu0
      %v4975 = vadd.f32 %v4746, %v4974
      %v4976 = vpop.f32.mrb[0].mxu0
      %4977 = vmatprep.mubr.f32.mxu0 %v4790
      %4978 = vmatmul.mubr.f32.gmra.mrb[0].mxu0 %v4659
      %v4979 = vpop.f32.mrb[0].mxu0
      %v4980 = vadd.f32 %v4746, %v4979
      %v4981 = vpop.f32.mrb[0].mxu0
      %4982 = vmatprep.mubr.f32.mxu0 %v4792
      %4983 = vmatmul.mubr.f32.gmra.mrb[0].mxu0 %v4660
      %v4984 = vpop.f32.mrb[0].mxu0
      %v4985 = vadd.f32 %v4746, %v4984
      %v4986 = vpop.f32.mrb[0].mxu0
      %4987 = vmatprep.mubr.f32.mxu0 %v1351
      %4988 = vmatmul.mubr.f32.gmra.mrb[0].mxu0 %v4661
      %v4989 = vpop.f32.mrb[0].mxu0
      %v4990 = vadd.f32 %v4746, %v4989
      %v4991 = vpop.f32.mrb[0].mxu0
      %4992 = vmatprep.mubr.f32.mxu0 %v4794
      %4993 = vmatmul.mubr.f32.gmra.mrb[0].mxu0 %v4734
      %v4994 = vpop.f32.mrb[0].mxu0
      %v4995 = vadd.f32 %v4746, %v4994
      %v4996 = vpop.f32.mrb[0].mxu0
      %4997 = vmatprep.mubr.f32.mxu0 %v4796
      %4998 = vmatmul.mubr.f32.gmra.mrb[0].mxu0 %v4735
      %v4999 = vpop.f32.mrb[0].mxu0
      %v5000 = vadd.f32 %v4746, %v4999
      %v5001 = vpop.f32.mrb[0].mxu0
      %5002 = vmatprep.mubr.f32.mxu0 %v4798
      %5003 = vmatmul.mubr.f32.gmra.mrb[0].mxu0 %v4736
      %v5004 = vpop.f32.mrb[0].mxu0
      %v5005 = vadd.f32 %v4746, %v5004
      %v5006 = vpop.f32.mrb[0].mxu0
      %5007 = vmatprep.mubr.f32.mxu0 %v4800
      %5008 = vmatmul.mubr.f32.gmra.mrb[0].mxu0 %v4737
      %v5009 = vpop.f32.mrb[0].mxu0
      %v5010 = vadd.f32 %v4746, %v5009
      %v5011 = vpop.f32.mrb[0].mxu0
      %5012 = vmatprep.mubr.f32.mxu0 %v4802
      %5013 = vmatmul.mubr.f32.gmra.mrb[0].mxu0 %v4738
      %v5014 = vpop.f32.mrb[0].mxu0
      %v5015 = vadd.f32 %v4746, %v5014
      %v5016 = vpop.f32.mrb[0].mxu0
      %5017 = vmatprep.mubr.f32.mxu0 %v4804
      %5018 = vmatmul.mubr.f32.gmra.mrb[0].mxu0 %v4739
      %v5019 = vpop.f32.mrb[0].mxu0
      %v5020 = vadd.f32 %v4746, %v5019
      %v5021 = vpop.f32.mrb[0].mxu0
      %5022 = vmatprep.mubr.f32.mxu0 %v4806
      %5023 = vmatmul.mubr.f32.gmra.mrb[0].mxu0 %v4740
      %v5024 = vpop.f32.mrb[0].mxu0
      %v5025 = vadd.f32 %v4746, %v5024
      %v5026 = vpop.f32.mrb[0].mxu0
      %5027 = vmatprep.mubr.f32.mxu0 %v1351
      %5028 = vmatmul.mubr.f32.gmra.mrb[0].mxu0 %v4741
      %v5029 = vpop.f32.mrb[0].mxu0
      %v5030 = vadd.f32 %v4746, %v5029
      %v5031 = vpop.f32.mrb[0].mxu0
      %5032 = vdwg.mxu0
      %v5033 = vmax.f32 %v4875, 0.0
      %v5034 = vmax.f32 %v4880, 0.0
      %v5035 = vmax.f32 %v4885, 0.0
      %v5036 = vmax.f32 %v4890, 0.0
      %v5037 = vmax.f32 %v4895, 0.0
      %v5038 = vmax.f32 %v4900, 0.0
      %v5039 = vmax.f32 %v4905, 0.0
      %v5040 = vmax.f32 %v4910, 0.0
      %v5041 = vmax.f32 %v4915, 0.0
      %v5042 = vmax.f32 %v4920, 0.0
      %v5043 = vmax.f32 %v4925, 0.0
      %v5044 = vmax.f32 %v4930, 0.0
      %v5045 = vmax.f32 %v4935, 0.0
      %v5046 = vmax.f32 %v4940, 0.0
      %v5047 = vmax.f32 %v4945, 0.0
      %v5048 = vmax.f32 %v4950, 0.0
      %v5049 = vmax.f32 %v4955, 0.0
      %v5050 = vmax.f32 %v4960, 0.0
      %v5051 = vmax.f32 %v4965, 0.0
      %v5052 = vmax.f32 %v4970, 0.0
      %v5053 = vmax.f32 %v4975, 0.0
      %v5054 = vmax.f32 %v4980, 0.0
      %v5055 = vmax.f32 %v4985, 0.0
      %v5056 = vmax.f32 %v4990, 0.0
      %v5057 = vmax.f32 %v4995, 0.0
      %v5058 = vmax.f32 %v5000, 0.0
      %v5059 = vmax.f32 %v5005, 0.0
      %v5060 = vmax.f32 %v5010, 0.0
      %v5061 = vmax.f32 %v5015, 0.0
      %v5062 = vmax.f32 %v5020, 0.0
      %v5063 = vmax.f32 %v5025, 0.0
      %v5064 = vmax.f32 %v5030, 0.0
      %s5065 = scalar_lea.vmem %s8, 1344
      %v5066 = vld [vmem:[%s5065] sm:$0xff]
      %v5067 = vld [vmem:[%s5065 + $0x8] sm:$0xff]
      %v5068 = vld [vmem:[%s5065 + $0x10] sm:$0xff]
      %v5069 = vld [vmem:[%s5065 + $0x18] sm:$0xff]
      %v5070 = vld [vmem:[%s5065 + $0x20] sm:$0xff]
      %v5071 = vld [vmem:[%s5065 + $0x28] sm:$0xff]
      %v5072 = vld [vmem:[%s5065 + $0x30] sm:$0xff]
      %v5073 = vld [vmem:[%s5065 + $0x38] sm:$0xff]
      %v5074 = vld [vmem:[%s5065 + $0x40] sm:$0xff]
      %v5075 = vld [vmem:[%s5065 + $0x48] sm:$0xff]
      %v5076 = vld [vmem:[%s5065 + $0x50] sm:$0xff]
      %v5077 = vld [vmem:[%s5065 + $0x58] sm:$0xff]
      %v5078 = vld [vmem:[%s5065 + $0x60] sm:$0xff]
      %v5079 = vld [vmem:[%s5065 + $0x68] sm:$0xff]
      %v5080 = vld [vmem:[%s5065 + $0x70] sm:$0xff]
      %v5081 = vld [vmem:[%s5065 + $0x78] sm:$0xff]
      %v5082 = vld [vmem:[%s5065 + $0x80] sm:$0xff]
      %v5083 = vld [vmem:[%s5065 + $0x88] sm:$0xff]
      %v5084 = vld [vmem:[%s5065 + $0x90] sm:$0xff]
      %v5085 = vld [vmem:[%s5065 + $0x98] sm:$0xff]
      %v5086 = vld [vmem:[%s5065 + $0xa0] sm:$0xff]
      %v5087 = vld [vmem:[%s5065 + $0xa8] sm:$0xff]
      %v5088 = vld [vmem:[%s5065 + $0xb0] sm:$0xff]
      %v5089 = vld [vmem:[%s5065 + $0xb8] sm:$0xff]
      %s5090 = scalar_lea.vmem %s9, 7
      %v5091 = vld [vmem:[%s5090] sm:$0x1]
      %v5100 = vrot.slane %v5041, 7
      %v5101 = vrot.slane %v5042, 7
      %v5102 = vrot.slane %v5043, 7
      %v5103 = vrot.slane %v5044, 7
      %v5104 = vrot.slane %v5045, 7
      %v5105 = vrot.slane %v5046, 7
      %v5106 = vrot.slane %v5047, 7
      %v5107 = vrot.slane %v5048, 7
      %v5116 = vsel %vm1675, 0.0, %v5100
      %v5117 = vsel %vm1675, 0.0, %v5101
      %v5118 = vsel %vm1675, 0.0, %v5102
      %v5119 = vsel %vm1675, 0.0, %v5103
      %v5120 = vsel %vm1675, 0.0, %v5104
      %v5121 = vsel %vm1675, 0.0, %v5105
      %v5122 = vsel %vm1675, 0.0, %v5106
      %v5123 = vsel %vm1675, 0.0, %v5107
      %5132 = vrot.lane.b32.xlu0 %v5033, 64
      %v5133 = vpop.permute.xlu0 %5132
      %5134 = vrot.lane.b32.xlu0 %v5034, 64
      %v5135 = vpop.permute.xlu0 %5134
      %5136 = vrot.lane.b32.xlu0 %v5035, 64
      %v5137 = vpop.permute.xlu0 %5136
      %5138 = vrot.lane.b32.xlu0 %v5036, 64
      %v5139 = vpop.permute.xlu0 %5138
      %5140 = vrot.lane.b32.xlu0 %v5037, 64
      %v5141 = vpop.permute.xlu0 %5140
      %5142 = vrot.lane.b32.xlu0 %v5038, 64
      %v5143 = vpop.permute.xlu0 %5142
      %5144 = vrot.lane.b32.xlu0 %v5039, 64
      %v5145 = vpop.permute.xlu0 %5144
      %5146 = vrot.lane.b32.xlu0 %v5040, 64
      %v5147 = vpop.permute.xlu0 %5146
      %v5156 = vsel %vm1170, %v5116, %v5133
      %v5157 = vsel %vm1170, %v5117, %v5135
      %v5158 = vsel %vm1170, %v5118, %v5137
      %v5159 = vsel %vm1170, %v5119, %v5139
      %v5160 = vsel %vm1170, %v5120, %v5141
      %v5161 = vsel %vm1170, %v5121, %v5143
      %v5162 = vsel %vm1170, %v5122, %v5145
      %v5163 = vsel %vm1170, %v5123, %v5147
      %v5164 = vrot.slane %v5033, 1
      %v5165 = vrot.slane %v5034, 1
      %v5166 = vrot.slane %v5035, 1
      %v5167 = vrot.slane %v5036, 1
      %v5168 = vrot.slane %v5037, 1
      %v5169 = vrot.slane %v5038, 1
      %v5170 = vrot.slane %v5039, 1
      %v5171 = vrot.slane %v5040, 1
      %v5180 = vsel %vm393, %v5164, 0.0
      %v5181 = vsel %vm393, %v5165, 0.0
      %v5182 = vsel %vm393, %v5166, 0.0
      %v5183 = vsel %vm393, %v5167, 0.0
      %v5184 = vsel %vm393, %v5168, 0.0
      %v5185 = vsel %vm393, %v5169, 0.0
      %v5186 = vsel %vm393, %v5170, 0.0
      %v5187 = vsel %vm393, %v5171, 0.0
      %5188 = vrot.lane.b32.xlu0 %v5041, 64
      %v5189 = vpop.permute.xlu0 %5188
      %5190 = vrot.lane.b32.xlu0 %v5042, 64
      %v5191 = vpop.permute.xlu0 %5190
      %5192 = vrot.lane.b32.xlu0 %v5043, 64
      %v5193 = vpop.permute.xlu0 %5192
      %5194 = vrot.lane.b32.xlu0 %v5044, 64
      %v5195 = vpop.permute.xlu0 %5194
      %5196 = vrot.lane.b32.xlu0 %v5045, 64
      %v5197 = vpop.permute.xlu0 %5196
      %5198 = vrot.lane.b32.xlu0 %v5046, 64
      %v5199 = vpop.permute.xlu0 %5198
      %5200 = vrot.lane.b32.xlu0 %v5047, 64
      %v5201 = vpop.permute.xlu0 %5200
      %5202 = vrot.lane.b32.xlu0 %v5048, 64
      %v5203 = vpop.permute.xlu0 %5202
      %v5212 = vsel %vm1170, %v5033, %v5189
      %v5213 = vsel %vm1170, %v5034, %v5191
      %v5214 = vsel %vm1170, %v5035, %v5193
      %v5215 = vsel %vm1170, %v5036, %v5195
      %v5216 = vsel %vm1170, %v5037, %v5197
      %v5217 = vsel %vm1170, %v5038, %v5199
      %v5218 = vsel %vm1170, %v5039, %v5201
      %v5219 = vsel %vm1170, %v5040, %v5203
      %v5228 = vrot.slane %v5057, 7
      %v5229 = vrot.slane %v5058, 7
      %v5230 = vrot.slane %v5059, 7
      %v5231 = vrot.slane %v5060, 7
      %v5232 = vrot.slane %v5061, 7
      %v5233 = vrot.slane %v5062, 7
      %v5234 = vrot.slane %v5063, 7
      %v5235 = vrot.slane %v5064, 7
      %v5244 = vsel %vm1675, 0.0, %v5228
      %v5245 = vsel %vm1675, 0.0, %v5229
      %v5246 = vsel %vm1675, 0.0, %v5230
      %v5247 = vsel %vm1675, 0.0, %v5231
      %v5248 = vsel %vm1675, 0.0, %v5232
      %v5249 = vsel %vm1675, 0.0, %v5233
      %v5250 = vsel %vm1675, 0.0, %v5234
      %v5251 = vsel %vm1675, 0.0, %v5235
      %5260 = vrot.lane.b32.xlu0 %v5049, 64
      %v5261 = vpop.permute.xlu0 %5260
      %5262 = vrot.lane.b32.xlu0 %v5050, 64
      %v5263 = vpop.permute.xlu0 %5262
      %5264 = vrot.lane.b32.xlu0 %v5051, 64
      %v5265 = vpop.permute.xlu0 %5264
      %5266 = vrot.lane.b32.xlu0 %v5052, 64
      %v5267 = vpop.permute.xlu0 %5266
      %5268 = vrot.lane.b32.xlu0 %v5053, 64
      %v5269 = vpop.permute.xlu0 %5268
      %5270 = vrot.lane.b32.xlu0 %v5054, 64
      %v5271 = vpop.permute.xlu0 %5270
      %5272 = vrot.lane.b32.xlu0 %v5055, 64
      %v5273 = vpop.permute.xlu0 %5272
      %5274 = vrot.lane.b32.xlu0 %v5056, 64
      %v5275 = vpop.permute.xlu0 %5274
      %v5284 = vsel %vm1170, %v5244, %v5261
      %v5285 = vsel %vm1170, %v5245, %v5263
      %v5286 = vsel %vm1170, %v5246, %v5265
      %v5287 = vsel %vm1170, %v5247, %v5267
      %v5288 = vsel %vm1170, %v5248, %v5269
      %v5289 = vsel %vm1170, %v5249, %v5271
      %v5290 = vsel %vm1170, %v5250, %v5273
      %v5291 = vsel %vm1170, %v5251, %v5275
      %v5292 = vrot.slane %v5049, 1
      %v5293 = vrot.slane %v5050, 1
      %v5294 = vrot.slane %v5051, 1
      %v5295 = vrot.slane %v5052, 1
      %v5296 = vrot.slane %v5053, 1
      %v5297 = vrot.slane %v5054, 1
      %v5298 = vrot.slane %v5055, 1
      %v5299 = vrot.slane %v5056, 1
      %v5308 = vsel %vm393, %v5292, 0.0
      %v5309 = vsel %vm393, %v5293, 0.0
      %v5310 = vsel %vm393, %v5294, 0.0
      %v5311 = vsel %vm393, %v5295, 0.0
      %v5312 = vsel %vm393, %v5296, 0.0
      %v5313 = vsel %vm393, %v5297, 0.0
      %v5314 = vsel %vm393, %v5298, 0.0
      %v5315 = vsel %vm393, %v5299, 0.0
      %5316 = vrot.lane.b32.xlu0 %v5057, 64
      %v5317 = vpop.permute.xlu0 %5316
      %5318 = vrot.lane.b32.xlu0 %v5058, 64
      %v5319 = vpop.permute.xlu0 %5318
      %5320 = vrot.lane.b32.xlu0 %v5059, 64
      %v5321 = vpop.permute.xlu0 %5320
      %5322 = vrot.lane.b32.xlu0 %v5060, 64
      %v5323 = vpop.permute.xlu0 %5322
      %5324 = vrot.lane.b32.xlu0 %v5061, 64
      %v5325 = vpop.permute.xlu0 %5324
      %5326 = vrot.lane.b32.xlu0 %v5062, 64
      %v5327 = vpop.permute.xlu0 %5326
      %5328 = vrot.lane.b32.xlu0 %v5063, 64
      %v5329 = vpop.permute.xlu0 %5328
      %5330 = vrot.lane.b32.xlu0 %v5064, 64
      %v5331 = vpop.permute.xlu0 %5330
      %v5340 = vsel %vm1170, %v5049, %v5317
      %v5341 = vsel %vm1170, %v5050, %v5319
      %v5342 = vsel %vm1170, %v5051, %v5321
      %v5343 = vsel %vm1170, %v5052, %v5323
      %v5344 = vsel %vm1170, %v5053, %v5325
      %v5345 = vsel %vm1170, %v5054, %v5327
      %v5346 = vsel %vm1170, %v5055, %v5329
      %v5347 = vsel %vm1170, %v5056, %v5331
      %v5349 = vlaneseq
      %v5350 = vshrl.u32 %v5349, 7
      %v5351 = vsub.s32 0, %v5350
      %v5352 = vrot.slane %v5091, %v5351
      %v5354 = vsel %vm1170, %v5041, 0
      %v5356 = vsel %vm1170, %v5042, 0
      %v5358 = vsel %vm1170, %v5043, 0
      %v5360 = vsel %vm1170, %v5044, 0
      %v5362 = vsel %vm1170, %v5045, 0
      %v5364 = vsel %vm1170, %v5046, 0
      %v5366 = vsel %vm1170, %v5047, 0
      %v5368 = vsel %vm1170, %v5048, 0
      %v5371 = vsel %vm1170, %v5180, 0
      %v5374 = vsel %vm1170, %v5181, 0
      %v5377 = vsel %vm1170, %v5182, 0
      %v5380 = vsel %vm1170, %v5183, 0
      %v5383 = vsel %vm1170, %v5184, 0
      %v5386 = vsel %vm1170, %v5185, 0
      %v5389 = vsel %vm1170, %v5186, 0
      %v5392 = vsel %vm1170, %v5187, 0
      %v5394 = vsel %vm1170, %v5057, 0
      %v5396 = vsel %vm1170, %v5058, 0
      %v5398 = vsel %vm1170, %v5059, 0
      %v5400 = vsel %vm1170, %v5060, 0
      %v5402 = vsel %vm1170, %v5061, 0
      %v5404 = vsel %vm1170, %v5062, 0
      %v5406 = vsel %vm1170, %v5063, 0
      %v5408 = vsel %vm1170, %v5064, 0
      %v5411 = vsel %vm1170, %v5308, 0
      %v5414 = vsel %vm1170, %v5309, 0
      %v5417 = vsel %vm1170, %v5310, 0
      %v5420 = vsel %vm1170, %v5311, 0
      %v5423 = vsel %vm1170, %v5312, 0
      %v5426 = vsel %vm1170, %v5313, 0
      %v5429 = vsel %vm1170, %v5314, 0
      %v5432 = vsel %vm1170, %v5315, 0
      %5434 = vmatprep.subr.mxu0 0.0
      %5435 = vmatpush1.msra.mxu0 %v5066
      %5436 = vmatprep.subr.mxu0 0.0
      %5437 = vmatpush1.msra.mxu0 %v5067
      %5438 = vmatprep.subr.mxu0 0.0
      %5439 = vmatpush1.msra.mxu0 %v5068
      %5440 = vmatprep.subr.mxu0 0.0
      %5441 = vmatpush1.msra.mxu0 %v5069
      %5442 = vmatprep.subr.mxu0 0.0
      %5443 = vmatpush1.msra.mxu0 %v5070
      %5444 = vmatprep.subr.mxu0 0.0
      %5445 = vmatpush1.msra.mxu0 %v5071
      %5446 = vmatprep.subr.mxu0 0.0
      %5447 = vmatpush1.msra.mxu0 %v5072
      %5448 = vmatprep.subr.mxu0 0.0
      %5449 = vmatpush1.msra.mxu0 %v5073
      %5450 = vmatprep.subr.mxu0 0.0
      %5451 = vmatpush1.msra.mxu0 %v5074
      %5452 = vmatprep.subr.mxu0 0.0
      %5453 = vmatpush1.msra.mxu0 %v5075
      %5454 = vmatprep.subr.mxu0 0.0
      %5455 = vmatpush1.msra.mxu0 %v5076
      %5456 = vmatprep.subr.mxu0 0.0
      %5457 = vmatpush1.msra.mxu0 %v5077
      %5458 = vmatprep.subr.mxu0 0.0
      %5459 = vmatpush1.msra.mxu0 %v5078
      %5460 = vmatprep.subr.mxu0 0.0
      %5461 = vmatpush1.msra.mxu0 %v5079
      %5462 = vmatprep.subr.mxu0 0.0
      %5463 = vmatpush1.msra.mxu0 %v5080
      %5464 = vmatprep.subr.mxu0 0.0
      %5465 = vmatpush1.msra.mxu0 %v5081
      %5466 = vmatprep.subr.mxu0 0.0
      %5467 = vmatpush1.msra.mxu0 %v5082
      %5468 = vmatprep.subr.mxu0 0.0
      %5469 = vmatpush1.msra.mxu0 %v5083
      %5470 = vmatprep.subr.mxu0 0.0
      %5471 = vmatpush1.msra.mxu0 %v5084
      %5472 = vmatprep.subr.mxu0 0.0
      %5473 = vmatpush1.msra.mxu0 %v5085
      %5474 = vmatprep.subr.mxu0 0.0
      %5475 = vmatpush1.msra.mxu0 %v5086
      %5476 = vmatprep.subr.mxu0 0.0
      %5477 = vmatpush1.msra.mxu0 %v5087
      %5478 = vmatprep.subr.mxu0 0.0
      %5479 = vmatpush1.msra.mxu0 %v5088
      %5480 = vmatprep.subr.mxu0 0.0
      %5481 = vmatpush1.msra.mxu0 %v5089
      %5482 = vmatprep.subr.mxu0 0.0
      %5483 = vmatpush1.msra.mxu0 0.0
      %5484 = vmatprep.subr.mxu0 0.0
      %5485 = vmatpush1.msra.mxu0 0.0
      %5486 = vmatprep.subr.mxu0 0.0
      %5487 = vmatpush1.msra.mxu0 0.0
      %5488 = vmatprep.subr.mxu0 0.0
      %5489 = vmatpush1.msra.mxu0 0.0
      %5490 = vmatprep.subr.mxu0 0.0
      %5491 = vmatpush1.msra.mxu0 0.0
      %5492 = vmatprep.subr.mxu0 0.0
      %5493 = vmatpush1.msra.mxu0 0.0
      %5494 = vmatprep.subr.mxu0 0.0
      %5495 = vmatpush1.msra.mxu0 0.0
      %5496 = vmatprep.subr.mxu0 0.0
      %5497 = vmatpush1.msra.mxu0 0.0
      %5498 = vmatprep.mubr.f32.mxu0 %v5354
      %5499 = vmatmul.mubr.f32.gmra.mrb[0].mxu0 %v5156
      %v5500 = vpop.f32.mrb[0].mxu0
      %v5501 = vadd.f32 %v5352, %v5500
      %v5502 = vpop.f32.mrb[0].mxu0
      %5503 = vmatprep.mubr.f32.mxu0 %v5356
      %5504 = vmatmul.mubr.f32.gmra.mrb[0].mxu0 %v5157
      %v5505 = vpop.f32.mrb[0].mxu0
      %v5506 = vadd.f32 %v5352, %v5505
      %v5507 = vpop.f32.mrb[0].mxu0
      %5508 = vmatprep.mubr.f32.mxu0 %v5358
      %5509 = vmatmul.mubr.f32.gmra.mrb[0].mxu0 %v5158
      %v5510 = vpop.f32.mrb[0].mxu0
      %v5511 = vadd.f32 %v5352, %v5510
      %v5512 = vpop.f32.mrb[0].mxu0
      %5513 = vmatprep.mubr.f32.mxu0 %v5360
      %5514 = vmatmul.mubr.f32.gmra.mrb[0].mxu0 %v5159
      %v5515 = vpop.f32.mrb[0].mxu0
      %v5516 = vadd.f32 %v5352, %v5515
      %v5517 = vpop.f32.mrb[0].mxu0
      %5518 = vmatprep.mubr.f32.mxu0 %v5362
      %5519 = vmatmul.mubr.f32.gmra.mrb[0].mxu0 %v5160
      %v5520 = vpop.f32.mrb[0].mxu0
      %v5521 = vadd.f32 %v5352, %v5520
      %v5522 = vpop.f32.mrb[0].mxu0
      %5523 = vmatprep.mubr.f32.mxu0 %v5364
      %5524 = vmatmul.mubr.f32.gmra.mrb[0].mxu0 %v5161
      %v5525 = vpop.f32.mrb[0].mxu0
      %v5526 = vadd.f32 %v5352, %v5525
      %v5527 = vpop.f32.mrb[0].mxu0
      %5528 = vmatprep.mubr.f32.mxu0 %v5366
      %5529 = vmatmul.mubr.f32.gmra.mrb[0].mxu0 %v5162
      %v5530 = vpop.f32.mrb[0].mxu0
      %v5531 = vadd.f32 %v5352, %v5530
      %v5532 = vpop.f32.mrb[0].mxu0
      %5533 = vmatprep.mubr.f32.mxu0 %v5368
      %5534 = vmatmul.mubr.f32.gmra.mrb[0].mxu0 %v5163
      %v5535 = vpop.f32.mrb[0].mxu0
      %v5536 = vadd.f32 %v5352, %v5535
      %v5537 = vpop.f32.mrb[0].mxu0
      %5538 = vmatprep.mubr.f32.mxu0 %v5371
      %5539 = vmatmul.mubr.f32.gmra.mrb[0].mxu0 %v5212
      %v5540 = vpop.f32.mrb[0].mxu0
      %v5541 = vadd.f32 %v5352, %v5540
      %v5542 = vpop.f32.mrb[0].mxu0
      %5543 = vmatprep.mubr.f32.mxu0 %v5374
      %5544 = vmatmul.mubr.f32.gmra.mrb[0].mxu0 %v5213
      %v5545 = vpop.f32.mrb[0].mxu0
      %v5546 = vadd.f32 %v5352, %v5545
      %v5547 = vpop.f32.mrb[0].mxu0
      %5548 = vmatprep.mubr.f32.mxu0 %v5377
      %5549 = vmatmul.mubr.f32.gmra.mrb[0].mxu0 %v5214
      %v5550 = vpop.f32.mrb[0].mxu0
      %v5551 = vadd.f32 %v5352, %v5550
      %v5552 = vpop.f32.mrb[0].mxu0
      %5553 = vmatprep.mubr.f32.mxu0 %v5380
      %5554 = vmatmul.mubr.f32.gmra.mrb[0].mxu0 %v5215
      %v5555 = vpop.f32.mrb[0].mxu0
      %v5556 = vadd.f32 %v5352, %v5555
      %v5557 = vpop.f32.mrb[0].mxu0
      %5558 = vmatprep.mubr.f32.mxu0 %v5383
      %5559 = vmatmul.mubr.f32.gmra.mrb[0].mxu0 %v5216
      %v5560 = vpop.f32.mrb[0].mxu0
      %v5561 = vadd.f32 %v5352, %v5560
      %v5562 = vpop.f32.mrb[0].mxu0
      %5563 = vmatprep.mubr.f32.mxu0 %v5386
      %5564 = vmatmul.mubr.f32.gmra.mrb[0].mxu0 %v5217
      %v5565 = vpop.f32.mrb[0].mxu0
      %v5566 = vadd.f32 %v5352, %v5565
      %v5567 = vpop.f32.mrb[0].mxu0
      %5568 = vmatprep.mubr.f32.mxu0 %v5389
      %5569 = vmatmul.mubr.f32.gmra.mrb[0].mxu0 %v5218
      %v5570 = vpop.f32.mrb[0].mxu0
      %v5571 = vadd.f32 %v5352, %v5570
      %v5572 = vpop.f32.mrb[0].mxu0
      %5573 = vmatprep.mubr.f32.mxu0 %v5392
      %5574 = vmatmul.mubr.f32.gmra.mrb[0].mxu0 %v5219
      %v5575 = vpop.f32.mrb[0].mxu0
      %v5576 = vadd.f32 %v5352, %v5575
      %v5577 = vpop.f32.mrb[0].mxu0
      %5578 = vmatprep.mubr.f32.mxu0 %v5394
      %5579 = vmatmul.mubr.f32.gmra.mrb[0].mxu0 %v5284
      %v5580 = vpop.f32.mrb[0].mxu0
      %v5581 = vadd.f32 %v5352, %v5580
      %v5582 = vpop.f32.mrb[0].mxu0
      %5583 = vmatprep.mubr.f32.mxu0 %v5396
      %5584 = vmatmul.mubr.f32.gmra.mrb[0].mxu0 %v5285
      %v5585 = vpop.f32.mrb[0].mxu0
      %v5586 = vadd.f32 %v5352, %v5585
      %v5587 = vpop.f32.mrb[0].mxu0
      %5588 = vmatprep.mubr.f32.mxu0 %v5398
      %5589 = vmatmul.mubr.f32.gmra.mrb[0].mxu0 %v5286
      %v5590 = vpop.f32.mrb[0].mxu0
      %v5591 = vadd.f32 %v5352, %v5590
      %v5592 = vpop.f32.mrb[0].mxu0
      %5593 = vmatprep.mubr.f32.mxu0 %v5400
      %5594 = vmatmul.mubr.f32.gmra.mrb[0].mxu0 %v5287
      %v5595 = vpop.f32.mrb[0].mxu0
      %v5596 = vadd.f32 %v5352, %v5595
      %v5597 = vpop.f32.mrb[0].mxu0
      %5598 = vmatprep.mubr.f32.mxu0 %v5402
      %5599 = vmatmul.mubr.f32.gmra.mrb[0].mxu0 %v5288
      %v5600 = vpop.f32.mrb[0].mxu0
      %v5601 = vadd.f32 %v5352, %v5600
      %v5602 = vpop.f32.mrb[0].mxu0
      %5603 = vmatprep.mubr.f32.mxu0 %v5404
      %5604 = vmatmul.mubr.f32.gmra.mrb[0].mxu0 %v5289
      %v5605 = vpop.f32.mrb[0].mxu0
      %v5606 = vadd.f32 %v5352, %v5605
      %v5607 = vpop.f32.mrb[0].mxu0
      %5608 = vmatprep.mubr.f32.mxu0 %v5406
      %5609 = vmatmul.mubr.f32.gmra.mrb[0].mxu0 %v5290
      %v5610 = vpop.f32.mrb[0].mxu0
      %v5611 = vadd.f32 %v5352, %v5610
      %v5612 = vpop.f32.mrb[0].mxu0
      %5613 = vmatprep.mubr.f32.mxu0 %v5408
      %5614 = vmatmul.mubr.f32.gmra.mrb[0].mxu0 %v5291
      %v5615 = vpop.f32.mrb[0].mxu0
      %v5616 = vadd.f32 %v5352, %v5615
      %v5617 = vpop.f32.mrb[0].mxu0
      %5618 = vmatprep.mubr.f32.mxu0 %v5411
      %5619 = vmatmul.mubr.f32.gmra.mrb[0].mxu0 %v5340
      %v5620 = vpop.f32.mrb[0].mxu0
      %v5621 = vadd.f32 %v5352, %v5620
      %v5622 = vpop.f32.mrb[0].mxu0
      %5623 = vmatprep.mubr.f32.mxu0 %v5414
      %5624 = vmatmul.mubr.f32.gmra.mrb[0].mxu0 %v5341
      %v5625 = vpop.f32.mrb[0].mxu0
      %v5626 = vadd.f32 %v5352, %v5625
      %v5627 = vpop.f32.mrb[0].mxu0
      %5628 = vmatprep.mubr.f32.mxu0 %v5417
      %5629 = vmatmul.mubr.f32.gmra.mrb[0].mxu0 %v5342
      %v5630 = vpop.f32.mrb[0].mxu0
      %v5631 = vadd.f32 %v5352, %v5630
      %v5632 = vpop.f32.mrb[0].mxu0
      %5633 = vmatprep.mubr.f32.mxu0 %v5420
      %5634 = vmatmul.mubr.f32.gmra.mrb[0].mxu0 %v5343
      %v5635 = vpop.f32.mrb[0].mxu0
      %v5636 = vadd.f32 %v5352, %v5635
      %v5637 = vpop.f32.mrb[0].mxu0
      %5638 = vmatprep.mubr.f32.mxu0 %v5423
      %5639 = vmatmul.mubr.f32.gmra.mrb[0].mxu0 %v5344
      %v5640 = vpop.f32.mrb[0].mxu0
      %v5641 = vadd.f32 %v5352, %v5640
      %v5642 = vpop.f32.mrb[0].mxu0
      %5643 = vmatprep.mubr.f32.mxu0 %v5426
      %5644 = vmatmul.mubr.f32.gmra.mrb[0].mxu0 %v5345
      %v5645 = vpop.f32.mrb[0].mxu0
      %v5646 = vadd.f32 %v5352, %v5645
      %v5647 = vpop.f32.mrb[0].mxu0
      %5648 = vmatprep.mubr.f32.mxu0 %v5429
      %5649 = vmatmul.mubr.f32.gmra.mrb[0].mxu0 %v5346
      %v5650 = vpop.f32.mrb[0].mxu0
      %v5651 = vadd.f32 %v5352, %v5650
      %v5652 = vpop.f32.mrb[0].mxu0
      %5653 = vmatprep.mubr.f32.mxu0 %v5432
      %5654 = vmatmul.mubr.f32.gmra.mrb[0].mxu0 %v5347
      %v5655 = vpop.f32.mrb[0].mxu0
      %v5656 = vadd.f32 %v5352, %v5655
      %v5657 = vpop.f32.mrb[0].mxu0
      %5658 = vdwg.mxu0
      %v5659 = vadd.f32 %v5501, %v3363
      %v5660 = vadd.f32 %v5506, %v3364
      %v5661 = vadd.f32 %v5511, %v3365
      %v5662 = vadd.f32 %v5516, %v3366
      %v5663 = vadd.f32 %v5521, %v3367
      %v5664 = vadd.f32 %v5526, %v3368
      %v5665 = vadd.f32 %v5531, %v3369
      %v5666 = vadd.f32 %v5536, %v3370
      %v5667 = vmax.f32 %v5659, 0.0
      %v5668 = vmax.f32 %v5660, 0.0
      %v5669 = vmax.f32 %v5661, 0.0
      %v5670 = vmax.f32 %v5662, 0.0
      %v5671 = vmax.f32 %v5663, 0.0
      %v5672 = vmax.f32 %v5664, 0.0
      %v5673 = vmax.f32 %v5665, 0.0
      %v5674 = vmax.f32 %v5666, 0.0
      %v5675 = vadd.f32 %v5541, %v3379
      %v5676 = vadd.f32 %v5546, %v3380
      %v5677 = vadd.f32 %v5551, %v3381
      %v5678 = vadd.f32 %v5556, %v3382
      %v5679 = vadd.f32 %v5561, %v3383
      %v5680 = vadd.f32 %v5566, %v3384
      %v5681 = vadd.f32 %v5571, %v3385
      %v5682 = vadd.f32 %v5576, %v3386
      %v5683 = vmax.f32 %v5675, 0.0
      %v5684 = vmax.f32 %v5676, 0.0
      %v5685 = vmax.f32 %v5677, 0.0
      %v5686 = vmax.f32 %v5678, 0.0
      %v5687 = vmax.f32 %v5679, 0.0
      %v5688 = vmax.f32 %v5680, 0.0
      %v5689 = vmax.f32 %v5681, 0.0
      %v5690 = vmax.f32 %v5682, 0.0
      %v5691 = vadd.f32 %v5581, %v3395
      %v5692 = vadd.f32 %v5586, %v3396
      %v5693 = vadd.f32 %v5591, %v3397
      %v5694 = vadd.f32 %v5596, %v3398
      %v5695 = vadd.f32 %v5601, %v3399
      %v5696 = vadd.f32 %v5606, %v3400
      %v5697 = vadd.f32 %v5611, %v3401
      %v5698 = vadd.f32 %v5616, %v3402
      %v5699 = vmax.f32 %v5691, 0.0
      %v5700 = vmax.f32 %v5692, 0.0
      %v5701 = vmax.f32 %v5693, 0.0
      %v5702 = vmax.f32 %v5694, 0.0
      %v5703 = vmax.f32 %v5695, 0.0
      %v5704 = vmax.f32 %v5696, 0.0
      %v5705 = vmax.f32 %v5697, 0.0
      %v5706 = vmax.f32 %v5698, 0.0
      %v5707 = vadd.f32 %v5621, %v3411
      %v5708 = vadd.f32 %v5626, %v3412
      %v5709 = vadd.f32 %v5631, %v3413
      %v5710 = vadd.f32 %v5636, %v3414
      %v5711 = vadd.f32 %v5641, %v3415
      %v5712 = vadd.f32 %v5646, %v3416
      %v5713 = vadd.f32 %v5651, %v3417
      %v5714 = vadd.f32 %v5656, %v3418
      %v5715 = vmax.f32 %v5707, 0.0
      %v5716 = vmax.f32 %v5708, 0.0
      %v5717 = vmax.f32 %v5709, 0.0
      %v5718 = vmax.f32 %v5710, 0.0
      %v5719 = vmax.f32 %v5711, 0.0
      %v5720 = vmax.f32 %v5712, 0.0
      %v5721 = vmax.f32 %v5713, 0.0
      %v5722 = vmax.f32 %v5714, 0.0
      %v5723 = vld [vmem:[%s6] sm:$0xff]
      %v5724 = vld [vmem:[%s6 + $0x8] sm:$0xff]
      %v5725 = vld [vmem:[%s6 + $0x10] sm:$0xff]
      %v5726 = vld [vmem:[%s6 + $0x18] sm:$0xff]
      %v5727 = vld [vmem:[%s6 + $0x20] sm:$0xff]
      %v5728 = vld [vmem:[%s6 + $0x28] sm:$0xff]
      %v5729 = vld [vmem:[%s6 + $0x30] sm:$0xff]
      %v5730 = vld [vmem:[%s6 + $0x38] sm:$0xff]
      %v5731 = vld [vmem:[%s6 + $0x40] sm:$0xff]
      %v5732 = vld [vmem:[%s6 + $0x48] sm:$0xff]
      %v5733 = vld [vmem:[%s6 + $0x50] sm:$0xff]
      %v5734 = vld [vmem:[%s6 + $0x58] sm:$0xff]
      %v5735 = vld [vmem:[%s6 + $0x60] sm:$0xff]
      %v5736 = vld [vmem:[%s6 + $0x68] sm:$0xff]
      %v5737 = vld [vmem:[%s6 + $0x70] sm:$0xff]
      %v5738 = vld [vmem:[%s6 + $0x78] sm:$0xff]
      %v5739 = vld [vmem:[%s7] sm:$0x1]
      %v5741 = vlaneseq
      %v5742 = vshrl.u32 %v5741, 7
      %v5743 = vsub.s32 0, %v5742
      %v5744 = vrot.slane %v5739, %v5743
      %5746 = vmatprep.subr.mxu0 0.0
      %5747 = vmatpush1.msra.mxu0 %v5723
      %5748 = vmatprep.subr.mxu0 0.0
      %5749 = vmatpush1.msra.mxu0 %v5724
      %5750 = vmatprep.subr.mxu0 0.0
      %5751 = vmatpush1.msra.mxu0 %v5725
      %5752 = vmatprep.subr.mxu0 0.0
      %5753 = vmatpush1.msra.mxu0 %v5726
      %5754 = vmatprep.subr.mxu0 0.0
      %5755 = vmatpush1.msra.mxu0 %v5727
      %5756 = vmatprep.subr.mxu0 0.0
      %5757 = vmatpush1.msra.mxu0 %v5728
      %5758 = vmatprep.subr.mxu0 0.0
      %5759 = vmatpush1.msra.mxu0 %v5729
      %5760 = vmatprep.subr.mxu0 0.0
      %5761 = vmatpush1.msra.mxu0 %v5730
      %5762 = vmatprep.subr.mxu0 0.0
      %5763 = vmatpush1.msra.mxu0 %v5731
      %5764 = vmatprep.subr.mxu0 0.0
      %5765 = vmatpush1.msra.mxu0 %v5732
      %5766 = vmatprep.subr.mxu0 0.0
      %5767 = vmatpush1.msra.mxu0 %v5733
      %5768 = vmatprep.subr.mxu0 0.0
      %5769 = vmatpush1.msra.mxu0 %v5734
      %5770 = vmatprep.subr.mxu0 0.0
      %5771 = vmatpush1.msra.mxu0 %v5735
      %5772 = vmatprep.subr.mxu0 0.0
      %5773 = vmatpush1.msra.mxu0 %v5736
      %5774 = vmatprep.subr.mxu0 0.0
      %5775 = vmatpush1.msra.mxu0 %v5737
      %5776 = vmatprep.subr.mxu0 0.0
      %5777 = vmatpush1.msra.mxu0 %v5738
      %5778 = vmatprep.subr.mxu0 0.0
      %5779 = vmatpush1.msra.mxu0 0.0
      %5780 = vmatprep.subr.mxu0 0.0
      %5781 = vmatpush1.msra.mxu0 0.0
      %5782 = vmatprep.subr.mxu0 0.0
      %5783 = vmatpush1.msra.mxu0 0.0
      %5784 = vmatprep.subr.mxu0 0.0
      %5785 = vmatpush1.msra.mxu0 0.0
      %5786 = vmatprep.subr.mxu0 0.0
      %5787 = vmatpush1.msra.mxu0 0.0
      %5788 = vmatprep.subr.mxu0 0.0
      %5789 = vmatpush1.msra.mxu0 0.0
      %5790 = vmatprep.subr.mxu0 0.0
      %5791 = vmatpush1.msra.mxu0 0.0
      %5792 = vmatprep.subr.mxu0 0.0
      %5793 = vmatpush1.msra.mxu0 0.0
      %5794 = vmatprep.subr.mxu0 0.0
      %5795 = vmatpush1.msra.mxu0 0.0
      %5796 = vmatprep.subr.mxu0 0.0
      %5797 = vmatpush1.msra.mxu0 0.0
      %5798 = vmatprep.subr.mxu0 0.0
      %5799 = vmatpush1.msra.mxu0 0.0
      %5800 = vmatprep.subr.mxu0 0.0
      %5801 = vmatpush1.msra.mxu0 0.0
      %5802 = vmatprep.subr.mxu0 0.0
      %5803 = vmatpush1.msra.mxu0 0.0
      %5804 = vmatprep.subr.mxu0 0.0
      %5805 = vmatpush1.msra.mxu0 0.0
      %5806 = vmatprep.subr.mxu0 0.0
      %5807 = vmatpush1.msra.mxu0 0.0
      %5808 = vmatprep.subr.mxu0 0.0
      %5809 = vmatpush1.msra.mxu0 0.0
      %5810 = vmatprep.mubr.f32.mxu0 0.0
      %5811 = vmatmul.mubr.f32.gmra.mrb[0].mxu0 %v360
      %v5812 = vpop.f32.mrb[0].mxu0
      %v5813 = vadd.f32 %v5744, %v5812
      %v5814 = vpop.f32.mrb[0].mxu0
      %5815 = vmatprep.mubr.f32.mxu0 0.0
      %5816 = vmatmul.mubr.f32.gmra.mrb[0].mxu0 %v361
      %v5817 = vpop.f32.mrb[0].mxu0
      %v5818 = vadd.f32 %v5744, %v5817
      %v5819 = vpop.f32.mrb[0].mxu0
      %5820 = vmatprep.mubr.f32.mxu0 0.0
      %5821 = vmatmul.mubr.f32.gmra.mrb[0].mxu0 %v362
      %v5822 = vpop.f32.mrb[0].mxu0
      %v5823 = vadd.f32 %v5744, %v5822
      %v5824 = vpop.f32.mrb[0].mxu0
      %5825 = vmatprep.mubr.f32.mxu0 0.0
      %5826 = vmatmul.mubr.f32.gmra.mrb[0].mxu0 %v363
      %v5827 = vpop.f32.mrb[0].mxu0
      %v5828 = vadd.f32 %v5744, %v5827
      %v5829 = vpop.f32.mrb[0].mxu0
      %5830 = vmatprep.mubr.f32.mxu0 0.0
      %5831 = vmatmul.mubr.f32.gmra.mrb[0].mxu0 %v364
      %v5832 = vpop.f32.mrb[0].mxu0
      %v5833 = vadd.f32 %v5744, %v5832
      %v5834 = vpop.f32.mrb[0].mxu0
      %5835 = vmatprep.mubr.f32.mxu0 0.0
      %5836 = vmatmul.mubr.f32.gmra.mrb[0].mxu0 %v365
      %v5837 = vpop.f32.mrb[0].mxu0
      %v5838 = vadd.f32 %v5744, %v5837
      %v5839 = vpop.f32.mrb[0].mxu0
      %5840 = vmatprep.mubr.f32.mxu0 0.0
      %5841 = vmatmul.mubr.f32.gmra.mrb[0].mxu0 %v366
      %v5842 = vpop.f32.mrb[0].mxu0
      %v5843 = vadd.f32 %v5744, %v5842
      %v5844 = vpop.f32.mrb[0].mxu0
      %5845 = vmatprep.mubr.f32.mxu0 0.0
      %5846 = vmatmul.mubr.f32.gmra.mrb[0].mxu0 %v367
      %v5847 = vpop.f32.mrb[0].mxu0
      %v5848 = vadd.f32 %v5744, %v5847
      %v5849 = vpop.f32.mrb[0].mxu0
      %5850 = vdwg.mxu0
      %v5851 = vmax.f32 %v5813, 0.0
      %v5852 = vmax.f32 %v5818, 0.0
      %v5853 = vmax.f32 %v5823, 0.0
      %v5854 = vmax.f32 %v5828, 0.0
      %v5855 = vmax.f32 %v5833, 0.0
      %v5856 = vmax.f32 %v5838, 0.0
      %v5857 = vmax.f32 %v5843, 0.0
      %v5858 = vmax.f32 %v5848, 0.0
      %v5859 = vmul.f32 %v5851, 0.25
      %v5860 = vmul.f32 %v5852, 0.25
      %v5861 = vmul.f32 %v5853, 0.25
      %v5862 = vmul.f32 %v5854, 0.25
      %v5863 = vmul.f32 %v5855, 0.25
      %v5864 = vmul.f32 %v5856, 0.25
      %v5865 = vmul.f32 %v5857, 0.25
      %v5866 = vmul.f32 %v5851, 0.75
      %v5867 = vmul.f32 %v5852, 0.75
      %v5868 = vmul.f32 %v5853, 0.75
      %v5869 = vmul.f32 %v5854, 0.75
      %v5870 = vmul.f32 %v5855, 0.75
      %v5871 = vmul.f32 %v5856, 0.75
      %v5872 = vmul.f32 %v5857, 0.75
      %v5873 = vmul.f32 %v5858, 0.75
      %v5874 = vadd.f32 %v5859, %v5866
      %v5875 = vadd.f32 %v5859, %v5867
      %v5876 = vadd.f32 %v5860, %v5868
      %v5877 = vadd.f32 %v5861, %v5869
      %v5878 = vadd.f32 %v5862, %v5870
      %v5879 = vadd.f32 %v5863, %v5871
      %v5880 = vadd.f32 %v5864, %v5872
      %v5881 = vadd.f32 %v5865, %v5873
      %v5882 = vmul.f32 %v5858, 0.25
      %v5883 = vadd.f32 %v5866, %v5860
      %v5884 = vadd.f32 %v5867, %v5861
      %v5885 = vadd.f32 %v5868, %v5862
      %v5886 = vadd.f32 %v5869, %v5863
      %v5887 = vadd.f32 %v5870, %v5864
      %v5888 = vadd.f32 %v5871, %v5865
      %v5889 = vadd.f32 %v5872, %v5882
      %v5890 = vadd.f32 %v5873, %v5882
      %v5899 = vrot.slane %v5874, 7
      %v5900 = vrot.slane %v5875, 7
      %v5901 = vrot.slane %v5876, 7
      %v5902 = vrot.slane %v5877, 7
      %v5903 = vrot.slane %v5878, 7
      %v5904 = vrot.slane %v5879, 7
      %v5905 = vrot.slane %v5880, 7
      %v5906 = vrot.slane %v5881, 7
      %v5915 = vsel %vm1675, %v5874, %v5899
      %v5916 = vsel %vm1675, %v5875, %v5900
      %v5917 = vsel %vm1675, %v5876, %v5901
      %v5918 = vsel %vm1675, %v5877, %v5902
      %v5919 = vsel %vm1675, %v5878, %v5903
      %v5920 = vsel %vm1675, %v5879, %v5904
      %v5921 = vsel %vm1675, %v5880, %v5905
      %v5922 = vsel %vm1675, %v5881, %v5906
      %v5923 = vmul.f32 %v5915, 0.25
      %v5924 = vmul.f32 %v5916, 0.25
      %v5925 = vmul.f32 %v5917, 0.25
      %v5926 = vmul.f32 %v5918, 0.25
      %v5927 = vmul.f32 %v5919, 0.25
      %v5928 = vmul.f32 %v5920, 0.25
      %v5929 = vmul.f32 %v5921, 0.25
      %v5930 = vmul.f32 %v5922, 0.25
      %v5931 = vmul.f32 %v5874, 0.75
      %v5932 = vmul.f32 %v5875, 0.75
      %v5933 = vmul.f32 %v5876, 0.75
      %v5934 = vmul.f32 %v5877, 0.75
      %v5935 = vmul.f32 %v5878, 0.75
      %v5936 = vmul.f32 %v5879, 0.75
      %v5937 = vmul.f32 %v5880, 0.75
      %v5938 = vmul.f32 %v5881, 0.75
      %v5939 = vadd.f32 %v5923, %v5931
      %v5940 = vadd.f32 %v5924, %v5932
      %v5941 = vadd.f32 %v5925, %v5933
      %v5942 = vadd.f32 %v5926, %v5934
      %v5943 = vadd.f32 %v5927, %v5935
      %v5944 = vadd.f32 %v5928, %v5936
      %v5945 = vadd.f32 %v5929, %v5937
      %v5946 = vadd.f32 %v5930, %v5938
      %v5947 = vrot.slane %v5874, 1
      %v5948 = vrot.slane %v5875, 1
      %v5949 = vrot.slane %v5876, 1
      %v5950 = vrot.slane %v5877, 1
      %v5951 = vrot.slane %v5878, 1
      %v5952 = vrot.slane %v5879, 1
      %v5953 = vrot.slane %v5880, 1
      %v5954 = vrot.slane %v5881, 1
      %v5963 = vsel %vm393, %v5947, %v5874
      %v5964 = vsel %vm393, %v5948, %v5875
      %v5965 = vsel %vm393, %v5949, %v5876
      %v5966 = vsel %vm393, %v5950, %v5877
      %v5967 = vsel %vm393, %v5951, %v5878
      %v5968 = vsel %vm393, %v5952, %v5879
      %v5969 = vsel %vm393, %v5953, %v5880
      %v5970 = vsel %vm393, %v5954, %v5881
      %v5971 = vmul.f32 %v5963, 0.25
      %v5972 = vmul.f32 %v5964, 0.25
      %v5973 = vmul.f32 %v5965, 0.25
      %v5974 = vmul.f32 %v5966, 0.25
      %v5975 = vmul.f32 %v5967, 0.25
      %v5976 = vmul.f32 %v5968, 0.25
      %v5977 = vmul.f32 %v5969, 0.25
      %v5978 = vmul.f32 %v5970, 0.25
      %v5979 = vadd.f32 %v5931, %v5971
      %v5980 = vadd.f32 %v5932, %v5972
      %v5981 = vadd.f32 %v5933, %v5973
      %v5982 = vadd.f32 %v5934, %v5974
      %v5983 = vadd.f32 %v5935, %v5975
      %v5984 = vadd.f32 %v5936, %v5976
      %v5985 = vadd.f32 %v5937, %v5977
      %v5986 = vadd.f32 %v5938, %v5978
      %v5987 = vadd.f32 %v5667, %v5939
      %v5988 = vadd.f32 %v5668, %v5940
      %v5989 = vadd.f32 %v5669, %v5941
      %v5990 = vadd.f32 %v5670, %v5942
      %v5991 = vadd.f32 %v5671, %v5943
      %v5992 = vadd.f32 %v5672, %v5944
      %v5993 = vadd.f32 %v5673, %v5945
      %v5994 = vadd.f32 %v5674, %v5946
      %v5995 = vadd.f32 %v5683, %v5979
      %v5996 = vadd.f32 %v5684, %v5980
      %v5997 = vadd.f32 %v5685, %v5981
      %v5998 = vadd.f32 %v5686, %v5982
      %v5999 = vadd.f32 %v5687, %v5983
      %v6000 = vadd.f32 %v5688, %v5984
      %v6001 = vadd.f32 %v5689, %v5985
      %v6002 = vadd.f32 %v5690, %v5986
      %6011 = vrot.lane.b32.xlu0 %v5995, 64
      %v6012 = vpop.permute.xlu0 %6011
      %6013 = vrot.lane.b32.xlu0 %v5996, 64
      %v6014 = vpop.permute.xlu0 %6013
      %6015 = vrot.lane.b32.xlu0 %v5997, 64
      %v6016 = vpop.permute.xlu0 %6015
      %6017 = vrot.lane.b32.xlu0 %v5998, 64
      %v6018 = vpop.permute.xlu0 %6017
      %6019 = vrot.lane.b32.xlu0 %v5999, 64
      %v6020 = vpop.permute.xlu0 %6019
      %6021 = vrot.lane.b32.xlu0 %v6000, 64
      %v6022 = vpop.permute.xlu0 %6021
      %6023 = vrot.lane.b32.xlu0 %v6001, 64
      %v6024 = vpop.permute.xlu0 %6023
      %6025 = vrot.lane.b32.xlu0 %v6002, 64
      %v6026 = vpop.permute.xlu0 %6025
      %v6035 = vsel %vm1170, %v5987, %v6012
      %v6036 = vsel %vm1170, %v5988, %v6014
      %v6037 = vsel %vm1170, %v5989, %v6016
      %v6038 = vsel %vm1170, %v5990, %v6018
      %v6039 = vsel %vm1170, %v5991, %v6020
      %v6040 = vsel %vm1170, %v5992, %v6022
      %v6041 = vsel %vm1170, %v5993, %v6024
      %v6042 = vsel %vm1170, %v5994, %v6026
      %6043 = vst [vmem:[%s359] sm:$0xff] %v6035
      %6044 = vst [vmem:[%s359 + $0x10] sm:$0xff] %v6036
      %6045 = vst [vmem:[%s359 + $0x20] sm:$0xff] %v6037
      %6046 = vst [vmem:[%s359 + $0x30] sm:$0xff] %v6038
      %6047 = vst [vmem:[%s359 + $0x40] sm:$0xff] %v6039
      %6048 = vst [vmem:[%s359 + $0x50] sm:$0xff] %v6040
      %6049 = vst [vmem:[%s359 + $0x60] sm:$0xff] %v6041
      %6050 = vst [vmem:[%s359 + $0x70] sm:$0xff] %v6042
      %v6059 = vrot.slane %v5883, 7
      %v6060 = vrot.slane %v5884, 7
      %v6061 = vrot.slane %v5885, 7
      %v6062 = vrot.slane %v5886, 7
      %v6063 = vrot.slane %v5887, 7
      %v6064 = vrot.slane %v5888, 7
      %v6065 = vrot.slane %v5889, 7
      %v6066 = vrot.slane %v5890, 7
      %v6075 = vsel %vm1675, %v5883, %v6059
      %v6076 = vsel %vm1675, %v5884, %v6060
      %v6077 = vsel %vm1675, %v5885, %v6061
      %v6078 = vsel %vm1675, %v5886, %v6062
      %v6079 = vsel %vm1675, %v5887, %v6063
      %v6080 = vsel %vm1675, %v5888, %v6064
      %v6081 = vsel %vm1675, %v5889, %v6065
      %v6082 = vsel %vm1675, %v5890, %v6066
      %v6083 = vmul.f32 %v6075, 0.25
      %v6084 = vmul.f32 %v6076, 0.25
      %v6085 = vmul.f32 %v6077, 0.25
      %v6086 = vmul.f32 %v6078, 0.25
      %v6087 = vmul.f32 %v6079, 0.25
      %v6088 = vmul.f32 %v6080, 0.25
      %v6089 = vmul.f32 %v6081, 0.25
      %v6090 = vmul.f32 %v6082, 0.25
      %v6091 = vmul.f32 %v5883, 0.75
      %v6092 = vmul.f32 %v5884, 0.75
      %v6093 = vmul.f32 %v5885, 0.75
      %v6094 = vmul.f32 %v5886, 0.75
      %v6095 = vmul.f32 %v5887, 0.75
      %v6096 = vmul.f32 %v5888, 0.75
      %v6097 = vmul.f32 %v5889, 0.75
      %v6098 = vmul.f32 %v5890, 0.75
      %v6099 = vadd.f32 %v6083, %v6091
      %v6100 = vadd.f32 %v6084, %v6092
      %v6101 = vadd.f32 %v6085, %v6093
      %v6102 = vadd.f32 %v6086, %v6094
      %v6103 = vadd.f32 %v6087, %v6095
      %v6104 = vadd.f32 %v6088, %v6096
      %v6105 = vadd.f32 %v6089, %v6097
      %v6106 = vadd.f32 %v6090, %v6098
      %v6107 = vrot.slane %v5883, 1
      %v6108 = vrot.slane %v5884, 1
      %v6109 = vrot.slane %v5885, 1
      %v6110 = vrot.slane %v5886, 1
      %v6111 = vrot.slane %v5887, 1
      %v6112 = vrot.slane %v5888, 1
      %v6113 = vrot.slane %v5889, 1
      %v6114 = vrot.slane %v5890, 1
      %v6123 = vsel %vm393, %v6107, %v5883
      %v6124 = vsel %vm393, %v6108, %v5884
      %v6125 = vsel %vm393, %v6109, %v5885
      %v6126 = vsel %vm393, %v6110, %v5886
      %v6127 = vsel %vm393, %v6111, %v5887
      %v6128 = vsel %vm393, %v6112, %v5888
      %v6129 = vsel %vm393, %v6113, %v5889
      %v6130 = vsel %vm393, %v6114, %v5890
      %v6131 = vmul.f32 %v6123, 0.25
      %v6132 = vmul.f32 %v6124, 0.25
      %v6133 = vmul.f32 %v6125, 0.25
      %v6134 = vmul.f32 %v6126, 0.25
      %v6135 = vmul.f32 %v6127, 0.25
      %v6136 = vmul.f32 %v6128, 0.25
      %v6137 = vmul.f32 %v6129, 0.25
      %v6138 = vmul.f32 %v6130, 0.25
      %v6139 = vadd.f32 %v6091, %v6131
      %v6140 = vadd.f32 %v6092, %v6132
      %v6141 = vadd.f32 %v6093, %v6133
      %v6142 = vadd.f32 %v6094, %v6134
      %v6143 = vadd.f32 %v6095, %v6135
      %v6144 = vadd.f32 %v6096, %v6136
      %v6145 = vadd.f32 %v6097, %v6137
      %v6146 = vadd.f32 %v6098, %v6138
      %v6147 = vadd.f32 %v5699, %v6099
      %v6148 = vadd.f32 %v5700, %v6100
      %v6149 = vadd.f32 %v5701, %v6101
      %v6150 = vadd.f32 %v5702, %v6102
      %v6151 = vadd.f32 %v5703, %v6103
      %v6152 = vadd.f32 %v5704, %v6104
      %v6153 = vadd.f32 %v5705, %v6105
      %v6154 = vadd.f32 %v5706, %v6106
      %v6155 = vadd.f32 %v5715, %v6139
      %v6156 = vadd.f32 %v5716, %v6140
      %v6157 = vadd.f32 %v5717, %v6141
      %v6158 = vadd.f32 %v5718, %v6142
      %v6159 = vadd.f32 %v5719, %v6143
      %v6160 = vadd.f32 %v5720, %v6144
      %v6161 = vadd.f32 %v5721, %v6145
      %v6162 = vadd.f32 %v5722, %v6146
      %6171 = vrot.lane.b32.xlu0 %v6155, 64
      %v6172 = vpop.permute.xlu0 %6171
      %6173 = vrot.lane.b32.xlu0 %v6156, 64
      %v6174 = vpop.permute.xlu0 %6173
      %6175 = vrot.lane.b32.xlu0 %v6157, 64
      %v6176 = vpop.permute.xlu0 %6175
      %6177 = vrot.lane.b32.xlu0 %v6158, 64
      %v6178 = vpop.permute.xlu0 %6177
      %6179 = vrot.lane.b32.xlu0 %v6159, 64
      %v6180 = vpop.permute.xlu0 %6179
      %6181 = vrot.lane.b32.xlu0 %v6160, 64
      %v6182 = vpop.permute.xlu0 %6181
      %6183 = vrot.lane.b32.xlu0 %v6161, 64
      %v6184 = vpop.permute.xlu0 %6183
      %6185 = vrot.lane.b32.xlu0 %v6162, 64
      %v6186 = vpop.permute.xlu0 %6185
      %v6195 = vsel %vm1170, %v6147, %v6172
      %v6196 = vsel %vm1170, %v6148, %v6174
      %v6197 = vsel %vm1170, %v6149, %v6176
      %v6198 = vsel %vm1170, %v6150, %v6178
      %v6199 = vsel %vm1170, %v6151, %v6180
      %v6200 = vsel %vm1170, %v6152, %v6182
      %v6201 = vsel %vm1170, %v6153, %v6184
      %v6202 = vsel %vm1170, %v6154, %v6186
      %s6203 = scalar_lea.vmem %s359, 8
      %6204 = vst [vmem:[%s6203] sm:$0xff] %v6195
      %6205 = vst [vmem:[%s6203 + $0x10] sm:$0xff] %v6196
      %6206 = vst [vmem:[%s6203 + $0x20] sm:$0xff] %v6197
      %6207 = vst [vmem:[%s6203 + $0x30] sm:$0xff] %v6198
      %6208 = vst [vmem:[%s6203 + $0x40] sm:$0xff] %v6199
      %6209 = vst [vmem:[%s6203 + $0x50] sm:$0xff] %v6200
      %6210 = vst [vmem:[%s6203 + $0x60] sm:$0xff] %v6201
      %6211 = vst [vmem:[%s6203 + $0x70] sm:$0xff] %v6202
      %p6212 = scmp.lt.s32.totalorder %s21, 1
      %s6213 = scalar_select %p6212, %s21, 1
      %s6214 = smul.addr %s6213, 16
      %s6215 = smul.addr %s6214, 8
      %s6216 = scalar_lea.vmem %s10, %s6215
      // Predicated region
      $region61: #{upsampler_block_fwd.1} parent=59 // pred_check
        %p6217 = pneg %p254
      $region62: #{upsampler_block_fwd.1} parent=59 // pred_check_branch
        %6219 = sbr.rel (%p6217) target = $region64
      $region63: #{upsampler_block_fwd.1} parent=59 // pred_region
        _
      $region64: #{upsampler_block_fwd.1} parent=59 // pred_fallthru
        _
    $region60: #{upsampler_block_fwd.1} parent=5 // pred_fallthru
      _
    %p6220 = scmp.le.s32.totalorder 2, %s16
    // Predicated region
    $region65: #{upsampler_block_fwd.1} parent=5 // pred_check
      %p6221 = pneg %p6220
    $region66: #{upsampler_block_fwd.1} parent=5 // pred_check_branch
      %6223 = sbr.rel (%p6221) target = $region68
    $region67: #{upsampler_block_fwd.1} parent=5 // pred_region
      %s6224 = ssub.s32 %s16, 2
      // Predicated region
      $region69: #{upsampler_block_fwd.1} parent=67 // pred_check
        %p6225 = pneg %p260
      $region70: #{upsampler_block_fwd.1} parent=67 // pred_check_branch
        %6227 = sbr.rel (%p6225) target = $region72
      $region71: #{upsampler_block_fwd.1} parent=67 // pred_region
        %p6228 = scmp.lt.s32.totalorder %s22, 1
        %s6229 = scalar_select %p6228, %s22, 1
        %s6230 = smul.addr %s6229, 16
        %s6231 = smul.addr %s6230, 8
        %s6232 = scalar_lea.vmem %s10, %s6231
      $region72: #{upsampler_block_fwd.1} parent=67 // pred_fallthru
        _
    $region68: #{upsampler_block_fwd.1} parent=5 // pred_fallthru
      _
  $region6: #{upsampler_block_fwd.1} parent=0 // loop_footer
    %s20 = sadd.s32 1, %s16
  $region7: #{upsampler_block_fwd.1} parent=0 // loop_footer_branch
    %15 = sbr.rel target = $region3
  $region8: #{upsampler_block_fwd.1} parent=0 // loop_exit
    _

</llo_original>
